<compile_context>
chip_gen: v7x
topology: tpu7x:2x2x1
jax: 0.10.0
libtpu: 0.0.40
codegen_flags: <defaults>
</compile_context>

<pallas_src>
import math
import numpy as np
import jax
import jax.numpy as jnp
from jax import lax
from jax.experimental import pallas as pl
from jax.experimental.pallas import tpu as pltpu

WINDOW_SIZE = 11
SIGMA = 1.5
C1 = 0.01 ** 2
C2 = 0.03 ** 2


def _gaussian_1d(window_size=WINDOW_SIZE, sigma=SIGMA):
    # Matches gaussian() from the PyTorch module (deterministic constants).
    g = np.array(
        [math.exp(-((x - window_size // 2) ** 2) / float(2 * sigma ** 2))
         for x in range(window_size)],
        dtype=np.float64,
    )
    return g / g.sum()


_GAUSS_1D = _gaussian_1d()


def _toeplitz(n, window_size=WINDOW_SIZE):
    """Banded (clipped) Gaussian Toeplitz matrix with zero padding folded in.

    T[i, k] = g[k - i + pad] if |k - i| <= pad else 0.  T is symmetric (g is),
    and X @ T applies the 1D Gaussian (conv2d padding=pad semantics) along the
    last axis of X.
    """
    pad = window_size // 2
    t = np.zeros((n, n), dtype=np.float32)
    for i in range(n):
        for k in range(max(0, i - pad), min(n, i + pad + 1)):
            t[i, k] = _GAUSS_1D[k - i + pad]
    return t


def _make_ssim_kernel(G, H, W):
    def kernel(img1_ref, img2_ref, th_ref, tw_ref, out_ref):
        # img refs: (G, H, W); th_ref: (H, H); tw_ref: (W, W); out_ref: (G, 1)
        x1 = img1_ref[...]
        x2 = img2_ref[...]
        th = th_ref[...]
        tw = tw_ref[...]

        # Stack the 5 maps so each Gaussian pass is ONE large MXU matmul.
        maps = jnp.concatenate([x1, x2, x1 * x1, x2 * x2, x1 * x2], axis=0)  # (5G,H,W)
        n = 5 * G

        # Row pass (along W) on the MXU; padding is baked into tw.
        r = jnp.dot(maps.reshape(n * H, W), tw,
                    preferred_element_type=jnp.float32,
                    precision=lax.Precision.HIGHEST).reshape(n, H, W)

        # Column pass (along H): one minor-dim transpose (XLU) so this is again
        # a plain 2D MXU matmul; th is symmetric so th^T == th.
        rt = jnp.swapaxes(r, 1, 2)                                           # (n,W,H)
        y = jnp.dot(rt.reshape(n * W, H), th,
                    preferred_element_type=jnp.float32,
                    precision=lax.Precision.HIGHEST).reshape(n, W, H)

        # Everything stays in the transposed (G, W, H) layout: the remaining
        # math is elementwise and the result is fully reduced per image.
        mu1 = y[0:G]
        mu2 = y[G:2 * G]
        e11 = y[2 * G:3 * G]
        e22 = y[3 * G:4 * G]
        e12 = y[4 * G:5 * G]

        mu1_sq = mu1 * mu1
        mu2_sq = mu2 * mu2
        mu1_mu2 = mu1 * mu2
        sigma1_sq = e11 - mu1_sq
        sigma2_sq = e22 - mu2_sq
        sigma12 = e12 - mu1_mu2

        num = (2.0 * mu1_mu2 + C1) * (2.0 * sigma12 + C2)
        den = (mu1_sq + mu2_sq + C1) * (sigma1_sq + sigma2_sq + C2)
        # Exact reciprocal (approx=True not validated against the 1e-5 tol).
        ssim_map = num * pl.reciprocal(den, approx=False)

        # Per-image partial sums of the SSIM map.
        row_sums = jnp.sum(ssim_map, axis=2)                      # (G, W)
        out_ref[...] = jnp.sum(row_sums, axis=1, keepdims=True)   # (G, 1)

    return kernel


def _vmem_budget():
    """Generation-aware VMEM limit + per-group working-set budget (bytes)."""
    try:
        info = pltpu.get_tpu_info()
        cap = int(getattr(info, "vmem_capacity_bytes", 64 * 1024 * 1024))
    except Exception:  # pragma: no cover - conservative fallback
        cap = 64 * 1024 * 1024
    # v5e/v6e (128 MiB): 96 MiB limit / 64 MiB budget.  v7x (64 MiB): 48 / 32.
    limit = min((cap * 3) // 4, 96 * 1024 * 1024)
    budget = (limit * 2) // 3
    return limit, budget


def _pick_group_size(BC, H, W, budget):
    # Rough peak live-f32 footprint per image: double-buffered inputs (4) plus
    # ~2 live 5-map stacks at any program point (10) plus elementwise temps.
    per_img_bytes = 4 * H * W * 20
    fixed_bytes = 8 * (H * H + W * W)          # double-buffered Toeplitz matrices
    g = max(1, (budget - fixed_bytes) // max(per_img_bytes, 1))
    # Keep >= 2 grid steps when there is enough work, so ("parallel",) has
    # something to shard across the two v7x TensorCores.
    if BC > 8 and g >= BC:
        g = (BC + 1) // 2
    g = min(g, BC)
    # Multiple of 8 keeps the (G, 1) output block sublane-aligned.
    g = max(8, ((g + 7) // 8) * 8)
    return int(g)


def ssim_pallas(img1, img2, window_size=WINDOW_SIZE, size_average=True):
    """SSIM forward, semantics of SSIM.forward(img1, img2) in the PyTorch module."""
    B, C, H, W = img1.shape
    BC = B * C

    vmem_limit, budget = _vmem_budget()
    G = _pick_group_size(BC, H, W, budget)
    num_groups = -(-BC // G)
    BC_pad = num_groups * G

    # No spatial padding: conv padding is folded into the Toeplitz matrices.
    x1 = img1.astype(jnp.float32).reshape(BC, H, W)
    x2 = img2.astype(jnp.float32).reshape(BC, H, W)
    if BC_pad != BC:
        # Phantom images only fill the last group; their rows are sliced away.
        x1 = jnp.pad(x1, ((0, BC_pad - BC), (0, 0), (0, 0)))
        x2 = jnp.pad(x2, ((0, BC_pad - BC), (0, 0), (0, 0)))

    th = jnp.asarray(_toeplitz(H, window_size), jnp.float32)
    tw = jnp.asarray(_toeplitz(W, window_size), jnp.float32)

    kernel = _make_ssim_kernel(G, H, W)

    partial_sums = pl.pallas_call(
        kernel,
        out_shape=jax.ShapeDtypeStruct((BC_pad, 1), jnp.float32),
        grid_spec=pltpu.PrefetchScalarGridSpec(
            num_scalar_prefetch=0,
            grid=(num_groups,),
            in_specs=[
                pl.BlockSpec((G, H, W), lambda i: (i, 0, 0)),
                pl.BlockSpec((G, H, W), lambda i: (i, 0, 0)),
                pl.BlockSpec((H, H), lambda i: (0, 0)),   # Th (resident; index fixed)
                pl.BlockSpec((W, W), lambda i: (0, 0)),   # Tw
            ],
            out_specs=pl.BlockSpec((G, 1), lambda i: (i, 0)),
        ),
        compiler_params=pltpu.CompilerParams(
            dimension_semantics=("parallel",),
            vmem_limit_bytes=int(vmem_limit),
        ),
    )(x1, x2, th, tw)

    partial_sums = partial_sums[:BC, 0]

    if size_average:
        # ssim_map.mean() over all of (B, C, H, W)
        return jnp.sum(partial_sums) / (B * C * H * W)
    # ssim_map.mean(1).mean(1).mean(1): per-batch mean over (C, H, W)
    return jnp.sum(partial_sums.reshape(B, C), axis=1) / (C * H * W)


def _ssim_reference(img1, img2, window_size=WINDOW_SIZE, size_average=True):
    """Pure-JAX reference mirroring the PyTorch _ssim()."""
    B, C, H, W = img1.shape
    pad = window_size // 2
    w2d = jnp.asarray(np.outer(_GAUSS_1D, _GAUSS_1D), jnp.float32)
    w = jnp.broadcast_to(w2d[None, None], (C, 1, window_size, window_size))

    def conv(x):
        return lax.conv_general_dilated(
            x, w, window_strides=(1, 1), padding=[(pad, pad), (pad, pad)],
            dimension_numbers=("NCHW", "OIHW", "NCHW"),
            feature_group_count=C, precision=lax.Precision.HIGHEST)

    mu1 = conv(img1)
    mu2 = conv(img2)
    mu1_sq, mu2_sq, mu1_mu2 = mu1 * mu1, mu2 * mu2, mu1 * mu2
    sigma1_sq = conv(img1 * img1) - mu1_sq
    sigma2_sq = conv(img2 * img2) - mu2_sq
    sigma12 = conv(img1 * img2) - mu1_mu2
    ssim_map = ((2 * mu1_mu2 + C1) * (2 * sigma12 + C2)
                / ((mu1_sq + mu2_sq + C1) * (sigma1_sq + sigma2_sq + C2)))
    if size_average:
        return ssim_map.mean()
    return ssim_map.mean(axis=(1, 2, 3))


if __name__ == "__main__":
    key = jax.random.PRNGKey(0)
    k1, k2 = jax.random.split(key)
    B, C, H, W = 2, 3, 16, 16
    img1 = jax.random.uniform(k1, (B, C, H, W), dtype=jnp.float32)
    img2 = jax.random.uniform(k2, (B, C, H, W), dtype=jnp.float32)

    out = jax.block_until_ready(ssim_pallas(img1, img2))
    ref = _ssim_reference(img1, img2)
    np.testing.assert_allclose(np.asarray(out), np.asarray(ref),
                               rtol=1e-5, atol=1e-5)
    print("KERNEL_OK")
</pallas_src>

<mosaic_0001>
module attributes {stable_mosaic.version = 11 : i64} {
  func.func @kernel(%arg0: i32, %arg1: memref<8x16x16xf32, #tpu.memory_space<vmem>>, %arg2: memref<8x16x16xf32, #tpu.memory_space<vmem>>, %arg3: memref<16x16xf32, #tpu.memory_space<vmem>>, %arg4: memref<16x16xf32, #tpu.memory_space<vmem>>, %arg5: memref<8x1xf32, #tpu.memory_space<vmem>>) attributes {dimension_semantics = [#tpu.dimension_semantics<parallel>], iteration_bounds = array<i64: 1>, scalar_prefetch = 0 : i64, scratch_operands = 0 : i64, tpu.core_type = #tpu.core_type<tc>, window_params = [{transform_indices = @transform_0, window_bounds = array<i64: 8, 16, 16>}, {transform_indices = @transform_1, window_bounds = array<i64: 8, 16, 16>}, {pipeline_mode = #tpu.pipeline_mode<synchronous>, transform_indices = @transform_2, window_bounds = array<i64: 16, 16>}, {pipeline_mode = #tpu.pipeline_mode<synchronous>, transform_indices = @transform_3, window_bounds = array<i64: 16, 16>}, {transform_indices = @transform_4, window_bounds = array<i64: 8, 1>}]} {
    %c0 = arith.constant 0 : index
    %c0_0 = arith.constant 0 : index
    %c0_1 = arith.constant 0 : index
    %0 = vector.load %arg1[%c0, %c0_0, %c0_1] : memref<8x16x16xf32, #tpu.memory_space<vmem>>, vector<8x16x16xf32>
    %c0_2 = arith.constant 0 : index
    %c0_3 = arith.constant 0 : index
    %c0_4 = arith.constant 0 : index
    %1 = vector.load %arg2[%c0_2, %c0_3, %c0_4] : memref<8x16x16xf32, #tpu.memory_space<vmem>>, vector<8x16x16xf32>
    %c0_5 = arith.constant 0 : index
    %c0_6 = arith.constant 0 : index
    %2 = vector.load %arg3[%c0_5, %c0_6] : memref<16x16xf32, #tpu.memory_space<vmem>>, vector<16x16xf32>
    %c0_7 = arith.constant 0 : index
    %c0_8 = arith.constant 0 : index
    %3 = vector.load %arg4[%c0_7, %c0_8] : memref<16x16xf32, #tpu.memory_space<vmem>>, vector<16x16xf32>
    %4 = arith.mulf %0, %0 : vector<8x16x16xf32>
    %5 = arith.mulf %1, %1 : vector<8x16x16xf32>
    %6 = arith.mulf %0, %1 : vector<8x16x16xf32>
    %7 = tpu.concatenate %0, %1, %4, %5, %6 in 0 : vector<8x16x16xf32>, vector<8x16x16xf32>, vector<8x16x16xf32>, vector<8x16x16xf32>, vector<8x16x16xf32> -> vector<40x16x16xf32>
    %8 = vector.shape_cast %7 : vector<40x16x16xf32> to vector<640x16xf32>
    %cst = arith.constant dense<0.000000e+00> : vector<640x16xf32>
    %9 = tpu.matmul %8, %3, %cst {dimension_numbers = #tpu.dot_dimension_numbers<[1], [0], [0], [1], [0, 0, 1, 1], [], []>, precision = #tpu.contract_precision<fp32>} : vector<640x16xf32>, vector<16x16xf32>, vector<640x16xf32> -> vector<640x16xf32>
    %10 = vector.shape_cast %9 : vector<640x16xf32> to vector<40x16x16xf32>
    %11 = tpu.transpose %10, [0, 2, 1] : vector<40x16x16xf32> -> vector<40x16x16xf32>
    %12 = vector.shape_cast %11 : vector<40x16x16xf32> to vector<640x16xf32>
    %cst_9 = arith.constant dense<0.000000e+00> : vector<640x16xf32>
    %13 = tpu.matmul %12, %2, %cst_9 {dimension_numbers = #tpu.dot_dimension_numbers<[1], [0], [0], [1], [0, 0, 1, 1], [], []>, precision = #tpu.contract_precision<fp32>} : vector<640x16xf32>, vector<16x16xf32>, vector<640x16xf32> -> vector<640x16xf32>
    %14 = vector.shape_cast %13 : vector<640x16xf32> to vector<40x16x16xf32>
    %15 = vector.extract_strided_slice %14 {offsets = [0, 0, 0], sizes = [8, 16, 16], strides = [1, 1, 1]} : vector<40x16x16xf32> to vector<8x16x16xf32>
    %16 = vector.extract_strided_slice %14 {offsets = [8, 0, 0], sizes = [8, 16, 16], strides = [1, 1, 1]} : vector<40x16x16xf32> to vector<8x16x16xf32>
    %17 = vector.extract_strided_slice %14 {offsets = [16, 0, 0], sizes = [8, 16, 16], strides = [1, 1, 1]} : vector<40x16x16xf32> to vector<8x16x16xf32>
    %18 = vector.extract_strided_slice %14 {offsets = [24, 0, 0], sizes = [8, 16, 16], strides = [1, 1, 1]} : vector<40x16x16xf32> to vector<8x16x16xf32>
    %19 = vector.extract_strided_slice %14 {offsets = [32, 0, 0], sizes = [8, 16, 16], strides = [1, 1, 1]} : vector<40x16x16xf32> to vector<8x16x16xf32>
    %20 = arith.mulf %15, %15 : vector<8x16x16xf32>
    %21 = arith.mulf %16, %16 : vector<8x16x16xf32>
    %22 = arith.mulf %15, %16 : vector<8x16x16xf32>
    %23 = arith.subf %17, %20 : vector<8x16x16xf32>
    %24 = arith.subf %18, %21 : vector<8x16x16xf32>
    %25 = arith.subf %19, %22 : vector<8x16x16xf32>
    %cst_10 = arith.constant 2.000000e+00 : f32
    %26 = vector.broadcast %cst_10 : f32 to vector<8x16x16xf32>
    %27 = arith.mulf %26, %22 : vector<8x16x16xf32>
    %cst_11 = arith.constant 9.99999974E-5 : f32
    %28 = vector.broadcast %cst_11 : f32 to vector<8x16x16xf32>
    %29 = arith.addf %27, %28 : vector<8x16x16xf32>
    %cst_12 = arith.constant 2.000000e+00 : f32
    %30 = vector.broadcast %cst_12 : f32 to vector<8x16x16xf32>
    %31 = arith.mulf %30, %25 : vector<8x16x16xf32>
    %cst_13 = arith.constant 8.99999984E-4 : f32
    %32 = vector.broadcast %cst_13 : f32 to vector<8x16x16xf32>
    %33 = arith.addf %31, %32 : vector<8x16x16xf32>
    %34 = arith.mulf %29, %33 : vector<8x16x16xf32>
    %35 = arith.addf %20, %21 : vector<8x16x16xf32>
    %cst_14 = arith.constant 9.99999974E-5 : f32
    %36 = vector.broadcast %cst_14 : f32 to vector<8x16x16xf32>
    %37 = arith.addf %35, %36 : vector<8x16x16xf32>
    %38 = arith.addf %23, %24 : vector<8x16x16xf32>
    %cst_15 = arith.constant 8.99999984E-4 : f32
    %39 = vector.broadcast %cst_15 : f32 to vector<8x16x16xf32>
    %40 = arith.addf %38, %39 : vector<8x16x16xf32>
    %41 = arith.mulf %37, %40 : vector<8x16x16xf32>
    %42 = tpu.reciprocal %41 : vector<8x16x16xf32> -> vector<8x16x16xf32>
    %43 = arith.mulf %34, %42 : vector<8x16x16xf32>
    %cst_16 = arith.constant dense<0.000000e+00> : vector<8x16xf32>
    %44 = vector.multi_reduction <add>, %43, %cst_16 [2] : vector<8x16x16xf32> to vector<8x16xf32>
    %cst_17 = arith.constant dense<0.000000e+00> : vector<8xf32>
    %45 = vector.multi_reduction <add>, %44, %cst_17 [1] : vector<8x16xf32> to vector<8xf32>
    %46 = vector.shape_cast %45 : vector<8xf32> to vector<8x1xf32>
    %c0_18 = arith.constant 0 : index
    %c0_19 = arith.constant 0 : index
    %47 = vector.load %arg5[%c0_18, %c0_19] : memref<8x1xf32, #tpu.memory_space<vmem>>, vector<8x1xf32>
    tpu.vector_store %arg5[%c0_18, %c0_19], %46 {strides = array<i32>} : memref<8x1xf32, #tpu.memory_space<vmem>>, vector<8x1xf32>,
    return
  }
  func.func @transform_0(%arg0: i32) -> (i32, i32, i32) {
    %c0_i32 = arith.constant 0 : i32
    %c0_i32_0 = arith.constant 0 : i32
    %c0_i32_1 = arith.constant 0 : i32
    return %arg0, %c0_i32, %c0_i32_0 : i32, i32, i32
  }
  func.func @transform_1(%arg0: i32) -> (i32, i32, i32) {
    %c0_i32 = arith.constant 0 : i32
    %c0_i32_0 = arith.constant 0 : i32
    %c0_i32_1 = arith.constant 0 : i32
    return %arg0, %c0_i32, %c0_i32_0 : i32, i32, i32
  }
  func.func @transform_2(%arg0: i32) -> (i32, i32) {
    %c0_i32 = arith.constant 0 : i32
    %c0_i32_0 = arith.constant 0 : i32
    %c0_i32_1 = arith.constant 0 : i32
    return %c0_i32, %c0_i32_0 : i32, i32
  }
  func.func @transform_3(%arg0: i32) -> (i32, i32) {
    %c0_i32 = arith.constant 0 : i32
    %c0_i32_0 = arith.constant 0 : i32
    %c0_i32_1 = arith.constant 0 : i32
    return %c0_i32, %c0_i32_0 : i32, i32
  }
  func.func @transform_4(%arg0: i32) -> (i32, i32) {
    %c0_i32 = arith.constant 0 : i32
    %c0_i32_0 = arith.constant 0 : i32
    return %arg0, %c0_i32 : i32, i32
  }
}

</mosaic_0001>

<llo_original>
// kernel: tpu_custom_call.1
$region0: #{tpu_custom_call.1}
  #allocation0 [shape = 'u32[]', space=smem, size = 0x4, offset = 0x4, fixed_abs, tag = 'smem constant byte address 0x4 - core index']
  #allocation1 [shape = 'u32[144,128]{1,0:T(1,128)}', space=vmem, size = 0x12000, scoped, tag = 'internal scratch']
  %s0 = inlined_call_operand.hbm [shape: f32[8,16,16], index: 0, kind: input, shape index: {}]
  %s1 = inlined_call_operand.hbm [shape: f32[8,16,16], index: 1, kind: input, shape index: {}]
  %s2 = inlined_call_operand.hbm [shape: f32[16,16], index: 2, kind: input, shape index: {}]
  %s3 = inlined_call_operand.hbm [shape: f32[16,16], index: 3, kind: input, shape index: {}]
  %s4 = inlined_call_operand.vmem [shape: f32[8,1], index: 4, kind: output, shape index: {}]
  %s5 = sld [smem:[#allocation0]]
  $region42: #{tpu_custom_call.1} parent=0
    _
  %s7 = ssub.s32 1, %s5
  %s8 = scalar_select 0, %s7, %s5
  $region1: #{tpu_custom_call.1} parent=0
    #allocation2 [shape = 'u8[65536]{0}', space=vmem, size = 0x10000, scoped, tag = 'input window, operand 0, single buffered']
    #allocation3 [shape = 's32[1]{0}', space=sflag, size = 0x4, scoped, tag = 'scoped memory for tpu_custom_call.1']
    #allocation4 [shape = 'u8[65536]{0}', space=vmem, size = 0x10000, scoped, tag = 'input window, operand 1, single buffered']
    #allocation5 [shape = 's32[1]{0}', space=sflag, size = 0x4, scoped, tag = 'scoped memory for tpu_custom_call.1']
    #allocation6 [shape = 'u8[8192]{0}', space=vmem, size = 0x2000, scoped, tag = 'input window, operand 2, single buffered']
    #allocation7 [shape = 'u8[8192]{0}', space=vmem, size = 0x2000, scoped, tag = 'input window, operand 3, single buffered']
    #allocation8 [shape = 's32[1]{0}', space=sflag, size = 0x4, scoped, tag = 'scoped memory for tpu_custom_call.1']
    %9 = vsyncpa [#allocation3], 0
    %10 = vsyncpa [#allocation5], 0
    %11 = vsyncpa [#allocation8], 0
    // Predicated region
    $region2: #{tpu_custom_call.1} parent=1 // pred_check
      _
    $region3: #{tpu_custom_call.1} parent=1 // pred_check_branch
      %13 = sbr.rel (0) target = $region5
    $region4: #{tpu_custom_call.1} parent=1 // pred_region
      %s15 = ssub.s32 2048, 2048
      %16 = vsyncadd [#allocation3], %s15
      %s17 = sshll.u32 [#allocation2], 4
      %s18 = int_to_ptr.vmem [resolvable:$true] %s17
      %23 = dma.hbm_to_vmem [thread:$0]  %s0, 2048, %s18, [#allocation3], 128, 128, 8
    $region5: #{tpu_custom_call.1} parent=1 // pred_fallthru
      _
    // Predicated region
    $region6: #{tpu_custom_call.1} parent=1 // pred_check
      _
    $region7: #{tpu_custom_call.1} parent=1 // pred_check_branch
      %25 = sbr.rel (0) target = $region9
    $region8: #{tpu_custom_call.1} parent=1 // pred_region
      %s27 = ssub.s32 2048, 2048
      %28 = vsyncadd [#allocation5], %s27
      %s29 = sshll.u32 [#allocation4], 4
      %s30 = int_to_ptr.vmem [resolvable:$true] %s29
      %35 = dma.hbm_to_vmem [thread:$0]  %s1, 2048, %s30, [#allocation5], 128, 128, 8
    $region9: #{tpu_custom_call.1} parent=1 // pred_fallthru
      _
    // Predicated region
    $region10: #{tpu_custom_call.1} parent=1 // pred_check
      _
    $region11: #{tpu_custom_call.1} parent=1 // pred_check_branch
      %37 = sbr.rel (0) target = $region13
    $region12: #{tpu_custom_call.1} parent=1 // pred_region
      %s39 = ssub.s32 256, 256
      %40 = vsyncadd [#allocation5], %s39
      %s41 = sshll.u32 [#allocation6], 4
      %s42 = int_to_ptr.vmem [resolvable:$true] %s41
      %47 = dma.hbm_to_vmem [thread:$0]  %s2, 256, %s42, [#allocation5], 128, 128, 8
    $region13: #{tpu_custom_call.1} parent=1 // pred_fallthru
      _
    // Predicated region
    $region14: #{tpu_custom_call.1} parent=1 // pred_check
      _
    $region15: #{tpu_custom_call.1} parent=1 // pred_check_branch
      %49 = sbr.rel (0) target = $region17
    $region16: #{tpu_custom_call.1} parent=1 // pred_region
      %s51 = ssub.s32 256, 256
      %52 = vsyncadd [#allocation8], %s51
      %s53 = sshll.u32 [#allocation7], 4
      %s54 = int_to_ptr.vmem [resolvable:$true] %s53
      %59 = dma.hbm_to_vmem [thread:$0]  %s3, 256, %s54, [#allocation8], 128, 128, 8
    $region17: #{tpu_custom_call.1} parent=1 // pred_fallthru
      _
    // Predicated region
    $region18: #{tpu_custom_call.1} parent=1 // pred_check
      _
    $region19: #{tpu_custom_call.1} parent=1 // pred_check_branch
      %61 = sbr.rel (0) target = $region21
    $region20: #{tpu_custom_call.1} parent=1 // pred_region
      %62 = dma.done [#allocation3], 2048
    $region21: #{tpu_custom_call.1} parent=1 // pred_fallthru
      _
    // Predicated region
    $region22: #{tpu_custom_call.1} parent=1 // pred_check
      _
    $region23: #{tpu_custom_call.1} parent=1 // pred_check_branch
      %64 = sbr.rel (0) target = $region25
    $region24: #{tpu_custom_call.1} parent=1 // pred_region
      %65 = dma.done [#allocation5], 2048
    $region25: #{tpu_custom_call.1} parent=1 // pred_fallthru
      _
    // Predicated region
    $region26: #{tpu_custom_call.1} parent=1 // pred_check
      _
    $region27: #{tpu_custom_call.1} parent=1 // pred_check_branch
      %67 = sbr.rel (0) target = $region29
    $region28: #{tpu_custom_call.1} parent=1 // pred_region
      %68 = dma.done [#allocation5], 256
    $region29: #{tpu_custom_call.1} parent=1 // pred_fallthru
      _
    // Predicated region
    $region30: #{tpu_custom_call.1} parent=1 // pred_check
      _
    $region31: #{tpu_custom_call.1} parent=1 // pred_check_branch
      %70 = sbr.rel (0) target = $region33
    $region32: #{tpu_custom_call.1} parent=1 // pred_region
      %71 = dma.done [#allocation8], 256
    $region33: #{tpu_custom_call.1} parent=1 // pred_fallthru
      _
    %v72 = vld [vmem:[#allocation2] sm:$0xff]
    %v73 = vld [vmem:[#allocation2 + $0x8] sm:$0xff]
    %v74 = vld [vmem:[#allocation2 + $0x10] sm:$0xff]
    %v75 = vld [vmem:[#allocation2 + $0x18] sm:$0xff]
    %v76 = vld [vmem:[#allocation2 + $0x20] sm:$0xff]
    %v77 = vld [vmem:[#allocation2 + $0x28] sm:$0xff]
    %v78 = vld [vmem:[#allocation2 + $0x30] sm:$0xff]
    %v79 = vld [vmem:[#allocation2 + $0x38] sm:$0xff]
    %v80 = vld [vmem:[#allocation2 + $0x40] sm:$0xff]
    %v81 = vld [vmem:[#allocation2 + $0x48] sm:$0xff]
    %v82 = vld [vmem:[#allocation2 + $0x50] sm:$0xff]
    %v83 = vld [vmem:[#allocation2 + $0x58] sm:$0xff]
    %v84 = vld [vmem:[#allocation2 + $0x60] sm:$0xff]
    %v85 = vld [vmem:[#allocation2 + $0x68] sm:$0xff]
    %v86 = vld [vmem:[#allocation2 + $0x70] sm:$0xff]
    %v87 = vld [vmem:[#allocation2 + $0x78] sm:$0xff]
    %v88 = vld [vmem:[#allocation4] sm:$0xff]
    %v89 = vld [vmem:[#allocation4 + $0x8] sm:$0xff]
    %v90 = vld [vmem:[#allocation4 + $0x10] sm:$0xff]
    %v91 = vld [vmem:[#allocation4 + $0x18] sm:$0xff]
    %v92 = vld [vmem:[#allocation4 + $0x20] sm:$0xff]
    %v93 = vld [vmem:[#allocation4 + $0x28] sm:$0xff]
    %v94 = vld [vmem:[#allocation4 + $0x30] sm:$0xff]
    %v95 = vld [vmem:[#allocation4 + $0x38] sm:$0xff]
    %v96 = vld [vmem:[#allocation4 + $0x40] sm:$0xff]
    %v97 = vld [vmem:[#allocation4 + $0x48] sm:$0xff]
    %v98 = vld [vmem:[#allocation4 + $0x50] sm:$0xff]
    %v99 = vld [vmem:[#allocation4 + $0x58] sm:$0xff]
    %v100 = vld [vmem:[#allocation4 + $0x60] sm:$0xff]
    %v101 = vld [vmem:[#allocation4 + $0x68] sm:$0xff]
    %v102 = vld [vmem:[#allocation4 + $0x70] sm:$0xff]
    %v103 = vld [vmem:[#allocation4 + $0x78] sm:$0xff]
    %v104 = vld [vmem:[#allocation6] sm:$0xff]
    %v105 = vld [vmem:[#allocation6 + $0x8] sm:$0xff]
    %v106 = vld [vmem:[#allocation7] sm:$0xff]
    %v107 = vld [vmem:[#allocation7 + $0x8] sm:$0xff]
    %v108 = vmul.f32 %v72, %v72
    %v109 = vmul.f32 %v73, %v73
    %v110 = vmul.f32 %v74, %v74
    %v111 = vmul.f32 %v75, %v75
    %v112 = vmul.f32 %v76, %v76
    %v113 = vmul.f32 %v77, %v77
    %v114 = vmul.f32 %v78, %v78
    %v115 = vmul.f32 %v79, %v79
    %v116 = vmul.f32 %v80, %v80
    %v117 = vmul.f32 %v81, %v81
    %v118 = vmul.f32 %v82, %v82
    %v119 = vmul.f32 %v83, %v83
    %v120 = vmul.f32 %v84, %v84
    %v121 = vmul.f32 %v85, %v85
    %v122 = vmul.f32 %v86, %v86
    %v123 = vmul.f32 %v87, %v87
    %v124 = vmul.f32 %v88, %v88
    %v125 = vmul.f32 %v89, %v89
    %v126 = vmul.f32 %v90, %v90
    %v127 = vmul.f32 %v91, %v91
    %v128 = vmul.f32 %v92, %v92
    %v129 = vmul.f32 %v93, %v93
    %v130 = vmul.f32 %v94, %v94
    %v131 = vmul.f32 %v95, %v95
    %v132 = vmul.f32 %v96, %v96
    %v133 = vmul.f32 %v97, %v97
    %v134 = vmul.f32 %v98, %v98
    %v135 = vmul.f32 %v99, %v99
    %v136 = vmul.f32 %v100, %v100
    %v137 = vmul.f32 %v101, %v101
    %v138 = vmul.f32 %v102, %v102
    %v139 = vmul.f32 %v103, %v103
    %v140 = vmul.f32 %v72, %v88
    %v141 = vmul.f32 %v73, %v89
    %v142 = vmul.f32 %v74, %v90
    %v143 = vmul.f32 %v75, %v91
    %v144 = vmul.f32 %v76, %v92
    %v145 = vmul.f32 %v77, %v93
    %v146 = vmul.f32 %v78, %v94
    %v147 = vmul.f32 %v79, %v95
    %v148 = vmul.f32 %v80, %v96
    %v149 = vmul.f32 %v81, %v97
    %v150 = vmul.f32 %v82, %v98
    %v151 = vmul.f32 %v83, %v99
    %v152 = vmul.f32 %v84, %v100
    %v153 = vmul.f32 %v85, %v101
    %v154 = vmul.f32 %v86, %v102
    %v155 = vmul.f32 %v87, %v103
    %vm156 = vcmask 130048
    %v158 = vsel %vm156, %v72, 0
    %v161 = vsel %vm156, %v73, 0
    %v164 = vsel %vm156, %v74, 0
    %v167 = vsel %vm156, %v75, 0
    %v170 = vsel %vm156, %v76, 0
    %v173 = vsel %vm156, %v77, 0
    %v176 = vsel %vm156, %v78, 0
    %v179 = vsel %vm156, %v79, 0
    %v182 = vsel %vm156, %v80, 0
    %v185 = vsel %vm156, %v81, 0
    %v188 = vsel %vm156, %v82, 0
    %v191 = vsel %vm156, %v83, 0
    %v194 = vsel %vm156, %v84, 0
    %v197 = vsel %vm156, %v85, 0
    %v200 = vsel %vm156, %v86, 0
    %v203 = vsel %vm156, %v87, 0
    %v206 = vsel %vm156, %v88, 0
    %v209 = vsel %vm156, %v89, 0
    %v212 = vsel %vm156, %v90, 0
    %v215 = vsel %vm156, %v91, 0
    %v218 = vsel %vm156, %v92, 0
    %v221 = vsel %vm156, %v93, 0
    %v224 = vsel %vm156, %v94, 0
    %v227 = vsel %vm156, %v95, 0
    %v230 = vsel %vm156, %v96, 0
    %v233 = vsel %vm156, %v97, 0
    %v236 = vsel %vm156, %v98, 0
    %v239 = vsel %vm156, %v99, 0
    %v242 = vsel %vm156, %v100, 0
    %v245 = vsel %vm156, %v101, 0
    %v248 = vsel %vm156, %v102, 0
    %v251 = vsel %vm156, %v103, 0
    %v254 = vsel %vm156, %v108, 0
    %v257 = vsel %vm156, %v109, 0
    %v260 = vsel %vm156, %v110, 0
    %v263 = vsel %vm156, %v111, 0
    %v266 = vsel %vm156, %v112, 0
    %v269 = vsel %vm156, %v113, 0
    %v272 = vsel %vm156, %v114, 0
    %v275 = vsel %vm156, %v115, 0
    %v278 = vsel %vm156, %v116, 0
    %v281 = vsel %vm156, %v117, 0
    %v284 = vsel %vm156, %v118, 0
    %v287 = vsel %vm156, %v119, 0
    %v290 = vsel %vm156, %v120, 0
    %v293 = vsel %vm156, %v121, 0
    %v296 = vsel %vm156, %v122, 0
    %v299 = vsel %vm156, %v123, 0
    %v302 = vsel %vm156, %v124, 0
    %v305 = vsel %vm156, %v125, 0
    %v308 = vsel %vm156, %v126, 0
    %v311 = vsel %vm156, %v127, 0
    %v314 = vsel %vm156, %v128, 0
    %v317 = vsel %vm156, %v129, 0
    %v320 = vsel %vm156, %v130, 0
    %v323 = vsel %vm156, %v131, 0
    %v326 = vsel %vm156, %v132, 0
    %v329 = vsel %vm156, %v133, 0
    %v332 = vsel %vm156, %v134, 0
    %v335 = vsel %vm156, %v135, 0
    %v338 = vsel %vm156, %v136, 0
    %v341 = vsel %vm156, %v137, 0
    %v344 = vsel %vm156, %v138, 0
    %v347 = vsel %vm156, %v139, 0
    %v350 = vsel %vm156, %v140, 0
    %v353 = vsel %vm156, %v141, 0
    %v356 = vsel %vm156, %v142, 0
    %v359 = vsel %vm156, %v143, 0
    %v362 = vsel %vm156, %v144, 0
    %v365 = vsel %vm156, %v145, 0
    %v368 = vsel %vm156, %v146, 0
    %v371 = vsel %vm156, %v147, 0
    %v374 = vsel %vm156, %v148, 0
    %v377 = vsel %vm156, %v149, 0
    %v380 = vsel %vm156, %v150, 0
    %v383 = vsel %vm156, %v151, 0
    %v386 = vsel %vm156, %v152, 0
    %v389 = vsel %vm156, %v153, 0
    %v392 = vsel %vm156, %v154, 0
    %v395 = vsel %vm156, %v155, 0
    %397 = vmatprep.subr.mxu0 0.0
    %v398 = vand.u32 %v106, 4294901760
    %399 = vmatpush1.msra.mxu0 %v398
    %400 = vmatprep.subr.mxu0 0.0
    %v401 = vand.u32 %v107, 4294901760
    %402 = vmatpush1.msra.mxu0 %v401
    %403 = vmatprep.subr.mxu0 0.0
    %404 = vmatpush1.msra.mxu0 0.0
    %405 = vmatprep.subr.mxu0 0.0
    %406 = vmatpush1.msra.mxu0 0.0
    %407 = vmatprep.subr.mxu0 0.0
    %408 = vmatpush1.msra.mxu0 0.0
    %409 = vmatprep.subr.mxu0 0.0
    %410 = vmatpush1.msra.mxu0 0.0
    %411 = vmatprep.subr.mxu0 0.0
    %412 = vmatpush1.msra.mxu0 0.0
    %413 = vmatprep.subr.mxu0 0.0
    %414 = vmatpush1.msra.mxu0 0.0
    %415 = vmatprep.subr.mxu0 0.0
    %416 = vmatpush1.msra.mxu0 0.0
    %417 = vmatprep.subr.mxu0 0.0
    %418 = vmatpush1.msra.mxu0 0.0
    %419 = vmatprep.subr.mxu0 0.0
    %420 = vmatpush1.msra.mxu0 0.0
    %421 = vmatprep.subr.mxu0 0.0
    %422 = vmatpush1.msra.mxu0 0.0
    %423 = vmatprep.subr.mxu0 0.0
    %424 = vmatpush1.msra.mxu0 0.0
    %425 = vmatprep.subr.mxu0 0.0
    %426 = vmatpush1.msra.mxu0 0.0
    %427 = vmatprep.subr.mxu0 0.0
    %428 = vmatpush1.msra.mxu0 0.0
    %429 = vmatprep.subr.mxu0 0.0
    %430 = vmatpush1.msra.mxu0 0.0
    %431 = vmatprep.subr.mxu0 0.0
    %432 = vmatpush1.msra.mxu0 0.0
    %433 = vmatprep.subr.mxu0 0.0
    %434 = vmatpush1.msra.mxu0 0.0
    %435 = vmatprep.subr.mxu0 0.0
    %436 = vmatpush1.msra.mxu0 0.0
    %437 = vmatprep.subr.mxu0 0.0
    %438 = vmatpush1.msra.mxu0 0.0
    %439 = vmatprep.subr.mxu0 0.0
    %440 = vmatpush1.msra.mxu0 0.0
    %441 = vmatprep.subr.mxu0 0.0
    %442 = vmatpush1.msra.mxu0 0.0
    %443 = vmatprep.subr.mxu0 0.0
    %444 = vmatpush1.msra.mxu0 0.0
    %445 = vmatprep.subr.mxu0 0.0
    %446 = vmatpush1.msra.mxu0 0.0
    %447 = vmatprep.subr.mxu0 0.0
    %448 = vmatpush1.msra.mxu0 0.0
    %449 = vmatprep.subr.mxu0 0.0
    %450 = vmatpush1.msra.mxu0 0.0
    %451 = vmatprep.subr.mxu0 0.0
    %452 = vmatpush1.msra.mxu0 0.0
    %453 = vmatprep.subr.mxu0 0.0
    %454 = vmatpush1.msra.mxu0 0.0
    %455 = vmatprep.subr.mxu0 0.0
    %456 = vmatpush1.msra.mxu0 0.0
    %457 = vmatprep.subr.mxu0 0.0
    %458 = vmatpush1.msra.mxu0 0.0
    %459 = vmatprep.subr.mxu0 0.0
    %460 = vmatpush1.msra.mxu0 0.0
    %461 = vmatprep.subr.mxu0 0.0
    %462 = vmatpush1.msra.mxu0 0.0
    %463 = vmatprep.mubr.f32.mxu0 0.0
    %v464 = vand.u32 %v158, 4294901760
    %v465 = vsub.f32 %v158, %v464
    %v466 = vand.u32 %v465, 4294901760
    %v467 = vsub.f32 %v465, %v466
    %v468 = vand.u32 %v467, 4294901760
    %469 = vmatmul.mubr.f32.gmra.mrb[0].mxu0 %v468
    %v470 = vpop.f32.mrb[0].mxu0
    %v471 = vadd.f32 0.0, %v470
    %v472 = vpop.f32.mrb[0].mxu0
    %473 = vmatprep.mubr.f32.mxu0 0.0
    %v474 = vand.u32 %v161, 4294901760
    %v475 = vsub.f32 %v161, %v474
    %v476 = vand.u32 %v475, 4294901760
    %v477 = vsub.f32 %v475, %v476
    %v478 = vand.u32 %v477, 4294901760
    %479 = vmatmul.mubr.f32.gmra.mrb[0].mxu0 %v478
    %v480 = vpop.f32.mrb[0].mxu0
    %v481 = vadd.f32 0.0, %v480
    %v482 = vpop.f32.mrb[0].mxu0
    %483 = vmatprep.mubr.f32.mxu0 0.0
    %v484 = vand.u32 %v164, 4294901760
    %v485 = vsub.f32 %v164, %v484
    %v486 = vand.u32 %v485, 4294901760
    %v487 = vsub.f32 %v485, %v486
    %v488 = vand.u32 %v487, 4294901760
    %489 = vmatmul.mubr.f32.gmra.mrb[0].mxu0 %v488
    %v490 = vpop.f32.mrb[0].mxu0
    %v491 = vadd.f32 0.0, %v490
    %v492 = vpop.f32.mrb[0].mxu0
    %493 = vmatprep.mubr.f32.mxu0 0.0
    %v494 = vand.u32 %v167, 4294901760
    %v495 = vsub.f32 %v167, %v494
    %v496 = vand.u32 %v495, 4294901760
    %v497 = vsub.f32 %v495, %v496
    %v498 = vand.u32 %v497, 4294901760
    %499 = vmatmul.mubr.f32.gmra.mrb[0].mxu0 %v498
    %v500 = vpop.f32.mrb[0].mxu0
    %v501 = vadd.f32 0.0, %v500
    %v502 = vpop.f32.mrb[0].mxu0
    %503 = vmatprep.mubr.f32.mxu0 0.0
    %v504 = vand.u32 %v170, 4294901760
    %v505 = vsub.f32 %v170, %v504
    %v506 = vand.u32 %v505, 4294901760
    %v507 = vsub.f32 %v505, %v506
    %v508 = vand.u32 %v507, 4294901760
    %509 = vmatmul.mubr.f32.gmra.mrb[0].mxu0 %v508
    %v510 = vpop.f32.mrb[0].mxu0
    %v511 = vadd.f32 0.0, %v510
    %v512 = vpop.f32.mrb[0].mxu0
    %513 = vmatprep.mubr.f32.mxu0 0.0
    %v514 = vand.u32 %v173, 4294901760
    %v515 = vsub.f32 %v173, %v514
    %v516 = vand.u32 %v515, 4294901760
    %v517 = vsub.f32 %v515, %v516
    %v518 = vand.u32 %v517, 4294901760
    %519 = vmatmul.mubr.f32.gmra.mrb[0].mxu0 %v518
    %v520 = vpop.f32.mrb[0].mxu0
    %v521 = vadd.f32 0.0, %v520
    %v522 = vpop.f32.mrb[0].mxu0
    %523 = vmatprep.mubr.f32.mxu0 0.0
    %v524 = vand.u32 %v176, 4294901760
    %v525 = vsub.f32 %v176, %v524
    %v526 = vand.u32 %v525, 4294901760
    %v527 = vsub.f32 %v525, %v526
    %v528 = vand.u32 %v527, 4294901760
    %529 = vmatmul.mubr.f32.gmra.mrb[0].mxu0 %v528
    %v530 = vpop.f32.mrb[0].mxu0
    %v531 = vadd.f32 0.0, %v530
    %v532 = vpop.f32.mrb[0].mxu0
    %533 = vmatprep.mubr.f32.mxu0 0.0
    %v534 = vand.u32 %v179, 4294901760
    %v535 = vsub.f32 %v179, %v534
    %v536 = vand.u32 %v535, 4294901760
    %v537 = vsub.f32 %v535, %v536
    %v538 = vand.u32 %v537, 4294901760
    %539 = vmatmul.mubr.f32.gmra.mrb[0].mxu0 %v538
    %v540 = vpop.f32.mrb[0].mxu0
    %v541 = vadd.f32 0.0, %v540
    %v542 = vpop.f32.mrb[0].mxu0
    %543 = vmatprep.mubr.f32.mxu0 0.0
    %v544 = vand.u32 %v182, 4294901760
    %v545 = vsub.f32 %v182, %v544
    %v546 = vand.u32 %v545, 4294901760
    %v547 = vsub.f32 %v545, %v546
    %v548 = vand.u32 %v547, 4294901760
    %549 = vmatmul.mubr.f32.gmra.mrb[0].mxu0 %v548
    %v550 = vpop.f32.mrb[0].mxu0
    %v551 = vadd.f32 0.0, %v550
    %v552 = vpop.f32.mrb[0].mxu0
    %553 = vmatprep.mubr.f32.mxu0 0.0
    %v554 = vand.u32 %v185, 4294901760
    %v555 = vsub.f32 %v185, %v554
    %v556 = vand.u32 %v555, 4294901760
    %v557 = vsub.f32 %v555, %v556
    %v558 = vand.u32 %v557, 4294901760
    %559 = vmatmul.mubr.f32.gmra.mrb[0].mxu0 %v558
    %v560 = vpop.f32.mrb[0].mxu0
    %v561 = vadd.f32 0.0, %v560
    %v562 = vpop.f32.mrb[0].mxu0
    %563 = vmatprep.mubr.f32.mxu0 0.0
    %v564 = vand.u32 %v188, 4294901760
    %v565 = vsub.f32 %v188, %v564
    %v566 = vand.u32 %v565, 4294901760
    %v567 = vsub.f32 %v565, %v566
    %v568 = vand.u32 %v567, 4294901760
    %569 = vmatmul.mubr.f32.gmra.mrb[0].mxu0 %v568
    %v570 = vpop.f32.mrb[0].mxu0
    %v571 = vadd.f32 0.0, %v570
    %v572 = vpop.f32.mrb[0].mxu0
    %573 = vmatprep.mubr.f32.mxu0 0.0
    %v574 = vand.u32 %v191, 4294901760
    %v575 = vsub.f32 %v191, %v574
    %v576 = vand.u32 %v575, 4294901760
    %v577 = vsub.f32 %v575, %v576
    %v578 = vand.u32 %v577, 4294901760
    %579 = vmatmul.mubr.f32.gmra.mrb[0].mxu0 %v578
    %v580 = vpop.f32.mrb[0].mxu0
    %v581 = vadd.f32 0.0, %v580
    %v582 = vpop.f32.mrb[0].mxu0
    %583 = vmatprep.mubr.f32.mxu0 0.0
    %v584 = vand.u32 %v194, 4294901760
    %v585 = vsub.f32 %v194, %v584
    %v586 = vand.u32 %v585, 4294901760
    %v587 = vsub.f32 %v585, %v586
    %v588 = vand.u32 %v587, 4294901760
    %589 = vmatmul.mubr.f32.gmra.mrb[0].mxu0 %v588
    %v590 = vpop.f32.mrb[0].mxu0
    %v591 = vadd.f32 0.0, %v590
    %v592 = vpop.f32.mrb[0].mxu0
    %593 = vmatprep.mubr.f32.mxu0 0.0
    %v594 = vand.u32 %v197, 4294901760
    %v595 = vsub.f32 %v197, %v594
    %v596 = vand.u32 %v595, 4294901760
    %v597 = vsub.f32 %v595, %v596
    %v598 = vand.u32 %v597, 4294901760
    %599 = vmatmul.mubr.f32.gmra.mrb[0].mxu0 %v598
    %v600 = vpop.f32.mrb[0].mxu0
    %v601 = vadd.f32 0.0, %v600
    %v602 = vpop.f32.mrb[0].mxu0
    %603 = vmatprep.mubr.f32.mxu0 0.0
    %v604 = vand.u32 %v200, 4294901760
    %v605 = vsub.f32 %v200, %v604
    %v606 = vand.u32 %v605, 4294901760
    %v607 = vsub.f32 %v605, %v606
    %v608 = vand.u32 %v607, 4294901760
    %609 = vmatmul.mubr.f32.gmra.mrb[0].mxu0 %v608
    %v610 = vpop.f32.mrb[0].mxu0
    %v611 = vadd.f32 0.0, %v610
    %v612 = vpop.f32.mrb[0].mxu0
    %613 = vmatprep.mubr.f32.mxu0 0.0
    %v614 = vand.u32 %v203, 4294901760
    %v615 = vsub.f32 %v203, %v614
    %v616 = vand.u32 %v615, 4294901760
    %v617 = vsub.f32 %v615, %v616
    %v618 = vand.u32 %v617, 4294901760
    %619 = vmatmul.mubr.f32.gmra.mrb[0].mxu0 %v618
    %v620 = vpop.f32.mrb[0].mxu0
    %v621 = vadd.f32 0.0, %v620
    %v622 = vpop.f32.mrb[0].mxu0
    %623 = vmatprep.mubr.f32.mxu0 0.0
    %v624 = vand.u32 %v206, 4294901760
    %v625 = vsub.f32 %v206, %v624
    %v626 = vand.u32 %v625, 4294901760
    %v627 = vsub.f32 %v625, %v626
    %v628 = vand.u32 %v627, 4294901760
    %629 = vmatmul.mubr.f32.gmra.mrb[0].mxu0 %v628
    %v630 = vpop.f32.mrb[0].mxu0
    %v631 = vadd.f32 0.0, %v630
    %v632 = vpop.f32.mrb[0].mxu0
    %633 = vmatprep.mubr.f32.mxu0 0.0
    %v634 = vand.u32 %v209, 4294901760
    %v635 = vsub.f32 %v209, %v634
    %v636 = vand.u32 %v635, 4294901760
    %v637 = vsub.f32 %v635, %v636
    %v638 = vand.u32 %v637, 4294901760
    %639 = vmatmul.mubr.f32.gmra.mrb[0].mxu0 %v638
    %v640 = vpop.f32.mrb[0].mxu0
    %v641 = vadd.f32 0.0, %v640
    %v642 = vpop.f32.mrb[0].mxu0
    %643 = vmatprep.mubr.f32.mxu0 0.0
    %v644 = vand.u32 %v212, 4294901760
    %v645 = vsub.f32 %v212, %v644
    %v646 = vand.u32 %v645, 4294901760
    %v647 = vsub.f32 %v645, %v646
    %v648 = vand.u32 %v647, 4294901760
    %649 = vmatmul.mubr.f32.gmra.mrb[0].mxu0 %v648
    %v650 = vpop.f32.mrb[0].mxu0
    %v651 = vadd.f32 0.0, %v650
    %v652 = vpop.f32.mrb[0].mxu0
    %653 = vmatprep.mubr.f32.mxu0 0.0
    %v654 = vand.u32 %v215, 4294901760
    %v655 = vsub.f32 %v215, %v654
    %v656 = vand.u32 %v655, 4294901760
    %v657 = vsub.f32 %v655, %v656
    %v658 = vand.u32 %v657, 4294901760
    %659 = vmatmul.mubr.f32.gmra.mrb[0].mxu0 %v658
    %v660 = vpop.f32.mrb[0].mxu0
    %v661 = vadd.f32 0.0, %v660
    %v662 = vpop.f32.mrb[0].mxu0
    %663 = vmatprep.mubr.f32.mxu0 0.0
    %v664 = vand.u32 %v218, 4294901760
    %v665 = vsub.f32 %v218, %v664
    %v666 = vand.u32 %v665, 4294901760
    %v667 = vsub.f32 %v665, %v666
    %v668 = vand.u32 %v667, 4294901760
    %669 = vmatmul.mubr.f32.gmra.mrb[0].mxu0 %v668
    %v670 = vpop.f32.mrb[0].mxu0
    %v671 = vadd.f32 0.0, %v670
    %v672 = vpop.f32.mrb[0].mxu0
    %673 = vmatprep.mubr.f32.mxu0 0.0
    %v674 = vand.u32 %v221, 4294901760
    %v675 = vsub.f32 %v221, %v674
    %v676 = vand.u32 %v675, 4294901760
    %v677 = vsub.f32 %v675, %v676
    %v678 = vand.u32 %v677, 4294901760
    %679 = vmatmul.mubr.f32.gmra.mrb[0].mxu0 %v678
    %v680 = vpop.f32.mrb[0].mxu0
    %v681 = vadd.f32 0.0, %v680
    %v682 = vpop.f32.mrb[0].mxu0
    %683 = vmatprep.mubr.f32.mxu0 0.0
    %v684 = vand.u32 %v224, 4294901760
    %v685 = vsub.f32 %v224, %v684
    %v686 = vand.u32 %v685, 4294901760
    %v687 = vsub.f32 %v685, %v686
    %v688 = vand.u32 %v687, 4294901760
    %689 = vmatmul.mubr.f32.gmra.mrb[0].mxu0 %v688
    %v690 = vpop.f32.mrb[0].mxu0
    %v691 = vadd.f32 0.0, %v690
    %v692 = vpop.f32.mrb[0].mxu0
    %693 = vmatprep.mubr.f32.mxu0 0.0
    %v694 = vand.u32 %v227, 4294901760
    %v695 = vsub.f32 %v227, %v694
    %v696 = vand.u32 %v695, 4294901760
    %v697 = vsub.f32 %v695, %v696
    %v698 = vand.u32 %v697, 4294901760
    %699 = vmatmul.mubr.f32.gmra.mrb[0].mxu0 %v698
    %v700 = vpop.f32.mrb[0].mxu0
    %v701 = vadd.f32 0.0, %v700
    %v702 = vpop.f32.mrb[0].mxu0
    %703 = vmatprep.mubr.f32.mxu0 0.0
    %v704 = vand.u32 %v230, 4294901760
    %v705 = vsub.f32 %v230, %v704
    %v706 = vand.u32 %v705, 4294901760
    %v707 = vsub.f32 %v705, %v706
    %v708 = vand.u32 %v707, 4294901760
    %709 = vmatmul.mubr.f32.gmra.mrb[0].mxu0 %v708
    %v710 = vpop.f32.mrb[0].mxu0
    %v711 = vadd.f32 0.0, %v710
    %v712 = vpop.f32.mrb[0].mxu0
    %713 = vmatprep.mubr.f32.mxu0 0.0
    %v714 = vand.u32 %v233, 4294901760
    %v715 = vsub.f32 %v233, %v714
    %v716 = vand.u32 %v715, 4294901760
    %v717 = vsub.f32 %v715, %v716
    %v718 = vand.u32 %v717, 4294901760
    %719 = vmatmul.mubr.f32.gmra.mrb[0].mxu0 %v718
    %v720 = vpop.f32.mrb[0].mxu0
    %v721 = vadd.f32 0.0, %v720
    %v722 = vpop.f32.mrb[0].mxu0
    %723 = vmatprep.mubr.f32.mxu0 0.0
    %v724 = vand.u32 %v236, 4294901760
    %v725 = vsub.f32 %v236, %v724
    %v726 = vand.u32 %v725, 4294901760
    %v727 = vsub.f32 %v725, %v726
    %v728 = vand.u32 %v727, 4294901760
    %729 = vmatmul.mubr.f32.gmra.mrb[0].mxu0 %v728
    %v730 = vpop.f32.mrb[0].mxu0
    %v731 = vadd.f32 0.0, %v730
    %v732 = vpop.f32.mrb[0].mxu0
    %733 = vmatprep.mubr.f32.mxu0 0.0
    %v734 = vand.u32 %v239, 4294901760
    %v735 = vsub.f32 %v239, %v734
    %v736 = vand.u32 %v735, 4294901760
    %v737 = vsub.f32 %v735, %v736
    %v738 = vand.u32 %v737, 4294901760
    %739 = vmatmul.mubr.f32.gmra.mrb[0].mxu0 %v738
    %v740 = vpop.f32.mrb[0].mxu0
    %v741 = vadd.f32 0.0, %v740
    %v742 = vpop.f32.mrb[0].mxu0
    %743 = vmatprep.mubr.f32.mxu0 0.0
    %v744 = vand.u32 %v242, 4294901760
    %v745 = vsub.f32 %v242, %v744
    %v746 = vand.u32 %v745, 4294901760
    %v747 = vsub.f32 %v745, %v746
    %v748 = vand.u32 %v747, 4294901760
    %749 = vmatmul.mubr.f32.gmra.mrb[0].mxu0 %v748
    %v750 = vpop.f32.mrb[0].mxu0
    %v751 = vadd.f32 0.0, %v750
    %v752 = vpop.f32.mrb[0].mxu0
    %753 = vmatprep.mubr.f32.mxu0 0.0
    %v754 = vand.u32 %v245, 4294901760
    %v755 = vsub.f32 %v245, %v754
    %v756 = vand.u32 %v755, 4294901760
    %v757 = vsub.f32 %v755, %v756
    %v758 = vand.u32 %v757, 4294901760
    %759 = vmatmul.mubr.f32.gmra.mrb[0].mxu0 %v758
    %v760 = vpop.f32.mrb[0].mxu0
    %v761 = vadd.f32 0.0, %v760
    %v762 = vpop.f32.mrb[0].mxu0
    %763 = vmatprep.mubr.f32.mxu0 0.0
    %v764 = vand.u32 %v248, 4294901760
    %v765 = vsub.f32 %v248, %v764
    %v766 = vand.u32 %v765, 4294901760
    %v767 = vsub.f32 %v765, %v766
    %v768 = vand.u32 %v767, 4294901760
    %769 = vmatmul.mubr.f32.gmra.mrb[0].mxu0 %v768
    %v770 = vpop.f32.mrb[0].mxu0
    %v771 = vadd.f32 0.0, %v770
    %v772 = vpop.f32.mrb[0].mxu0
    %773 = vmatprep.mubr.f32.mxu0 0.0
    %v774 = vand.u32 %v251, 4294901760
    %v775 = vsub.f32 %v251, %v774
    %v776 = vand.u32 %v775, 4294901760
    %v777 = vsub.f32 %v775, %v776
    %v778 = vand.u32 %v777, 4294901760
    %779 = vmatmul.mubr.f32.gmra.mrb[0].mxu0 %v778
    %v780 = vpop.f32.mrb[0].mxu0
    %v781 = vadd.f32 0.0, %v780
    %v782 = vpop.f32.mrb[0].mxu0
    %783 = vmatprep.mubr.f32.mxu0 0.0
    %v784 = vand.u32 %v254, 4294901760
    %v785 = vsub.f32 %v254, %v784
    %v786 = vand.u32 %v785, 4294901760
    %v787 = vsub.f32 %v785, %v786
    %v788 = vand.u32 %v787, 4294901760
    %789 = vmatmul.mubr.f32.gmra.mrb[0].mxu0 %v788
    %v790 = vpop.f32.mrb[0].mxu0
    %v791 = vadd.f32 0.0, %v790
    %v792 = vpop.f32.mrb[0].mxu0
    %793 = vmatprep.mubr.f32.mxu0 0.0
    %v794 = vand.u32 %v257, 4294901760
    %v795 = vsub.f32 %v257, %v794
    %v796 = vand.u32 %v795, 4294901760
    %v797 = vsub.f32 %v795, %v796
    %v798 = vand.u32 %v797, 4294901760
    %799 = vmatmul.mubr.f32.gmra.mrb[0].mxu0 %v798
    %v800 = vpop.f32.mrb[0].mxu0
    %v801 = vadd.f32 0.0, %v800
    %v802 = vpop.f32.mrb[0].mxu0
    %803 = vmatprep.mubr.f32.mxu0 0.0
    %v804 = vand.u32 %v260, 4294901760
    %v805 = vsub.f32 %v260, %v804
    %v806 = vand.u32 %v805, 4294901760
    %v807 = vsub.f32 %v805, %v806
    %v808 = vand.u32 %v807, 4294901760
    %809 = vmatmul.mubr.f32.gmra.mrb[0].mxu0 %v808
    %v810 = vpop.f32.mrb[0].mxu0
    %v811 = vadd.f32 0.0, %v810
    %v812 = vpop.f32.mrb[0].mxu0
    %813 = vmatprep.mubr.f32.mxu0 0.0
    %v814 = vand.u32 %v263, 4294901760
    %v815 = vsub.f32 %v263, %v814
    %v816 = vand.u32 %v815, 4294901760
    %v817 = vsub.f32 %v815, %v816
    %v818 = vand.u32 %v817, 4294901760
    %819 = vmatmul.mubr.f32.gmra.mrb[0].mxu0 %v818
    %v820 = vpop.f32.mrb[0].mxu0
    %v821 = vadd.f32 0.0, %v820
    %v822 = vpop.f32.mrb[0].mxu0
    %823 = vmatprep.mubr.f32.mxu0 0.0
    %v824 = vand.u32 %v266, 4294901760
    %v825 = vsub.f32 %v266, %v824
    %v826 = vand.u32 %v825, 4294901760
    %v827 = vsub.f32 %v825, %v826
    %v828 = vand.u32 %v827, 4294901760
    %829 = vmatmul.mubr.f32.gmra.mrb[0].mxu0 %v828
    %v830 = vpop.f32.mrb[0].mxu0
    %v831 = vadd.f32 0.0, %v830
    %v832 = vpop.f32.mrb[0].mxu0
    %833 = vmatprep.mubr.f32.mxu0 0.0
    %v834 = vand.u32 %v269, 4294901760
    %v835 = vsub.f32 %v269, %v834
    %v836 = vand.u32 %v835, 4294901760
    %v837 = vsub.f32 %v835, %v836
    %v838 = vand.u32 %v837, 4294901760
    %839 = vmatmul.mubr.f32.gmra.mrb[0].mxu0 %v838
    %v840 = vpop.f32.mrb[0].mxu0
    %v841 = vadd.f32 0.0, %v840
    %v842 = vpop.f32.mrb[0].mxu0
    %843 = vmatprep.mubr.f32.mxu0 0.0
    %v844 = vand.u32 %v272, 4294901760
    %v845 = vsub.f32 %v272, %v844
    %v846 = vand.u32 %v845, 4294901760
    %v847 = vsub.f32 %v845, %v846
    %v848 = vand.u32 %v847, 4294901760
    %849 = vmatmul.mubr.f32.gmra.mrb[0].mxu0 %v848
    %v850 = vpop.f32.mrb[0].mxu0
    %v851 = vadd.f32 0.0, %v850
    %v852 = vpop.f32.mrb[0].mxu0
    %853 = vmatprep.mubr.f32.mxu0 0.0
    %v854 = vand.u32 %v275, 4294901760
    %v855 = vsub.f32 %v275, %v854
    %v856 = vand.u32 %v855, 4294901760
    %v857 = vsub.f32 %v855, %v856
    %v858 = vand.u32 %v857, 4294901760
    %859 = vmatmul.mubr.f32.gmra.mrb[0].mxu0 %v858
    %v860 = vpop.f32.mrb[0].mxu0
    %v861 = vadd.f32 0.0, %v860
    %v862 = vpop.f32.mrb[0].mxu0
    %863 = vmatprep.mubr.f32.mxu0 0.0
    %v864 = vand.u32 %v278, 4294901760
    %v865 = vsub.f32 %v278, %v864
    %v866 = vand.u32 %v865, 4294901760
    %v867 = vsub.f32 %v865, %v866
    %v868 = vand.u32 %v867, 4294901760
    %869 = vmatmul.mubr.f32.gmra.mrb[0].mxu0 %v868
    %v870 = vpop.f32.mrb[0].mxu0
    %v871 = vadd.f32 0.0, %v870
    %v872 = vpop.f32.mrb[0].mxu0
    %873 = vmatprep.mubr.f32.mxu0 0.0
    %v874 = vand.u32 %v281, 4294901760
    %v875 = vsub.f32 %v281, %v874
    %v876 = vand.u32 %v875, 4294901760
    %v877 = vsub.f32 %v875, %v876
    %v878 = vand.u32 %v877, 4294901760
    %879 = vmatmul.mubr.f32.gmra.mrb[0].mxu0 %v878
    %v880 = vpop.f32.mrb[0].mxu0
    %v881 = vadd.f32 0.0, %v880
    %v882 = vpop.f32.mrb[0].mxu0
    %883 = vmatprep.mubr.f32.mxu0 0.0
    %v884 = vand.u32 %v284, 4294901760
    %v885 = vsub.f32 %v284, %v884
    %v886 = vand.u32 %v885, 4294901760
    %v887 = vsub.f32 %v885, %v886
    %v888 = vand.u32 %v887, 4294901760
    %889 = vmatmul.mubr.f32.gmra.mrb[0].mxu0 %v888
    %v890 = vpop.f32.mrb[0].mxu0
    %v891 = vadd.f32 0.0, %v890
    %v892 = vpop.f32.mrb[0].mxu0
    %893 = vmatprep.mubr.f32.mxu0 0.0
    %v894 = vand.u32 %v287, 4294901760
    %v895 = vsub.f32 %v287, %v894
    %v896 = vand.u32 %v895, 4294901760
    %v897 = vsub.f32 %v895, %v896
    %v898 = vand.u32 %v897, 4294901760
    %899 = vmatmul.mubr.f32.gmra.mrb[0].mxu0 %v898
    %v900 = vpop.f32.mrb[0].mxu0
    %v901 = vadd.f32 0.0, %v900
    %v902 = vpop.f32.mrb[0].mxu0
    %903 = vmatprep.mubr.f32.mxu0 0.0
    %v904 = vand.u32 %v290, 4294901760
    %v905 = vsub.f32 %v290, %v904
    %v906 = vand.u32 %v905, 4294901760
    %v907 = vsub.f32 %v905, %v906
    %v908 = vand.u32 %v907, 4294901760
    %909 = vmatmul.mubr.f32.gmra.mrb[0].mxu0 %v908
    %v910 = vpop.f32.mrb[0].mxu0
    %v911 = vadd.f32 0.0, %v910
    %v912 = vpop.f32.mrb[0].mxu0
    %913 = vmatprep.mubr.f32.mxu0 0.0
    %v914 = vand.u32 %v293, 4294901760
    %v915 = vsub.f32 %v293, %v914
    %v916 = vand.u32 %v915, 4294901760
    %v917 = vsub.f32 %v915, %v916
    %v918 = vand.u32 %v917, 4294901760
    %919 = vmatmul.mubr.f32.gmra.mrb[0].mxu0 %v918
    %v920 = vpop.f32.mrb[0].mxu0
    %v921 = vadd.f32 0.0, %v920
    %v922 = vpop.f32.mrb[0].mxu0
    %923 = vmatprep.mubr.f32.mxu0 0.0
    %v924 = vand.u32 %v296, 4294901760
    %v925 = vsub.f32 %v296, %v924
    %v926 = vand.u32 %v925, 4294901760
    %v927 = vsub.f32 %v925, %v926
    %v928 = vand.u32 %v927, 4294901760
    %929 = vmatmul.mubr.f32.gmra.mrb[0].mxu0 %v928
    %v930 = vpop.f32.mrb[0].mxu0
    %v931 = vadd.f32 0.0, %v930
    %v932 = vpop.f32.mrb[0].mxu0
    %933 = vmatprep.mubr.f32.mxu0 0.0
    %v934 = vand.u32 %v299, 4294901760
    %v935 = vsub.f32 %v299, %v934
    %v936 = vand.u32 %v935, 4294901760
    %v937 = vsub.f32 %v935, %v936
    %v938 = vand.u32 %v937, 4294901760
    %939 = vmatmul.mubr.f32.gmra.mrb[0].mxu0 %v938
    %v940 = vpop.f32.mrb[0].mxu0
    %v941 = vadd.f32 0.0, %v940
    %v942 = vpop.f32.mrb[0].mxu0
    %943 = vmatprep.mubr.f32.mxu0 0.0
    %v944 = vand.u32 %v302, 4294901760
    %v945 = vsub.f32 %v302, %v944
    %v946 = vand.u32 %v945, 4294901760
    %v947 = vsub.f32 %v945, %v946
    %v948 = vand.u32 %v947, 4294901760
    %949 = vmatmul.mubr.f32.gmra.mrb[0].mxu0 %v948
    %v950 = vpop.f32.mrb[0].mxu0
    %v951 = vadd.f32 0.0, %v950
    %v952 = vpop.f32.mrb[0].mxu0
    %953 = vmatprep.mubr.f32.mxu0 0.0
    %v954 = vand.u32 %v305, 4294901760
    %v955 = vsub.f32 %v305, %v954
    %v956 = vand.u32 %v955, 4294901760
    %v957 = vsub.f32 %v955, %v956
    %v958 = vand.u32 %v957, 4294901760
    %959 = vmatmul.mubr.f32.gmra.mrb[0].mxu0 %v958
    %v960 = vpop.f32.mrb[0].mxu0
    %v961 = vadd.f32 0.0, %v960
    %v962 = vpop.f32.mrb[0].mxu0
    %963 = vmatprep.mubr.f32.mxu0 0.0
    %v964 = vand.u32 %v308, 4294901760
    %v965 = vsub.f32 %v308, %v964
    %v966 = vand.u32 %v965, 4294901760
    %v967 = vsub.f32 %v965, %v966
    %v968 = vand.u32 %v967, 4294901760
    %969 = vmatmul.mubr.f32.gmra.mrb[0].mxu0 %v968
    %v970 = vpop.f32.mrb[0].mxu0
    %v971 = vadd.f32 0.0, %v970
    %v972 = vpop.f32.mrb[0].mxu0
    %973 = vmatprep.mubr.f32.mxu0 0.0
    %v974 = vand.u32 %v311, 4294901760
    %v975 = vsub.f32 %v311, %v974
    %v976 = vand.u32 %v975, 4294901760
    %v977 = vsub.f32 %v975, %v976
    %v978 = vand.u32 %v977, 4294901760
    %979 = vmatmul.mubr.f32.gmra.mrb[0].mxu0 %v978
    %v980 = vpop.f32.mrb[0].mxu0
    %v981 = vadd.f32 0.0, %v980
    %v982 = vpop.f32.mrb[0].mxu0
    %983 = vmatprep.mubr.f32.mxu0 0.0
    %v984 = vand.u32 %v314, 4294901760
    %v985 = vsub.f32 %v314, %v984
    %v986 = vand.u32 %v985, 4294901760
    %v987 = vsub.f32 %v985, %v986
    %v988 = vand.u32 %v987, 4294901760
    %989 = vmatmul.mubr.f32.gmra.mrb[0].mxu0 %v988
    %v990 = vpop.f32.mrb[0].mxu0
    %v991 = vadd.f32 0.0, %v990
    %v992 = vpop.f32.mrb[0].mxu0
    %993 = vmatprep.mubr.f32.mxu0 0.0
    %v994 = vand.u32 %v317, 4294901760
    %v995 = vsub.f32 %v317, %v994
    %v996 = vand.u32 %v995, 4294901760
    %v997 = vsub.f32 %v995, %v996
    %v998 = vand.u32 %v997, 4294901760
    %999 = vmatmul.mubr.f32.gmra.mrb[0].mxu0 %v998
    %v1000 = vpop.f32.mrb[0].mxu0
    %v1001 = vadd.f32 0.0, %v1000
    %v1002 = vpop.f32.mrb[0].mxu0
    %1003 = vmatprep.mubr.f32.mxu0 0.0
    %v1004 = vand.u32 %v320, 4294901760
    %v1005 = vsub.f32 %v320, %v1004
    %v1006 = vand.u32 %v1005, 4294901760
    %v1007 = vsub.f32 %v1005, %v1006
    %v1008 = vand.u32 %v1007, 4294901760
    %1009 = vmatmul.mubr.f32.gmra.mrb[0].mxu0 %v1008
    %v1010 = vpop.f32.mrb[0].mxu0
    %v1011 = vadd.f32 0.0, %v1010
    %v1012 = vpop.f32.mrb[0].mxu0
    %1013 = vmatprep.mubr.f32.mxu0 0.0
    %v1014 = vand.u32 %v323, 4294901760
    %v1015 = vsub.f32 %v323, %v1014
    %v1016 = vand.u32 %v1015, 4294901760
    %v1017 = vsub.f32 %v1015, %v1016
    %v1018 = vand.u32 %v1017, 4294901760
    %1019 = vmatmul.mubr.f32.gmra.mrb[0].mxu0 %v1018
    %v1020 = vpop.f32.mrb[0].mxu0
    %v1021 = vadd.f32 0.0, %v1020
    %v1022 = vpop.f32.mrb[0].mxu0
    %1023 = vmatprep.mubr.f32.mxu0 0.0
    %v1024 = vand.u32 %v326, 4294901760
    %v1025 = vsub.f32 %v326, %v1024
    %v1026 = vand.u32 %v1025, 4294901760
    %v1027 = vsub.f32 %v1025, %v1026
    %v1028 = vand.u32 %v1027, 4294901760
    %1029 = vmatmul.mubr.f32.gmra.mrb[0].mxu0 %v1028
    %v1030 = vpop.f32.mrb[0].mxu0
    %v1031 = vadd.f32 0.0, %v1030
    %v1032 = vpop.f32.mrb[0].mxu0
    %1033 = vmatprep.mubr.f32.mxu0 0.0
    %v1034 = vand.u32 %v329, 4294901760
    %v1035 = vsub.f32 %v329, %v1034
    %v1036 = vand.u32 %v1035, 4294901760
    %v1037 = vsub.f32 %v1035, %v1036
    %v1038 = vand.u32 %v1037, 4294901760
    %1039 = vmatmul.mubr.f32.gmra.mrb[0].mxu0 %v1038
    %v1040 = vpop.f32.mrb[0].mxu0
    %v1041 = vadd.f32 0.0, %v1040
    %v1042 = vpop.f32.mrb[0].mxu0
    %1043 = vmatprep.mubr.f32.mxu0 0.0
    %v1044 = vand.u32 %v332, 4294901760
    %v1045 = vsub.f32 %v332, %v1044
    %v1046 = vand.u32 %v1045, 4294901760
    %v1047 = vsub.f32 %v1045, %v1046
    %v1048 = vand.u32 %v1047, 4294901760
    %1049 = vmatmul.mubr.f32.gmra.mrb[0].mxu0 %v1048
    %v1050 = vpop.f32.mrb[0].mxu0
    %v1051 = vadd.f32 0.0, %v1050
    %v1052 = vpop.f32.mrb[0].mxu0
    %1053 = vmatprep.mubr.f32.mxu0 0.0
    %v1054 = vand.u32 %v335, 4294901760
    %v1055 = vsub.f32 %v335, %v1054
    %v1056 = vand.u32 %v1055, 4294901760
    %v1057 = vsub.f32 %v1055, %v1056
    %v1058 = vand.u32 %v1057, 4294901760
    %1059 = vmatmul.mubr.f32.gmra.mrb[0].mxu0 %v1058
    %v1060 = vpop.f32.mrb[0].mxu0
    %v1061 = vadd.f32 0.0, %v1060
    %v1062 = vpop.f32.mrb[0].mxu0
    %1063 = vmatprep.mubr.f32.mxu0 0.0
    %v1064 = vand.u32 %v338, 4294901760
    %v1065 = vsub.f32 %v338, %v1064
    %v1066 = vand.u32 %v1065, 4294901760
    %v1067 = vsub.f32 %v1065, %v1066
    %v1068 = vand.u32 %v1067, 4294901760
    %1069 = vmatmul.mubr.f32.gmra.mrb[0].mxu0 %v1068
    %v1070 = vpop.f32.mrb[0].mxu0
    %v1071 = vadd.f32 0.0, %v1070
    %v1072 = vpop.f32.mrb[0].mxu0
    %1073 = vmatprep.mubr.f32.mxu0 0.0
    %v1074 = vand.u32 %v341, 4294901760
    %v1075 = vsub.f32 %v341, %v1074
    %v1076 = vand.u32 %v1075, 4294901760
    %v1077 = vsub.f32 %v1075, %v1076
    %v1078 = vand.u32 %v1077, 4294901760
    %1079 = vmatmul.mubr.f32.gmra.mrb[0].mxu0 %v1078
    %v1080 = vpop.f32.mrb[0].mxu0
    %v1081 = vadd.f32 0.0, %v1080
    %v1082 = vpop.f32.mrb[0].mxu0
    %1083 = vmatprep.mubr.f32.mxu0 0.0
    %v1084 = vand.u32 %v344, 4294901760
    %v1085 = vsub.f32 %v344, %v1084
    %v1086 = vand.u32 %v1085, 4294901760
    %v1087 = vsub.f32 %v1085, %v1086
    %v1088 = vand.u32 %v1087, 4294901760
    %1089 = vmatmul.mubr.f32.gmra.mrb[0].mxu0 %v1088
    %v1090 = vpop.f32.mrb[0].mxu0
    %v1091 = vadd.f32 0.0, %v1090
    %v1092 = vpop.f32.mrb[0].mxu0
    %1093 = vmatprep.mubr.f32.mxu0 0.0
    %v1094 = vand.u32 %v347, 4294901760
    %v1095 = vsub.f32 %v347, %v1094
    %v1096 = vand.u32 %v1095, 4294901760
    %v1097 = vsub.f32 %v1095, %v1096
    %v1098 = vand.u32 %v1097, 4294901760
    %1099 = vmatmul.mubr.f32.gmra.mrb[0].mxu0 %v1098
    %v1100 = vpop.f32.mrb[0].mxu0
    %v1101 = vadd.f32 0.0, %v1100
    %v1102 = vpop.f32.mrb[0].mxu0
    %1103 = vmatprep.mubr.f32.mxu0 0.0
    %v1104 = vand.u32 %v350, 4294901760
    %v1105 = vsub.f32 %v350, %v1104
    %v1106 = vand.u32 %v1105, 4294901760
    %v1107 = vsub.f32 %v1105, %v1106
    %v1108 = vand.u32 %v1107, 4294901760
    %1109 = vmatmul.mubr.f32.gmra.mrb[0].mxu0 %v1108
    %v1110 = vpop.f32.mrb[0].mxu0
    %v1111 = vadd.f32 0.0, %v1110
    %v1112 = vpop.f32.mrb[0].mxu0
    %1113 = vmatprep.mubr.f32.mxu0 0.0
    %v1114 = vand.u32 %v353, 4294901760
    %v1115 = vsub.f32 %v353, %v1114
    %v1116 = vand.u32 %v1115, 4294901760
    %v1117 = vsub.f32 %v1115, %v1116
    %v1118 = vand.u32 %v1117, 4294901760
    %1119 = vmatmul.mubr.f32.gmra.mrb[0].mxu0 %v1118
    %v1120 = vpop.f32.mrb[0].mxu0
    %v1121 = vadd.f32 0.0, %v1120
    %v1122 = vpop.f32.mrb[0].mxu0
    %1123 = vmatprep.mubr.f32.mxu0 0.0
    %v1124 = vand.u32 %v356, 4294901760
    %v1125 = vsub.f32 %v356, %v1124
    %v1126 = vand.u32 %v1125, 4294901760
    %v1127 = vsub.f32 %v1125, %v1126
    %v1128 = vand.u32 %v1127, 4294901760
    %1129 = vmatmul.mubr.f32.gmra.mrb[0].mxu0 %v1128
    %v1130 = vpop.f32.mrb[0].mxu0
    %v1131 = vadd.f32 0.0, %v1130
    %v1132 = vpop.f32.mrb[0].mxu0
    %1133 = vmatprep.mubr.f32.mxu0 0.0
    %v1134 = vand.u32 %v359, 4294901760
    %v1135 = vsub.f32 %v359, %v1134
    %v1136 = vand.u32 %v1135, 4294901760
    %v1137 = vsub.f32 %v1135, %v1136
    %v1138 = vand.u32 %v1137, 4294901760
    %1139 = vmatmul.mubr.f32.gmra.mrb[0].mxu0 %v1138
    %v1140 = vpop.f32.mrb[0].mxu0
    %v1141 = vadd.f32 0.0, %v1140
    %v1142 = vpop.f32.mrb[0].mxu0
    %1143 = vmatprep.mubr.f32.mxu0 0.0
    %v1144 = vand.u32 %v362, 4294901760
    %v1145 = vsub.f32 %v362, %v1144
    %v1146 = vand.u32 %v1145, 4294901760
    %v1147 = vsub.f32 %v1145, %v1146
    %v1148 = vand.u32 %v1147, 4294901760
    %1149 = vmatmul.mubr.f32.gmra.mrb[0].mxu0 %v1148
    %v1150 = vpop.f32.mrb[0].mxu0
    %v1151 = vadd.f32 0.0, %v1150
    %v1152 = vpop.f32.mrb[0].mxu0
    %1153 = vmatprep.mubr.f32.mxu0 0.0
    %v1154 = vand.u32 %v365, 4294901760
    %v1155 = vsub.f32 %v365, %v1154
    %v1156 = vand.u32 %v1155, 4294901760
    %v1157 = vsub.f32 %v1155, %v1156
    %v1158 = vand.u32 %v1157, 4294901760
    %1159 = vmatmul.mubr.f32.gmra.mrb[0].mxu0 %v1158
    %v1160 = vpop.f32.mrb[0].mxu0
    %v1161 = vadd.f32 0.0, %v1160
    %v1162 = vpop.f32.mrb[0].mxu0
    %1163 = vmatprep.mubr.f32.mxu0 0.0
    %v1164 = vand.u32 %v368, 4294901760
    %v1165 = vsub.f32 %v368, %v1164
    %v1166 = vand.u32 %v1165, 4294901760
    %v1167 = vsub.f32 %v1165, %v1166
    %v1168 = vand.u32 %v1167, 4294901760
    %1169 = vmatmul.mubr.f32.gmra.mrb[0].mxu0 %v1168
    %v1170 = vpop.f32.mrb[0].mxu0
    %v1171 = vadd.f32 0.0, %v1170
    %v1172 = vpop.f32.mrb[0].mxu0
    %1173 = vmatprep.mubr.f32.mxu0 0.0
    %v1174 = vand.u32 %v371, 4294901760
    %v1175 = vsub.f32 %v371, %v1174
    %v1176 = vand.u32 %v1175, 4294901760
    %v1177 = vsub.f32 %v1175, %v1176
    %v1178 = vand.u32 %v1177, 4294901760
    %1179 = vmatmul.mubr.f32.gmra.mrb[0].mxu0 %v1178
    %v1180 = vpop.f32.mrb[0].mxu0
    %v1181 = vadd.f32 0.0, %v1180
    %v1182 = vpop.f32.mrb[0].mxu0
    %1183 = vmatprep.mubr.f32.mxu0 0.0
    %v1184 = vand.u32 %v374, 4294901760
    %v1185 = vsub.f32 %v374, %v1184
    %v1186 = vand.u32 %v1185, 4294901760
    %v1187 = vsub.f32 %v1185, %v1186
    %v1188 = vand.u32 %v1187, 4294901760
    %1189 = vmatmul.mubr.f32.gmra.mrb[0].mxu0 %v1188
    %v1190 = vpop.f32.mrb[0].mxu0
    %v1191 = vadd.f32 0.0, %v1190
    %v1192 = vpop.f32.mrb[0].mxu0
    %1193 = vmatprep.mubr.f32.mxu0 0.0
    %v1194 = vand.u32 %v377, 4294901760
    %v1195 = vsub.f32 %v377, %v1194
    %v1196 = vand.u32 %v1195, 4294901760
    %v1197 = vsub.f32 %v1195, %v1196
    %v1198 = vand.u32 %v1197, 4294901760
    %1199 = vmatmul.mubr.f32.gmra.mrb[0].mxu0 %v1198
    %v1200 = vpop.f32.mrb[0].mxu0
    %v1201 = vadd.f32 0.0, %v1200
    %v1202 = vpop.f32.mrb[0].mxu0
    %1203 = vmatprep.mubr.f32.mxu0 0.0
    %v1204 = vand.u32 %v380, 4294901760
    %v1205 = vsub.f32 %v380, %v1204
    %v1206 = vand.u32 %v1205, 4294901760
    %v1207 = vsub.f32 %v1205, %v1206
    %v1208 = vand.u32 %v1207, 4294901760
    %1209 = vmatmul.mubr.f32.gmra.mrb[0].mxu0 %v1208
    %v1210 = vpop.f32.mrb[0].mxu0
    %v1211 = vadd.f32 0.0, %v1210
    %v1212 = vpop.f32.mrb[0].mxu0
    %1213 = vmatprep.mubr.f32.mxu0 0.0
    %v1214 = vand.u32 %v383, 4294901760
    %v1215 = vsub.f32 %v383, %v1214
    %v1216 = vand.u32 %v1215, 4294901760
    %v1217 = vsub.f32 %v1215, %v1216
    %v1218 = vand.u32 %v1217, 4294901760
    %1219 = vmatmul.mubr.f32.gmra.mrb[0].mxu0 %v1218
    %v1220 = vpop.f32.mrb[0].mxu0
    %v1221 = vadd.f32 0.0, %v1220
    %v1222 = vpop.f32.mrb[0].mxu0
    %1223 = vmatprep.mubr.f32.mxu0 0.0
    %v1224 = vand.u32 %v386, 4294901760
    %v1225 = vsub.f32 %v386, %v1224
    %v1226 = vand.u32 %v1225, 4294901760
    %v1227 = vsub.f32 %v1225, %v1226
    %v1228 = vand.u32 %v1227, 4294901760
    %1229 = vmatmul.mubr.f32.gmra.mrb[0].mxu0 %v1228
    %v1230 = vpop.f32.mrb[0].mxu0
    %v1231 = vadd.f32 0.0, %v1230
    %v1232 = vpop.f32.mrb[0].mxu0
    %1233 = vmatprep.mubr.f32.mxu0 0.0
    %v1234 = vand.u32 %v389, 4294901760
    %v1235 = vsub.f32 %v389, %v1234
    %v1236 = vand.u32 %v1235, 4294901760
    %v1237 = vsub.f32 %v1235, %v1236
    %v1238 = vand.u32 %v1237, 4294901760
    %1239 = vmatmul.mubr.f32.gmra.mrb[0].mxu0 %v1238
    %v1240 = vpop.f32.mrb[0].mxu0
    %v1241 = vadd.f32 0.0, %v1240
    %v1242 = vpop.f32.mrb[0].mxu0
    %1243 = vmatprep.mubr.f32.mxu0 0.0
    %v1244 = vand.u32 %v392, 4294901760
    %v1245 = vsub.f32 %v392, %v1244
    %v1246 = vand.u32 %v1245, 4294901760
    %v1247 = vsub.f32 %v1245, %v1246
    %v1248 = vand.u32 %v1247, 4294901760
    %1249 = vmatmul.mubr.f32.gmra.mrb[0].mxu0 %v1248
    %v1250 = vpop.f32.mrb[0].mxu0
    %v1251 = vadd.f32 0.0, %v1250
    %v1252 = vpop.f32.mrb[0].mxu0
    %1253 = vmatprep.mubr.f32.mxu0 0.0
    %v1254 = vand.u32 %v395, 4294901760
    %v1255 = vsub.f32 %v395, %v1254
    %v1256 = vand.u32 %v1255, 4294901760
    %v1257 = vsub.f32 %v1255, %v1256
    %v1258 = vand.u32 %v1257, 4294901760
    %1259 = vmatmul.mubr.f32.gmra.mrb[0].mxu0 %v1258
    %v1260 = vpop.f32.mrb[0].mxu0
    %v1261 = vadd.f32 0.0, %v1260
    %v1262 = vpop.f32.mrb[0].mxu0
    %1263 = vdwg.mxu0
    %1264 = vmatprep.subr.mxu0 0.0
    %v1265 = vand.u32 %v106, 4294901760
    %v1266 = vsub.f32 %v106, %v1265
    %v1267 = vand.u32 %v1266, 4294901760
    %v1268 = vsub.f32 %v1266, %v1267
    %v1269 = vand.u32 %v1268, 4294901760
    %1270 = vmatpush1.msra.mxu0 %v1269
    %1271 = vmatprep.subr.mxu0 0.0
    %v1272 = vand.u32 %v107, 4294901760
    %v1273 = vsub.f32 %v107, %v1272
    %v1274 = vand.u32 %v1273, 4294901760
    %v1275 = vsub.f32 %v1273, %v1274
    %v1276 = vand.u32 %v1275, 4294901760
    %1277 = vmatpush1.msra.mxu0 %v1276
    %1278 = vmatprep.subr.mxu0 0.0
    %1279 = vmatpush1.msra.mxu0 0.0
    %1280 = vmatprep.subr.mxu0 0.0
    %1281 = vmatpush1.msra.mxu0 0.0
    %1282 = vmatprep.subr.mxu0 0.0
    %1283 = vmatpush1.msra.mxu0 0.0
    %1284 = vmatprep.subr.mxu0 0.0
    %1285 = vmatpush1.msra.mxu0 0.0
    %1286 = vmatprep.subr.mxu0 0.0
    %1287 = vmatpush1.msra.mxu0 0.0
    %1288 = vmatprep.subr.mxu0 0.0
    %1289 = vmatpush1.msra.mxu0 0.0
    %1290 = vmatprep.subr.mxu0 0.0
    %1291 = vmatpush1.msra.mxu0 0.0
    %1292 = vmatprep.subr.mxu0 0.0
    %1293 = vmatpush1.msra.mxu0 0.0
    %1294 = vmatprep.subr.mxu0 0.0
    %1295 = vmatpush1.msra.mxu0 0.0
    %1296 = vmatprep.subr.mxu0 0.0
    %1297 = vmatpush1.msra.mxu0 0.0
    %1298 = vmatprep.subr.mxu0 0.0
    %1299 = vmatpush1.msra.mxu0 0.0
    %1300 = vmatprep.subr.mxu0 0.0
    %1301 = vmatpush1.msra.mxu0 0.0
    %1302 = vmatprep.subr.mxu0 0.0
    %1303 = vmatpush1.msra.mxu0 0.0
    %1304 = vmatprep.subr.mxu0 0.0
    %1305 = vmatpush1.msra.mxu0 0.0
    %1306 = vmatprep.subr.mxu0 0.0
    %1307 = vmatpush1.msra.mxu0 0.0
    %1308 = vmatprep.subr.mxu0 0.0
    %1309 = vmatpush1.msra.mxu0 0.0
    %1310 = vmatprep.subr.mxu0 0.0
    %1311 = vmatpush1.msra.mxu0 0.0
    %1312 = vmatprep.subr.mxu0 0.0
    %1313 = vmatpush1.msra.mxu0 0.0
    %1314 = vmatprep.subr.mxu0 0.0
    %1315 = vmatpush1.msra.mxu0 0.0
    %1316 = vmatprep.subr.mxu0 0.0
    %1317 = vmatpush1.msra.mxu0 0.0
    %1318 = vmatprep.subr.mxu0 0.0
    %1319 = vmatpush1.msra.mxu0 0.0
    %1320 = vmatprep.subr.mxu0 0.0
    %1321 = vmatpush1.msra.mxu0 0.0
    %1322 = vmatprep.subr.mxu0 0.0
    %1323 = vmatpush1.msra.mxu0 0.0
    %1324 = vmatprep.subr.mxu0 0.0
    %1325 = vmatpush1.msra.mxu0 0.0
    %1326 = vmatprep.subr.mxu0 0.0
    %1327 = vmatpush1.msra.mxu0 0.0
    %1328 = vmatprep.subr.mxu0 0.0
    %1329 = vmatpush1.msra.mxu0 0.0
    %1330 = vmatprep.subr.mxu0 0.0
    %1331 = vmatpush1.msra.mxu0 0.0
    %1332 = vmatprep.subr.mxu0 0.0
    %1333 = vmatpush1.msra.mxu0 0.0
    %1334 = vmatprep.subr.mxu0 0.0
    %1335 = vmatpush1.msra.mxu0 0.0
    %1336 = vmatprep.subr.mxu0 0.0
    %1337 = vmatpush1.msra.mxu0 0.0
    %1338 = vmatprep.mubr.f32.mxu0 0.0
    %v1339 = vand.u32 %v158, 4294901760
    %1340 = vmatmul.mubr.f32.gmra.mrb[0].mxu0 %v1339
    %v1341 = vpop.f32.mrb[0].mxu0
    %v1342 = vadd.f32 %v471, %v1341
    %v1343 = vpop.f32.mrb[0].mxu0
    %1344 = vmatprep.mubr.f32.mxu0 0.0
    %v1345 = vand.u32 %v161, 4294901760
    %1346 = vmatmul.mubr.f32.gmra.mrb[0].mxu0 %v1345
    %v1347 = vpop.f32.mrb[0].mxu0
    %v1348 = vadd.f32 %v481, %v1347
    %v1349 = vpop.f32.mrb[0].mxu0
    %1350 = vmatprep.mubr.f32.mxu0 0.0
    %v1351 = vand.u32 %v164, 4294901760
    %1352 = vmatmul.mubr.f32.gmra.mrb[0].mxu0 %v1351
    %v1353 = vpop.f32.mrb[0].mxu0
    %v1354 = vadd.f32 %v491, %v1353
    %v1355 = vpop.f32.mrb[0].mxu0
    %1356 = vmatprep.mubr.f32.mxu0 0.0
    %v1357 = vand.u32 %v167, 4294901760
    %1358 = vmatmul.mubr.f32.gmra.mrb[0].mxu0 %v1357
    %v1359 = vpop.f32.mrb[0].mxu0
    %v1360 = vadd.f32 %v501, %v1359
    %v1361 = vpop.f32.mrb[0].mxu0
    %1362 = vmatprep.mubr.f32.mxu0 0.0
    %v1363 = vand.u32 %v170, 4294901760
    %1364 = vmatmul.mubr.f32.gmra.mrb[0].mxu0 %v1363
    %v1365 = vpop.f32.mrb[0].mxu0
    %v1366 = vadd.f32 %v511, %v1365
    %v1367 = vpop.f32.mrb[0].mxu0
    %1368 = vmatprep.mubr.f32.mxu0 0.0
    %v1369 = vand.u32 %v173, 4294901760
    %1370 = vmatmul.mubr.f32.gmra.mrb[0].mxu0 %v1369
    %v1371 = vpop.f32.mrb[0].mxu0
    %v1372 = vadd.f32 %v521, %v1371
    %v1373 = vpop.f32.mrb[0].mxu0
    %1374 = vmatprep.mubr.f32.mxu0 0.0
    %v1375 = vand.u32 %v176, 4294901760
    %1376 = vmatmul.mubr.f32.gmra.mrb[0].mxu0 %v1375
    %v1377 = vpop.f32.mrb[0].mxu0
    %v1378 = vadd.f32 %v531, %v1377
    %v1379 = vpop.f32.mrb[0].mxu0
    %1380 = vmatprep.mubr.f32.mxu0 0.0
    %v1381 = vand.u32 %v179, 4294901760
    %1382 = vmatmul.mubr.f32.gmra.mrb[0].mxu0 %v1381
    %v1383 = vpop.f32.mrb[0].mxu0
    %v1384 = vadd.f32 %v541, %v1383
    %v1385 = vpop.f32.mrb[0].mxu0
    %1386 = vmatprep.mubr.f32.mxu0 0.0
    %v1387 = vand.u32 %v182, 4294901760
    %1388 = vmatmul.mubr.f32.gmra.mrb[0].mxu0 %v1387
    %v1389 = vpop.f32.mrb[0].mxu0
    %v1390 = vadd.f32 %v551, %v1389
    %v1391 = vpop.f32.mrb[0].mxu0
    %1392 = vmatprep.mubr.f32.mxu0 0.0
    %v1393 = vand.u32 %v185, 4294901760
    %1394 = vmatmul.mubr.f32.gmra.mrb[0].mxu0 %v1393
    %v1395 = vpop.f32.mrb[0].mxu0
    %v1396 = vadd.f32 %v561, %v1395
    %v1397 = vpop.f32.mrb[0].mxu0
    %1398 = vmatprep.mubr.f32.mxu0 0.0
    %v1399 = vand.u32 %v188, 4294901760
    %1400 = vmatmul.mubr.f32.gmra.mrb[0].mxu0 %v1399
    %v1401 = vpop.f32.mrb[0].mxu0
    %v1402 = vadd.f32 %v571, %v1401
    %v1403 = vpop.f32.mrb[0].mxu0
    %1404 = vmatprep.mubr.f32.mxu0 0.0
    %v1405 = vand.u32 %v191, 4294901760
    %1406 = vmatmul.mubr.f32.gmra.mrb[0].mxu0 %v1405
    %v1407 = vpop.f32.mrb[0].mxu0
    %v1408 = vadd.f32 %v581, %v1407
    %v1409 = vpop.f32.mrb[0].mxu0
    %1410 = vmatprep.mubr.f32.mxu0 0.0
    %v1411 = vand.u32 %v194, 4294901760
    %1412 = vmatmul.mubr.f32.gmra.mrb[0].mxu0 %v1411
    %v1413 = vpop.f32.mrb[0].mxu0
    %v1414 = vadd.f32 %v591, %v1413
    %v1415 = vpop.f32.mrb[0].mxu0
    %1416 = vmatprep.mubr.f32.mxu0 0.0
    %v1417 = vand.u32 %v197, 4294901760
    %1418 = vmatmul.mubr.f32.gmra.mrb[0].mxu0 %v1417
    %v1419 = vpop.f32.mrb[0].mxu0
    %v1420 = vadd.f32 %v601, %v1419
    %v1421 = vpop.f32.mrb[0].mxu0
    %1422 = vmatprep.mubr.f32.mxu0 0.0
    %v1423 = vand.u32 %v200, 4294901760
    %1424 = vmatmul.mubr.f32.gmra.mrb[0].mxu0 %v1423
    %v1425 = vpop.f32.mrb[0].mxu0
    %v1426 = vadd.f32 %v611, %v1425
    %v1427 = vpop.f32.mrb[0].mxu0
    %1428 = vmatprep.mubr.f32.mxu0 0.0
    %v1429 = vand.u32 %v203, 4294901760
    %1430 = vmatmul.mubr.f32.gmra.mrb[0].mxu0 %v1429
    %v1431 = vpop.f32.mrb[0].mxu0
    %v1432 = vadd.f32 %v621, %v1431
    %v1433 = vpop.f32.mrb[0].mxu0
    %1434 = vmatprep.mubr.f32.mxu0 0.0
    %v1435 = vand.u32 %v206, 4294901760
    %1436 = vmatmul.mubr.f32.gmra.mrb[0].mxu0 %v1435
    %v1437 = vpop.f32.mrb[0].mxu0
    %v1438 = vadd.f32 %v631, %v1437
    %v1439 = vpop.f32.mrb[0].mxu0
    %1440 = vmatprep.mubr.f32.mxu0 0.0
    %v1441 = vand.u32 %v209, 4294901760
    %1442 = vmatmul.mubr.f32.gmra.mrb[0].mxu0 %v1441
    %v1443 = vpop.f32.mrb[0].mxu0
    %v1444 = vadd.f32 %v641, %v1443
    %v1445 = vpop.f32.mrb[0].mxu0
    %1446 = vmatprep.mubr.f32.mxu0 0.0
    %v1447 = vand.u32 %v212, 4294901760
    %1448 = vmatmul.mubr.f32.gmra.mrb[0].mxu0 %v1447
    %v1449 = vpop.f32.mrb[0].mxu0
    %v1450 = vadd.f32 %v651, %v1449
    %v1451 = vpop.f32.mrb[0].mxu0
    %1452 = vmatprep.mubr.f32.mxu0 0.0
    %v1453 = vand.u32 %v215, 4294901760
    %1454 = vmatmul.mubr.f32.gmra.mrb[0].mxu0 %v1453
    %v1455 = vpop.f32.mrb[0].mxu0
    %v1456 = vadd.f32 %v661, %v1455
    %v1457 = vpop.f32.mrb[0].mxu0
    %1458 = vmatprep.mubr.f32.mxu0 0.0
    %v1459 = vand.u32 %v218, 4294901760
    %1460 = vmatmul.mubr.f32.gmra.mrb[0].mxu0 %v1459
    %v1461 = vpop.f32.mrb[0].mxu0
    %v1462 = vadd.f32 %v671, %v1461
    %v1463 = vpop.f32.mrb[0].mxu0
    %1464 = vmatprep.mubr.f32.mxu0 0.0
    %v1465 = vand.u32 %v221, 4294901760
    %1466 = vmatmul.mubr.f32.gmra.mrb[0].mxu0 %v1465
    %v1467 = vpop.f32.mrb[0].mxu0
    %v1468 = vadd.f32 %v681, %v1467
    %v1469 = vpop.f32.mrb[0].mxu0
    %1470 = vmatprep.mubr.f32.mxu0 0.0
    %v1471 = vand.u32 %v224, 4294901760
    %1472 = vmatmul.mubr.f32.gmra.mrb[0].mxu0 %v1471
    %v1473 = vpop.f32.mrb[0].mxu0
    %v1474 = vadd.f32 %v691, %v1473
    %v1475 = vpop.f32.mrb[0].mxu0
    %1476 = vmatprep.mubr.f32.mxu0 0.0
    %v1477 = vand.u32 %v227, 4294901760
    %1478 = vmatmul.mubr.f32.gmra.mrb[0].mxu0 %v1477
    %v1479 = vpop.f32.mrb[0].mxu0
    %v1480 = vadd.f32 %v701, %v1479
    %v1481 = vpop.f32.mrb[0].mxu0
    %1482 = vmatprep.mubr.f32.mxu0 0.0
    %v1483 = vand.u32 %v230, 4294901760
    %1484 = vmatmul.mubr.f32.gmra.mrb[0].mxu0 %v1483
    %v1485 = vpop.f32.mrb[0].mxu0
    %v1486 = vadd.f32 %v711, %v1485
    %v1487 = vpop.f32.mrb[0].mxu0
    %1488 = vmatprep.mubr.f32.mxu0 0.0
    %v1489 = vand.u32 %v233, 4294901760
    %1490 = vmatmul.mubr.f32.gmra.mrb[0].mxu0 %v1489
    %v1491 = vpop.f32.mrb[0].mxu0
    %v1492 = vadd.f32 %v721, %v1491
    %v1493 = vpop.f32.mrb[0].mxu0
    %1494 = vmatprep.mubr.f32.mxu0 0.0
    %v1495 = vand.u32 %v236, 4294901760
    %1496 = vmatmul.mubr.f32.gmra.mrb[0].mxu0 %v1495
    %v1497 = vpop.f32.mrb[0].mxu0
    %v1498 = vadd.f32 %v731, %v1497
    %v1499 = vpop.f32.mrb[0].mxu0
    %1500 = vmatprep.mubr.f32.mxu0 0.0
    %v1501 = vand.u32 %v239, 4294901760
    %1502 = vmatmul.mubr.f32.gmra.mrb[0].mxu0 %v1501
    %v1503 = vpop.f32.mrb[0].mxu0
    %v1504 = vadd.f32 %v741, %v1503
    %v1505 = vpop.f32.mrb[0].mxu0
    %1506 = vmatprep.mubr.f32.mxu0 0.0
    %v1507 = vand.u32 %v242, 4294901760
    %1508 = vmatmul.mubr.f32.gmra.mrb[0].mxu0 %v1507
    %v1509 = vpop.f32.mrb[0].mxu0
    %v1510 = vadd.f32 %v751, %v1509
    %v1511 = vpop.f32.mrb[0].mxu0
    %1512 = vmatprep.mubr.f32.mxu0 0.0
    %v1513 = vand.u32 %v245, 4294901760
    %1514 = vmatmul.mubr.f32.gmra.mrb[0].mxu0 %v1513
    %v1515 = vpop.f32.mrb[0].mxu0
    %v1516 = vadd.f32 %v761, %v1515
    %v1517 = vpop.f32.mrb[0].mxu0
    %1518 = vmatprep.mubr.f32.mxu0 0.0
    %v1519 = vand.u32 %v248, 4294901760
    %1520 = vmatmul.mubr.f32.gmra.mrb[0].mxu0 %v1519
    %v1521 = vpop.f32.mrb[0].mxu0
    %v1522 = vadd.f32 %v771, %v1521
    %v1523 = vpop.f32.mrb[0].mxu0
    %1524 = vmatprep.mubr.f32.mxu0 0.0
    %v1525 = vand.u32 %v251, 4294901760
    %1526 = vmatmul.mubr.f32.gmra.mrb[0].mxu0 %v1525
    %v1527 = vpop.f32.mrb[0].mxu0
    %v1528 = vadd.f32 %v781, %v1527
    %v1529 = vpop.f32.mrb[0].mxu0
    %1530 = vmatprep.mubr.f32.mxu0 0.0
    %v1531 = vand.u32 %v254, 4294901760
    %1532 = vmatmul.mubr.f32.gmra.mrb[0].mxu0 %v1531
    %v1533 = vpop.f32.mrb[0].mxu0
    %v1534 = vadd.f32 %v791, %v1533
    %v1535 = vpop.f32.mrb[0].mxu0
    %1536 = vmatprep.mubr.f32.mxu0 0.0
    %v1537 = vand.u32 %v257, 4294901760
    %1538 = vmatmul.mubr.f32.gmra.mrb[0].mxu0 %v1537
    %v1539 = vpop.f32.mrb[0].mxu0
    %v1540 = vadd.f32 %v801, %v1539
    %v1541 = vpop.f32.mrb[0].mxu0
    %1542 = vmatprep.mubr.f32.mxu0 0.0
    %v1543 = vand.u32 %v260, 4294901760
    %1544 = vmatmul.mubr.f32.gmra.mrb[0].mxu0 %v1543
    %v1545 = vpop.f32.mrb[0].mxu0
    %v1546 = vadd.f32 %v811, %v1545
    %v1547 = vpop.f32.mrb[0].mxu0
    %1548 = vmatprep.mubr.f32.mxu0 0.0
    %v1549 = vand.u32 %v263, 4294901760
    %1550 = vmatmul.mubr.f32.gmra.mrb[0].mxu0 %v1549
    %v1551 = vpop.f32.mrb[0].mxu0
    %v1552 = vadd.f32 %v821, %v1551
    %v1553 = vpop.f32.mrb[0].mxu0
    %1554 = vmatprep.mubr.f32.mxu0 0.0
    %v1555 = vand.u32 %v266, 4294901760
    %1556 = vmatmul.mubr.f32.gmra.mrb[0].mxu0 %v1555
    %v1557 = vpop.f32.mrb[0].mxu0
    %v1558 = vadd.f32 %v831, %v1557
    %v1559 = vpop.f32.mrb[0].mxu0
    %1560 = vmatprep.mubr.f32.mxu0 0.0
    %v1561 = vand.u32 %v269, 4294901760
    %1562 = vmatmul.mubr.f32.gmra.mrb[0].mxu0 %v1561
    %v1563 = vpop.f32.mrb[0].mxu0
    %v1564 = vadd.f32 %v841, %v1563
    %v1565 = vpop.f32.mrb[0].mxu0
    %1566 = vmatprep.mubr.f32.mxu0 0.0
    %v1567 = vand.u32 %v272, 4294901760
    %1568 = vmatmul.mubr.f32.gmra.mrb[0].mxu0 %v1567
    %v1569 = vpop.f32.mrb[0].mxu0
    %v1570 = vadd.f32 %v851, %v1569
    %v1571 = vpop.f32.mrb[0].mxu0
    %1572 = vmatprep.mubr.f32.mxu0 0.0
    %v1573 = vand.u32 %v275, 4294901760
    %1574 = vmatmul.mubr.f32.gmra.mrb[0].mxu0 %v1573
    %v1575 = vpop.f32.mrb[0].mxu0
    %v1576 = vadd.f32 %v861, %v1575
    %v1577 = vpop.f32.mrb[0].mxu0
    %1578 = vmatprep.mubr.f32.mxu0 0.0
    %v1579 = vand.u32 %v278, 4294901760
    %1580 = vmatmul.mubr.f32.gmra.mrb[0].mxu0 %v1579
    %v1581 = vpop.f32.mrb[0].mxu0
    %v1582 = vadd.f32 %v871, %v1581
    %v1583 = vpop.f32.mrb[0].mxu0
    %1584 = vmatprep.mubr.f32.mxu0 0.0
    %v1585 = vand.u32 %v281, 4294901760
    %1586 = vmatmul.mubr.f32.gmra.mrb[0].mxu0 %v1585
    %v1587 = vpop.f32.mrb[0].mxu0
    %v1588 = vadd.f32 %v881, %v1587
    %v1589 = vpop.f32.mrb[0].mxu0
    %1590 = vmatprep.mubr.f32.mxu0 0.0
    %v1591 = vand.u32 %v284, 4294901760
    %1592 = vmatmul.mubr.f32.gmra.mrb[0].mxu0 %v1591
    %v1593 = vpop.f32.mrb[0].mxu0
    %v1594 = vadd.f32 %v891, %v1593
    %v1595 = vpop.f32.mrb[0].mxu0
    %1596 = vmatprep.mubr.f32.mxu0 0.0
    %v1597 = vand.u32 %v287, 4294901760
    %1598 = vmatmul.mubr.f32.gmra.mrb[0].mxu0 %v1597
    %v1599 = vpop.f32.mrb[0].mxu0
    %v1600 = vadd.f32 %v901, %v1599
    %v1601 = vpop.f32.mrb[0].mxu0
    %1602 = vmatprep.mubr.f32.mxu0 0.0
    %v1603 = vand.u32 %v290, 4294901760
    %1604 = vmatmul.mubr.f32.gmra.mrb[0].mxu0 %v1603
    %v1605 = vpop.f32.mrb[0].mxu0
    %v1606 = vadd.f32 %v911, %v1605
    %v1607 = vpop.f32.mrb[0].mxu0
    %1608 = vmatprep.mubr.f32.mxu0 0.0
    %v1609 = vand.u32 %v293, 4294901760
    %1610 = vmatmul.mubr.f32.gmra.mrb[0].mxu0 %v1609
    %v1611 = vpop.f32.mrb[0].mxu0
    %v1612 = vadd.f32 %v921, %v1611
    %v1613 = vpop.f32.mrb[0].mxu0
    %1614 = vmatprep.mubr.f32.mxu0 0.0
    %v1615 = vand.u32 %v296, 4294901760
    %1616 = vmatmul.mubr.f32.gmra.mrb[0].mxu0 %v1615
    %v1617 = vpop.f32.mrb[0].mxu0
    %v1618 = vadd.f32 %v931, %v1617
    %v1619 = vpop.f32.mrb[0].mxu0
    %1620 = vmatprep.mubr.f32.mxu0 0.0
    %v1621 = vand.u32 %v299, 4294901760
    %1622 = vmatmul.mubr.f32.gmra.mrb[0].mxu0 %v1621
    %v1623 = vpop.f32.mrb[0].mxu0
    %v1624 = vadd.f32 %v941, %v1623
    %v1625 = vpop.f32.mrb[0].mxu0
    %1626 = vmatprep.mubr.f32.mxu0 0.0
    %v1627 = vand.u32 %v302, 4294901760
    %1628 = vmatmul.mubr.f32.gmra.mrb[0].mxu0 %v1627
    %v1629 = vpop.f32.mrb[0].mxu0
    %v1630 = vadd.f32 %v951, %v1629
    %v1631 = vpop.f32.mrb[0].mxu0
    %1632 = vmatprep.mubr.f32.mxu0 0.0
    %v1633 = vand.u32 %v305, 4294901760
    %1634 = vmatmul.mubr.f32.gmra.mrb[0].mxu0 %v1633
    %v1635 = vpop.f32.mrb[0].mxu0
    %v1636 = vadd.f32 %v961, %v1635
    %v1637 = vpop.f32.mrb[0].mxu0
    %1638 = vmatprep.mubr.f32.mxu0 0.0
    %v1639 = vand.u32 %v308, 4294901760
    %1640 = vmatmul.mubr.f32.gmra.mrb[0].mxu0 %v1639
    %v1641 = vpop.f32.mrb[0].mxu0
    %v1642 = vadd.f32 %v971, %v1641
    %v1643 = vpop.f32.mrb[0].mxu0
    %1644 = vmatprep.mubr.f32.mxu0 0.0
    %v1645 = vand.u32 %v311, 4294901760
    %1646 = vmatmul.mubr.f32.gmra.mrb[0].mxu0 %v1645
    %v1647 = vpop.f32.mrb[0].mxu0
    %v1648 = vadd.f32 %v981, %v1647
    %v1649 = vpop.f32.mrb[0].mxu0
    %1650 = vmatprep.mubr.f32.mxu0 0.0
    %v1651 = vand.u32 %v314, 4294901760
    %1652 = vmatmul.mubr.f32.gmra.mrb[0].mxu0 %v1651
    %v1653 = vpop.f32.mrb[0].mxu0
    %v1654 = vadd.f32 %v991, %v1653
    %v1655 = vpop.f32.mrb[0].mxu0
    %1656 = vmatprep.mubr.f32.mxu0 0.0
    %v1657 = vand.u32 %v317, 4294901760
    %1658 = vmatmul.mubr.f32.gmra.mrb[0].mxu0 %v1657
    %v1659 = vpop.f32.mrb[0].mxu0
    %v1660 = vadd.f32 %v1001, %v1659
    %v1661 = vpop.f32.mrb[0].mxu0
    %1662 = vmatprep.mubr.f32.mxu0 0.0
    %v1663 = vand.u32 %v320, 4294901760
    %1664 = vmatmul.mubr.f32.gmra.mrb[0].mxu0 %v1663
    %v1665 = vpop.f32.mrb[0].mxu0
    %v1666 = vadd.f32 %v1011, %v1665
    %v1667 = vpop.f32.mrb[0].mxu0
    %1668 = vmatprep.mubr.f32.mxu0 0.0
    %v1669 = vand.u32 %v323, 4294901760
    %1670 = vmatmul.mubr.f32.gmra.mrb[0].mxu0 %v1669
    %v1671 = vpop.f32.mrb[0].mxu0
    %v1672 = vadd.f32 %v1021, %v1671
    %v1673 = vpop.f32.mrb[0].mxu0
    %1674 = vmatprep.mubr.f32.mxu0 0.0
    %v1675 = vand.u32 %v326, 4294901760
    %1676 = vmatmul.mubr.f32.gmra.mrb[0].mxu0 %v1675
    %v1677 = vpop.f32.mrb[0].mxu0
    %v1678 = vadd.f32 %v1031, %v1677
    %v1679 = vpop.f32.mrb[0].mxu0
    %1680 = vmatprep.mubr.f32.mxu0 0.0
    %v1681 = vand.u32 %v329, 4294901760
    %1682 = vmatmul.mubr.f32.gmra.mrb[0].mxu0 %v1681
    %v1683 = vpop.f32.mrb[0].mxu0
    %v1684 = vadd.f32 %v1041, %v1683
    %v1685 = vpop.f32.mrb[0].mxu0
    %1686 = vmatprep.mubr.f32.mxu0 0.0
    %v1687 = vand.u32 %v332, 4294901760
    %1688 = vmatmul.mubr.f32.gmra.mrb[0].mxu0 %v1687
    %v1689 = vpop.f32.mrb[0].mxu0
    %v1690 = vadd.f32 %v1051, %v1689
    %v1691 = vpop.f32.mrb[0].mxu0
    %1692 = vmatprep.mubr.f32.mxu0 0.0
    %v1693 = vand.u32 %v335, 4294901760
    %1694 = vmatmul.mubr.f32.gmra.mrb[0].mxu0 %v1693
    %v1695 = vpop.f32.mrb[0].mxu0
    %v1696 = vadd.f32 %v1061, %v1695
    %v1697 = vpop.f32.mrb[0].mxu0
    %1698 = vmatprep.mubr.f32.mxu0 0.0
    %v1699 = vand.u32 %v338, 4294901760
    %1700 = vmatmul.mubr.f32.gmra.mrb[0].mxu0 %v1699
    %v1701 = vpop.f32.mrb[0].mxu0
    %v1702 = vadd.f32 %v1071, %v1701
    %v1703 = vpop.f32.mrb[0].mxu0
    %1704 = vmatprep.mubr.f32.mxu0 0.0
    %v1705 = vand.u32 %v341, 4294901760
    %1706 = vmatmul.mubr.f32.gmra.mrb[0].mxu0 %v1705
    %v1707 = vpop.f32.mrb[0].mxu0
    %v1708 = vadd.f32 %v1081, %v1707
    %v1709 = vpop.f32.mrb[0].mxu0
    %1710 = vmatprep.mubr.f32.mxu0 0.0
    %v1711 = vand.u32 %v344, 4294901760
    %1712 = vmatmul.mubr.f32.gmra.mrb[0].mxu0 %v1711
    %v1713 = vpop.f32.mrb[0].mxu0
    %v1714 = vadd.f32 %v1091, %v1713
    %v1715 = vpop.f32.mrb[0].mxu0
    %1716 = vmatprep.mubr.f32.mxu0 0.0
    %v1717 = vand.u32 %v347, 4294901760
    %1718 = vmatmul.mubr.f32.gmra.mrb[0].mxu0 %v1717
    %v1719 = vpop.f32.mrb[0].mxu0
    %v1720 = vadd.f32 %v1101, %v1719
    %v1721 = vpop.f32.mrb[0].mxu0
    %1722 = vmatprep.mubr.f32.mxu0 0.0
    %v1723 = vand.u32 %v350, 4294901760
    %1724 = vmatmul.mubr.f32.gmra.mrb[0].mxu0 %v1723
    %v1725 = vpop.f32.mrb[0].mxu0
    %v1726 = vadd.f32 %v1111, %v1725
    %v1727 = vpop.f32.mrb[0].mxu0
    %1728 = vmatprep.mubr.f32.mxu0 0.0
    %v1729 = vand.u32 %v353, 4294901760
    %1730 = vmatmul.mubr.f32.gmra.mrb[0].mxu0 %v1729
    %v1731 = vpop.f32.mrb[0].mxu0
    %v1732 = vadd.f32 %v1121, %v1731
    %v1733 = vpop.f32.mrb[0].mxu0
    %1734 = vmatprep.mubr.f32.mxu0 0.0
    %v1735 = vand.u32 %v356, 4294901760
    %1736 = vmatmul.mubr.f32.gmra.mrb[0].mxu0 %v1735
    %v1737 = vpop.f32.mrb[0].mxu0
    %v1738 = vadd.f32 %v1131, %v1737
    %v1739 = vpop.f32.mrb[0].mxu0
    %1740 = vmatprep.mubr.f32.mxu0 0.0
    %v1741 = vand.u32 %v359, 4294901760
    %1742 = vmatmul.mubr.f32.gmra.mrb[0].mxu0 %v1741
    %v1743 = vpop.f32.mrb[0].mxu0
    %v1744 = vadd.f32 %v1141, %v1743
    %v1745 = vpop.f32.mrb[0].mxu0
    %1746 = vmatprep.mubr.f32.mxu0 0.0
    %v1747 = vand.u32 %v362, 4294901760
    %1748 = vmatmul.mubr.f32.gmra.mrb[0].mxu0 %v1747
    %v1749 = vpop.f32.mrb[0].mxu0
    %v1750 = vadd.f32 %v1151, %v1749
    %v1751 = vpop.f32.mrb[0].mxu0
    %1752 = vmatprep.mubr.f32.mxu0 0.0
    %v1753 = vand.u32 %v365, 4294901760
    %1754 = vmatmul.mubr.f32.gmra.mrb[0].mxu0 %v1753
    %v1755 = vpop.f32.mrb[0].mxu0
    %v1756 = vadd.f32 %v1161, %v1755
    %v1757 = vpop.f32.mrb[0].mxu0
    %1758 = vmatprep.mubr.f32.mxu0 0.0
    %v1759 = vand.u32 %v368, 4294901760
    %1760 = vmatmul.mubr.f32.gmra.mrb[0].mxu0 %v1759
    %v1761 = vpop.f32.mrb[0].mxu0
    %v1762 = vadd.f32 %v1171, %v1761
    %v1763 = vpop.f32.mrb[0].mxu0
    %1764 = vmatprep.mubr.f32.mxu0 0.0
    %v1765 = vand.u32 %v371, 4294901760
    %1766 = vmatmul.mubr.f32.gmra.mrb[0].mxu0 %v1765
    %v1767 = vpop.f32.mrb[0].mxu0
    %v1768 = vadd.f32 %v1181, %v1767
    %v1769 = vpop.f32.mrb[0].mxu0
    %1770 = vmatprep.mubr.f32.mxu0 0.0
    %v1771 = vand.u32 %v374, 4294901760
    %1772 = vmatmul.mubr.f32.gmra.mrb[0].mxu0 %v1771
    %v1773 = vpop.f32.mrb[0].mxu0
    %v1774 = vadd.f32 %v1191, %v1773
    %v1775 = vpop.f32.mrb[0].mxu0
    %1776 = vmatprep.mubr.f32.mxu0 0.0
    %v1777 = vand.u32 %v377, 4294901760
    %1778 = vmatmul.mubr.f32.gmra.mrb[0].mxu0 %v1777
    %v1779 = vpop.f32.mrb[0].mxu0
    %v1780 = vadd.f32 %v1201, %v1779
    %v1781 = vpop.f32.mrb[0].mxu0
    %1782 = vmatprep.mubr.f32.mxu0 0.0
    %v1783 = vand.u32 %v380, 4294901760
    %1784 = vmatmul.mubr.f32.gmra.mrb[0].mxu0 %v1783
    %v1785 = vpop.f32.mrb[0].mxu0
    %v1786 = vadd.f32 %v1211, %v1785
    %v1787 = vpop.f32.mrb[0].mxu0
    %1788 = vmatprep.mubr.f32.mxu0 0.0
    %v1789 = vand.u32 %v383, 4294901760
    %1790 = vmatmul.mubr.f32.gmra.mrb[0].mxu0 %v1789
    %v1791 = vpop.f32.mrb[0].mxu0
    %v1792 = vadd.f32 %v1221, %v1791
    %v1793 = vpop.f32.mrb[0].mxu0
    %1794 = vmatprep.mubr.f32.mxu0 0.0
    %v1795 = vand.u32 %v386, 4294901760
    %1796 = vmatmul.mubr.f32.gmra.mrb[0].mxu0 %v1795
    %v1797 = vpop.f32.mrb[0].mxu0
    %v1798 = vadd.f32 %v1231, %v1797
    %v1799 = vpop.f32.mrb[0].mxu0
    %1800 = vmatprep.mubr.f32.mxu0 0.0
    %v1801 = vand.u32 %v389, 4294901760
    %1802 = vmatmul.mubr.f32.gmra.mrb[0].mxu0 %v1801
    %v1803 = vpop.f32.mrb[0].mxu0
    %v1804 = vadd.f32 %v1241, %v1803
    %v1805 = vpop.f32.mrb[0].mxu0
    %1806 = vmatprep.mubr.f32.mxu0 0.0
    %v1807 = vand.u32 %v392, 4294901760
    %1808 = vmatmul.mubr.f32.gmra.mrb[0].mxu0 %v1807
    %v1809 = vpop.f32.mrb[0].mxu0
    %v1810 = vadd.f32 %v1251, %v1809
    %v1811 = vpop.f32.mrb[0].mxu0
    %1812 = vmatprep.mubr.f32.mxu0 0.0
    %v1813 = vand.u32 %v395, 4294901760
    %1814 = vmatmul.mubr.f32.gmra.mrb[0].mxu0 %v1813
    %v1815 = vpop.f32.mrb[0].mxu0
    %v1816 = vadd.f32 %v1261, %v1815
    %v1817 = vpop.f32.mrb[0].mxu0
    %1818 = vdwg.mxu0
    %1819 = vmatprep.subr.mxu0 0.0
    %v1820 = vand.u32 %v106, 4294901760
    %v1821 = vsub.f32 %v106, %v1820
    %1822 = vmatpush1.msra.mxu0 %v1821
    %1823 = vmatprep.subr.mxu0 0.0
    %v1824 = vand.u32 %v107, 4294901760
    %v1825 = vsub.f32 %v107, %v1824
    %1826 = vmatpush1.msra.mxu0 %v1825
    %1827 = vmatprep.subr.mxu0 0.0
    %1828 = vmatpush1.msra.mxu0 0.0
    %1829 = vmatprep.subr.mxu0 0.0
    %1830 = vmatpush1.msra.mxu0 0.0
    %1831 = vmatprep.subr.mxu0 0.0
    %1832 = vmatpush1.msra.mxu0 0.0
    %1833 = vmatprep.subr.mxu0 0.0
    %1834 = vmatpush1.msra.mxu0 0.0
    %1835 = vmatprep.subr.mxu0 0.0
    %1836 = vmatpush1.msra.mxu0 0.0
    %1837 = vmatprep.subr.mxu0 0.0
    %1838 = vmatpush1.msra.mxu0 0.0
    %1839 = vmatprep.subr.mxu0 0.0
    %1840 = vmatpush1.msra.mxu0 0.0
    %1841 = vmatprep.subr.mxu0 0.0
    %1842 = vmatpush1.msra.mxu0 0.0
    %1843 = vmatprep.subr.mxu0 0.0
    %1844 = vmatpush1.msra.mxu0 0.0
    %1845 = vmatprep.subr.mxu0 0.0
    %1846 = vmatpush1.msra.mxu0 0.0
    %1847 = vmatprep.subr.mxu0 0.0
    %1848 = vmatpush1.msra.mxu0 0.0
    %1849 = vmatprep.subr.mxu0 0.0
    %1850 = vmatpush1.msra.mxu0 0.0
    %1851 = vmatprep.subr.mxu0 0.0
    %1852 = vmatpush1.msra.mxu0 0.0
    %1853 = vmatprep.subr.mxu0 0.0
    %1854 = vmatpush1.msra.mxu0 0.0
    %1855 = vmatprep.subr.mxu0 0.0
    %1856 = vmatpush1.msra.mxu0 0.0
    %1857 = vmatprep.subr.mxu0 0.0
    %1858 = vmatpush1.msra.mxu0 0.0
    %1859 = vmatprep.subr.mxu0 0.0
    %1860 = vmatpush1.msra.mxu0 0.0
    %1861 = vmatprep.subr.mxu0 0.0
    %1862 = vmatpush1.msra.mxu0 0.0
    %1863 = vmatprep.subr.mxu0 0.0
    %1864 = vmatpush1.msra.mxu0 0.0
    %1865 = vmatprep.subr.mxu0 0.0
    %1866 = vmatpush1.msra.mxu0 0.0
    %1867 = vmatprep.subr.mxu0 0.0
    %1868 = vmatpush1.msra.mxu0 0.0
    %1869 = vmatprep.subr.mxu0 0.0
    %1870 = vmatpush1.msra.mxu0 0.0
    %1871 = vmatprep.subr.mxu0 0.0
    %1872 = vmatpush1.msra.mxu0 0.0
    %1873 = vmatprep.subr.mxu0 0.0
    %1874 = vmatpush1.msra.mxu0 0.0
    %1875 = vmatprep.subr.mxu0 0.0
    %1876 = vmatpush1.msra.mxu0 0.0
    %1877 = vmatprep.subr.mxu0 0.0
    %1878 = vmatpush1.msra.mxu0 0.0
    %1879 = vmatprep.subr.mxu0 0.0
    %1880 = vmatpush1.msra.mxu0 0.0
    %1881 = vmatprep.subr.mxu0 0.0
    %1882 = vmatpush1.msra.mxu0 0.0
    %1883 = vmatprep.subr.mxu0 0.0
    %1884 = vmatpush1.msra.mxu0 0.0
    %1885 = vmatprep.subr.mxu0 0.0
    %1886 = vmatpush1.msra.mxu0 0.0
    %1887 = vmatprep.mubr.f32.mxu0 0.0
    %v1888 = vand.u32 %v158, 4294901760
    %v1889 = vsub.f32 %v158, %v1888
    %1890 = vmatmul.mubr.f32.gmra.mrb[0].mxu0 %v1889
    %v1891 = vpop.f32.mrb[0].mxu0
    %v1892 = vadd.f32 %v1342, %v1891
    %v1893 = vpop.f32.mrb[0].mxu0
    %1894 = vmatprep.mubr.f32.mxu0 0.0
    %v1895 = vand.u32 %v161, 4294901760
    %v1896 = vsub.f32 %v161, %v1895
    %1897 = vmatmul.mubr.f32.gmra.mrb[0].mxu0 %v1896
    %v1898 = vpop.f32.mrb[0].mxu0
    %v1899 = vadd.f32 %v1348, %v1898
    %v1900 = vpop.f32.mrb[0].mxu0
    %1901 = vmatprep.mubr.f32.mxu0 0.0
    %v1902 = vand.u32 %v164, 4294901760
    %v1903 = vsub.f32 %v164, %v1902
    %1904 = vmatmul.mubr.f32.gmra.mrb[0].mxu0 %v1903
    %v1905 = vpop.f32.mrb[0].mxu0
    %v1906 = vadd.f32 %v1354, %v1905
    %v1907 = vpop.f32.mrb[0].mxu0
    %1908 = vmatprep.mubr.f32.mxu0 0.0
    %v1909 = vand.u32 %v167, 4294901760
    %v1910 = vsub.f32 %v167, %v1909
    %1911 = vmatmul.mubr.f32.gmra.mrb[0].mxu0 %v1910
    %v1912 = vpop.f32.mrb[0].mxu0
    %v1913 = vadd.f32 %v1360, %v1912
    %v1914 = vpop.f32.mrb[0].mxu0
    %1915 = vmatprep.mubr.f32.mxu0 0.0
    %v1916 = vand.u32 %v170, 4294901760
    %v1917 = vsub.f32 %v170, %v1916
    %1918 = vmatmul.mubr.f32.gmra.mrb[0].mxu0 %v1917
    %v1919 = vpop.f32.mrb[0].mxu0
    %v1920 = vadd.f32 %v1366, %v1919
    %v1921 = vpop.f32.mrb[0].mxu0
    %1922 = vmatprep.mubr.f32.mxu0 0.0
    %v1923 = vand.u32 %v173, 4294901760
    %v1924 = vsub.f32 %v173, %v1923
    %1925 = vmatmul.mubr.f32.gmra.mrb[0].mxu0 %v1924
    %v1926 = vpop.f32.mrb[0].mxu0
    %v1927 = vadd.f32 %v1372, %v1926
    %v1928 = vpop.f32.mrb[0].mxu0
    %1929 = vmatprep.mubr.f32.mxu0 0.0
    %v1930 = vand.u32 %v176, 4294901760
    %v1931 = vsub.f32 %v176, %v1930
    %1932 = vmatmul.mubr.f32.gmra.mrb[0].mxu0 %v1931
    %v1933 = vpop.f32.mrb[0].mxu0
    %v1934 = vadd.f32 %v1378, %v1933
    %v1935 = vpop.f32.mrb[0].mxu0
    %1936 = vmatprep.mubr.f32.mxu0 0.0
    %v1937 = vand.u32 %v179, 4294901760
    %v1938 = vsub.f32 %v179, %v1937
    %1939 = vmatmul.mubr.f32.gmra.mrb[0].mxu0 %v1938
    %v1940 = vpop.f32.mrb[0].mxu0
    %v1941 = vadd.f32 %v1384, %v1940
    %v1942 = vpop.f32.mrb[0].mxu0
    %1943 = vmatprep.mubr.f32.mxu0 0.0
    %v1944 = vand.u32 %v182, 4294901760
    %v1945 = vsub.f32 %v182, %v1944
    %1946 = vmatmul.mubr.f32.gmra.mrb[0].mxu0 %v1945
    %v1947 = vpop.f32.mrb[0].mxu0
    %v1948 = vadd.f32 %v1390, %v1947
    %v1949 = vpop.f32.mrb[0].mxu0
    %1950 = vmatprep.mubr.f32.mxu0 0.0
    %v1951 = vand.u32 %v185, 4294901760
    %v1952 = vsub.f32 %v185, %v1951
    %1953 = vmatmul.mubr.f32.gmra.mrb[0].mxu0 %v1952
    %v1954 = vpop.f32.mrb[0].mxu0
    %v1955 = vadd.f32 %v1396, %v1954
    %v1956 = vpop.f32.mrb[0].mxu0
    %1957 = vmatprep.mubr.f32.mxu0 0.0
    %v1958 = vand.u32 %v188, 4294901760
    %v1959 = vsub.f32 %v188, %v1958
    %1960 = vmatmul.mubr.f32.gmra.mrb[0].mxu0 %v1959
    %v1961 = vpop.f32.mrb[0].mxu0
    %v1962 = vadd.f32 %v1402, %v1961
    %v1963 = vpop.f32.mrb[0].mxu0
    %1964 = vmatprep.mubr.f32.mxu0 0.0
    %v1965 = vand.u32 %v191, 4294901760
    %v1966 = vsub.f32 %v191, %v1965
    %1967 = vmatmul.mubr.f32.gmra.mrb[0].mxu0 %v1966
    %v1968 = vpop.f32.mrb[0].mxu0
    %v1969 = vadd.f32 %v1408, %v1968
    %v1970 = vpop.f32.mrb[0].mxu0
    %1971 = vmatprep.mubr.f32.mxu0 0.0
    %v1972 = vand.u32 %v194, 4294901760
    %v1973 = vsub.f32 %v194, %v1972
    %1974 = vmatmul.mubr.f32.gmra.mrb[0].mxu0 %v1973
    %v1975 = vpop.f32.mrb[0].mxu0
    %v1976 = vadd.f32 %v1414, %v1975
    %v1977 = vpop.f32.mrb[0].mxu0
    %1978 = vmatprep.mubr.f32.mxu0 0.0
    %v1979 = vand.u32 %v197, 4294901760
    %v1980 = vsub.f32 %v197, %v1979
    %1981 = vmatmul.mubr.f32.gmra.mrb[0].mxu0 %v1980
    %v1982 = vpop.f32.mrb[0].mxu0
    %v1983 = vadd.f32 %v1420, %v1982
    %v1984 = vpop.f32.mrb[0].mxu0
    %1985 = vmatprep.mubr.f32.mxu0 0.0
    %v1986 = vand.u32 %v200, 4294901760
    %v1987 = vsub.f32 %v200, %v1986
    %1988 = vmatmul.mubr.f32.gmra.mrb[0].mxu0 %v1987
    %v1989 = vpop.f32.mrb[0].mxu0
    %v1990 = vadd.f32 %v1426, %v1989
    %v1991 = vpop.f32.mrb[0].mxu0
    %1992 = vmatprep.mubr.f32.mxu0 0.0
    %v1993 = vand.u32 %v203, 4294901760
    %v1994 = vsub.f32 %v203, %v1993
    %1995 = vmatmul.mubr.f32.gmra.mrb[0].mxu0 %v1994
    %v1996 = vpop.f32.mrb[0].mxu0
    %v1997 = vadd.f32 %v1432, %v1996
    %v1998 = vpop.f32.mrb[0].mxu0
    %1999 = vmatprep.mubr.f32.mxu0 0.0
    %v2000 = vand.u32 %v206, 4294901760
    %v2001 = vsub.f32 %v206, %v2000
    %2002 = vmatmul.mubr.f32.gmra.mrb[0].mxu0 %v2001
    %v2003 = vpop.f32.mrb[0].mxu0
    %v2004 = vadd.f32 %v1438, %v2003
    %v2005 = vpop.f32.mrb[0].mxu0
    %2006 = vmatprep.mubr.f32.mxu0 0.0
    %v2007 = vand.u32 %v209, 4294901760
    %v2008 = vsub.f32 %v209, %v2007
    %2009 = vmatmul.mubr.f32.gmra.mrb[0].mxu0 %v2008
    %v2010 = vpop.f32.mrb[0].mxu0
    %v2011 = vadd.f32 %v1444, %v2010
    %v2012 = vpop.f32.mrb[0].mxu0
    %2013 = vmatprep.mubr.f32.mxu0 0.0
    %v2014 = vand.u32 %v212, 4294901760
    %v2015 = vsub.f32 %v212, %v2014
    %2016 = vmatmul.mubr.f32.gmra.mrb[0].mxu0 %v2015
    %v2017 = vpop.f32.mrb[0].mxu0
    %v2018 = vadd.f32 %v1450, %v2017
    %v2019 = vpop.f32.mrb[0].mxu0
    %2020 = vmatprep.mubr.f32.mxu0 0.0
    %v2021 = vand.u32 %v215, 4294901760
    %v2022 = vsub.f32 %v215, %v2021
    %2023 = vmatmul.mubr.f32.gmra.mrb[0].mxu0 %v2022
    %v2024 = vpop.f32.mrb[0].mxu0
    %v2025 = vadd.f32 %v1456, %v2024
    %v2026 = vpop.f32.mrb[0].mxu0
    %2027 = vmatprep.mubr.f32.mxu0 0.0
    %v2028 = vand.u32 %v218, 4294901760
    %v2029 = vsub.f32 %v218, %v2028
    %2030 = vmatmul.mubr.f32.gmra.mrb[0].mxu0 %v2029
    %v2031 = vpop.f32.mrb[0].mxu0
    %v2032 = vadd.f32 %v1462, %v2031
    %v2033 = vpop.f32.mrb[0].mxu0
    %2034 = vmatprep.mubr.f32.mxu0 0.0
    %v2035 = vand.u32 %v221, 4294901760
    %v2036 = vsub.f32 %v221, %v2035
    %2037 = vmatmul.mubr.f32.gmra.mrb[0].mxu0 %v2036
    %v2038 = vpop.f32.mrb[0].mxu0
    %v2039 = vadd.f32 %v1468, %v2038
    %v2040 = vpop.f32.mrb[0].mxu0
    %2041 = vmatprep.mubr.f32.mxu0 0.0
    %v2042 = vand.u32 %v224, 4294901760
    %v2043 = vsub.f32 %v224, %v2042
    %2044 = vmatmul.mubr.f32.gmra.mrb[0].mxu0 %v2043
    %v2045 = vpop.f32.mrb[0].mxu0
    %v2046 = vadd.f32 %v1474, %v2045
    %v2047 = vpop.f32.mrb[0].mxu0
    %2048 = vmatprep.mubr.f32.mxu0 0.0
    %v2049 = vand.u32 %v227, 4294901760
    %v2050 = vsub.f32 %v227, %v2049
    %2051 = vmatmul.mubr.f32.gmra.mrb[0].mxu0 %v2050
    %v2052 = vpop.f32.mrb[0].mxu0
    %v2053 = vadd.f32 %v1480, %v2052
    %v2054 = vpop.f32.mrb[0].mxu0
    %2055 = vmatprep.mubr.f32.mxu0 0.0
    %v2056 = vand.u32 %v230, 4294901760
    %v2057 = vsub.f32 %v230, %v2056
    %2058 = vmatmul.mubr.f32.gmra.mrb[0].mxu0 %v2057
    %v2059 = vpop.f32.mrb[0].mxu0
    %v2060 = vadd.f32 %v1486, %v2059
    %v2061 = vpop.f32.mrb[0].mxu0
    %2062 = vmatprep.mubr.f32.mxu0 0.0
    %v2063 = vand.u32 %v233, 4294901760
    %v2064 = vsub.f32 %v233, %v2063
    %2065 = vmatmul.mubr.f32.gmra.mrb[0].mxu0 %v2064
    %v2066 = vpop.f32.mrb[0].mxu0
    %v2067 = vadd.f32 %v1492, %v2066
    %v2068 = vpop.f32.mrb[0].mxu0
    %2069 = vmatprep.mubr.f32.mxu0 0.0
    %v2070 = vand.u32 %v236, 4294901760
    %v2071 = vsub.f32 %v236, %v2070
    %2072 = vmatmul.mubr.f32.gmra.mrb[0].mxu0 %v2071
    %v2073 = vpop.f32.mrb[0].mxu0
    %v2074 = vadd.f32 %v1498, %v2073
    %v2075 = vpop.f32.mrb[0].mxu0
    %2076 = vmatprep.mubr.f32.mxu0 0.0
    %v2077 = vand.u32 %v239, 4294901760
    %v2078 = vsub.f32 %v239, %v2077
    %2079 = vmatmul.mubr.f32.gmra.mrb[0].mxu0 %v2078
    %v2080 = vpop.f32.mrb[0].mxu0
    %v2081 = vadd.f32 %v1504, %v2080
    %v2082 = vpop.f32.mrb[0].mxu0
    %2083 = vmatprep.mubr.f32.mxu0 0.0
    %v2084 = vand.u32 %v242, 4294901760
    %v2085 = vsub.f32 %v242, %v2084
    %2086 = vmatmul.mubr.f32.gmra.mrb[0].mxu0 %v2085
    %v2087 = vpop.f32.mrb[0].mxu0
    %v2088 = vadd.f32 %v1510, %v2087
    %v2089 = vpop.f32.mrb[0].mxu0
    %2090 = vmatprep.mubr.f32.mxu0 0.0
    %v2091 = vand.u32 %v245, 4294901760
    %v2092 = vsub.f32 %v245, %v2091
    %2093 = vmatmul.mubr.f32.gmra.mrb[0].mxu0 %v2092
    %v2094 = vpop.f32.mrb[0].mxu0
    %v2095 = vadd.f32 %v1516, %v2094
    %v2096 = vpop.f32.mrb[0].mxu0
    %2097 = vmatprep.mubr.f32.mxu0 0.0
    %v2098 = vand.u32 %v248, 4294901760
    %v2099 = vsub.f32 %v248, %v2098
    %2100 = vmatmul.mubr.f32.gmra.mrb[0].mxu0 %v2099
    %v2101 = vpop.f32.mrb[0].mxu0
    %v2102 = vadd.f32 %v1522, %v2101
    %v2103 = vpop.f32.mrb[0].mxu0
    %2104 = vmatprep.mubr.f32.mxu0 0.0
    %v2105 = vand.u32 %v251, 4294901760
    %v2106 = vsub.f32 %v251, %v2105
    %2107 = vmatmul.mubr.f32.gmra.mrb[0].mxu0 %v2106
    %v2108 = vpop.f32.mrb[0].mxu0
    %v2109 = vadd.f32 %v1528, %v2108
    %v2110 = vpop.f32.mrb[0].mxu0
    %2111 = vmatprep.mubr.f32.mxu0 0.0
    %v2112 = vand.u32 %v254, 4294901760
    %v2113 = vsub.f32 %v254, %v2112
    %2114 = vmatmul.mubr.f32.gmra.mrb[0].mxu0 %v2113
    %v2115 = vpop.f32.mrb[0].mxu0
    %v2116 = vadd.f32 %v1534, %v2115
    %v2117 = vpop.f32.mrb[0].mxu0
    %2118 = vmatprep.mubr.f32.mxu0 0.0
    %v2119 = vand.u32 %v257, 4294901760
    %v2120 = vsub.f32 %v257, %v2119
    %2121 = vmatmul.mubr.f32.gmra.mrb[0].mxu0 %v2120
    %v2122 = vpop.f32.mrb[0].mxu0
    %v2123 = vadd.f32 %v1540, %v2122
    %v2124 = vpop.f32.mrb[0].mxu0
    %2125 = vmatprep.mubr.f32.mxu0 0.0
    %v2126 = vand.u32 %v260, 4294901760
    %v2127 = vsub.f32 %v260, %v2126
    %2128 = vmatmul.mubr.f32.gmra.mrb[0].mxu0 %v2127
    %v2129 = vpop.f32.mrb[0].mxu0
    %v2130 = vadd.f32 %v1546, %v2129
    %v2131 = vpop.f32.mrb[0].mxu0
    %2132 = vmatprep.mubr.f32.mxu0 0.0
    %v2133 = vand.u32 %v263, 4294901760
    %v2134 = vsub.f32 %v263, %v2133
    %2135 = vmatmul.mubr.f32.gmra.mrb[0].mxu0 %v2134
    %v2136 = vpop.f32.mrb[0].mxu0
    %v2137 = vadd.f32 %v1552, %v2136
    %v2138 = vpop.f32.mrb[0].mxu0
    %2139 = vmatprep.mubr.f32.mxu0 0.0
    %v2140 = vand.u32 %v266, 4294901760
    %v2141 = vsub.f32 %v266, %v2140
    %2142 = vmatmul.mubr.f32.gmra.mrb[0].mxu0 %v2141
    %v2143 = vpop.f32.mrb[0].mxu0
    %v2144 = vadd.f32 %v1558, %v2143
    %v2145 = vpop.f32.mrb[0].mxu0
    %2146 = vmatprep.mubr.f32.mxu0 0.0
    %v2147 = vand.u32 %v269, 4294901760
    %v2148 = vsub.f32 %v269, %v2147
    %2149 = vmatmul.mubr.f32.gmra.mrb[0].mxu0 %v2148
    %v2150 = vpop.f32.mrb[0].mxu0
    %v2151 = vadd.f32 %v1564, %v2150
    %v2152 = vpop.f32.mrb[0].mxu0
    %2153 = vmatprep.mubr.f32.mxu0 0.0
    %v2154 = vand.u32 %v272, 4294901760
    %v2155 = vsub.f32 %v272, %v2154
    %2156 = vmatmul.mubr.f32.gmra.mrb[0].mxu0 %v2155
    %v2157 = vpop.f32.mrb[0].mxu0
    %v2158 = vadd.f32 %v1570, %v2157
    %v2159 = vpop.f32.mrb[0].mxu0
    %2160 = vmatprep.mubr.f32.mxu0 0.0
    %v2161 = vand.u32 %v275, 4294901760
    %v2162 = vsub.f32 %v275, %v2161
    %2163 = vmatmul.mubr.f32.gmra.mrb[0].mxu0 %v2162
    %v2164 = vpop.f32.mrb[0].mxu0
    %v2165 = vadd.f32 %v1576, %v2164
    %v2166 = vpop.f32.mrb[0].mxu0
    %2167 = vmatprep.mubr.f32.mxu0 0.0
    %v2168 = vand.u32 %v278, 4294901760
    %v2169 = vsub.f32 %v278, %v2168
    %2170 = vmatmul.mubr.f32.gmra.mrb[0].mxu0 %v2169
    %v2171 = vpop.f32.mrb[0].mxu0
    %v2172 = vadd.f32 %v1582, %v2171
    %v2173 = vpop.f32.mrb[0].mxu0
    %2174 = vmatprep.mubr.f32.mxu0 0.0
    %v2175 = vand.u32 %v281, 4294901760
    %v2176 = vsub.f32 %v281, %v2175
    %2177 = vmatmul.mubr.f32.gmra.mrb[0].mxu0 %v2176
    %v2178 = vpop.f32.mrb[0].mxu0
    %v2179 = vadd.f32 %v1588, %v2178
    %v2180 = vpop.f32.mrb[0].mxu0
    %2181 = vmatprep.mubr.f32.mxu0 0.0
    %v2182 = vand.u32 %v284, 4294901760
    %v2183 = vsub.f32 %v284, %v2182
    %2184 = vmatmul.mubr.f32.gmra.mrb[0].mxu0 %v2183
    %v2185 = vpop.f32.mrb[0].mxu0
    %v2186 = vadd.f32 %v1594, %v2185
    %v2187 = vpop.f32.mrb[0].mxu0
    %2188 = vmatprep.mubr.f32.mxu0 0.0
    %v2189 = vand.u32 %v287, 4294901760
    %v2190 = vsub.f32 %v287, %v2189
    %2191 = vmatmul.mubr.f32.gmra.mrb[0].mxu0 %v2190
    %v2192 = vpop.f32.mrb[0].mxu0
    %v2193 = vadd.f32 %v1600, %v2192
    %v2194 = vpop.f32.mrb[0].mxu0
    %2195 = vmatprep.mubr.f32.mxu0 0.0
    %v2196 = vand.u32 %v290, 4294901760
    %v2197 = vsub.f32 %v290, %v2196
    %2198 = vmatmul.mubr.f32.gmra.mrb[0].mxu0 %v2197
    %v2199 = vpop.f32.mrb[0].mxu0
    %v2200 = vadd.f32 %v1606, %v2199
    %v2201 = vpop.f32.mrb[0].mxu0
    %2202 = vmatprep.mubr.f32.mxu0 0.0
    %v2203 = vand.u32 %v293, 4294901760
    %v2204 = vsub.f32 %v293, %v2203
    %2205 = vmatmul.mubr.f32.gmra.mrb[0].mxu0 %v2204
    %v2206 = vpop.f32.mrb[0].mxu0
    %v2207 = vadd.f32 %v1612, %v2206
    %v2208 = vpop.f32.mrb[0].mxu0
    %2209 = vmatprep.mubr.f32.mxu0 0.0
    %v2210 = vand.u32 %v296, 4294901760
    %v2211 = vsub.f32 %v296, %v2210
    %2212 = vmatmul.mubr.f32.gmra.mrb[0].mxu0 %v2211
    %v2213 = vpop.f32.mrb[0].mxu0
    %v2214 = vadd.f32 %v1618, %v2213
    %v2215 = vpop.f32.mrb[0].mxu0
    %2216 = vmatprep.mubr.f32.mxu0 0.0
    %v2217 = vand.u32 %v299, 4294901760
    %v2218 = vsub.f32 %v299, %v2217
    %2219 = vmatmul.mubr.f32.gmra.mrb[0].mxu0 %v2218
    %v2220 = vpop.f32.mrb[0].mxu0
    %v2221 = vadd.f32 %v1624, %v2220
    %v2222 = vpop.f32.mrb[0].mxu0
    %2223 = vmatprep.mubr.f32.mxu0 0.0
    %v2224 = vand.u32 %v302, 4294901760
    %v2225 = vsub.f32 %v302, %v2224
    %2226 = vmatmul.mubr.f32.gmra.mrb[0].mxu0 %v2225
    %v2227 = vpop.f32.mrb[0].mxu0
    %v2228 = vadd.f32 %v1630, %v2227
    %v2229 = vpop.f32.mrb[0].mxu0
    %2230 = vmatprep.mubr.f32.mxu0 0.0
    %v2231 = vand.u32 %v305, 4294901760
    %v2232 = vsub.f32 %v305, %v2231
    %2233 = vmatmul.mubr.f32.gmra.mrb[0].mxu0 %v2232
    %v2234 = vpop.f32.mrb[0].mxu0
    %v2235 = vadd.f32 %v1636, %v2234
    %v2236 = vpop.f32.mrb[0].mxu0
    %2237 = vmatprep.mubr.f32.mxu0 0.0
    %v2238 = vand.u32 %v308, 4294901760
    %v2239 = vsub.f32 %v308, %v2238
    %2240 = vmatmul.mubr.f32.gmra.mrb[0].mxu0 %v2239
    %v2241 = vpop.f32.mrb[0].mxu0
    %v2242 = vadd.f32 %v1642, %v2241
    %v2243 = vpop.f32.mrb[0].mxu0
    %2244 = vmatprep.mubr.f32.mxu0 0.0
    %v2245 = vand.u32 %v311, 4294901760
    %v2246 = vsub.f32 %v311, %v2245
    %2247 = vmatmul.mubr.f32.gmra.mrb[0].mxu0 %v2246
    %v2248 = vpop.f32.mrb[0].mxu0
    %v2249 = vadd.f32 %v1648, %v2248
    %v2250 = vpop.f32.mrb[0].mxu0
    %2251 = vmatprep.mubr.f32.mxu0 0.0
    %v2252 = vand.u32 %v314, 4294901760
    %v2253 = vsub.f32 %v314, %v2252
    %2254 = vmatmul.mubr.f32.gmra.mrb[0].mxu0 %v2253
    %v2255 = vpop.f32.mrb[0].mxu0
    %v2256 = vadd.f32 %v1654, %v2255
    %v2257 = vpop.f32.mrb[0].mxu0
    %2258 = vmatprep.mubr.f32.mxu0 0.0
    %v2259 = vand.u32 %v317, 4294901760
    %v2260 = vsub.f32 %v317, %v2259
    %2261 = vmatmul.mubr.f32.gmra.mrb[0].mxu0 %v2260
    %v2262 = vpop.f32.mrb[0].mxu0
    %v2263 = vadd.f32 %v1660, %v2262
    %v2264 = vpop.f32.mrb[0].mxu0
    %2265 = vmatprep.mubr.f32.mxu0 0.0
    %v2266 = vand.u32 %v320, 4294901760
    %v2267 = vsub.f32 %v320, %v2266
    %2268 = vmatmul.mubr.f32.gmra.mrb[0].mxu0 %v2267
    %v2269 = vpop.f32.mrb[0].mxu0
    %v2270 = vadd.f32 %v1666, %v2269
    %v2271 = vpop.f32.mrb[0].mxu0
    %2272 = vmatprep.mubr.f32.mxu0 0.0
    %v2273 = vand.u32 %v323, 4294901760
    %v2274 = vsub.f32 %v323, %v2273
    %2275 = vmatmul.mubr.f32.gmra.mrb[0].mxu0 %v2274
    %v2276 = vpop.f32.mrb[0].mxu0
    %v2277 = vadd.f32 %v1672, %v2276
    %v2278 = vpop.f32.mrb[0].mxu0
    %2279 = vmatprep.mubr.f32.mxu0 0.0
    %v2280 = vand.u32 %v326, 4294901760
    %v2281 = vsub.f32 %v326, %v2280
    %2282 = vmatmul.mubr.f32.gmra.mrb[0].mxu0 %v2281
    %v2283 = vpop.f32.mrb[0].mxu0
    %v2284 = vadd.f32 %v1678, %v2283
    %v2285 = vpop.f32.mrb[0].mxu0
    %2286 = vmatprep.mubr.f32.mxu0 0.0
    %v2287 = vand.u32 %v329, 4294901760
    %v2288 = vsub.f32 %v329, %v2287
    %2289 = vmatmul.mubr.f32.gmra.mrb[0].mxu0 %v2288
    %v2290 = vpop.f32.mrb[0].mxu0
    %v2291 = vadd.f32 %v1684, %v2290
    %v2292 = vpop.f32.mrb[0].mxu0
    %2293 = vmatprep.mubr.f32.mxu0 0.0
    %v2294 = vand.u32 %v332, 4294901760
    %v2295 = vsub.f32 %v332, %v2294
    %2296 = vmatmul.mubr.f32.gmra.mrb[0].mxu0 %v2295
    %v2297 = vpop.f32.mrb[0].mxu0
    %v2298 = vadd.f32 %v1690, %v2297
    %v2299 = vpop.f32.mrb[0].mxu0
    %2300 = vmatprep.mubr.f32.mxu0 0.0
    %v2301 = vand.u32 %v335, 4294901760
    %v2302 = vsub.f32 %v335, %v2301
    %2303 = vmatmul.mubr.f32.gmra.mrb[0].mxu0 %v2302
    %v2304 = vpop.f32.mrb[0].mxu0
    %v2305 = vadd.f32 %v1696, %v2304
    %v2306 = vpop.f32.mrb[0].mxu0
    %2307 = vmatprep.mubr.f32.mxu0 0.0
    %v2308 = vand.u32 %v338, 4294901760
    %v2309 = vsub.f32 %v338, %v2308
    %2310 = vmatmul.mubr.f32.gmra.mrb[0].mxu0 %v2309
    %v2311 = vpop.f32.mrb[0].mxu0
    %v2312 = vadd.f32 %v1702, %v2311
    %v2313 = vpop.f32.mrb[0].mxu0
    %2314 = vmatprep.mubr.f32.mxu0 0.0
    %v2315 = vand.u32 %v341, 4294901760
    %v2316 = vsub.f32 %v341, %v2315
    %2317 = vmatmul.mubr.f32.gmra.mrb[0].mxu0 %v2316
    %v2318 = vpop.f32.mrb[0].mxu0
    %v2319 = vadd.f32 %v1708, %v2318
    %v2320 = vpop.f32.mrb[0].mxu0
    %2321 = vmatprep.mubr.f32.mxu0 0.0
    %v2322 = vand.u32 %v344, 4294901760
    %v2323 = vsub.f32 %v344, %v2322
    %2324 = vmatmul.mubr.f32.gmra.mrb[0].mxu0 %v2323
    %v2325 = vpop.f32.mrb[0].mxu0
    %v2326 = vadd.f32 %v1714, %v2325
    %v2327 = vpop.f32.mrb[0].mxu0
    %2328 = vmatprep.mubr.f32.mxu0 0.0
    %v2329 = vand.u32 %v347, 4294901760
    %v2330 = vsub.f32 %v347, %v2329
    %2331 = vmatmul.mubr.f32.gmra.mrb[0].mxu0 %v2330
    %v2332 = vpop.f32.mrb[0].mxu0
    %v2333 = vadd.f32 %v1720, %v2332
    %v2334 = vpop.f32.mrb[0].mxu0
    %2335 = vmatprep.mubr.f32.mxu0 0.0
    %v2336 = vand.u32 %v350, 4294901760
    %v2337 = vsub.f32 %v350, %v2336
    %2338 = vmatmul.mubr.f32.gmra.mrb[0].mxu0 %v2337
    %v2339 = vpop.f32.mrb[0].mxu0
    %v2340 = vadd.f32 %v1726, %v2339
    %v2341 = vpop.f32.mrb[0].mxu0
    %2342 = vmatprep.mubr.f32.mxu0 0.0
    %v2343 = vand.u32 %v353, 4294901760
    %v2344 = vsub.f32 %v353, %v2343
    %2345 = vmatmul.mubr.f32.gmra.mrb[0].mxu0 %v2344
    %v2346 = vpop.f32.mrb[0].mxu0
    %v2347 = vadd.f32 %v1732, %v2346
    %v2348 = vpop.f32.mrb[0].mxu0
    %2349 = vmatprep.mubr.f32.mxu0 0.0
    %v2350 = vand.u32 %v356, 4294901760
    %v2351 = vsub.f32 %v356, %v2350
    %2352 = vmatmul.mubr.f32.gmra.mrb[0].mxu0 %v2351
    %v2353 = vpop.f32.mrb[0].mxu0
    %v2354 = vadd.f32 %v1738, %v2353
    %v2355 = vpop.f32.mrb[0].mxu0
    %2356 = vmatprep.mubr.f32.mxu0 0.0
    %v2357 = vand.u32 %v359, 4294901760
    %v2358 = vsub.f32 %v359, %v2357
    %2359 = vmatmul.mubr.f32.gmra.mrb[0].mxu0 %v2358
    %v2360 = vpop.f32.mrb[0].mxu0
    %v2361 = vadd.f32 %v1744, %v2360
    %v2362 = vpop.f32.mrb[0].mxu0
    %2363 = vmatprep.mubr.f32.mxu0 0.0
    %v2364 = vand.u32 %v362, 4294901760
    %v2365 = vsub.f32 %v362, %v2364
    %2366 = vmatmul.mubr.f32.gmra.mrb[0].mxu0 %v2365
    %v2367 = vpop.f32.mrb[0].mxu0
    %v2368 = vadd.f32 %v1750, %v2367
    %v2369 = vpop.f32.mrb[0].mxu0
    %2370 = vmatprep.mubr.f32.mxu0 0.0
    %v2371 = vand.u32 %v365, 4294901760
    %v2372 = vsub.f32 %v365, %v2371
    %2373 = vmatmul.mubr.f32.gmra.mrb[0].mxu0 %v2372
    %v2374 = vpop.f32.mrb[0].mxu0
    %v2375 = vadd.f32 %v1756, %v2374
    %v2376 = vpop.f32.mrb[0].mxu0
    %2377 = vmatprep.mubr.f32.mxu0 0.0
    %v2378 = vand.u32 %v368, 4294901760
    %v2379 = vsub.f32 %v368, %v2378
    %2380 = vmatmul.mubr.f32.gmra.mrb[0].mxu0 %v2379
    %v2381 = vpop.f32.mrb[0].mxu0
    %v2382 = vadd.f32 %v1762, %v2381
    %v2383 = vpop.f32.mrb[0].mxu0
    %2384 = vmatprep.mubr.f32.mxu0 0.0
    %v2385 = vand.u32 %v371, 4294901760
    %v2386 = vsub.f32 %v371, %v2385
    %2387 = vmatmul.mubr.f32.gmra.mrb[0].mxu0 %v2386
    %v2388 = vpop.f32.mrb[0].mxu0
    %v2389 = vadd.f32 %v1768, %v2388
    %v2390 = vpop.f32.mrb[0].mxu0
    %2391 = vmatprep.mubr.f32.mxu0 0.0
    %v2392 = vand.u32 %v374, 4294901760
    %v2393 = vsub.f32 %v374, %v2392
    %2394 = vmatmul.mubr.f32.gmra.mrb[0].mxu0 %v2393
    %v2395 = vpop.f32.mrb[0].mxu0
    %v2396 = vadd.f32 %v1774, %v2395
    %v2397 = vpop.f32.mrb[0].mxu0
    %2398 = vmatprep.mubr.f32.mxu0 0.0
    %v2399 = vand.u32 %v377, 4294901760
    %v2400 = vsub.f32 %v377, %v2399
    %2401 = vmatmul.mubr.f32.gmra.mrb[0].mxu0 %v2400
    %v2402 = vpop.f32.mrb[0].mxu0
    %v2403 = vadd.f32 %v1780, %v2402
    %v2404 = vpop.f32.mrb[0].mxu0
    %2405 = vmatprep.mubr.f32.mxu0 0.0
    %v2406 = vand.u32 %v380, 4294901760
    %v2407 = vsub.f32 %v380, %v2406
    %2408 = vmatmul.mubr.f32.gmra.mrb[0].mxu0 %v2407
    %v2409 = vpop.f32.mrb[0].mxu0
    %v2410 = vadd.f32 %v1786, %v2409
    %v2411 = vpop.f32.mrb[0].mxu0
    %2412 = vmatprep.mubr.f32.mxu0 0.0
    %v2413 = vand.u32 %v383, 4294901760
    %v2414 = vsub.f32 %v383, %v2413
    %2415 = vmatmul.mubr.f32.gmra.mrb[0].mxu0 %v2414
    %v2416 = vpop.f32.mrb[0].mxu0
    %v2417 = vadd.f32 %v1792, %v2416
    %v2418 = vpop.f32.mrb[0].mxu0
    %2419 = vmatprep.mubr.f32.mxu0 0.0
    %v2420 = vand.u32 %v386, 4294901760
    %v2421 = vsub.f32 %v386, %v2420
    %2422 = vmatmul.mubr.f32.gmra.mrb[0].mxu0 %v2421
    %v2423 = vpop.f32.mrb[0].mxu0
    %v2424 = vadd.f32 %v1798, %v2423
    %v2425 = vpop.f32.mrb[0].mxu0
    %2426 = vmatprep.mubr.f32.mxu0 0.0
    %v2427 = vand.u32 %v389, 4294901760
    %v2428 = vsub.f32 %v389, %v2427
    %2429 = vmatmul.mubr.f32.gmra.mrb[0].mxu0 %v2428
    %v2430 = vpop.f32.mrb[0].mxu0
    %v2431 = vadd.f32 %v1804, %v2430
    %v2432 = vpop.f32.mrb[0].mxu0
    %2433 = vmatprep.mubr.f32.mxu0 0.0
    %v2434 = vand.u32 %v392, 4294901760
    %v2435 = vsub.f32 %v392, %v2434
    %2436 = vmatmul.mubr.f32.gmra.mrb[0].mxu0 %v2435
    %v2437 = vpop.f32.mrb[0].mxu0
    %v2438 = vadd.f32 %v1810, %v2437
    %v2439 = vpop.f32.mrb[0].mxu0
    %2440 = vmatprep.mubr.f32.mxu0 0.0
    %v2441 = vand.u32 %v395, 4294901760
    %v2442 = vsub.f32 %v395, %v2441
    %2443 = vmatmul.mubr.f32.gmra.mrb[0].mxu0 %v2442
    %v2444 = vpop.f32.mrb[0].mxu0
    %v2445 = vadd.f32 %v1816, %v2444
    %v2446 = vpop.f32.mrb[0].mxu0
    %2447 = vdwg.mxu0
    %2448 = vmatprep.subr.mxu0 0.0
    %v2449 = vand.u32 %v106, 4294901760
    %2450 = vmatpush1.msra.mxu0 %v2449
    %2451 = vmatprep.subr.mxu0 0.0
    %v2452 = vand.u32 %v107, 4294901760
    %2453 = vmatpush1.msra.mxu0 %v2452
    %2454 = vmatprep.subr.mxu0 0.0
    %2455 = vmatpush1.msra.mxu0 0.0
    %2456 = vmatprep.subr.mxu0 0.0
    %2457 = vmatpush1.msra.mxu0 0.0
    %2458 = vmatprep.subr.mxu0 0.0
    %2459 = vmatpush1.msra.mxu0 0.0
    %2460 = vmatprep.subr.mxu0 0.0
    %2461 = vmatpush1.msra.mxu0 0.0
    %2462 = vmatprep.subr.mxu0 0.0
    %2463 = vmatpush1.msra.mxu0 0.0
    %2464 = vmatprep.subr.mxu0 0.0
    %2465 = vmatpush1.msra.mxu0 0.0
    %2466 = vmatprep.subr.mxu0 0.0
    %2467 = vmatpush1.msra.mxu0 0.0
    %2468 = vmatprep.subr.mxu0 0.0
    %2469 = vmatpush1.msra.mxu0 0.0
    %2470 = vmatprep.subr.mxu0 0.0
    %2471 = vmatpush1.msra.mxu0 0.0
    %2472 = vmatprep.subr.mxu0 0.0
    %2473 = vmatpush1.msra.mxu0 0.0
    %2474 = vmatprep.subr.mxu0 0.0
    %2475 = vmatpush1.msra.mxu0 0.0
    %2476 = vmatprep.subr.mxu0 0.0
    %2477 = vmatpush1.msra.mxu0 0.0
    %2478 = vmatprep.subr.mxu0 0.0
    %2479 = vmatpush1.msra.mxu0 0.0
    %2480 = vmatprep.subr.mxu0 0.0
    %2481 = vmatpush1.msra.mxu0 0.0
    %2482 = vmatprep.subr.mxu0 0.0
    %2483 = vmatpush1.msra.mxu0 0.0
    %2484 = vmatprep.subr.mxu0 0.0
    %2485 = vmatpush1.msra.mxu0 0.0
    %2486 = vmatprep.subr.mxu0 0.0
    %2487 = vmatpush1.msra.mxu0 0.0
    %2488 = vmatprep.subr.mxu0 0.0
    %2489 = vmatpush1.msra.mxu0 0.0
    %2490 = vmatprep.subr.mxu0 0.0
    %2491 = vmatpush1.msra.mxu0 0.0
    %2492 = vmatprep.subr.mxu0 0.0
    %2493 = vmatpush1.msra.mxu0 0.0
    %2494 = vmatprep.subr.mxu0 0.0
    %2495 = vmatpush1.msra.mxu0 0.0
    %2496 = vmatprep.subr.mxu0 0.0
    %2497 = vmatpush1.msra.mxu0 0.0
    %2498 = vmatprep.subr.mxu0 0.0
    %2499 = vmatpush1.msra.mxu0 0.0
    %2500 = vmatprep.subr.mxu0 0.0
    %2501 = vmatpush1.msra.mxu0 0.0
    %2502 = vmatprep.subr.mxu0 0.0
    %2503 = vmatpush1.msra.mxu0 0.0
    %2504 = vmatprep.subr.mxu0 0.0
    %2505 = vmatpush1.msra.mxu0 0.0
    %2506 = vmatprep.subr.mxu0 0.0
    %2507 = vmatpush1.msra.mxu0 0.0
    %2508 = vmatprep.subr.mxu0 0.0
    %2509 = vmatpush1.msra.mxu0 0.0
    %2510 = vmatprep.subr.mxu0 0.0
    %2511 = vmatpush1.msra.mxu0 0.0
    %2512 = vmatprep.subr.mxu0 0.0
    %2513 = vmatpush1.msra.mxu0 0.0
    %2514 = vmatprep.mubr.f32.mxu0 0.0
    %v2515 = vand.u32 %v158, 4294901760
    %v2516 = vsub.f32 %v158, %v2515
    %v2517 = vand.u32 %v2516, 4294901760
    %2518 = vmatmul.mubr.f32.gmra.mrb[0].mxu0 %v2517
    %v2519 = vpop.f32.mrb[0].mxu0
    %v2520 = vadd.f32 %v1892, %v2519
    %v2521 = vpop.f32.mrb[0].mxu0
    %2522 = vmatprep.mubr.f32.mxu0 0.0
    %v2523 = vand.u32 %v161, 4294901760
    %v2524 = vsub.f32 %v161, %v2523
    %v2525 = vand.u32 %v2524, 4294901760
    %2526 = vmatmul.mubr.f32.gmra.mrb[0].mxu0 %v2525
    %v2527 = vpop.f32.mrb[0].mxu0
    %v2528 = vadd.f32 %v1899, %v2527
    %v2529 = vpop.f32.mrb[0].mxu0
    %2530 = vmatprep.mubr.f32.mxu0 0.0
    %v2531 = vand.u32 %v164, 4294901760
    %v2532 = vsub.f32 %v164, %v2531
    %v2533 = vand.u32 %v2532, 4294901760
    %2534 = vmatmul.mubr.f32.gmra.mrb[0].mxu0 %v2533
    %v2535 = vpop.f32.mrb[0].mxu0
    %v2536 = vadd.f32 %v1906, %v2535
    %v2537 = vpop.f32.mrb[0].mxu0
    %2538 = vmatprep.mubr.f32.mxu0 0.0
    %v2539 = vand.u32 %v167, 4294901760
    %v2540 = vsub.f32 %v167, %v2539
    %v2541 = vand.u32 %v2540, 4294901760
    %2542 = vmatmul.mubr.f32.gmra.mrb[0].mxu0 %v2541
    %v2543 = vpop.f32.mrb[0].mxu0
    %v2544 = vadd.f32 %v1913, %v2543
    %v2545 = vpop.f32.mrb[0].mxu0
    %2546 = vmatprep.mubr.f32.mxu0 0.0
    %v2547 = vand.u32 %v170, 4294901760
    %v2548 = vsub.f32 %v170, %v2547
    %v2549 = vand.u32 %v2548, 4294901760
    %2550 = vmatmul.mubr.f32.gmra.mrb[0].mxu0 %v2549
    %v2551 = vpop.f32.mrb[0].mxu0
    %v2552 = vadd.f32 %v1920, %v2551
    %v2553 = vpop.f32.mrb[0].mxu0
    %2554 = vmatprep.mubr.f32.mxu0 0.0
    %v2555 = vand.u32 %v173, 4294901760
    %v2556 = vsub.f32 %v173, %v2555
    %v2557 = vand.u32 %v2556, 4294901760
    %2558 = vmatmul.mubr.f32.gmra.mrb[0].mxu0 %v2557
    %v2559 = vpop.f32.mrb[0].mxu0
    %v2560 = vadd.f32 %v1927, %v2559
    %v2561 = vpop.f32.mrb[0].mxu0
    %2562 = vmatprep.mubr.f32.mxu0 0.0
    %v2563 = vand.u32 %v176, 4294901760
    %v2564 = vsub.f32 %v176, %v2563
    %v2565 = vand.u32 %v2564, 4294901760
    %2566 = vmatmul.mubr.f32.gmra.mrb[0].mxu0 %v2565
    %v2567 = vpop.f32.mrb[0].mxu0
    %v2568 = vadd.f32 %v1934, %v2567
    %v2569 = vpop.f32.mrb[0].mxu0
    %2570 = vmatprep.mubr.f32.mxu0 0.0
    %v2571 = vand.u32 %v179, 4294901760
    %v2572 = vsub.f32 %v179, %v2571
    %v2573 = vand.u32 %v2572, 4294901760
    %2574 = vmatmul.mubr.f32.gmra.mrb[0].mxu0 %v2573
    %v2575 = vpop.f32.mrb[0].mxu0
    %v2576 = vadd.f32 %v1941, %v2575
    %v2577 = vpop.f32.mrb[0].mxu0
    %2578 = vmatprep.mubr.f32.mxu0 0.0
    %v2579 = vand.u32 %v182, 4294901760
    %v2580 = vsub.f32 %v182, %v2579
    %v2581 = vand.u32 %v2580, 4294901760
    %2582 = vmatmul.mubr.f32.gmra.mrb[0].mxu0 %v2581
    %v2583 = vpop.f32.mrb[0].mxu0
    %v2584 = vadd.f32 %v1948, %v2583
    %v2585 = vpop.f32.mrb[0].mxu0
    %2586 = vmatprep.mubr.f32.mxu0 0.0
    %v2587 = vand.u32 %v185, 4294901760
    %v2588 = vsub.f32 %v185, %v2587
    %v2589 = vand.u32 %v2588, 4294901760
    %2590 = vmatmul.mubr.f32.gmra.mrb[0].mxu0 %v2589
    %v2591 = vpop.f32.mrb[0].mxu0
    %v2592 = vadd.f32 %v1955, %v2591
    %v2593 = vpop.f32.mrb[0].mxu0
    %2594 = vmatprep.mubr.f32.mxu0 0.0
    %v2595 = vand.u32 %v188, 4294901760
    %v2596 = vsub.f32 %v188, %v2595
    %v2597 = vand.u32 %v2596, 4294901760
    %2598 = vmatmul.mubr.f32.gmra.mrb[0].mxu0 %v2597
    %v2599 = vpop.f32.mrb[0].mxu0
    %v2600 = vadd.f32 %v1962, %v2599
    %v2601 = vpop.f32.mrb[0].mxu0
    %2602 = vmatprep.mubr.f32.mxu0 0.0
    %v2603 = vand.u32 %v191, 4294901760
    %v2604 = vsub.f32 %v191, %v2603
    %v2605 = vand.u32 %v2604, 4294901760
    %2606 = vmatmul.mubr.f32.gmra.mrb[0].mxu0 %v2605
    %v2607 = vpop.f32.mrb[0].mxu0
    %v2608 = vadd.f32 %v1969, %v2607
    %v2609 = vpop.f32.mrb[0].mxu0
    %2610 = vmatprep.mubr.f32.mxu0 0.0
    %v2611 = vand.u32 %v194, 4294901760
    %v2612 = vsub.f32 %v194, %v2611
    %v2613 = vand.u32 %v2612, 4294901760
    %2614 = vmatmul.mubr.f32.gmra.mrb[0].mxu0 %v2613
    %v2615 = vpop.f32.mrb[0].mxu0
    %v2616 = vadd.f32 %v1976, %v2615
    %v2617 = vpop.f32.mrb[0].mxu0
    %2618 = vmatprep.mubr.f32.mxu0 0.0
    %v2619 = vand.u32 %v197, 4294901760
    %v2620 = vsub.f32 %v197, %v2619
    %v2621 = vand.u32 %v2620, 4294901760
    %2622 = vmatmul.mubr.f32.gmra.mrb[0].mxu0 %v2621
    %v2623 = vpop.f32.mrb[0].mxu0
    %v2624 = vadd.f32 %v1983, %v2623
    %v2625 = vpop.f32.mrb[0].mxu0
    %2626 = vmatprep.mubr.f32.mxu0 0.0
    %v2627 = vand.u32 %v200, 4294901760
    %v2628 = vsub.f32 %v200, %v2627
    %v2629 = vand.u32 %v2628, 4294901760
    %2630 = vmatmul.mubr.f32.gmra.mrb[0].mxu0 %v2629
    %v2631 = vpop.f32.mrb[0].mxu0
    %v2632 = vadd.f32 %v1990, %v2631
    %v2633 = vpop.f32.mrb[0].mxu0
    %2634 = vmatprep.mubr.f32.mxu0 0.0
    %v2635 = vand.u32 %v203, 4294901760
    %v2636 = vsub.f32 %v203, %v2635
    %v2637 = vand.u32 %v2636, 4294901760
    %2638 = vmatmul.mubr.f32.gmra.mrb[0].mxu0 %v2637
    %v2639 = vpop.f32.mrb[0].mxu0
    %v2640 = vadd.f32 %v1997, %v2639
    %v2641 = vpop.f32.mrb[0].mxu0
    %2642 = vmatprep.mubr.f32.mxu0 0.0
    %v2643 = vand.u32 %v206, 4294901760
    %v2644 = vsub.f32 %v206, %v2643
    %v2645 = vand.u32 %v2644, 4294901760
    %2646 = vmatmul.mubr.f32.gmra.mrb[0].mxu0 %v2645
    %v2647 = vpop.f32.mrb[0].mxu0
    %v2648 = vadd.f32 %v2004, %v2647
    %v2649 = vpop.f32.mrb[0].mxu0
    %2650 = vmatprep.mubr.f32.mxu0 0.0
    %v2651 = vand.u32 %v209, 4294901760
    %v2652 = vsub.f32 %v209, %v2651
    %v2653 = vand.u32 %v2652, 4294901760
    %2654 = vmatmul.mubr.f32.gmra.mrb[0].mxu0 %v2653
    %v2655 = vpop.f32.mrb[0].mxu0
    %v2656 = vadd.f32 %v2011, %v2655
    %v2657 = vpop.f32.mrb[0].mxu0
    %2658 = vmatprep.mubr.f32.mxu0 0.0
    %v2659 = vand.u32 %v212, 4294901760
    %v2660 = vsub.f32 %v212, %v2659
    %v2661 = vand.u32 %v2660, 4294901760
    %2662 = vmatmul.mubr.f32.gmra.mrb[0].mxu0 %v2661
    %v2663 = vpop.f32.mrb[0].mxu0
    %v2664 = vadd.f32 %v2018, %v2663
    %v2665 = vpop.f32.mrb[0].mxu0
    %2666 = vmatprep.mubr.f32.mxu0 0.0
    %v2667 = vand.u32 %v215, 4294901760
    %v2668 = vsub.f32 %v215, %v2667
    %v2669 = vand.u32 %v2668, 4294901760
    %2670 = vmatmul.mubr.f32.gmra.mrb[0].mxu0 %v2669
    %v2671 = vpop.f32.mrb[0].mxu0
    %v2672 = vadd.f32 %v2025, %v2671
    %v2673 = vpop.f32.mrb[0].mxu0
    %2674 = vmatprep.mubr.f32.mxu0 0.0
    %v2675 = vand.u32 %v218, 4294901760
    %v2676 = vsub.f32 %v218, %v2675
    %v2677 = vand.u32 %v2676, 4294901760
    %2678 = vmatmul.mubr.f32.gmra.mrb[0].mxu0 %v2677
    %v2679 = vpop.f32.mrb[0].mxu0
    %v2680 = vadd.f32 %v2032, %v2679
    %v2681 = vpop.f32.mrb[0].mxu0
    %2682 = vmatprep.mubr.f32.mxu0 0.0
    %v2683 = vand.u32 %v221, 4294901760
    %v2684 = vsub.f32 %v221, %v2683
    %v2685 = vand.u32 %v2684, 4294901760
    %2686 = vmatmul.mubr.f32.gmra.mrb[0].mxu0 %v2685
    %v2687 = vpop.f32.mrb[0].mxu0
    %v2688 = vadd.f32 %v2039, %v2687
    %v2689 = vpop.f32.mrb[0].mxu0
    %2690 = vmatprep.mubr.f32.mxu0 0.0
    %v2691 = vand.u32 %v224, 4294901760
    %v2692 = vsub.f32 %v224, %v2691
    %v2693 = vand.u32 %v2692, 4294901760
    %2694 = vmatmul.mubr.f32.gmra.mrb[0].mxu0 %v2693
    %v2695 = vpop.f32.mrb[0].mxu0
    %v2696 = vadd.f32 %v2046, %v2695
    %v2697 = vpop.f32.mrb[0].mxu0
    %2698 = vmatprep.mubr.f32.mxu0 0.0
    %v2699 = vand.u32 %v227, 4294901760
    %v2700 = vsub.f32 %v227, %v2699
    %v2701 = vand.u32 %v2700, 4294901760
    %2702 = vmatmul.mubr.f32.gmra.mrb[0].mxu0 %v2701
    %v2703 = vpop.f32.mrb[0].mxu0
    %v2704 = vadd.f32 %v2053, %v2703
    %v2705 = vpop.f32.mrb[0].mxu0
    %2706 = vmatprep.mubr.f32.mxu0 0.0
    %v2707 = vand.u32 %v230, 4294901760
    %v2708 = vsub.f32 %v230, %v2707
    %v2709 = vand.u32 %v2708, 4294901760
    %2710 = vmatmul.mubr.f32.gmra.mrb[0].mxu0 %v2709
    %v2711 = vpop.f32.mrb[0].mxu0
    %v2712 = vadd.f32 %v2060, %v2711
    %v2713 = vpop.f32.mrb[0].mxu0
    %2714 = vmatprep.mubr.f32.mxu0 0.0
    %v2715 = vand.u32 %v233, 4294901760
    %v2716 = vsub.f32 %v233, %v2715
    %v2717 = vand.u32 %v2716, 4294901760
    %2718 = vmatmul.mubr.f32.gmra.mrb[0].mxu0 %v2717
    %v2719 = vpop.f32.mrb[0].mxu0
    %v2720 = vadd.f32 %v2067, %v2719
    %v2721 = vpop.f32.mrb[0].mxu0
    %2722 = vmatprep.mubr.f32.mxu0 0.0
    %v2723 = vand.u32 %v236, 4294901760
    %v2724 = vsub.f32 %v236, %v2723
    %v2725 = vand.u32 %v2724, 4294901760
    %2726 = vmatmul.mubr.f32.gmra.mrb[0].mxu0 %v2725
    %v2727 = vpop.f32.mrb[0].mxu0
    %v2728 = vadd.f32 %v2074, %v2727
    %v2729 = vpop.f32.mrb[0].mxu0
    %2730 = vmatprep.mubr.f32.mxu0 0.0
    %v2731 = vand.u32 %v239, 4294901760
    %v2732 = vsub.f32 %v239, %v2731
    %v2733 = vand.u32 %v2732, 4294901760
    %2734 = vmatmul.mubr.f32.gmra.mrb[0].mxu0 %v2733
    %v2735 = vpop.f32.mrb[0].mxu0
    %v2736 = vadd.f32 %v2081, %v2735
    %v2737 = vpop.f32.mrb[0].mxu0
    %2738 = vmatprep.mubr.f32.mxu0 0.0
    %v2739 = vand.u32 %v242, 4294901760
    %v2740 = vsub.f32 %v242, %v2739
    %v2741 = vand.u32 %v2740, 4294901760
    %2742 = vmatmul.mubr.f32.gmra.mrb[0].mxu0 %v2741
    %v2743 = vpop.f32.mrb[0].mxu0
    %v2744 = vadd.f32 %v2088, %v2743
    %v2745 = vpop.f32.mrb[0].mxu0
    %2746 = vmatprep.mubr.f32.mxu0 0.0
    %v2747 = vand.u32 %v245, 4294901760
    %v2748 = vsub.f32 %v245, %v2747
    %v2749 = vand.u32 %v2748, 4294901760
    %2750 = vmatmul.mubr.f32.gmra.mrb[0].mxu0 %v2749
    %v2751 = vpop.f32.mrb[0].mxu0
    %v2752 = vadd.f32 %v2095, %v2751
    %v2753 = vpop.f32.mrb[0].mxu0
    %2754 = vmatprep.mubr.f32.mxu0 0.0
    %v2755 = vand.u32 %v248, 4294901760
    %v2756 = vsub.f32 %v248, %v2755
    %v2757 = vand.u32 %v2756, 4294901760
    %2758 = vmatmul.mubr.f32.gmra.mrb[0].mxu0 %v2757
    %v2759 = vpop.f32.mrb[0].mxu0
    %v2760 = vadd.f32 %v2102, %v2759
    %v2761 = vpop.f32.mrb[0].mxu0
    %2762 = vmatprep.mubr.f32.mxu0 0.0
    %v2763 = vand.u32 %v251, 4294901760
    %v2764 = vsub.f32 %v251, %v2763
    %v2765 = vand.u32 %v2764, 4294901760
    %2766 = vmatmul.mubr.f32.gmra.mrb[0].mxu0 %v2765
    %v2767 = vpop.f32.mrb[0].mxu0
    %v2768 = vadd.f32 %v2109, %v2767
    %v2769 = vpop.f32.mrb[0].mxu0
    %2770 = vmatprep.mubr.f32.mxu0 0.0
    %v2771 = vand.u32 %v254, 4294901760
    %v2772 = vsub.f32 %v254, %v2771
    %v2773 = vand.u32 %v2772, 4294901760
    %2774 = vmatmul.mubr.f32.gmra.mrb[0].mxu0 %v2773
    %v2775 = vpop.f32.mrb[0].mxu0
    %v2776 = vadd.f32 %v2116, %v2775
    %v2777 = vpop.f32.mrb[0].mxu0
    %2778 = vmatprep.mubr.f32.mxu0 0.0
    %v2779 = vand.u32 %v257, 4294901760
    %v2780 = vsub.f32 %v257, %v2779
    %v2781 = vand.u32 %v2780, 4294901760
    %2782 = vmatmul.mubr.f32.gmra.mrb[0].mxu0 %v2781
    %v2783 = vpop.f32.mrb[0].mxu0
    %v2784 = vadd.f32 %v2123, %v2783
    %v2785 = vpop.f32.mrb[0].mxu0
    %2786 = vmatprep.mubr.f32.mxu0 0.0
    %v2787 = vand.u32 %v260, 4294901760
    %v2788 = vsub.f32 %v260, %v2787
    %v2789 = vand.u32 %v2788, 4294901760
    %2790 = vmatmul.mubr.f32.gmra.mrb[0].mxu0 %v2789
    %v2791 = vpop.f32.mrb[0].mxu0
    %v2792 = vadd.f32 %v2130, %v2791
    %v2793 = vpop.f32.mrb[0].mxu0
    %2794 = vmatprep.mubr.f32.mxu0 0.0
    %v2795 = vand.u32 %v263, 4294901760
    %v2796 = vsub.f32 %v263, %v2795
    %v2797 = vand.u32 %v2796, 4294901760
    %2798 = vmatmul.mubr.f32.gmra.mrb[0].mxu0 %v2797
    %v2799 = vpop.f32.mrb[0].mxu0
    %v2800 = vadd.f32 %v2137, %v2799
    %v2801 = vpop.f32.mrb[0].mxu0
    %2802 = vmatprep.mubr.f32.mxu0 0.0
    %v2803 = vand.u32 %v266, 4294901760
    %v2804 = vsub.f32 %v266, %v2803
    %v2805 = vand.u32 %v2804, 4294901760
    %2806 = vmatmul.mubr.f32.gmra.mrb[0].mxu0 %v2805
    %v2807 = vpop.f32.mrb[0].mxu0
    %v2808 = vadd.f32 %v2144, %v2807
    %v2809 = vpop.f32.mrb[0].mxu0
    %2810 = vmatprep.mubr.f32.mxu0 0.0
    %v2811 = vand.u32 %v269, 4294901760
    %v2812 = vsub.f32 %v269, %v2811
    %v2813 = vand.u32 %v2812, 4294901760
    %2814 = vmatmul.mubr.f32.gmra.mrb[0].mxu0 %v2813
    %v2815 = vpop.f32.mrb[0].mxu0
    %v2816 = vadd.f32 %v2151, %v2815
    %v2817 = vpop.f32.mrb[0].mxu0
    %2818 = vmatprep.mubr.f32.mxu0 0.0
    %v2819 = vand.u32 %v272, 4294901760
    %v2820 = vsub.f32 %v272, %v2819
    %v2821 = vand.u32 %v2820, 4294901760
    %2822 = vmatmul.mubr.f32.gmra.mrb[0].mxu0 %v2821
    %v2823 = vpop.f32.mrb[0].mxu0
    %v2824 = vadd.f32 %v2158, %v2823
    %v2825 = vpop.f32.mrb[0].mxu0
    %2826 = vmatprep.mubr.f32.mxu0 0.0
    %v2827 = vand.u32 %v275, 4294901760
    %v2828 = vsub.f32 %v275, %v2827
    %v2829 = vand.u32 %v2828, 4294901760
    %2830 = vmatmul.mubr.f32.gmra.mrb[0].mxu0 %v2829
    %v2831 = vpop.f32.mrb[0].mxu0
    %v2832 = vadd.f32 %v2165, %v2831
    %v2833 = vpop.f32.mrb[0].mxu0
    %2834 = vmatprep.mubr.f32.mxu0 0.0
    %v2835 = vand.u32 %v278, 4294901760
    %v2836 = vsub.f32 %v278, %v2835
    %v2837 = vand.u32 %v2836, 4294901760
    %2838 = vmatmul.mubr.f32.gmra.mrb[0].mxu0 %v2837
    %v2839 = vpop.f32.mrb[0].mxu0
    %v2840 = vadd.f32 %v2172, %v2839
    %v2841 = vpop.f32.mrb[0].mxu0
    %2842 = vmatprep.mubr.f32.mxu0 0.0
    %v2843 = vand.u32 %v281, 4294901760
    %v2844 = vsub.f32 %v281, %v2843
    %v2845 = vand.u32 %v2844, 4294901760
    %2846 = vmatmul.mubr.f32.gmra.mrb[0].mxu0 %v2845
    %v2847 = vpop.f32.mrb[0].mxu0
    %v2848 = vadd.f32 %v2179, %v2847
    %v2849 = vpop.f32.mrb[0].mxu0
    %2850 = vmatprep.mubr.f32.mxu0 0.0
    %v2851 = vand.u32 %v284, 4294901760
    %v2852 = vsub.f32 %v284, %v2851
    %v2853 = vand.u32 %v2852, 4294901760
    %2854 = vmatmul.mubr.f32.gmra.mrb[0].mxu0 %v2853
    %v2855 = vpop.f32.mrb[0].mxu0
    %v2856 = vadd.f32 %v2186, %v2855
    %v2857 = vpop.f32.mrb[0].mxu0
    %2858 = vmatprep.mubr.f32.mxu0 0.0
    %v2859 = vand.u32 %v287, 4294901760
    %v2860 = vsub.f32 %v287, %v2859
    %v2861 = vand.u32 %v2860, 4294901760
    %2862 = vmatmul.mubr.f32.gmra.mrb[0].mxu0 %v2861
    %v2863 = vpop.f32.mrb[0].mxu0
    %v2864 = vadd.f32 %v2193, %v2863
    %v2865 = vpop.f32.mrb[0].mxu0
    %2866 = vmatprep.mubr.f32.mxu0 0.0
    %v2867 = vand.u32 %v290, 4294901760
    %v2868 = vsub.f32 %v290, %v2867
    %v2869 = vand.u32 %v2868, 4294901760
    %2870 = vmatmul.mubr.f32.gmra.mrb[0].mxu0 %v2869
    %v2871 = vpop.f32.mrb[0].mxu0
    %v2872 = vadd.f32 %v2200, %v2871
    %v2873 = vpop.f32.mrb[0].mxu0
    %2874 = vmatprep.mubr.f32.mxu0 0.0
    %v2875 = vand.u32 %v293, 4294901760
    %v2876 = vsub.f32 %v293, %v2875
    %v2877 = vand.u32 %v2876, 4294901760
    %2878 = vmatmul.mubr.f32.gmra.mrb[0].mxu0 %v2877
    %v2879 = vpop.f32.mrb[0].mxu0
    %v2880 = vadd.f32 %v2207, %v2879
    %v2881 = vpop.f32.mrb[0].mxu0
    %2882 = vmatprep.mubr.f32.mxu0 0.0
    %v2883 = vand.u32 %v296, 4294901760
    %v2884 = vsub.f32 %v296, %v2883
    %v2885 = vand.u32 %v2884, 4294901760
    %2886 = vmatmul.mubr.f32.gmra.mrb[0].mxu0 %v2885
    %v2887 = vpop.f32.mrb[0].mxu0
    %v2888 = vadd.f32 %v2214, %v2887
    %v2889 = vpop.f32.mrb[0].mxu0
    %2890 = vmatprep.mubr.f32.mxu0 0.0
    %v2891 = vand.u32 %v299, 4294901760
    %v2892 = vsub.f32 %v299, %v2891
    %v2893 = vand.u32 %v2892, 4294901760
    %2894 = vmatmul.mubr.f32.gmra.mrb[0].mxu0 %v2893
    %v2895 = vpop.f32.mrb[0].mxu0
    %v2896 = vadd.f32 %v2221, %v2895
    %v2897 = vpop.f32.mrb[0].mxu0
    %2898 = vmatprep.mubr.f32.mxu0 0.0
    %v2899 = vand.u32 %v302, 4294901760
    %v2900 = vsub.f32 %v302, %v2899
    %v2901 = vand.u32 %v2900, 4294901760
    %2902 = vmatmul.mubr.f32.gmra.mrb[0].mxu0 %v2901
    %v2903 = vpop.f32.mrb[0].mxu0
    %v2904 = vadd.f32 %v2228, %v2903
    %v2905 = vpop.f32.mrb[0].mxu0
    %2906 = vmatprep.mubr.f32.mxu0 0.0
    %v2907 = vand.u32 %v305, 4294901760
    %v2908 = vsub.f32 %v305, %v2907
    %v2909 = vand.u32 %v2908, 4294901760
    %2910 = vmatmul.mubr.f32.gmra.mrb[0].mxu0 %v2909
    %v2911 = vpop.f32.mrb[0].mxu0
    %v2912 = vadd.f32 %v2235, %v2911
    %v2913 = vpop.f32.mrb[0].mxu0
    %2914 = vmatprep.mubr.f32.mxu0 0.0
    %v2915 = vand.u32 %v308, 4294901760
    %v2916 = vsub.f32 %v308, %v2915
    %v2917 = vand.u32 %v2916, 4294901760
    %2918 = vmatmul.mubr.f32.gmra.mrb[0].mxu0 %v2917
    %v2919 = vpop.f32.mrb[0].mxu0
    %v2920 = vadd.f32 %v2242, %v2919
    %v2921 = vpop.f32.mrb[0].mxu0
    %2922 = vmatprep.mubr.f32.mxu0 0.0
    %v2923 = vand.u32 %v311, 4294901760
    %v2924 = vsub.f32 %v311, %v2923
    %v2925 = vand.u32 %v2924, 4294901760
    %2926 = vmatmul.mubr.f32.gmra.mrb[0].mxu0 %v2925
    %v2927 = vpop.f32.mrb[0].mxu0
    %v2928 = vadd.f32 %v2249, %v2927
    %v2929 = vpop.f32.mrb[0].mxu0
    %2930 = vmatprep.mubr.f32.mxu0 0.0
    %v2931 = vand.u32 %v314, 4294901760
    %v2932 = vsub.f32 %v314, %v2931
    %v2933 = vand.u32 %v2932, 4294901760
    %2934 = vmatmul.mubr.f32.gmra.mrb[0].mxu0 %v2933
    %v2935 = vpop.f32.mrb[0].mxu0
    %v2936 = vadd.f32 %v2256, %v2935
    %v2937 = vpop.f32.mrb[0].mxu0
    %2938 = vmatprep.mubr.f32.mxu0 0.0
    %v2939 = vand.u32 %v317, 4294901760
    %v2940 = vsub.f32 %v317, %v2939
    %v2941 = vand.u32 %v2940, 4294901760
    %2942 = vmatmul.mubr.f32.gmra.mrb[0].mxu0 %v2941
    %v2943 = vpop.f32.mrb[0].mxu0
    %v2944 = vadd.f32 %v2263, %v2943
    %v2945 = vpop.f32.mrb[0].mxu0
    %2946 = vmatprep.mubr.f32.mxu0 0.0
    %v2947 = vand.u32 %v320, 4294901760
    %v2948 = vsub.f32 %v320, %v2947
    %v2949 = vand.u32 %v2948, 4294901760
    %2950 = vmatmul.mubr.f32.gmra.mrb[0].mxu0 %v2949
    %v2951 = vpop.f32.mrb[0].mxu0
    %v2952 = vadd.f32 %v2270, %v2951
    %v2953 = vpop.f32.mrb[0].mxu0
    %2954 = vmatprep.mubr.f32.mxu0 0.0
    %v2955 = vand.u32 %v323, 4294901760
    %v2956 = vsub.f32 %v323, %v2955
    %v2957 = vand.u32 %v2956, 4294901760
    %2958 = vmatmul.mubr.f32.gmra.mrb[0].mxu0 %v2957
    %v2959 = vpop.f32.mrb[0].mxu0
    %v2960 = vadd.f32 %v2277, %v2959
    %v2961 = vpop.f32.mrb[0].mxu0
    %2962 = vmatprep.mubr.f32.mxu0 0.0
    %v2963 = vand.u32 %v326, 4294901760
    %v2964 = vsub.f32 %v326, %v2963
    %v2965 = vand.u32 %v2964, 4294901760
    %2966 = vmatmul.mubr.f32.gmra.mrb[0].mxu0 %v2965
    %v2967 = vpop.f32.mrb[0].mxu0
    %v2968 = vadd.f32 %v2284, %v2967
    %v2969 = vpop.f32.mrb[0].mxu0
    %2970 = vmatprep.mubr.f32.mxu0 0.0
    %v2971 = vand.u32 %v329, 4294901760
    %v2972 = vsub.f32 %v329, %v2971
    %v2973 = vand.u32 %v2972, 4294901760
    %2974 = vmatmul.mubr.f32.gmra.mrb[0].mxu0 %v2973
    %v2975 = vpop.f32.mrb[0].mxu0
    %v2976 = vadd.f32 %v2291, %v2975
    %v2977 = vpop.f32.mrb[0].mxu0
    %2978 = vmatprep.mubr.f32.mxu0 0.0
    %v2979 = vand.u32 %v332, 4294901760
    %v2980 = vsub.f32 %v332, %v2979
    %v2981 = vand.u32 %v2980, 4294901760
    %2982 = vmatmul.mubr.f32.gmra.mrb[0].mxu0 %v2981
    %v2983 = vpop.f32.mrb[0].mxu0
    %v2984 = vadd.f32 %v2298, %v2983
    %v2985 = vpop.f32.mrb[0].mxu0
    %2986 = vmatprep.mubr.f32.mxu0 0.0
    %v2987 = vand.u32 %v335, 4294901760
    %v2988 = vsub.f32 %v335, %v2987
    %v2989 = vand.u32 %v2988, 4294901760
    %2990 = vmatmul.mubr.f32.gmra.mrb[0].mxu0 %v2989
    %v2991 = vpop.f32.mrb[0].mxu0
    %v2992 = vadd.f32 %v2305, %v2991
    %v2993 = vpop.f32.mrb[0].mxu0
    %2994 = vmatprep.mubr.f32.mxu0 0.0
    %v2995 = vand.u32 %v338, 4294901760
    %v2996 = vsub.f32 %v338, %v2995
    %v2997 = vand.u32 %v2996, 4294901760
    %2998 = vmatmul.mubr.f32.gmra.mrb[0].mxu0 %v2997
    %v2999 = vpop.f32.mrb[0].mxu0
    %v3000 = vadd.f32 %v2312, %v2999
    %v3001 = vpop.f32.mrb[0].mxu0
    %3002 = vmatprep.mubr.f32.mxu0 0.0
    %v3003 = vand.u32 %v341, 4294901760
    %v3004 = vsub.f32 %v341, %v3003
    %v3005 = vand.u32 %v3004, 4294901760
    %3006 = vmatmul.mubr.f32.gmra.mrb[0].mxu0 %v3005
    %v3007 = vpop.f32.mrb[0].mxu0
    %v3008 = vadd.f32 %v2319, %v3007
    %v3009 = vpop.f32.mrb[0].mxu0
    %3010 = vmatprep.mubr.f32.mxu0 0.0
    %v3011 = vand.u32 %v344, 4294901760
    %v3012 = vsub.f32 %v344, %v3011
    %v3013 = vand.u32 %v3012, 4294901760
    %3014 = vmatmul.mubr.f32.gmra.mrb[0].mxu0 %v3013
    %v3015 = vpop.f32.mrb[0].mxu0
    %v3016 = vadd.f32 %v2326, %v3015
    %v3017 = vpop.f32.mrb[0].mxu0
    %3018 = vmatprep.mubr.f32.mxu0 0.0
    %v3019 = vand.u32 %v347, 4294901760
    %v3020 = vsub.f32 %v347, %v3019
    %v3021 = vand.u32 %v3020, 4294901760
    %3022 = vmatmul.mubr.f32.gmra.mrb[0].mxu0 %v3021
    %v3023 = vpop.f32.mrb[0].mxu0
    %v3024 = vadd.f32 %v2333, %v3023
    %v3025 = vpop.f32.mrb[0].mxu0
    %3026 = vmatprep.mubr.f32.mxu0 0.0
    %v3027 = vand.u32 %v350, 4294901760
    %v3028 = vsub.f32 %v350, %v3027
    %v3029 = vand.u32 %v3028, 4294901760
    %3030 = vmatmul.mubr.f32.gmra.mrb[0].mxu0 %v3029
    %v3031 = vpop.f32.mrb[0].mxu0
    %v3032 = vadd.f32 %v2340, %v3031
    %v3033 = vpop.f32.mrb[0].mxu0
    %3034 = vmatprep.mubr.f32.mxu0 0.0
    %v3035 = vand.u32 %v353, 4294901760
    %v3036 = vsub.f32 %v353, %v3035
    %v3037 = vand.u32 %v3036, 4294901760
    %3038 = vmatmul.mubr.f32.gmra.mrb[0].mxu0 %v3037
    %v3039 = vpop.f32.mrb[0].mxu0
    %v3040 = vadd.f32 %v2347, %v3039
    %v3041 = vpop.f32.mrb[0].mxu0
    %3042 = vmatprep.mubr.f32.mxu0 0.0
    %v3043 = vand.u32 %v356, 4294901760
    %v3044 = vsub.f32 %v356, %v3043
    %v3045 = vand.u32 %v3044, 4294901760
    %3046 = vmatmul.mubr.f32.gmra.mrb[0].mxu0 %v3045
    %v3047 = vpop.f32.mrb[0].mxu0
    %v3048 = vadd.f32 %v2354, %v3047
    %v3049 = vpop.f32.mrb[0].mxu0
    %3050 = vmatprep.mubr.f32.mxu0 0.0
    %v3051 = vand.u32 %v359, 4294901760
    %v3052 = vsub.f32 %v359, %v3051
    %v3053 = vand.u32 %v3052, 4294901760
    %3054 = vmatmul.mubr.f32.gmra.mrb[0].mxu0 %v3053
    %v3055 = vpop.f32.mrb[0].mxu0
    %v3056 = vadd.f32 %v2361, %v3055
    %v3057 = vpop.f32.mrb[0].mxu0
    %3058 = vmatprep.mubr.f32.mxu0 0.0
    %v3059 = vand.u32 %v362, 4294901760
    %v3060 = vsub.f32 %v362, %v3059
    %v3061 = vand.u32 %v3060, 4294901760
    %3062 = vmatmul.mubr.f32.gmra.mrb[0].mxu0 %v3061
    %v3063 = vpop.f32.mrb[0].mxu0
    %v3064 = vadd.f32 %v2368, %v3063
    %v3065 = vpop.f32.mrb[0].mxu0
    %3066 = vmatprep.mubr.f32.mxu0 0.0
    %v3067 = vand.u32 %v365, 4294901760
    %v3068 = vsub.f32 %v365, %v3067
    %v3069 = vand.u32 %v3068, 4294901760
    %3070 = vmatmul.mubr.f32.gmra.mrb[0].mxu0 %v3069
    %v3071 = vpop.f32.mrb[0].mxu0
    %v3072 = vadd.f32 %v2375, %v3071
    %v3073 = vpop.f32.mrb[0].mxu0
    %3074 = vmatprep.mubr.f32.mxu0 0.0
    %v3075 = vand.u32 %v368, 4294901760
    %v3076 = vsub.f32 %v368, %v3075
    %v3077 = vand.u32 %v3076, 4294901760
    %3078 = vmatmul.mubr.f32.gmra.mrb[0].mxu0 %v3077
    %v3079 = vpop.f32.mrb[0].mxu0
    %v3080 = vadd.f32 %v2382, %v3079
    %v3081 = vpop.f32.mrb[0].mxu0
    %3082 = vmatprep.mubr.f32.mxu0 0.0
    %v3083 = vand.u32 %v371, 4294901760
    %v3084 = vsub.f32 %v371, %v3083
    %v3085 = vand.u32 %v3084, 4294901760
    %3086 = vmatmul.mubr.f32.gmra.mrb[0].mxu0 %v3085
    %v3087 = vpop.f32.mrb[0].mxu0
    %v3088 = vadd.f32 %v2389, %v3087
    %v3089 = vpop.f32.mrb[0].mxu0
    %3090 = vmatprep.mubr.f32.mxu0 0.0
    %v3091 = vand.u32 %v374, 4294901760
    %v3092 = vsub.f32 %v374, %v3091
    %v3093 = vand.u32 %v3092, 4294901760
    %3094 = vmatmul.mubr.f32.gmra.mrb[0].mxu0 %v3093
    %v3095 = vpop.f32.mrb[0].mxu0
    %v3096 = vadd.f32 %v2396, %v3095
    %v3097 = vpop.f32.mrb[0].mxu0
    %3098 = vmatprep.mubr.f32.mxu0 0.0
    %v3099 = vand.u32 %v377, 4294901760
    %v3100 = vsub.f32 %v377, %v3099
    %v3101 = vand.u32 %v3100, 4294901760
    %3102 = vmatmul.mubr.f32.gmra.mrb[0].mxu0 %v3101
    %v3103 = vpop.f32.mrb[0].mxu0
    %v3104 = vadd.f32 %v2403, %v3103
    %v3105 = vpop.f32.mrb[0].mxu0
    %3106 = vmatprep.mubr.f32.mxu0 0.0
    %v3107 = vand.u32 %v380, 4294901760
    %v3108 = vsub.f32 %v380, %v3107
    %v3109 = vand.u32 %v3108, 4294901760
    %3110 = vmatmul.mubr.f32.gmra.mrb[0].mxu0 %v3109
    %v3111 = vpop.f32.mrb[0].mxu0
    %v3112 = vadd.f32 %v2410, %v3111
    %v3113 = vpop.f32.mrb[0].mxu0
    %3114 = vmatprep.mubr.f32.mxu0 0.0
    %v3115 = vand.u32 %v383, 4294901760
    %v3116 = vsub.f32 %v383, %v3115
    %v3117 = vand.u32 %v3116, 4294901760
    %3118 = vmatmul.mubr.f32.gmra.mrb[0].mxu0 %v3117
    %v3119 = vpop.f32.mrb[0].mxu0
    %v3120 = vadd.f32 %v2417, %v3119
    %v3121 = vpop.f32.mrb[0].mxu0
    %3122 = vmatprep.mubr.f32.mxu0 0.0
    %v3123 = vand.u32 %v386, 4294901760
    %v3124 = vsub.f32 %v386, %v3123
    %v3125 = vand.u32 %v3124, 4294901760
    %3126 = vmatmul.mubr.f32.gmra.mrb[0].mxu0 %v3125
    %v3127 = vpop.f32.mrb[0].mxu0
    %v3128 = vadd.f32 %v2424, %v3127
    %v3129 = vpop.f32.mrb[0].mxu0
    %3130 = vmatprep.mubr.f32.mxu0 0.0
    %v3131 = vand.u32 %v389, 4294901760
    %v3132 = vsub.f32 %v389, %v3131
    %v3133 = vand.u32 %v3132, 4294901760
    %3134 = vmatmul.mubr.f32.gmra.mrb[0].mxu0 %v3133
    %v3135 = vpop.f32.mrb[0].mxu0
    %v3136 = vadd.f32 %v2431, %v3135
    %v3137 = vpop.f32.mrb[0].mxu0
    %3138 = vmatprep.mubr.f32.mxu0 0.0
    %v3139 = vand.u32 %v392, 4294901760
    %v3140 = vsub.f32 %v392, %v3139
    %v3141 = vand.u32 %v3140, 4294901760
    %3142 = vmatmul.mubr.f32.gmra.mrb[0].mxu0 %v3141
    %v3143 = vpop.f32.mrb[0].mxu0
    %v3144 = vadd.f32 %v2438, %v3143
    %v3145 = vpop.f32.mrb[0].mxu0
    %3146 = vmatprep.mubr.f32.mxu0 0.0
    %v3147 = vand.u32 %v395, 4294901760
    %v3148 = vsub.f32 %v395, %v3147
    %v3149 = vand.u32 %v3148, 4294901760
    %3150 = vmatmul.mubr.f32.gmra.mrb[0].mxu0 %v3149
    %v3151 = vpop.f32.mrb[0].mxu0
    %v3152 = vadd.f32 %v2445, %v3151
    %v3153 = vpop.f32.mrb[0].mxu0
    %3154 = vdwg.mxu0
    %3155 = vmatprep.subr.mxu0 0.0
    %v3156 = vand.u32 %v106, 4294901760
    %v3157 = vsub.f32 %v106, %v3156
    %v3158 = vand.u32 %v3157, 4294901760
    %3159 = vmatpush1.msra.mxu0 %v3158
    %3160 = vmatprep.subr.mxu0 0.0
    %v3161 = vand.u32 %v107, 4294901760
    %v3162 = vsub.f32 %v107, %v3161
    %v3163 = vand.u32 %v3162, 4294901760
    %3164 = vmatpush1.msra.mxu0 %v3163
    %3165 = vmatprep.subr.mxu0 0.0
    %3166 = vmatpush1.msra.mxu0 0.0
    %3167 = vmatprep.subr.mxu0 0.0
    %3168 = vmatpush1.msra.mxu0 0.0
    %3169 = vmatprep.subr.mxu0 0.0
    %3170 = vmatpush1.msra.mxu0 0.0
    %3171 = vmatprep.subr.mxu0 0.0
    %3172 = vmatpush1.msra.mxu0 0.0
    %3173 = vmatprep.subr.mxu0 0.0
    %3174 = vmatpush1.msra.mxu0 0.0
    %3175 = vmatprep.subr.mxu0 0.0
    %3176 = vmatpush1.msra.mxu0 0.0
    %3177 = vmatprep.subr.mxu0 0.0
    %3178 = vmatpush1.msra.mxu0 0.0
    %3179 = vmatprep.subr.mxu0 0.0
    %3180 = vmatpush1.msra.mxu0 0.0
    %3181 = vmatprep.subr.mxu0 0.0
    %3182 = vmatpush1.msra.mxu0 0.0
    %3183 = vmatprep.subr.mxu0 0.0
    %3184 = vmatpush1.msra.mxu0 0.0
    %3185 = vmatprep.subr.mxu0 0.0
    %3186 = vmatpush1.msra.mxu0 0.0
    %3187 = vmatprep.subr.mxu0 0.0
    %3188 = vmatpush1.msra.mxu0 0.0
    %3189 = vmatprep.subr.mxu0 0.0
    %3190 = vmatpush1.msra.mxu0 0.0
    %3191 = vmatprep.subr.mxu0 0.0
    %3192 = vmatpush1.msra.mxu0 0.0
    %3193 = vmatprep.subr.mxu0 0.0
    %3194 = vmatpush1.msra.mxu0 0.0
    %3195 = vmatprep.subr.mxu0 0.0
    %3196 = vmatpush1.msra.mxu0 0.0
    %3197 = vmatprep.subr.mxu0 0.0
    %3198 = vmatpush1.msra.mxu0 0.0
    %3199 = vmatprep.subr.mxu0 0.0
    %3200 = vmatpush1.msra.mxu0 0.0
    %3201 = vmatprep.subr.mxu0 0.0
    %3202 = vmatpush1.msra.mxu0 0.0
    %3203 = vmatprep.subr.mxu0 0.0
    %3204 = vmatpush1.msra.mxu0 0.0
    %3205 = vmatprep.subr.mxu0 0.0
    %3206 = vmatpush1.msra.mxu0 0.0
    %3207 = vmatprep.subr.mxu0 0.0
    %3208 = vmatpush1.msra.mxu0 0.0
    %3209 = vmatprep.subr.mxu0 0.0
    %3210 = vmatpush1.msra.mxu0 0.0
    %3211 = vmatprep.subr.mxu0 0.0
    %3212 = vmatpush1.msra.mxu0 0.0
    %3213 = vmatprep.subr.mxu0 0.0
    %3214 = vmatpush1.msra.mxu0 0.0
    %3215 = vmatprep.subr.mxu0 0.0
    %3216 = vmatpush1.msra.mxu0 0.0
    %3217 = vmatprep.subr.mxu0 0.0
    %3218 = vmatpush1.msra.mxu0 0.0
    %3219 = vmatprep.subr.mxu0 0.0
    %3220 = vmatpush1.msra.mxu0 0.0
    %3221 = vmatprep.subr.mxu0 0.0
    %3222 = vmatpush1.msra.mxu0 0.0
    %3223 = vmatprep.subr.mxu0 0.0
    %3224 = vmatpush1.msra.mxu0 0.0
    %3225 = vmatprep.mubr.f32.mxu0 0.0
    %v3226 = vand.u32 %v158, 4294901760
    %3227 = vmatmul.mubr.f32.gmra.mrb[0].mxu0 %v3226
    %v3228 = vpop.f32.mrb[0].mxu0
    %v3229 = vadd.f32 %v2520, %v3228
    %v3230 = vpop.f32.mrb[0].mxu0
    %3231 = vmatprep.mubr.f32.mxu0 0.0
    %v3232 = vand.u32 %v161, 4294901760
    %3233 = vmatmul.mubr.f32.gmra.mrb[0].mxu0 %v3232
    %v3234 = vpop.f32.mrb[0].mxu0
    %v3235 = vadd.f32 %v2528, %v3234
    %v3236 = vpop.f32.mrb[0].mxu0
    %3237 = vmatprep.mubr.f32.mxu0 0.0
    %v3238 = vand.u32 %v164, 4294901760
    %3239 = vmatmul.mubr.f32.gmra.mrb[0].mxu0 %v3238
    %v3240 = vpop.f32.mrb[0].mxu0
    %v3241 = vadd.f32 %v2536, %v3240
    %v3242 = vpop.f32.mrb[0].mxu0
    %3243 = vmatprep.mubr.f32.mxu0 0.0
    %v3244 = vand.u32 %v167, 4294901760
    %3245 = vmatmul.mubr.f32.gmra.mrb[0].mxu0 %v3244
    %v3246 = vpop.f32.mrb[0].mxu0
    %v3247 = vadd.f32 %v2544, %v3246
    %v3248 = vpop.f32.mrb[0].mxu0
    %3249 = vmatprep.mubr.f32.mxu0 0.0
    %v3250 = vand.u32 %v170, 4294901760
    %3251 = vmatmul.mubr.f32.gmra.mrb[0].mxu0 %v3250
    %v3252 = vpop.f32.mrb[0].mxu0
    %v3253 = vadd.f32 %v2552, %v3252
    %v3254 = vpop.f32.mrb[0].mxu0
    %3255 = vmatprep.mubr.f32.mxu0 0.0
    %v3256 = vand.u32 %v173, 4294901760
    %3257 = vmatmul.mubr.f32.gmra.mrb[0].mxu0 %v3256
    %v3258 = vpop.f32.mrb[0].mxu0
    %v3259 = vadd.f32 %v2560, %v3258
    %v3260 = vpop.f32.mrb[0].mxu0
    %3261 = vmatprep.mubr.f32.mxu0 0.0
    %v3262 = vand.u32 %v176, 4294901760
    %3263 = vmatmul.mubr.f32.gmra.mrb[0].mxu0 %v3262
    %v3264 = vpop.f32.mrb[0].mxu0
    %v3265 = vadd.f32 %v2568, %v3264
    %v3266 = vpop.f32.mrb[0].mxu0
    %3267 = vmatprep.mubr.f32.mxu0 0.0
    %v3268 = vand.u32 %v179, 4294901760
    %3269 = vmatmul.mubr.f32.gmra.mrb[0].mxu0 %v3268
    %v3270 = vpop.f32.mrb[0].mxu0
    %v3271 = vadd.f32 %v2576, %v3270
    %v3272 = vpop.f32.mrb[0].mxu0
    %3273 = vmatprep.mubr.f32.mxu0 0.0
    %v3274 = vand.u32 %v182, 4294901760
    %3275 = vmatmul.mubr.f32.gmra.mrb[0].mxu0 %v3274
    %v3276 = vpop.f32.mrb[0].mxu0
    %v3277 = vadd.f32 %v2584, %v3276
    %v3278 = vpop.f32.mrb[0].mxu0
    %3279 = vmatprep.mubr.f32.mxu0 0.0
    %v3280 = vand.u32 %v185, 4294901760
    %3281 = vmatmul.mubr.f32.gmra.mrb[0].mxu0 %v3280
    %v3282 = vpop.f32.mrb[0].mxu0
    %v3283 = vadd.f32 %v2592, %v3282
    %v3284 = vpop.f32.mrb[0].mxu0
    %3285 = vmatprep.mubr.f32.mxu0 0.0
    %v3286 = vand.u32 %v188, 4294901760
    %3287 = vmatmul.mubr.f32.gmra.mrb[0].mxu0 %v3286
    %v3288 = vpop.f32.mrb[0].mxu0
    %v3289 = vadd.f32 %v2600, %v3288
    %v3290 = vpop.f32.mrb[0].mxu0
    %3291 = vmatprep.mubr.f32.mxu0 0.0
    %v3292 = vand.u32 %v191, 4294901760
    %3293 = vmatmul.mubr.f32.gmra.mrb[0].mxu0 %v3292
    %v3294 = vpop.f32.mrb[0].mxu0
    %v3295 = vadd.f32 %v2608, %v3294
    %v3296 = vpop.f32.mrb[0].mxu0
    %3297 = vmatprep.mubr.f32.mxu0 0.0
    %v3298 = vand.u32 %v194, 4294901760
    %3299 = vmatmul.mubr.f32.gmra.mrb[0].mxu0 %v3298
    %v3300 = vpop.f32.mrb[0].mxu0
    %v3301 = vadd.f32 %v2616, %v3300
    %v3302 = vpop.f32.mrb[0].mxu0
    %3303 = vmatprep.mubr.f32.mxu0 0.0
    %v3304 = vand.u32 %v197, 4294901760
    %3305 = vmatmul.mubr.f32.gmra.mrb[0].mxu0 %v3304
    %v3306 = vpop.f32.mrb[0].mxu0
    %v3307 = vadd.f32 %v2624, %v3306
    %v3308 = vpop.f32.mrb[0].mxu0
    %3309 = vmatprep.mubr.f32.mxu0 0.0
    %v3310 = vand.u32 %v200, 4294901760
    %3311 = vmatmul.mubr.f32.gmra.mrb[0].mxu0 %v3310
    %v3312 = vpop.f32.mrb[0].mxu0
    %v3313 = vadd.f32 %v2632, %v3312
    %v3314 = vpop.f32.mrb[0].mxu0
    %3315 = vmatprep.mubr.f32.mxu0 0.0
    %v3316 = vand.u32 %v203, 4294901760
    %3317 = vmatmul.mubr.f32.gmra.mrb[0].mxu0 %v3316
    %v3318 = vpop.f32.mrb[0].mxu0
    %v3319 = vadd.f32 %v2640, %v3318
    %v3320 = vpop.f32.mrb[0].mxu0
    %3321 = vmatprep.mubr.f32.mxu0 0.0
    %v3322 = vand.u32 %v206, 4294901760
    %3323 = vmatmul.mubr.f32.gmra.mrb[0].mxu0 %v3322
    %v3324 = vpop.f32.mrb[0].mxu0
    %v3325 = vadd.f32 %v2648, %v3324
    %v3326 = vpop.f32.mrb[0].mxu0
    %3327 = vmatprep.mubr.f32.mxu0 0.0
    %v3328 = vand.u32 %v209, 4294901760
    %3329 = vmatmul.mubr.f32.gmra.mrb[0].mxu0 %v3328
    %v3330 = vpop.f32.mrb[0].mxu0
    %v3331 = vadd.f32 %v2656, %v3330
    %v3332 = vpop.f32.mrb[0].mxu0
    %3333 = vmatprep.mubr.f32.mxu0 0.0
    %v3334 = vand.u32 %v212, 4294901760
    %3335 = vmatmul.mubr.f32.gmra.mrb[0].mxu0 %v3334
    %v3336 = vpop.f32.mrb[0].mxu0
    %v3337 = vadd.f32 %v2664, %v3336
    %v3338 = vpop.f32.mrb[0].mxu0
    %3339 = vmatprep.mubr.f32.mxu0 0.0
    %v3340 = vand.u32 %v215, 4294901760
    %3341 = vmatmul.mubr.f32.gmra.mrb[0].mxu0 %v3340
    %v3342 = vpop.f32.mrb[0].mxu0
    %v3343 = vadd.f32 %v2672, %v3342
    %v3344 = vpop.f32.mrb[0].mxu0
    %3345 = vmatprep.mubr.f32.mxu0 0.0
    %v3346 = vand.u32 %v218, 4294901760
    %3347 = vmatmul.mubr.f32.gmra.mrb[0].mxu0 %v3346
    %v3348 = vpop.f32.mrb[0].mxu0
    %v3349 = vadd.f32 %v2680, %v3348
    %v3350 = vpop.f32.mrb[0].mxu0
    %3351 = vmatprep.mubr.f32.mxu0 0.0
    %v3352 = vand.u32 %v221, 4294901760
    %3353 = vmatmul.mubr.f32.gmra.mrb[0].mxu0 %v3352
    %v3354 = vpop.f32.mrb[0].mxu0
    %v3355 = vadd.f32 %v2688, %v3354
    %v3356 = vpop.f32.mrb[0].mxu0
    %3357 = vmatprep.mubr.f32.mxu0 0.0
    %v3358 = vand.u32 %v224, 4294901760
    %3359 = vmatmul.mubr.f32.gmra.mrb[0].mxu0 %v3358
    %v3360 = vpop.f32.mrb[0].mxu0
    %v3361 = vadd.f32 %v2696, %v3360
    %v3362 = vpop.f32.mrb[0].mxu0
    %3363 = vmatprep.mubr.f32.mxu0 0.0
    %v3364 = vand.u32 %v227, 4294901760
    %3365 = vmatmul.mubr.f32.gmra.mrb[0].mxu0 %v3364
    %v3366 = vpop.f32.mrb[0].mxu0
    %v3367 = vadd.f32 %v2704, %v3366
    %v3368 = vpop.f32.mrb[0].mxu0
    %3369 = vmatprep.mubr.f32.mxu0 0.0
    %v3370 = vand.u32 %v230, 4294901760
    %3371 = vmatmul.mubr.f32.gmra.mrb[0].mxu0 %v3370
    %v3372 = vpop.f32.mrb[0].mxu0
    %v3373 = vadd.f32 %v2712, %v3372
    %v3374 = vpop.f32.mrb[0].mxu0
    %3375 = vmatprep.mubr.f32.mxu0 0.0
    %v3376 = vand.u32 %v233, 4294901760
    %3377 = vmatmul.mubr.f32.gmra.mrb[0].mxu0 %v3376
    %v3378 = vpop.f32.mrb[0].mxu0
    %v3379 = vadd.f32 %v2720, %v3378
    %v3380 = vpop.f32.mrb[0].mxu0
    %3381 = vmatprep.mubr.f32.mxu0 0.0
    %v3382 = vand.u32 %v236, 4294901760
    %3383 = vmatmul.mubr.f32.gmra.mrb[0].mxu0 %v3382
    %v3384 = vpop.f32.mrb[0].mxu0
    %v3385 = vadd.f32 %v2728, %v3384
    %v3386 = vpop.f32.mrb[0].mxu0
    %3387 = vmatprep.mubr.f32.mxu0 0.0
    %v3388 = vand.u32 %v239, 4294901760
    %3389 = vmatmul.mubr.f32.gmra.mrb[0].mxu0 %v3388
    %v3390 = vpop.f32.mrb[0].mxu0
    %v3391 = vadd.f32 %v2736, %v3390
    %v3392 = vpop.f32.mrb[0].mxu0
    %3393 = vmatprep.mubr.f32.mxu0 0.0
    %v3394 = vand.u32 %v242, 4294901760
    %3395 = vmatmul.mubr.f32.gmra.mrb[0].mxu0 %v3394
    %v3396 = vpop.f32.mrb[0].mxu0
    %v3397 = vadd.f32 %v2744, %v3396
    %v3398 = vpop.f32.mrb[0].mxu0
    %3399 = vmatprep.mubr.f32.mxu0 0.0
    %v3400 = vand.u32 %v245, 4294901760
    %3401 = vmatmul.mubr.f32.gmra.mrb[0].mxu0 %v3400
    %v3402 = vpop.f32.mrb[0].mxu0
    %v3403 = vadd.f32 %v2752, %v3402
    %v3404 = vpop.f32.mrb[0].mxu0
    %3405 = vmatprep.mubr.f32.mxu0 0.0
    %v3406 = vand.u32 %v248, 4294901760
    %3407 = vmatmul.mubr.f32.gmra.mrb[0].mxu0 %v3406
    %v3408 = vpop.f32.mrb[0].mxu0
    %v3409 = vadd.f32 %v2760, %v3408
    %v3410 = vpop.f32.mrb[0].mxu0
    %3411 = vmatprep.mubr.f32.mxu0 0.0
    %v3412 = vand.u32 %v251, 4294901760
    %3413 = vmatmul.mubr.f32.gmra.mrb[0].mxu0 %v3412
    %v3414 = vpop.f32.mrb[0].mxu0
    %v3415 = vadd.f32 %v2768, %v3414
    %v3416 = vpop.f32.mrb[0].mxu0
    %3417 = vmatprep.mubr.f32.mxu0 0.0
    %v3418 = vand.u32 %v254, 4294901760
    %3419 = vmatmul.mubr.f32.gmra.mrb[0].mxu0 %v3418
    %v3420 = vpop.f32.mrb[0].mxu0
    %v3421 = vadd.f32 %v2776, %v3420
    %v3422 = vpop.f32.mrb[0].mxu0
    %3423 = vmatprep.mubr.f32.mxu0 0.0
    %v3424 = vand.u32 %v257, 4294901760
    %3425 = vmatmul.mubr.f32.gmra.mrb[0].mxu0 %v3424
    %v3426 = vpop.f32.mrb[0].mxu0
    %v3427 = vadd.f32 %v2784, %v3426
    %v3428 = vpop.f32.mrb[0].mxu0
    %3429 = vmatprep.mubr.f32.mxu0 0.0
    %v3430 = vand.u32 %v260, 4294901760
    %3431 = vmatmul.mubr.f32.gmra.mrb[0].mxu0 %v3430
    %v3432 = vpop.f32.mrb[0].mxu0
    %v3433 = vadd.f32 %v2792, %v3432
    %v3434 = vpop.f32.mrb[0].mxu0
    %3435 = vmatprep.mubr.f32.mxu0 0.0
    %v3436 = vand.u32 %v263, 4294901760
    %3437 = vmatmul.mubr.f32.gmra.mrb[0].mxu0 %v3436
    %v3438 = vpop.f32.mrb[0].mxu0
    %v3439 = vadd.f32 %v2800, %v3438
    %v3440 = vpop.f32.mrb[0].mxu0
    %3441 = vmatprep.mubr.f32.mxu0 0.0
    %v3442 = vand.u32 %v266, 4294901760
    %3443 = vmatmul.mubr.f32.gmra.mrb[0].mxu0 %v3442
    %v3444 = vpop.f32.mrb[0].mxu0
    %v3445 = vadd.f32 %v2808, %v3444
    %v3446 = vpop.f32.mrb[0].mxu0
    %3447 = vmatprep.mubr.f32.mxu0 0.0
    %v3448 = vand.u32 %v269, 4294901760
    %3449 = vmatmul.mubr.f32.gmra.mrb[0].mxu0 %v3448
    %v3450 = vpop.f32.mrb[0].mxu0
    %v3451 = vadd.f32 %v2816, %v3450
    %v3452 = vpop.f32.mrb[0].mxu0
    %3453 = vmatprep.mubr.f32.mxu0 0.0
    %v3454 = vand.u32 %v272, 4294901760
    %3455 = vmatmul.mubr.f32.gmra.mrb[0].mxu0 %v3454
    %v3456 = vpop.f32.mrb[0].mxu0
    %v3457 = vadd.f32 %v2824, %v3456
    %v3458 = vpop.f32.mrb[0].mxu0
    %3459 = vmatprep.mubr.f32.mxu0 0.0
    %v3460 = vand.u32 %v275, 4294901760
    %3461 = vmatmul.mubr.f32.gmra.mrb[0].mxu0 %v3460
    %v3462 = vpop.f32.mrb[0].mxu0
    %v3463 = vadd.f32 %v2832, %v3462
    %v3464 = vpop.f32.mrb[0].mxu0
    %3465 = vmatprep.mubr.f32.mxu0 0.0
    %v3466 = vand.u32 %v278, 4294901760
    %3467 = vmatmul.mubr.f32.gmra.mrb[0].mxu0 %v3466
    %v3468 = vpop.f32.mrb[0].mxu0
    %v3469 = vadd.f32 %v2840, %v3468
    %v3470 = vpop.f32.mrb[0].mxu0
    %3471 = vmatprep.mubr.f32.mxu0 0.0
    %v3472 = vand.u32 %v281, 4294901760
    %3473 = vmatmul.mubr.f32.gmra.mrb[0].mxu0 %v3472
    %v3474 = vpop.f32.mrb[0].mxu0
    %v3475 = vadd.f32 %v2848, %v3474
    %v3476 = vpop.f32.mrb[0].mxu0
    %3477 = vmatprep.mubr.f32.mxu0 0.0
    %v3478 = vand.u32 %v284, 4294901760
    %3479 = vmatmul.mubr.f32.gmra.mrb[0].mxu0 %v3478
    %v3480 = vpop.f32.mrb[0].mxu0
    %v3481 = vadd.f32 %v2856, %v3480
    %v3482 = vpop.f32.mrb[0].mxu0
    %3483 = vmatprep.mubr.f32.mxu0 0.0
    %v3484 = vand.u32 %v287, 4294901760
    %3485 = vmatmul.mubr.f32.gmra.mrb[0].mxu0 %v3484
    %v3486 = vpop.f32.mrb[0].mxu0
    %v3487 = vadd.f32 %v2864, %v3486
    %v3488 = vpop.f32.mrb[0].mxu0
    %3489 = vmatprep.mubr.f32.mxu0 0.0
    %v3490 = vand.u32 %v290, 4294901760
    %3491 = vmatmul.mubr.f32.gmra.mrb[0].mxu0 %v3490
    %v3492 = vpop.f32.mrb[0].mxu0
    %v3493 = vadd.f32 %v2872, %v3492
    %v3494 = vpop.f32.mrb[0].mxu0
    %3495 = vmatprep.mubr.f32.mxu0 0.0
    %v3496 = vand.u32 %v293, 4294901760
    %3497 = vmatmul.mubr.f32.gmra.mrb[0].mxu0 %v3496
    %v3498 = vpop.f32.mrb[0].mxu0
    %v3499 = vadd.f32 %v2880, %v3498
    %v3500 = vpop.f32.mrb[0].mxu0
    %3501 = vmatprep.mubr.f32.mxu0 0.0
    %v3502 = vand.u32 %v296, 4294901760
    %3503 = vmatmul.mubr.f32.gmra.mrb[0].mxu0 %v3502
    %v3504 = vpop.f32.mrb[0].mxu0
    %v3505 = vadd.f32 %v2888, %v3504
    %v3506 = vpop.f32.mrb[0].mxu0
    %3507 = vmatprep.mubr.f32.mxu0 0.0
    %v3508 = vand.u32 %v299, 4294901760
    %3509 = vmatmul.mubr.f32.gmra.mrb[0].mxu0 %v3508
    %v3510 = vpop.f32.mrb[0].mxu0
    %v3511 = vadd.f32 %v2896, %v3510
    %v3512 = vpop.f32.mrb[0].mxu0
    %3513 = vmatprep.mubr.f32.mxu0 0.0
    %v3514 = vand.u32 %v302, 4294901760
    %3515 = vmatmul.mubr.f32.gmra.mrb[0].mxu0 %v3514
    %v3516 = vpop.f32.mrb[0].mxu0
    %v3517 = vadd.f32 %v2904, %v3516
    %v3518 = vpop.f32.mrb[0].mxu0
    %3519 = vmatprep.mubr.f32.mxu0 0.0
    %v3520 = vand.u32 %v305, 4294901760
    %3521 = vmatmul.mubr.f32.gmra.mrb[0].mxu0 %v3520
    %v3522 = vpop.f32.mrb[0].mxu0
    %v3523 = vadd.f32 %v2912, %v3522
    %v3524 = vpop.f32.mrb[0].mxu0
    %3525 = vmatprep.mubr.f32.mxu0 0.0
    %v3526 = vand.u32 %v308, 4294901760
    %3527 = vmatmul.mubr.f32.gmra.mrb[0].mxu0 %v3526
    %v3528 = vpop.f32.mrb[0].mxu0
    %v3529 = vadd.f32 %v2920, %v3528
    %v3530 = vpop.f32.mrb[0].mxu0
    %3531 = vmatprep.mubr.f32.mxu0 0.0
    %v3532 = vand.u32 %v311, 4294901760
    %3533 = vmatmul.mubr.f32.gmra.mrb[0].mxu0 %v3532
    %v3534 = vpop.f32.mrb[0].mxu0
    %v3535 = vadd.f32 %v2928, %v3534
    %v3536 = vpop.f32.mrb[0].mxu0
    %3537 = vmatprep.mubr.f32.mxu0 0.0
    %v3538 = vand.u32 %v314, 4294901760
    %3539 = vmatmul.mubr.f32.gmra.mrb[0].mxu0 %v3538
    %v3540 = vpop.f32.mrb[0].mxu0
    %v3541 = vadd.f32 %v2936, %v3540
    %v3542 = vpop.f32.mrb[0].mxu0
    %3543 = vmatprep.mubr.f32.mxu0 0.0
    %v3544 = vand.u32 %v317, 4294901760
    %3545 = vmatmul.mubr.f32.gmra.mrb[0].mxu0 %v3544
    %v3546 = vpop.f32.mrb[0].mxu0
    %v3547 = vadd.f32 %v2944, %v3546
    %v3548 = vpop.f32.mrb[0].mxu0
    %3549 = vmatprep.mubr.f32.mxu0 0.0
    %v3550 = vand.u32 %v320, 4294901760
    %3551 = vmatmul.mubr.f32.gmra.mrb[0].mxu0 %v3550
    %v3552 = vpop.f32.mrb[0].mxu0
    %v3553 = vadd.f32 %v2952, %v3552
    %v3554 = vpop.f32.mrb[0].mxu0
    %3555 = vmatprep.mubr.f32.mxu0 0.0
    %v3556 = vand.u32 %v323, 4294901760
    %3557 = vmatmul.mubr.f32.gmra.mrb[0].mxu0 %v3556
    %v3558 = vpop.f32.mrb[0].mxu0
    %v3559 = vadd.f32 %v2960, %v3558
    %v3560 = vpop.f32.mrb[0].mxu0
    %3561 = vmatprep.mubr.f32.mxu0 0.0
    %v3562 = vand.u32 %v326, 4294901760
    %3563 = vmatmul.mubr.f32.gmra.mrb[0].mxu0 %v3562
    %v3564 = vpop.f32.mrb[0].mxu0
    %v3565 = vadd.f32 %v2968, %v3564
    %v3566 = vpop.f32.mrb[0].mxu0
    %3567 = vmatprep.mubr.f32.mxu0 0.0
    %v3568 = vand.u32 %v329, 4294901760
    %3569 = vmatmul.mubr.f32.gmra.mrb[0].mxu0 %v3568
    %v3570 = vpop.f32.mrb[0].mxu0
    %v3571 = vadd.f32 %v2976, %v3570
    %v3572 = vpop.f32.mrb[0].mxu0
    %3573 = vmatprep.mubr.f32.mxu0 0.0
    %v3574 = vand.u32 %v332, 4294901760
    %3575 = vmatmul.mubr.f32.gmra.mrb[0].mxu0 %v3574
    %v3576 = vpop.f32.mrb[0].mxu0
    %v3577 = vadd.f32 %v2984, %v3576
    %v3578 = vpop.f32.mrb[0].mxu0
    %3579 = vmatprep.mubr.f32.mxu0 0.0
    %v3580 = vand.u32 %v335, 4294901760
    %3581 = vmatmul.mubr.f32.gmra.mrb[0].mxu0 %v3580
    %v3582 = vpop.f32.mrb[0].mxu0
    %v3583 = vadd.f32 %v2992, %v3582
    %v3584 = vpop.f32.mrb[0].mxu0
    %3585 = vmatprep.mubr.f32.mxu0 0.0
    %v3586 = vand.u32 %v338, 4294901760
    %3587 = vmatmul.mubr.f32.gmra.mrb[0].mxu0 %v3586
    %v3588 = vpop.f32.mrb[0].mxu0
    %v3589 = vadd.f32 %v3000, %v3588
    %v3590 = vpop.f32.mrb[0].mxu0
    %3591 = vmatprep.mubr.f32.mxu0 0.0
    %v3592 = vand.u32 %v341, 4294901760
    %3593 = vmatmul.mubr.f32.gmra.mrb[0].mxu0 %v3592
    %v3594 = vpop.f32.mrb[0].mxu0
    %v3595 = vadd.f32 %v3008, %v3594
    %v3596 = vpop.f32.mrb[0].mxu0
    %3597 = vmatprep.mubr.f32.mxu0 0.0
    %v3598 = vand.u32 %v344, 4294901760
    %3599 = vmatmul.mubr.f32.gmra.mrb[0].mxu0 %v3598
    %v3600 = vpop.f32.mrb[0].mxu0
    %v3601 = vadd.f32 %v3016, %v3600
    %v3602 = vpop.f32.mrb[0].mxu0
    %3603 = vmatprep.mubr.f32.mxu0 0.0
    %v3604 = vand.u32 %v347, 4294901760
    %3605 = vmatmul.mubr.f32.gmra.mrb[0].mxu0 %v3604
    %v3606 = vpop.f32.mrb[0].mxu0
    %v3607 = vadd.f32 %v3024, %v3606
    %v3608 = vpop.f32.mrb[0].mxu0
    %3609 = vmatprep.mubr.f32.mxu0 0.0
    %v3610 = vand.u32 %v350, 4294901760
    %3611 = vmatmul.mubr.f32.gmra.mrb[0].mxu0 %v3610
    %v3612 = vpop.f32.mrb[0].mxu0
    %v3613 = vadd.f32 %v3032, %v3612
    %v3614 = vpop.f32.mrb[0].mxu0
    %3615 = vmatprep.mubr.f32.mxu0 0.0
    %v3616 = vand.u32 %v353, 4294901760
    %3617 = vmatmul.mubr.f32.gmra.mrb[0].mxu0 %v3616
    %v3618 = vpop.f32.mrb[0].mxu0
    %v3619 = vadd.f32 %v3040, %v3618
    %v3620 = vpop.f32.mrb[0].mxu0
    %3621 = vmatprep.mubr.f32.mxu0 0.0
    %v3622 = vand.u32 %v356, 4294901760
    %3623 = vmatmul.mubr.f32.gmra.mrb[0].mxu0 %v3622
    %v3624 = vpop.f32.mrb[0].mxu0
    %v3625 = vadd.f32 %v3048, %v3624
    %v3626 = vpop.f32.mrb[0].mxu0
    %3627 = vmatprep.mubr.f32.mxu0 0.0
    %v3628 = vand.u32 %v359, 4294901760
    %3629 = vmatmul.mubr.f32.gmra.mrb[0].mxu0 %v3628
    %v3630 = vpop.f32.mrb[0].mxu0
    %v3631 = vadd.f32 %v3056, %v3630
    %v3632 = vpop.f32.mrb[0].mxu0
    %3633 = vmatprep.mubr.f32.mxu0 0.0
    %v3634 = vand.u32 %v362, 4294901760
    %3635 = vmatmul.mubr.f32.gmra.mrb[0].mxu0 %v3634
    %v3636 = vpop.f32.mrb[0].mxu0
    %v3637 = vadd.f32 %v3064, %v3636
    %v3638 = vpop.f32.mrb[0].mxu0
    %3639 = vmatprep.mubr.f32.mxu0 0.0
    %v3640 = vand.u32 %v365, 4294901760
    %3641 = vmatmul.mubr.f32.gmra.mrb[0].mxu0 %v3640
    %v3642 = vpop.f32.mrb[0].mxu0
    %v3643 = vadd.f32 %v3072, %v3642
    %v3644 = vpop.f32.mrb[0].mxu0
    %3645 = vmatprep.mubr.f32.mxu0 0.0
    %v3646 = vand.u32 %v368, 4294901760
    %3647 = vmatmul.mubr.f32.gmra.mrb[0].mxu0 %v3646
    %v3648 = vpop.f32.mrb[0].mxu0
    %v3649 = vadd.f32 %v3080, %v3648
    %v3650 = vpop.f32.mrb[0].mxu0
    %3651 = vmatprep.mubr.f32.mxu0 0.0
    %v3652 = vand.u32 %v371, 4294901760
    %3653 = vmatmul.mubr.f32.gmra.mrb[0].mxu0 %v3652
    %v3654 = vpop.f32.mrb[0].mxu0
    %v3655 = vadd.f32 %v3088, %v3654
    %v3656 = vpop.f32.mrb[0].mxu0
    %3657 = vmatprep.mubr.f32.mxu0 0.0
    %v3658 = vand.u32 %v374, 4294901760
    %3659 = vmatmul.mubr.f32.gmra.mrb[0].mxu0 %v3658
    %v3660 = vpop.f32.mrb[0].mxu0
    %v3661 = vadd.f32 %v3096, %v3660
    %v3662 = vpop.f32.mrb[0].mxu0
    %3663 = vmatprep.mubr.f32.mxu0 0.0
    %v3664 = vand.u32 %v377, 4294901760
    %3665 = vmatmul.mubr.f32.gmra.mrb[0].mxu0 %v3664
    %v3666 = vpop.f32.mrb[0].mxu0
    %v3667 = vadd.f32 %v3104, %v3666
    %v3668 = vpop.f32.mrb[0].mxu0
    %3669 = vmatprep.mubr.f32.mxu0 0.0
    %v3670 = vand.u32 %v380, 4294901760
    %3671 = vmatmul.mubr.f32.gmra.mrb[0].mxu0 %v3670
    %v3672 = vpop.f32.mrb[0].mxu0
    %v3673 = vadd.f32 %v3112, %v3672
    %v3674 = vpop.f32.mrb[0].mxu0
    %3675 = vmatprep.mubr.f32.mxu0 0.0
    %v3676 = vand.u32 %v383, 4294901760
    %3677 = vmatmul.mubr.f32.gmra.mrb[0].mxu0 %v3676
    %v3678 = vpop.f32.mrb[0].mxu0
    %v3679 = vadd.f32 %v3120, %v3678
    %v3680 = vpop.f32.mrb[0].mxu0
    %3681 = vmatprep.mubr.f32.mxu0 0.0
    %v3682 = vand.u32 %v386, 4294901760
    %3683 = vmatmul.mubr.f32.gmra.mrb[0].mxu0 %v3682
    %v3684 = vpop.f32.mrb[0].mxu0
    %v3685 = vadd.f32 %v3128, %v3684
    %v3686 = vpop.f32.mrb[0].mxu0
    %3687 = vmatprep.mubr.f32.mxu0 0.0
    %v3688 = vand.u32 %v389, 4294901760
    %3689 = vmatmul.mubr.f32.gmra.mrb[0].mxu0 %v3688
    %v3690 = vpop.f32.mrb[0].mxu0
    %v3691 = vadd.f32 %v3136, %v3690
    %v3692 = vpop.f32.mrb[0].mxu0
    %3693 = vmatprep.mubr.f32.mxu0 0.0
    %v3694 = vand.u32 %v392, 4294901760
    %3695 = vmatmul.mubr.f32.gmra.mrb[0].mxu0 %v3694
    %v3696 = vpop.f32.mrb[0].mxu0
    %v3697 = vadd.f32 %v3144, %v3696
    %v3698 = vpop.f32.mrb[0].mxu0
    %3699 = vmatprep.mubr.f32.mxu0 0.0
    %v3700 = vand.u32 %v395, 4294901760
    %3701 = vmatmul.mubr.f32.gmra.mrb[0].mxu0 %v3700
    %v3702 = vpop.f32.mrb[0].mxu0
    %v3703 = vadd.f32 %v3152, %v3702
    %v3704 = vpop.f32.mrb[0].mxu0
    %3705 = vdwg.mxu0
    %3706 = vmatprep.subr.mxu0 0.0
    %v3707 = vand.u32 %v106, 4294901760
    %3708 = vmatpush1.msra.mxu0 %v3707
    %3709 = vmatprep.subr.mxu0 0.0
    %v3710 = vand.u32 %v107, 4294901760
    %3711 = vmatpush1.msra.mxu0 %v3710
    %3712 = vmatprep.subr.mxu0 0.0
    %3713 = vmatpush1.msra.mxu0 0.0
    %3714 = vmatprep.subr.mxu0 0.0
    %3715 = vmatpush1.msra.mxu0 0.0
    %3716 = vmatprep.subr.mxu0 0.0
    %3717 = vmatpush1.msra.mxu0 0.0
    %3718 = vmatprep.subr.mxu0 0.0
    %3719 = vmatpush1.msra.mxu0 0.0
    %3720 = vmatprep.subr.mxu0 0.0
    %3721 = vmatpush1.msra.mxu0 0.0
    %3722 = vmatprep.subr.mxu0 0.0
    %3723 = vmatpush1.msra.mxu0 0.0
    %3724 = vmatprep.subr.mxu0 0.0
    %3725 = vmatpush1.msra.mxu0 0.0
    %3726 = vmatprep.subr.mxu0 0.0
    %3727 = vmatpush1.msra.mxu0 0.0
    %3728 = vmatprep.subr.mxu0 0.0
    %3729 = vmatpush1.msra.mxu0 0.0
    %3730 = vmatprep.subr.mxu0 0.0
    %3731 = vmatpush1.msra.mxu0 0.0
    %3732 = vmatprep.subr.mxu0 0.0
    %3733 = vmatpush1.msra.mxu0 0.0
    %3734 = vmatprep.subr.mxu0 0.0
    %3735 = vmatpush1.msra.mxu0 0.0
    %3736 = vmatprep.subr.mxu0 0.0
    %3737 = vmatpush1.msra.mxu0 0.0
    %3738 = vmatprep.subr.mxu0 0.0
    %3739 = vmatpush1.msra.mxu0 0.0
    %3740 = vmatprep.subr.mxu0 0.0
    %3741 = vmatpush1.msra.mxu0 0.0
    %3742 = vmatprep.subr.mxu0 0.0
    %3743 = vmatpush1.msra.mxu0 0.0
    %3744 = vmatprep.subr.mxu0 0.0
    %3745 = vmatpush1.msra.mxu0 0.0
    %3746 = vmatprep.subr.mxu0 0.0
    %3747 = vmatpush1.msra.mxu0 0.0
    %3748 = vmatprep.subr.mxu0 0.0
    %3749 = vmatpush1.msra.mxu0 0.0
    %3750 = vmatprep.subr.mxu0 0.0
    %3751 = vmatpush1.msra.mxu0 0.0
    %3752 = vmatprep.subr.mxu0 0.0
    %3753 = vmatpush1.msra.mxu0 0.0
    %3754 = vmatprep.subr.mxu0 0.0
    %3755 = vmatpush1.msra.mxu0 0.0
    %3756 = vmatprep.subr.mxu0 0.0
    %3757 = vmatpush1.msra.mxu0 0.0
    %3758 = vmatprep.subr.mxu0 0.0
    %3759 = vmatpush1.msra.mxu0 0.0
    %3760 = vmatprep.subr.mxu0 0.0
    %3761 = vmatpush1.msra.mxu0 0.0
    %3762 = vmatprep.subr.mxu0 0.0
    %3763 = vmatpush1.msra.mxu0 0.0
    %3764 = vmatprep.subr.mxu0 0.0
    %3765 = vmatpush1.msra.mxu0 0.0
    %3766 = vmatprep.subr.mxu0 0.0
    %3767 = vmatpush1.msra.mxu0 0.0
    %3768 = vmatprep.subr.mxu0 0.0
    %3769 = vmatpush1.msra.mxu0 0.0
    %3770 = vmatprep.subr.mxu0 0.0
    %3771 = vmatpush1.msra.mxu0 0.0
    %3772 = vmatprep.mubr.f32.mxu0 0.0
    %v3773 = vand.u32 %v158, 4294901760
    %3774 = vmatmul.mubr.f32.gmra.mrb[0].mxu0 %v3773
    %v3775 = vpop.f32.mrb[0].mxu0
    %v3776 = vadd.f32 %v3229, %v3775
    %v3777 = vpop.f32.mrb[0].mxu0
    %3778 = vmatprep.mubr.f32.mxu0 0.0
    %v3779 = vand.u32 %v161, 4294901760
    %3780 = vmatmul.mubr.f32.gmra.mrb[0].mxu0 %v3779
    %v3781 = vpop.f32.mrb[0].mxu0
    %v3782 = vadd.f32 %v3235, %v3781
    %v3783 = vpop.f32.mrb[0].mxu0
    %3784 = vmatprep.mubr.f32.mxu0 0.0
    %v3785 = vand.u32 %v164, 4294901760
    %3786 = vmatmul.mubr.f32.gmra.mrb[0].mxu0 %v3785
    %v3787 = vpop.f32.mrb[0].mxu0
    %v3788 = vadd.f32 %v3241, %v3787
    %v3789 = vpop.f32.mrb[0].mxu0
    %3790 = vmatprep.mubr.f32.mxu0 0.0
    %v3791 = vand.u32 %v167, 4294901760
    %3792 = vmatmul.mubr.f32.gmra.mrb[0].mxu0 %v3791
    %v3793 = vpop.f32.mrb[0].mxu0
    %v3794 = vadd.f32 %v3247, %v3793
    %v3795 = vpop.f32.mrb[0].mxu0
    %3796 = vmatprep.mubr.f32.mxu0 0.0
    %v3797 = vand.u32 %v170, 4294901760
    %3798 = vmatmul.mubr.f32.gmra.mrb[0].mxu0 %v3797
    %v3799 = vpop.f32.mrb[0].mxu0
    %v3800 = vadd.f32 %v3253, %v3799
    %v3801 = vpop.f32.mrb[0].mxu0
    %3802 = vmatprep.mubr.f32.mxu0 0.0
    %v3803 = vand.u32 %v173, 4294901760
    %3804 = vmatmul.mubr.f32.gmra.mrb[0].mxu0 %v3803
    %v3805 = vpop.f32.mrb[0].mxu0
    %v3806 = vadd.f32 %v3259, %v3805
    %v3807 = vpop.f32.mrb[0].mxu0
    %3808 = vmatprep.mubr.f32.mxu0 0.0
    %v3809 = vand.u32 %v176, 4294901760
    %3810 = vmatmul.mubr.f32.gmra.mrb[0].mxu0 %v3809
    %v3811 = vpop.f32.mrb[0].mxu0
    %v3812 = vadd.f32 %v3265, %v3811
    %v3813 = vpop.f32.mrb[0].mxu0
    %3814 = vmatprep.mubr.f32.mxu0 0.0
    %v3815 = vand.u32 %v179, 4294901760
    %3816 = vmatmul.mubr.f32.gmra.mrb[0].mxu0 %v3815
    %v3817 = vpop.f32.mrb[0].mxu0
    %v3818 = vadd.f32 %v3271, %v3817
    %v3819 = vpop.f32.mrb[0].mxu0
    %3820 = vmatprep.mubr.f32.mxu0 0.0
    %v3821 = vand.u32 %v182, 4294901760
    %3822 = vmatmul.mubr.f32.gmra.mrb[0].mxu0 %v3821
    %v3823 = vpop.f32.mrb[0].mxu0
    %v3824 = vadd.f32 %v3277, %v3823
    %v3825 = vpop.f32.mrb[0].mxu0
    %3826 = vmatprep.mubr.f32.mxu0 0.0
    %v3827 = vand.u32 %v185, 4294901760
    %3828 = vmatmul.mubr.f32.gmra.mrb[0].mxu0 %v3827
    %v3829 = vpop.f32.mrb[0].mxu0
    %v3830 = vadd.f32 %v3283, %v3829
    %v3831 = vpop.f32.mrb[0].mxu0
    %3832 = vmatprep.mubr.f32.mxu0 0.0
    %v3833 = vand.u32 %v188, 4294901760
    %3834 = vmatmul.mubr.f32.gmra.mrb[0].mxu0 %v3833
    %v3835 = vpop.f32.mrb[0].mxu0
    %v3836 = vadd.f32 %v3289, %v3835
    %v3837 = vpop.f32.mrb[0].mxu0
    %3838 = vmatprep.mubr.f32.mxu0 0.0
    %v3839 = vand.u32 %v191, 4294901760
    %3840 = vmatmul.mubr.f32.gmra.mrb[0].mxu0 %v3839
    %v3841 = vpop.f32.mrb[0].mxu0
    %v3842 = vadd.f32 %v3295, %v3841
    %v3843 = vpop.f32.mrb[0].mxu0
    %3844 = vmatprep.mubr.f32.mxu0 0.0
    %v3845 = vand.u32 %v194, 4294901760
    %3846 = vmatmul.mubr.f32.gmra.mrb[0].mxu0 %v3845
    %v3847 = vpop.f32.mrb[0].mxu0
    %v3848 = vadd.f32 %v3301, %v3847
    %v3849 = vpop.f32.mrb[0].mxu0
    %3850 = vmatprep.mubr.f32.mxu0 0.0
    %v3851 = vand.u32 %v197, 4294901760
    %3852 = vmatmul.mubr.f32.gmra.mrb[0].mxu0 %v3851
    %v3853 = vpop.f32.mrb[0].mxu0
    %v3854 = vadd.f32 %v3307, %v3853
    %v3855 = vpop.f32.mrb[0].mxu0
    %3856 = vmatprep.mubr.f32.mxu0 0.0
    %v3857 = vand.u32 %v200, 4294901760
    %3858 = vmatmul.mubr.f32.gmra.mrb[0].mxu0 %v3857
    %v3859 = vpop.f32.mrb[0].mxu0
    %v3860 = vadd.f32 %v3313, %v3859
    %v3861 = vpop.f32.mrb[0].mxu0
    %3862 = vmatprep.mubr.f32.mxu0 0.0
    %v3863 = vand.u32 %v203, 4294901760
    %3864 = vmatmul.mubr.f32.gmra.mrb[0].mxu0 %v3863
    %v3865 = vpop.f32.mrb[0].mxu0
    %v3866 = vadd.f32 %v3319, %v3865
    %v3867 = vpop.f32.mrb[0].mxu0
    %3868 = vmatprep.mubr.f32.mxu0 0.0
    %v3869 = vand.u32 %v206, 4294901760
    %3870 = vmatmul.mubr.f32.gmra.mrb[0].mxu0 %v3869
    %v3871 = vpop.f32.mrb[0].mxu0
    %v3872 = vadd.f32 %v3325, %v3871
    %v3873 = vpop.f32.mrb[0].mxu0
    %3874 = vmatprep.mubr.f32.mxu0 0.0
    %v3875 = vand.u32 %v209, 4294901760
    %3876 = vmatmul.mubr.f32.gmra.mrb[0].mxu0 %v3875
    %v3877 = vpop.f32.mrb[0].mxu0
    %v3878 = vadd.f32 %v3331, %v3877
    %v3879 = vpop.f32.mrb[0].mxu0
    %3880 = vmatprep.mubr.f32.mxu0 0.0
    %v3881 = vand.u32 %v212, 4294901760
    %3882 = vmatmul.mubr.f32.gmra.mrb[0].mxu0 %v3881
    %v3883 = vpop.f32.mrb[0].mxu0
    %v3884 = vadd.f32 %v3337, %v3883
    %v3885 = vpop.f32.mrb[0].mxu0
    %3886 = vmatprep.mubr.f32.mxu0 0.0
    %v3887 = vand.u32 %v215, 4294901760
    %3888 = vmatmul.mubr.f32.gmra.mrb[0].mxu0 %v3887
    %v3889 = vpop.f32.mrb[0].mxu0
    %v3890 = vadd.f32 %v3343, %v3889
    %v3891 = vpop.f32.mrb[0].mxu0
    %3892 = vmatprep.mubr.f32.mxu0 0.0
    %v3893 = vand.u32 %v218, 4294901760
    %3894 = vmatmul.mubr.f32.gmra.mrb[0].mxu0 %v3893
    %v3895 = vpop.f32.mrb[0].mxu0
    %v3896 = vadd.f32 %v3349, %v3895
    %v3897 = vpop.f32.mrb[0].mxu0
    %3898 = vmatprep.mubr.f32.mxu0 0.0
    %v3899 = vand.u32 %v221, 4294901760
    %3900 = vmatmul.mubr.f32.gmra.mrb[0].mxu0 %v3899
    %v3901 = vpop.f32.mrb[0].mxu0
    %v3902 = vadd.f32 %v3355, %v3901
    %v3903 = vpop.f32.mrb[0].mxu0
    %3904 = vmatprep.mubr.f32.mxu0 0.0
    %v3905 = vand.u32 %v224, 4294901760
    %3906 = vmatmul.mubr.f32.gmra.mrb[0].mxu0 %v3905
    %v3907 = vpop.f32.mrb[0].mxu0
    %v3908 = vadd.f32 %v3361, %v3907
    %v3909 = vpop.f32.mrb[0].mxu0
    %3910 = vmatprep.mubr.f32.mxu0 0.0
    %v3911 = vand.u32 %v227, 4294901760
    %3912 = vmatmul.mubr.f32.gmra.mrb[0].mxu0 %v3911
    %v3913 = vpop.f32.mrb[0].mxu0
    %v3914 = vadd.f32 %v3367, %v3913
    %v3915 = vpop.f32.mrb[0].mxu0
    %3916 = vmatprep.mubr.f32.mxu0 0.0
    %v3917 = vand.u32 %v230, 4294901760
    %3918 = vmatmul.mubr.f32.gmra.mrb[0].mxu0 %v3917
    %v3919 = vpop.f32.mrb[0].mxu0
    %v3920 = vadd.f32 %v3373, %v3919
    %v3921 = vpop.f32.mrb[0].mxu0
    %3922 = vmatprep.mubr.f32.mxu0 0.0
    %v3923 = vand.u32 %v233, 4294901760
    %3924 = vmatmul.mubr.f32.gmra.mrb[0].mxu0 %v3923
    %v3925 = vpop.f32.mrb[0].mxu0
    %v3926 = vadd.f32 %v3379, %v3925
    %v3927 = vpop.f32.mrb[0].mxu0
    %3928 = vmatprep.mubr.f32.mxu0 0.0
    %v3929 = vand.u32 %v236, 4294901760
    %3930 = vmatmul.mubr.f32.gmra.mrb[0].mxu0 %v3929
    %v3931 = vpop.f32.mrb[0].mxu0
    %v3932 = vadd.f32 %v3385, %v3931
    %v3933 = vpop.f32.mrb[0].mxu0
    %3934 = vmatprep.mubr.f32.mxu0 0.0
    %v3935 = vand.u32 %v239, 4294901760
    %3936 = vmatmul.mubr.f32.gmra.mrb[0].mxu0 %v3935
    %v3937 = vpop.f32.mrb[0].mxu0
    %v3938 = vadd.f32 %v3391, %v3937
    %v3939 = vpop.f32.mrb[0].mxu0
    %3940 = vmatprep.mubr.f32.mxu0 0.0
    %v3941 = vand.u32 %v242, 4294901760
    %3942 = vmatmul.mubr.f32.gmra.mrb[0].mxu0 %v3941
    %v3943 = vpop.f32.mrb[0].mxu0
    %v3944 = vadd.f32 %v3397, %v3943
    %v3945 = vpop.f32.mrb[0].mxu0
    %3946 = vmatprep.mubr.f32.mxu0 0.0
    %v3947 = vand.u32 %v245, 4294901760
    %3948 = vmatmul.mubr.f32.gmra.mrb[0].mxu0 %v3947
    %v3949 = vpop.f32.mrb[0].mxu0
    %v3950 = vadd.f32 %v3403, %v3949
    %v3951 = vpop.f32.mrb[0].mxu0
    %3952 = vmatprep.mubr.f32.mxu0 0.0
    %v3953 = vand.u32 %v248, 4294901760
    %3954 = vmatmul.mubr.f32.gmra.mrb[0].mxu0 %v3953
    %v3955 = vpop.f32.mrb[0].mxu0
    %v3956 = vadd.f32 %v3409, %v3955
    %v3957 = vpop.f32.mrb[0].mxu0
    %3958 = vmatprep.mubr.f32.mxu0 0.0
    %v3959 = vand.u32 %v251, 4294901760
    %3960 = vmatmul.mubr.f32.gmra.mrb[0].mxu0 %v3959
    %v3961 = vpop.f32.mrb[0].mxu0
    %v3962 = vadd.f32 %v3415, %v3961
    %v3963 = vpop.f32.mrb[0].mxu0
    %3964 = vmatprep.mubr.f32.mxu0 0.0
    %v3965 = vand.u32 %v254, 4294901760
    %3966 = vmatmul.mubr.f32.gmra.mrb[0].mxu0 %v3965
    %v3967 = vpop.f32.mrb[0].mxu0
    %v3968 = vadd.f32 %v3421, %v3967
    %v3969 = vpop.f32.mrb[0].mxu0
    %3970 = vmatprep.mubr.f32.mxu0 0.0
    %v3971 = vand.u32 %v257, 4294901760
    %3972 = vmatmul.mubr.f32.gmra.mrb[0].mxu0 %v3971
    %v3973 = vpop.f32.mrb[0].mxu0
    %v3974 = vadd.f32 %v3427, %v3973
    %v3975 = vpop.f32.mrb[0].mxu0
    %3976 = vmatprep.mubr.f32.mxu0 0.0
    %v3977 = vand.u32 %v260, 4294901760
    %3978 = vmatmul.mubr.f32.gmra.mrb[0].mxu0 %v3977
    %v3979 = vpop.f32.mrb[0].mxu0
    %v3980 = vadd.f32 %v3433, %v3979
    %v3981 = vpop.f32.mrb[0].mxu0
    %3982 = vmatprep.mubr.f32.mxu0 0.0
    %v3983 = vand.u32 %v263, 4294901760
    %3984 = vmatmul.mubr.f32.gmra.mrb[0].mxu0 %v3983
    %v3985 = vpop.f32.mrb[0].mxu0
    %v3986 = vadd.f32 %v3439, %v3985
    %v3987 = vpop.f32.mrb[0].mxu0
    %3988 = vmatprep.mubr.f32.mxu0 0.0
    %v3989 = vand.u32 %v266, 4294901760
    %3990 = vmatmul.mubr.f32.gmra.mrb[0].mxu0 %v3989
    %v3991 = vpop.f32.mrb[0].mxu0
    %v3992 = vadd.f32 %v3445, %v3991
    %v3993 = vpop.f32.mrb[0].mxu0
    %3994 = vmatprep.mubr.f32.mxu0 0.0
    %v3995 = vand.u32 %v269, 4294901760
    %3996 = vmatmul.mubr.f32.gmra.mrb[0].mxu0 %v3995
    %v3997 = vpop.f32.mrb[0].mxu0
    %v3998 = vadd.f32 %v3451, %v3997
    %v3999 = vpop.f32.mrb[0].mxu0
    %4000 = vmatprep.mubr.f32.mxu0 0.0
    %v4001 = vand.u32 %v272, 4294901760
    %4002 = vmatmul.mubr.f32.gmra.mrb[0].mxu0 %v4001
    %v4003 = vpop.f32.mrb[0].mxu0
    %v4004 = vadd.f32 %v3457, %v4003
    %v4005 = vpop.f32.mrb[0].mxu0
    %4006 = vmatprep.mubr.f32.mxu0 0.0
    %v4007 = vand.u32 %v275, 4294901760
    %4008 = vmatmul.mubr.f32.gmra.mrb[0].mxu0 %v4007
    %v4009 = vpop.f32.mrb[0].mxu0
    %v4010 = vadd.f32 %v3463, %v4009
    %v4011 = vpop.f32.mrb[0].mxu0
    %4012 = vmatprep.mubr.f32.mxu0 0.0
    %v4013 = vand.u32 %v278, 4294901760
    %4014 = vmatmul.mubr.f32.gmra.mrb[0].mxu0 %v4013
    %v4015 = vpop.f32.mrb[0].mxu0
    %v4016 = vadd.f32 %v3469, %v4015
    %v4017 = vpop.f32.mrb[0].mxu0
    %4018 = vmatprep.mubr.f32.mxu0 0.0
    %v4019 = vand.u32 %v281, 4294901760
    %4020 = vmatmul.mubr.f32.gmra.mrb[0].mxu0 %v4019
    %v4021 = vpop.f32.mrb[0].mxu0
    %v4022 = vadd.f32 %v3475, %v4021
    %v4023 = vpop.f32.mrb[0].mxu0
    %4024 = vmatprep.mubr.f32.mxu0 0.0
    %v4025 = vand.u32 %v284, 4294901760
    %4026 = vmatmul.mubr.f32.gmra.mrb[0].mxu0 %v4025
    %v4027 = vpop.f32.mrb[0].mxu0
    %v4028 = vadd.f32 %v3481, %v4027
    %v4029 = vpop.f32.mrb[0].mxu0
    %4030 = vmatprep.mubr.f32.mxu0 0.0
    %v4031 = vand.u32 %v287, 4294901760
    %4032 = vmatmul.mubr.f32.gmra.mrb[0].mxu0 %v4031
    %v4033 = vpop.f32.mrb[0].mxu0
    %v4034 = vadd.f32 %v3487, %v4033
    %v4035 = vpop.f32.mrb[0].mxu0
    %4036 = vmatprep.mubr.f32.mxu0 0.0
    %v4037 = vand.u32 %v290, 4294901760
    %4038 = vmatmul.mubr.f32.gmra.mrb[0].mxu0 %v4037
    %v4039 = vpop.f32.mrb[0].mxu0
    %v4040 = vadd.f32 %v3493, %v4039
    %v4041 = vpop.f32.mrb[0].mxu0
    %4042 = vmatprep.mubr.f32.mxu0 0.0
    %v4043 = vand.u32 %v293, 4294901760
    %4044 = vmatmul.mubr.f32.gmra.mrb[0].mxu0 %v4043
    %v4045 = vpop.f32.mrb[0].mxu0
    %v4046 = vadd.f32 %v3499, %v4045
    %v4047 = vpop.f32.mrb[0].mxu0
    %4048 = vmatprep.mubr.f32.mxu0 0.0
    %v4049 = vand.u32 %v296, 4294901760
    %4050 = vmatmul.mubr.f32.gmra.mrb[0].mxu0 %v4049
    %v4051 = vpop.f32.mrb[0].mxu0
    %v4052 = vadd.f32 %v3505, %v4051
    %v4053 = vpop.f32.mrb[0].mxu0
    %4054 = vmatprep.mubr.f32.mxu0 0.0
    %v4055 = vand.u32 %v299, 4294901760
    %4056 = vmatmul.mubr.f32.gmra.mrb[0].mxu0 %v4055
    %v4057 = vpop.f32.mrb[0].mxu0
    %v4058 = vadd.f32 %v3511, %v4057
    %v4059 = vpop.f32.mrb[0].mxu0
    %4060 = vmatprep.mubr.f32.mxu0 0.0
    %v4061 = vand.u32 %v302, 4294901760
    %4062 = vmatmul.mubr.f32.gmra.mrb[0].mxu0 %v4061
    %v4063 = vpop.f32.mrb[0].mxu0
    %v4064 = vadd.f32 %v3517, %v4063
    %v4065 = vpop.f32.mrb[0].mxu0
    %4066 = vmatprep.mubr.f32.mxu0 0.0
    %v4067 = vand.u32 %v305, 4294901760
    %4068 = vmatmul.mubr.f32.gmra.mrb[0].mxu0 %v4067
    %v4069 = vpop.f32.mrb[0].mxu0
    %v4070 = vadd.f32 %v3523, %v4069
    %v4071 = vpop.f32.mrb[0].mxu0
    %4072 = vmatprep.mubr.f32.mxu0 0.0
    %v4073 = vand.u32 %v308, 4294901760
    %4074 = vmatmul.mubr.f32.gmra.mrb[0].mxu0 %v4073
    %v4075 = vpop.f32.mrb[0].mxu0
    %v4076 = vadd.f32 %v3529, %v4075
    %v4077 = vpop.f32.mrb[0].mxu0
    %4078 = vmatprep.mubr.f32.mxu0 0.0
    %v4079 = vand.u32 %v311, 4294901760
    %4080 = vmatmul.mubr.f32.gmra.mrb[0].mxu0 %v4079
    %v4081 = vpop.f32.mrb[0].mxu0
    %v4082 = vadd.f32 %v3535, %v4081
    %v4083 = vpop.f32.mrb[0].mxu0
    %4084 = vmatprep.mubr.f32.mxu0 0.0
    %v4085 = vand.u32 %v314, 4294901760
    %4086 = vmatmul.mubr.f32.gmra.mrb[0].mxu0 %v4085
    %v4087 = vpop.f32.mrb[0].mxu0
    %v4088 = vadd.f32 %v3541, %v4087
    %v4089 = vpop.f32.mrb[0].mxu0
    %4090 = vmatprep.mubr.f32.mxu0 0.0
    %v4091 = vand.u32 %v317, 4294901760
    %4092 = vmatmul.mubr.f32.gmra.mrb[0].mxu0 %v4091
    %v4093 = vpop.f32.mrb[0].mxu0
    %v4094 = vadd.f32 %v3547, %v4093
    %v4095 = vpop.f32.mrb[0].mxu0
    %4096 = vmatprep.mubr.f32.mxu0 0.0
    %v4097 = vand.u32 %v320, 4294901760
    %4098 = vmatmul.mubr.f32.gmra.mrb[0].mxu0 %v4097
    %v4099 = vpop.f32.mrb[0].mxu0
    %v4100 = vadd.f32 %v3553, %v4099
    %v4101 = vpop.f32.mrb[0].mxu0
    %4102 = vmatprep.mubr.f32.mxu0 0.0
    %v4103 = vand.u32 %v323, 4294901760
    %4104 = vmatmul.mubr.f32.gmra.mrb[0].mxu0 %v4103
    %v4105 = vpop.f32.mrb[0].mxu0
    %v4106 = vadd.f32 %v3559, %v4105
    %v4107 = vpop.f32.mrb[0].mxu0
    %4108 = vmatprep.mubr.f32.mxu0 0.0
    %v4109 = vand.u32 %v326, 4294901760
    %4110 = vmatmul.mubr.f32.gmra.mrb[0].mxu0 %v4109
    %v4111 = vpop.f32.mrb[0].mxu0
    %v4112 = vadd.f32 %v3565, %v4111
    %v4113 = vpop.f32.mrb[0].mxu0
    %4114 = vmatprep.mubr.f32.mxu0 0.0
    %v4115 = vand.u32 %v329, 4294901760
    %4116 = vmatmul.mubr.f32.gmra.mrb[0].mxu0 %v4115
    %v4117 = vpop.f32.mrb[0].mxu0
    %v4118 = vadd.f32 %v3571, %v4117
    %v4119 = vpop.f32.mrb[0].mxu0
    %4120 = vmatprep.mubr.f32.mxu0 0.0
    %v4121 = vand.u32 %v332, 4294901760
    %4122 = vmatmul.mubr.f32.gmra.mrb[0].mxu0 %v4121
    %v4123 = vpop.f32.mrb[0].mxu0
    %v4124 = vadd.f32 %v3577, %v4123
    %v4125 = vpop.f32.mrb[0].mxu0
    %4126 = vmatprep.mubr.f32.mxu0 0.0
    %v4127 = vand.u32 %v335, 4294901760
    %4128 = vmatmul.mubr.f32.gmra.mrb[0].mxu0 %v4127
    %v4129 = vpop.f32.mrb[0].mxu0
    %v4130 = vadd.f32 %v3583, %v4129
    %v4131 = vpop.f32.mrb[0].mxu0
    %4132 = vmatprep.mubr.f32.mxu0 0.0
    %v4133 = vand.u32 %v338, 4294901760
    %4134 = vmatmul.mubr.f32.gmra.mrb[0].mxu0 %v4133
    %v4135 = vpop.f32.mrb[0].mxu0
    %v4136 = vadd.f32 %v3589, %v4135
    %v4137 = vpop.f32.mrb[0].mxu0
    %4138 = vmatprep.mubr.f32.mxu0 0.0
    %v4139 = vand.u32 %v341, 4294901760
    %4140 = vmatmul.mubr.f32.gmra.mrb[0].mxu0 %v4139
    %v4141 = vpop.f32.mrb[0].mxu0
    %v4142 = vadd.f32 %v3595, %v4141
    %v4143 = vpop.f32.mrb[0].mxu0
    %4144 = vmatprep.mubr.f32.mxu0 0.0
    %v4145 = vand.u32 %v344, 4294901760
    %4146 = vmatmul.mubr.f32.gmra.mrb[0].mxu0 %v4145
    %v4147 = vpop.f32.mrb[0].mxu0
    %v4148 = vadd.f32 %v3601, %v4147
    %v4149 = vpop.f32.mrb[0].mxu0
    %4150 = vmatprep.mubr.f32.mxu0 0.0
    %v4151 = vand.u32 %v347, 4294901760
    %4152 = vmatmul.mubr.f32.gmra.mrb[0].mxu0 %v4151
    %v4153 = vpop.f32.mrb[0].mxu0
    %v4154 = vadd.f32 %v3607, %v4153
    %v4155 = vpop.f32.mrb[0].mxu0
    %4156 = vmatprep.mubr.f32.mxu0 0.0
    %v4157 = vand.u32 %v350, 4294901760
    %4158 = vmatmul.mubr.f32.gmra.mrb[0].mxu0 %v4157
    %v4159 = vpop.f32.mrb[0].mxu0
    %v4160 = vadd.f32 %v3613, %v4159
    %v4161 = vpop.f32.mrb[0].mxu0
    %4162 = vmatprep.mubr.f32.mxu0 0.0
    %v4163 = vand.u32 %v353, 4294901760
    %4164 = vmatmul.mubr.f32.gmra.mrb[0].mxu0 %v4163
    %v4165 = vpop.f32.mrb[0].mxu0
    %v4166 = vadd.f32 %v3619, %v4165
    %v4167 = vpop.f32.mrb[0].mxu0
    %4168 = vmatprep.mubr.f32.mxu0 0.0
    %v4169 = vand.u32 %v356, 4294901760
    %4170 = vmatmul.mubr.f32.gmra.mrb[0].mxu0 %v4169
    %v4171 = vpop.f32.mrb[0].mxu0
    %v4172 = vadd.f32 %v3625, %v4171
    %v4173 = vpop.f32.mrb[0].mxu0
    %4174 = vmatprep.mubr.f32.mxu0 0.0
    %v4175 = vand.u32 %v359, 4294901760
    %4176 = vmatmul.mubr.f32.gmra.mrb[0].mxu0 %v4175
    %v4177 = vpop.f32.mrb[0].mxu0
    %v4178 = vadd.f32 %v3631, %v4177
    %v4179 = vpop.f32.mrb[0].mxu0
    %4180 = vmatprep.mubr.f32.mxu0 0.0
    %v4181 = vand.u32 %v362, 4294901760
    %4182 = vmatmul.mubr.f32.gmra.mrb[0].mxu0 %v4181
    %v4183 = vpop.f32.mrb[0].mxu0
    %v4184 = vadd.f32 %v3637, %v4183
    %v4185 = vpop.f32.mrb[0].mxu0
    %4186 = vmatprep.mubr.f32.mxu0 0.0
    %v4187 = vand.u32 %v365, 4294901760
    %4188 = vmatmul.mubr.f32.gmra.mrb[0].mxu0 %v4187
    %v4189 = vpop.f32.mrb[0].mxu0
    %v4190 = vadd.f32 %v3643, %v4189
    %v4191 = vpop.f32.mrb[0].mxu0
    %4192 = vmatprep.mubr.f32.mxu0 0.0
    %v4193 = vand.u32 %v368, 4294901760
    %4194 = vmatmul.mubr.f32.gmra.mrb[0].mxu0 %v4193
    %v4195 = vpop.f32.mrb[0].mxu0
    %v4196 = vadd.f32 %v3649, %v4195
    %v4197 = vpop.f32.mrb[0].mxu0
    %4198 = vmatprep.mubr.f32.mxu0 0.0
    %v4199 = vand.u32 %v371, 4294901760
    %4200 = vmatmul.mubr.f32.gmra.mrb[0].mxu0 %v4199
    %v4201 = vpop.f32.mrb[0].mxu0
    %v4202 = vadd.f32 %v3655, %v4201
    %v4203 = vpop.f32.mrb[0].mxu0
    %4204 = vmatprep.mubr.f32.mxu0 0.0
    %v4205 = vand.u32 %v374, 4294901760
    %4206 = vmatmul.mubr.f32.gmra.mrb[0].mxu0 %v4205
    %v4207 = vpop.f32.mrb[0].mxu0
    %v4208 = vadd.f32 %v3661, %v4207
    %v4209 = vpop.f32.mrb[0].mxu0
    %4210 = vmatprep.mubr.f32.mxu0 0.0
    %v4211 = vand.u32 %v377, 4294901760
    %4212 = vmatmul.mubr.f32.gmra.mrb[0].mxu0 %v4211
    %v4213 = vpop.f32.mrb[0].mxu0
    %v4214 = vadd.f32 %v3667, %v4213
    %v4215 = vpop.f32.mrb[0].mxu0
    %4216 = vmatprep.mubr.f32.mxu0 0.0
    %v4217 = vand.u32 %v380, 4294901760
    %4218 = vmatmul.mubr.f32.gmra.mrb[0].mxu0 %v4217
    %v4219 = vpop.f32.mrb[0].mxu0
    %v4220 = vadd.f32 %v3673, %v4219
    %v4221 = vpop.f32.mrb[0].mxu0
    %4222 = vmatprep.mubr.f32.mxu0 0.0
    %v4223 = vand.u32 %v383, 4294901760
    %4224 = vmatmul.mubr.f32.gmra.mrb[0].mxu0 %v4223
    %v4225 = vpop.f32.mrb[0].mxu0
    %v4226 = vadd.f32 %v3679, %v4225
    %v4227 = vpop.f32.mrb[0].mxu0
    %4228 = vmatprep.mubr.f32.mxu0 0.0
    %v4229 = vand.u32 %v386, 4294901760
    %4230 = vmatmul.mubr.f32.gmra.mrb[0].mxu0 %v4229
    %v4231 = vpop.f32.mrb[0].mxu0
    %v4232 = vadd.f32 %v3685, %v4231
    %v4233 = vpop.f32.mrb[0].mxu0
    %4234 = vmatprep.mubr.f32.mxu0 0.0
    %v4235 = vand.u32 %v389, 4294901760
    %4236 = vmatmul.mubr.f32.gmra.mrb[0].mxu0 %v4235
    %v4237 = vpop.f32.mrb[0].mxu0
    %v4238 = vadd.f32 %v3691, %v4237
    %v4239 = vpop.f32.mrb[0].mxu0
    %4240 = vmatprep.mubr.f32.mxu0 0.0
    %v4241 = vand.u32 %v392, 4294901760
    %4242 = vmatmul.mubr.f32.gmra.mrb[0].mxu0 %v4241
    %v4243 = vpop.f32.mrb[0].mxu0
    %v4244 = vadd.f32 %v3697, %v4243
    %v4245 = vpop.f32.mrb[0].mxu0
    %4246 = vmatprep.mubr.f32.mxu0 0.0
    %v4247 = vand.u32 %v395, 4294901760
    %4248 = vmatmul.mubr.f32.gmra.mrb[0].mxu0 %v4247
    %v4249 = vpop.f32.mrb[0].mxu0
    %v4250 = vadd.f32 %v3703, %v4249
    %v4251 = vpop.f32.mrb[0].mxu0
    %4252 = vdwg.mxu0
    %4253 = vxpose.xlu0.b32.start [1/16] %v3776, 128
    %4254 = vxpose.xlu0.b32.cont [2/16] %v3782, 128
    %4255 = vxpose.xlu0.b32.cont [3/16] 0.0, 128
    %4256 = vxpose.xlu0.b32.cont [4/16] 0.0, 128
    %4257 = vxpose.xlu0.b32.cont [5/16] 0.0, 128
    %4258 = vxpose.xlu0.b32.cont [6/16] 0.0, 128
    %4259 = vxpose.xlu0.b32.cont [7/16] 0.0, 128
    %4260 = vxpose.xlu0.b32.cont [8/16] 0.0, 128
    %4261 = vxpose.xlu0.b32.cont [9/16] 0.0, 128
    %4262 = vxpose.xlu0.b32.cont [10/16] 0.0, 128
    %4263 = vxpose.xlu0.b32.cont [11/16] 0.0, 128
    %4264 = vxpose.xlu0.b32.cont [12/16] 0.0, 128
    %4265 = vxpose.xlu0.b32.cont [13/16] 0.0, 128
    %4266 = vxpose.xlu0.b32.cont [14/16] 0.0, 128
    %4267 = vxpose.xlu0.b32.cont [15/16] 0.0, 128
    %4268 = vxpose.xlu0.b32.end [16/16] 0.0, 128
    %v4269 = vpop.trf.xlu0
    %v4270 = vpop.trf.xlu0
    %v4271 = vpop.trf.xlu0
    %v4272 = vpop.trf.xlu0
    %v4273 = vpop.trf.xlu0
    %v4274 = vpop.trf.xlu0
    %v4275 = vpop.trf.xlu0
    %v4276 = vpop.trf.xlu0
    %v4277 = vpop.trf.xlu0
    %v4278 = vpop.trf.xlu0
    %v4279 = vpop.trf.xlu0
    %v4280 = vpop.trf.xlu0
    %v4281 = vpop.trf.xlu0
    %v4282 = vpop.trf.xlu0
    %v4283 = vpop.trf.xlu0
    %v4284 = vpop.trf.xlu0
    %4285 = vxpose.xlu0.b32.start [1/16] %v3788, 128
    %4286 = vxpose.xlu0.b32.cont [2/16] %v3794, 128
    %4287 = vxpose.xlu0.b32.cont [3/16] 0.0, 128
    %4288 = vxpose.xlu0.b32.cont [4/16] 0.0, 128
    %4289 = vxpose.xlu0.b32.cont [5/16] 0.0, 128
    %4290 = vxpose.xlu0.b32.cont [6/16] 0.0, 128
    %4291 = vxpose.xlu0.b32.cont [7/16] 0.0, 128
    %4292 = vxpose.xlu0.b32.cont [8/16] 0.0, 128
    %4293 = vxpose.xlu0.b32.cont [9/16] 0.0, 128
    %4294 = vxpose.xlu0.b32.cont [10/16] 0.0, 128
    %4295 = vxpose.xlu0.b32.cont [11/16] 0.0, 128
    %4296 = vxpose.xlu0.b32.cont [12/16] 0.0, 128
    %4297 = vxpose.xlu0.b32.cont [13/16] 0.0, 128
    %4298 = vxpose.xlu0.b32.cont [14/16] 0.0, 128
    %4299 = vxpose.xlu0.b32.cont [15/16] 0.0, 128
    %4300 = vxpose.xlu0.b32.end [16/16] 0.0, 128
    %v4301 = vpop.trf.xlu0
    %v4302 = vpop.trf.xlu0
    %v4303 = vpop.trf.xlu0
    %v4304 = vpop.trf.xlu0
    %v4305 = vpop.trf.xlu0
    %v4306 = vpop.trf.xlu0
    %v4307 = vpop.trf.xlu0
    %v4308 = vpop.trf.xlu0
    %v4309 = vpop.trf.xlu0
    %v4310 = vpop.trf.xlu0
    %v4311 = vpop.trf.xlu0
    %v4312 = vpop.trf.xlu0
    %v4313 = vpop.trf.xlu0
    %v4314 = vpop.trf.xlu0
    %v4315 = vpop.trf.xlu0
    %v4316 = vpop.trf.xlu0
    %4317 = vxpose.xlu0.b32.start [1/16] %v3800, 128
    %4318 = vxpose.xlu0.b32.cont [2/16] %v3806, 128
    %4319 = vxpose.xlu0.b32.cont [3/16] 0.0, 128
    %4320 = vxpose.xlu0.b32.cont [4/16] 0.0, 128
    %4321 = vxpose.xlu0.b32.cont [5/16] 0.0, 128
    %4322 = vxpose.xlu0.b32.cont [6/16] 0.0, 128
    %4323 = vxpose.xlu0.b32.cont [7/16] 0.0, 128
    %4324 = vxpose.xlu0.b32.cont [8/16] 0.0, 128
    %4325 = vxpose.xlu0.b32.cont [9/16] 0.0, 128
    %4326 = vxpose.xlu0.b32.cont [10/16] 0.0, 128
    %4327 = vxpose.xlu0.b32.cont [11/16] 0.0, 128
    %4328 = vxpose.xlu0.b32.cont [12/16] 0.0, 128
    %4329 = vxpose.xlu0.b32.cont [13/16] 0.0, 128
    %4330 = vxpose.xlu0.b32.cont [14/16] 0.0, 128
    %4331 = vxpose.xlu0.b32.cont [15/16] 0.0, 128
    %4332 = vxpose.xlu0.b32.end [16/16] 0.0, 128
    %v4333 = vpop.trf.xlu0
    %v4334 = vpop.trf.xlu0
    %v4335 = vpop.trf.xlu0
    %v4336 = vpop.trf.xlu0
    %v4337 = vpop.trf.xlu0
    %v4338 = vpop.trf.xlu0
    %v4339 = vpop.trf.xlu0
    %v4340 = vpop.trf.xlu0
    %v4341 = vpop.trf.xlu0
    %v4342 = vpop.trf.xlu0
    %v4343 = vpop.trf.xlu0
    %v4344 = vpop.trf.xlu0
    %v4345 = vpop.trf.xlu0
    %v4346 = vpop.trf.xlu0
    %v4347 = vpop.trf.xlu0
    %v4348 = vpop.trf.xlu0
    %4349 = vxpose.xlu0.b32.start [1/16] %v3812, 128
    %4350 = vxpose.xlu0.b32.cont [2/16] %v3818, 128
    %4351 = vxpose.xlu0.b32.cont [3/16] 0.0, 128
    %4352 = vxpose.xlu0.b32.cont [4/16] 0.0, 128
    %4353 = vxpose.xlu0.b32.cont [5/16] 0.0, 128
    %4354 = vxpose.xlu0.b32.cont [6/16] 0.0, 128
    %4355 = vxpose.xlu0.b32.cont [7/16] 0.0, 128
    %4356 = vxpose.xlu0.b32.cont [8/16] 0.0, 128
    %4357 = vxpose.xlu0.b32.cont [9/16] 0.0, 128
    %4358 = vxpose.xlu0.b32.cont [10/16] 0.0, 128
    %4359 = vxpose.xlu0.b32.cont [11/16] 0.0, 128
    %4360 = vxpose.xlu0.b32.cont [12/16] 0.0, 128
    %4361 = vxpose.xlu0.b32.cont [13/16] 0.0, 128
    %4362 = vxpose.xlu0.b32.cont [14/16] 0.0, 128
    %4363 = vxpose.xlu0.b32.cont [15/16] 0.0, 128
    %4364 = vxpose.xlu0.b32.end [16/16] 0.0, 128
    %v4365 = vpop.trf.xlu0
    %v4366 = vpop.trf.xlu0
    %v4367 = vpop.trf.xlu0
    %v4368 = vpop.trf.xlu0
    %v4369 = vpop.trf.xlu0
    %v4370 = vpop.trf.xlu0
    %v4371 = vpop.trf.xlu0
    %v4372 = vpop.trf.xlu0
    %v4373 = vpop.trf.xlu0
    %v4374 = vpop.trf.xlu0
    %v4375 = vpop.trf.xlu0
    %v4376 = vpop.trf.xlu0
    %v4377 = vpop.trf.xlu0
    %v4378 = vpop.trf.xlu0
    %v4379 = vpop.trf.xlu0
    %v4380 = vpop.trf.xlu0
    %4381 = vxpose.xlu0.b32.start [1/16] %v3824, 128
    %4382 = vxpose.xlu0.b32.cont [2/16] %v3830, 128
    %4383 = vxpose.xlu0.b32.cont [3/16] 0.0, 128
    %4384 = vxpose.xlu0.b32.cont [4/16] 0.0, 128
    %4385 = vxpose.xlu0.b32.cont [5/16] 0.0, 128
    %4386 = vxpose.xlu0.b32.cont [6/16] 0.0, 128
    %4387 = vxpose.xlu0.b32.cont [7/16] 0.0, 128
    %4388 = vxpose.xlu0.b32.cont [8/16] 0.0, 128
    %4389 = vxpose.xlu0.b32.cont [9/16] 0.0, 128
    %4390 = vxpose.xlu0.b32.cont [10/16] 0.0, 128
    %4391 = vxpose.xlu0.b32.cont [11/16] 0.0, 128
    %4392 = vxpose.xlu0.b32.cont [12/16] 0.0, 128
    %4393 = vxpose.xlu0.b32.cont [13/16] 0.0, 128
    %4394 = vxpose.xlu0.b32.cont [14/16] 0.0, 128
    %4395 = vxpose.xlu0.b32.cont [15/16] 0.0, 128
    %4396 = vxpose.xlu0.b32.end [16/16] 0.0, 128
    %v4397 = vpop.trf.xlu0
    %v4398 = vpop.trf.xlu0
    %v4399 = vpop.trf.xlu0
    %v4400 = vpop.trf.xlu0
    %v4401 = vpop.trf.xlu0
    %v4402 = vpop.trf.xlu0
    %v4403 = vpop.trf.xlu0
    %v4404 = vpop.trf.xlu0
    %v4405 = vpop.trf.xlu0
    %v4406 = vpop.trf.xlu0
    %v4407 = vpop.trf.xlu0
    %v4408 = vpop.trf.xlu0
    %v4409 = vpop.trf.xlu0
    %v4410 = vpop.trf.xlu0
    %v4411 = vpop.trf.xlu0
    %v4412 = vpop.trf.xlu0
    %4413 = vxpose.xlu0.b32.start [1/16] %v3836, 128
    %4414 = vxpose.xlu0.b32.cont [2/16] %v3842, 128
    %4415 = vxpose.xlu0.b32.cont [3/16] 0.0, 128
    %4416 = vxpose.xlu0.b32.cont [4/16] 0.0, 128
    %4417 = vxpose.xlu0.b32.cont [5/16] 0.0, 128
    %4418 = vxpose.xlu0.b32.cont [6/16] 0.0, 128
    %4419 = vxpose.xlu0.b32.cont [7/16] 0.0, 128
    %4420 = vxpose.xlu0.b32.cont [8/16] 0.0, 128
    %4421 = vxpose.xlu0.b32.cont [9/16] 0.0, 128
    %4422 = vxpose.xlu0.b32.cont [10/16] 0.0, 128
    %4423 = vxpose.xlu0.b32.cont [11/16] 0.0, 128
    %4424 = vxpose.xlu0.b32.cont [12/16] 0.0, 128
    %4425 = vxpose.xlu0.b32.cont [13/16] 0.0, 128
    %4426 = vxpose.xlu0.b32.cont [14/16] 0.0, 128
    %4427 = vxpose.xlu0.b32.cont [15/16] 0.0, 128
    %4428 = vxpose.xlu0.b32.end [16/16] 0.0, 128
    %v4429 = vpop.trf.xlu0
    %v4430 = vpop.trf.xlu0
    %v4431 = vpop.trf.xlu0
    %v4432 = vpop.trf.xlu0
    %v4433 = vpop.trf.xlu0
    %v4434 = vpop.trf.xlu0
    %v4435 = vpop.trf.xlu0
    %v4436 = vpop.trf.xlu0
    %v4437 = vpop.trf.xlu0
    %v4438 = vpop.trf.xlu0
    %v4439 = vpop.trf.xlu0
    %v4440 = vpop.trf.xlu0
    %v4441 = vpop.trf.xlu0
    %v4442 = vpop.trf.xlu0
    %v4443 = vpop.trf.xlu0
    %v4444 = vpop.trf.xlu0
    %4445 = vxpose.xlu0.b32.start [1/16] %v3848, 128
    %4446 = vxpose.xlu0.b32.cont [2/16] %v3854, 128
    %4447 = vxpose.xlu0.b32.cont [3/16] 0.0, 128
    %4448 = vxpose.xlu0.b32.cont [4/16] 0.0, 128
    %4449 = vxpose.xlu0.b32.cont [5/16] 0.0, 128
    %4450 = vxpose.xlu0.b32.cont [6/16] 0.0, 128
    %4451 = vxpose.xlu0.b32.cont [7/16] 0.0, 128
    %4452 = vxpose.xlu0.b32.cont [8/16] 0.0, 128
    %4453 = vxpose.xlu0.b32.cont [9/16] 0.0, 128
    %4454 = vxpose.xlu0.b32.cont [10/16] 0.0, 128
    %4455 = vxpose.xlu0.b32.cont [11/16] 0.0, 128
    %4456 = vxpose.xlu0.b32.cont [12/16] 0.0, 128
    %4457 = vxpose.xlu0.b32.cont [13/16] 0.0, 128
    %4458 = vxpose.xlu0.b32.cont [14/16] 0.0, 128
    %4459 = vxpose.xlu0.b32.cont [15/16] 0.0, 128
    %4460 = vxpose.xlu0.b32.end [16/16] 0.0, 128
    %v4461 = vpop.trf.xlu0
    %v4462 = vpop.trf.xlu0
    %v4463 = vpop.trf.xlu0
    %v4464 = vpop.trf.xlu0
    %v4465 = vpop.trf.xlu0
    %v4466 = vpop.trf.xlu0
    %v4467 = vpop.trf.xlu0
    %v4468 = vpop.trf.xlu0
    %v4469 = vpop.trf.xlu0
    %v4470 = vpop.trf.xlu0
    %v4471 = vpop.trf.xlu0
    %v4472 = vpop.trf.xlu0
    %v4473 = vpop.trf.xlu0
    %v4474 = vpop.trf.xlu0
    %v4475 = vpop.trf.xlu0
    %v4476 = vpop.trf.xlu0
    %4477 = vxpose.xlu0.b32.start [1/16] %v3860, 128
    %4478 = vxpose.xlu0.b32.cont [2/16] %v3866, 128
    %4479 = vxpose.xlu0.b32.cont [3/16] 0.0, 128
    %4480 = vxpose.xlu0.b32.cont [4/16] 0.0, 128
    %4481 = vxpose.xlu0.b32.cont [5/16] 0.0, 128
    %4482 = vxpose.xlu0.b32.cont [6/16] 0.0, 128
    %4483 = vxpose.xlu0.b32.cont [7/16] 0.0, 128
    %4484 = vxpose.xlu0.b32.cont [8/16] 0.0, 128
    %4485 = vxpose.xlu0.b32.cont [9/16] 0.0, 128
    %4486 = vxpose.xlu0.b32.cont [10/16] 0.0, 128
    %4487 = vxpose.xlu0.b32.cont [11/16] 0.0, 128
    %4488 = vxpose.xlu0.b32.cont [12/16] 0.0, 128
    %4489 = vxpose.xlu0.b32.cont [13/16] 0.0, 128
    %4490 = vxpose.xlu0.b32.cont [14/16] 0.0, 128
    %4491 = vxpose.xlu0.b32.cont [15/16] 0.0, 128
    %4492 = vxpose.xlu0.b32.end [16/16] 0.0, 128
    %v4493 = vpop.trf.xlu0
    %v4494 = vpop.trf.xlu0
    %v4495 = vpop.trf.xlu0
    %v4496 = vpop.trf.xlu0
    %v4497 = vpop.trf.xlu0
    %v4498 = vpop.trf.xlu0
    %v4499 = vpop.trf.xlu0
    %v4500 = vpop.trf.xlu0
    %v4501 = vpop.trf.xlu0
    %v4502 = vpop.trf.xlu0
    %v4503 = vpop.trf.xlu0
    %v4504 = vpop.trf.xlu0
    %v4505 = vpop.trf.xlu0
    %v4506 = vpop.trf.xlu0
    %v4507 = vpop.trf.xlu0
    %v4508 = vpop.trf.xlu0
    %4509 = vxpose.xlu0.b32.start [1/16] %v3872, 128
    %4510 = vxpose.xlu0.b32.cont [2/16] %v3878, 128
    %4511 = vxpose.xlu0.b32.cont [3/16] 0.0, 128
    %4512 = vxpose.xlu0.b32.cont [4/16] 0.0, 128
    %4513 = vxpose.xlu0.b32.cont [5/16] 0.0, 128
    %4514 = vxpose.xlu0.b32.cont [6/16] 0.0, 128
    %4515 = vxpose.xlu0.b32.cont [7/16] 0.0, 128
    %4516 = vxpose.xlu0.b32.cont [8/16] 0.0, 128
    %4517 = vxpose.xlu0.b32.cont [9/16] 0.0, 128
    %4518 = vxpose.xlu0.b32.cont [10/16] 0.0, 128
    %4519 = vxpose.xlu0.b32.cont [11/16] 0.0, 128
    %4520 = vxpose.xlu0.b32.cont [12/16] 0.0, 128
    %4521 = vxpose.xlu0.b32.cont [13/16] 0.0, 128
    %4522 = vxpose.xlu0.b32.cont [14/16] 0.0, 128
    %4523 = vxpose.xlu0.b32.cont [15/16] 0.0, 128
    %4524 = vxpose.xlu0.b32.end [16/16] 0.0, 128
    %v4525 = vpop.trf.xlu0
    %v4526 = vpop.trf.xlu0
    %v4527 = vpop.trf.xlu0
    %v4528 = vpop.trf.xlu0
    %v4529 = vpop.trf.xlu0
    %v4530 = vpop.trf.xlu0
    %v4531 = vpop.trf.xlu0
    %v4532 = vpop.trf.xlu0
    %v4533 = vpop.trf.xlu0
    %v4534 = vpop.trf.xlu0
    %v4535 = vpop.trf.xlu0
    %v4536 = vpop.trf.xlu0
    %v4537 = vpop.trf.xlu0
    %v4538 = vpop.trf.xlu0
    %v4539 = vpop.trf.xlu0
    %v4540 = vpop.trf.xlu0
    %4541 = vxpose.xlu0.b32.start [1/16] %v3884, 128
    %4542 = vxpose.xlu0.b32.cont [2/16] %v3890, 128
    %4543 = vxpose.xlu0.b32.cont [3/16] 0.0, 128
    %4544 = vxpose.xlu0.b32.cont [4/16] 0.0, 128
    %4545 = vxpose.xlu0.b32.cont [5/16] 0.0, 128
    %4546 = vxpose.xlu0.b32.cont [6/16] 0.0, 128
    %4547 = vxpose.xlu0.b32.cont [7/16] 0.0, 128
    %4548 = vxpose.xlu0.b32.cont [8/16] 0.0, 128
    %4549 = vxpose.xlu0.b32.cont [9/16] 0.0, 128
    %4550 = vxpose.xlu0.b32.cont [10/16] 0.0, 128
    %4551 = vxpose.xlu0.b32.cont [11/16] 0.0, 128
    %4552 = vxpose.xlu0.b32.cont [12/16] 0.0, 128
    %4553 = vxpose.xlu0.b32.cont [13/16] 0.0, 128
    %4554 = vxpose.xlu0.b32.cont [14/16] 0.0, 128
    %4555 = vxpose.xlu0.b32.cont [15/16] 0.0, 128
    %4556 = vxpose.xlu0.b32.end [16/16] 0.0, 128
    %v4557 = vpop.trf.xlu0
    %v4558 = vpop.trf.xlu0
    %v4559 = vpop.trf.xlu0
    %v4560 = vpop.trf.xlu0
    %v4561 = vpop.trf.xlu0
    %v4562 = vpop.trf.xlu0
    %v4563 = vpop.trf.xlu0
    %v4564 = vpop.trf.xlu0
    %v4565 = vpop.trf.xlu0
    %v4566 = vpop.trf.xlu0
    %v4567 = vpop.trf.xlu0
    %v4568 = vpop.trf.xlu0
    %v4569 = vpop.trf.xlu0
    %v4570 = vpop.trf.xlu0
    %v4571 = vpop.trf.xlu0
    %v4572 = vpop.trf.xlu0
    %4573 = vxpose.xlu0.b32.start [1/16] %v3896, 128
    %4574 = vxpose.xlu0.b32.cont [2/16] %v3902, 128
    %4575 = vxpose.xlu0.b32.cont [3/16] 0.0, 128
    %4576 = vxpose.xlu0.b32.cont [4/16] 0.0, 128
    %4577 = vxpose.xlu0.b32.cont [5/16] 0.0, 128
    %4578 = vxpose.xlu0.b32.cont [6/16] 0.0, 128
    %4579 = vxpose.xlu0.b32.cont [7/16] 0.0, 128
    %4580 = vxpose.xlu0.b32.cont [8/16] 0.0, 128
    %4581 = vxpose.xlu0.b32.cont [9/16] 0.0, 128
    %4582 = vxpose.xlu0.b32.cont [10/16] 0.0, 128
    %4583 = vxpose.xlu0.b32.cont [11/16] 0.0, 128
    %4584 = vxpose.xlu0.b32.cont [12/16] 0.0, 128
    %4585 = vxpose.xlu0.b32.cont [13/16] 0.0, 128
    %4586 = vxpose.xlu0.b32.cont [14/16] 0.0, 128
    %4587 = vxpose.xlu0.b32.cont [15/16] 0.0, 128
    %4588 = vxpose.xlu0.b32.end [16/16] 0.0, 128
    %v4589 = vpop.trf.xlu0
    %v4590 = vpop.trf.xlu0
    %v4591 = vpop.trf.xlu0
    %v4592 = vpop.trf.xlu0
    %v4593 = vpop.trf.xlu0
    %v4594 = vpop.trf.xlu0
    %v4595 = vpop.trf.xlu0
    %v4596 = vpop.trf.xlu0
    %v4597 = vpop.trf.xlu0
    %v4598 = vpop.trf.xlu0
    %v4599 = vpop.trf.xlu0
    %v4600 = vpop.trf.xlu0
    %v4601 = vpop.trf.xlu0
    %v4602 = vpop.trf.xlu0
    %v4603 = vpop.trf.xlu0
    %v4604 = vpop.trf.xlu0
    %4605 = vxpose.xlu0.b32.start [1/16] %v3908, 128
    %4606 = vxpose.xlu0.b32.cont [2/16] %v3914, 128
    %4607 = vxpose.xlu0.b32.cont [3/16] 0.0, 128
    %4608 = vxpose.xlu0.b32.cont [4/16] 0.0, 128
    %4609 = vxpose.xlu0.b32.cont [5/16] 0.0, 128
    %4610 = vxpose.xlu0.b32.cont [6/16] 0.0, 128
    %4611 = vxpose.xlu0.b32.cont [7/16] 0.0, 128
    %4612 = vxpose.xlu0.b32.cont [8/16] 0.0, 128
    %4613 = vxpose.xlu0.b32.cont [9/16] 0.0, 128
    %4614 = vxpose.xlu0.b32.cont [10/16] 0.0, 128
    %4615 = vxpose.xlu0.b32.cont [11/16] 0.0, 128
    %4616 = vxpose.xlu0.b32.cont [12/16] 0.0, 128
    %4617 = vxpose.xlu0.b32.cont [13/16] 0.0, 128
    %4618 = vxpose.xlu0.b32.cont [14/16] 0.0, 128
    %4619 = vxpose.xlu0.b32.cont [15/16] 0.0, 128
    %4620 = vxpose.xlu0.b32.end [16/16] 0.0, 128
    %v4621 = vpop.trf.xlu0
    %v4622 = vpop.trf.xlu0
    %v4623 = vpop.trf.xlu0
    %v4624 = vpop.trf.xlu0
    %v4625 = vpop.trf.xlu0
    %v4626 = vpop.trf.xlu0
    %v4627 = vpop.trf.xlu0
    %v4628 = vpop.trf.xlu0
    %v4629 = vpop.trf.xlu0
    %v4630 = vpop.trf.xlu0
    %v4631 = vpop.trf.xlu0
    %v4632 = vpop.trf.xlu0
    %v4633 = vpop.trf.xlu0
    %v4634 = vpop.trf.xlu0
    %v4635 = vpop.trf.xlu0
    %v4636 = vpop.trf.xlu0
    %4637 = vxpose.xlu0.b32.start [1/16] %v3920, 128
    %4638 = vxpose.xlu0.b32.cont [2/16] %v3926, 128
    %4639 = vxpose.xlu0.b32.cont [3/16] 0.0, 128
    %4640 = vxpose.xlu0.b32.cont [4/16] 0.0, 128
    %4641 = vxpose.xlu0.b32.cont [5/16] 0.0, 128
    %4642 = vxpose.xlu0.b32.cont [6/16] 0.0, 128
    %4643 = vxpose.xlu0.b32.cont [7/16] 0.0, 128
    %4644 = vxpose.xlu0.b32.cont [8/16] 0.0, 128
    %4645 = vxpose.xlu0.b32.cont [9/16] 0.0, 128
    %4646 = vxpose.xlu0.b32.cont [10/16] 0.0, 128
    %4647 = vxpose.xlu0.b32.cont [11/16] 0.0, 128
    %4648 = vxpose.xlu0.b32.cont [12/16] 0.0, 128
    %4649 = vxpose.xlu0.b32.cont [13/16] 0.0, 128
    %4650 = vxpose.xlu0.b32.cont [14/16] 0.0, 128
    %4651 = vxpose.xlu0.b32.cont [15/16] 0.0, 128
    %4652 = vxpose.xlu0.b32.end [16/16] 0.0, 128
    %v4653 = vpop.trf.xlu0
    %v4654 = vpop.trf.xlu0
    %v4655 = vpop.trf.xlu0
    %v4656 = vpop.trf.xlu0
    %v4657 = vpop.trf.xlu0
    %v4658 = vpop.trf.xlu0
    %v4659 = vpop.trf.xlu0
    %v4660 = vpop.trf.xlu0
    %v4661 = vpop.trf.xlu0
    %v4662 = vpop.trf.xlu0
    %v4663 = vpop.trf.xlu0
    %v4664 = vpop.trf.xlu0
    %v4665 = vpop.trf.xlu0
    %v4666 = vpop.trf.xlu0
    %v4667 = vpop.trf.xlu0
    %v4668 = vpop.trf.xlu0
    %4669 = vxpose.xlu0.b32.start [1/16] %v3932, 128
    %4670 = vxpose.xlu0.b32.cont [2/16] %v3938, 128
    %4671 = vxpose.xlu0.b32.cont [3/16] 0.0, 128
    %4672 = vxpose.xlu0.b32.cont [4/16] 0.0, 128
    %4673 = vxpose.xlu0.b32.cont [5/16] 0.0, 128
    %4674 = vxpose.xlu0.b32.cont [6/16] 0.0, 128
    %4675 = vxpose.xlu0.b32.cont [7/16] 0.0, 128
    %4676 = vxpose.xlu0.b32.cont [8/16] 0.0, 128
    %4677 = vxpose.xlu0.b32.cont [9/16] 0.0, 128
    %4678 = vxpose.xlu0.b32.cont [10/16] 0.0, 128
    %4679 = vxpose.xlu0.b32.cont [11/16] 0.0, 128
    %4680 = vxpose.xlu0.b32.cont [12/16] 0.0, 128
    %4681 = vxpose.xlu0.b32.cont [13/16] 0.0, 128
    %4682 = vxpose.xlu0.b32.cont [14/16] 0.0, 128
    %4683 = vxpose.xlu0.b32.cont [15/16] 0.0, 128
    %4684 = vxpose.xlu0.b32.end [16/16] 0.0, 128
    %v4685 = vpop.trf.xlu0
    %v4686 = vpop.trf.xlu0
    %v4687 = vpop.trf.xlu0
    %v4688 = vpop.trf.xlu0
    %v4689 = vpop.trf.xlu0
    %v4690 = vpop.trf.xlu0
    %v4691 = vpop.trf.xlu0
    %v4692 = vpop.trf.xlu0
    %v4693 = vpop.trf.xlu0
    %v4694 = vpop.trf.xlu0
    %v4695 = vpop.trf.xlu0
    %v4696 = vpop.trf.xlu0
    %v4697 = vpop.trf.xlu0
    %v4698 = vpop.trf.xlu0
    %v4699 = vpop.trf.xlu0
    %v4700 = vpop.trf.xlu0
    %4701 = vxpose.xlu0.b32.start [1/16] %v3944, 128
    %4702 = vxpose.xlu0.b32.cont [2/16] %v3950, 128
    %4703 = vxpose.xlu0.b32.cont [3/16] 0.0, 128
    %4704 = vxpose.xlu0.b32.cont [4/16] 0.0, 128
    %4705 = vxpose.xlu0.b32.cont [5/16] 0.0, 128
    %4706 = vxpose.xlu0.b32.cont [6/16] 0.0, 128
    %4707 = vxpose.xlu0.b32.cont [7/16] 0.0, 128
    %4708 = vxpose.xlu0.b32.cont [8/16] 0.0, 128
    %4709 = vxpose.xlu0.b32.cont [9/16] 0.0, 128
    %4710 = vxpose.xlu0.b32.cont [10/16] 0.0, 128
    %4711 = vxpose.xlu0.b32.cont [11/16] 0.0, 128
    %4712 = vxpose.xlu0.b32.cont [12/16] 0.0, 128
    %4713 = vxpose.xlu0.b32.cont [13/16] 0.0, 128
    %4714 = vxpose.xlu0.b32.cont [14/16] 0.0, 128
    %4715 = vxpose.xlu0.b32.cont [15/16] 0.0, 128
    %4716 = vxpose.xlu0.b32.end [16/16] 0.0, 128
    %v4717 = vpop.trf.xlu0
    %v4718 = vpop.trf.xlu0
    %v4719 = vpop.trf.xlu0
    %v4720 = vpop.trf.xlu0
    %v4721 = vpop.trf.xlu0
    %v4722 = vpop.trf.xlu0
    %v4723 = vpop.trf.xlu0
    %v4724 = vpop.trf.xlu0
    %v4725 = vpop.trf.xlu0
    %v4726 = vpop.trf.xlu0
    %v4727 = vpop.trf.xlu0
    %v4728 = vpop.trf.xlu0
    %v4729 = vpop.trf.xlu0
    %v4730 = vpop.trf.xlu0
    %v4731 = vpop.trf.xlu0
    %v4732 = vpop.trf.xlu0
    %4733 = vxpose.xlu0.b32.start [1/16] %v3956, 128
    %4734 = vxpose.xlu0.b32.cont [2/16] %v3962, 128
    %4735 = vxpose.xlu0.b32.cont [3/16] 0.0, 128
    %4736 = vxpose.xlu0.b32.cont [4/16] 0.0, 128
    %4737 = vxpose.xlu0.b32.cont [5/16] 0.0, 128
    %4738 = vxpose.xlu0.b32.cont [6/16] 0.0, 128
    %4739 = vxpose.xlu0.b32.cont [7/16] 0.0, 128
    %4740 = vxpose.xlu0.b32.cont [8/16] 0.0, 128
    %4741 = vxpose.xlu0.b32.cont [9/16] 0.0, 128
    %4742 = vxpose.xlu0.b32.cont [10/16] 0.0, 128
    %4743 = vxpose.xlu0.b32.cont [11/16] 0.0, 128
    %4744 = vxpose.xlu0.b32.cont [12/16] 0.0, 128
    %4745 = vxpose.xlu0.b32.cont [13/16] 0.0, 128
    %4746 = vxpose.xlu0.b32.cont [14/16] 0.0, 128
    %4747 = vxpose.xlu0.b32.cont [15/16] 0.0, 128
    %4748 = vxpose.xlu0.b32.end [16/16] 0.0, 128
    %v4749 = vpop.trf.xlu0
    %v4750 = vpop.trf.xlu0
    %v4751 = vpop.trf.xlu0
    %v4752 = vpop.trf.xlu0
    %v4753 = vpop.trf.xlu0
    %v4754 = vpop.trf.xlu0
    %v4755 = vpop.trf.xlu0
    %v4756 = vpop.trf.xlu0
    %v4757 = vpop.trf.xlu0
    %v4758 = vpop.trf.xlu0
    %v4759 = vpop.trf.xlu0
    %v4760 = vpop.trf.xlu0
    %v4761 = vpop.trf.xlu0
    %v4762 = vpop.trf.xlu0
    %v4763 = vpop.trf.xlu0
    %v4764 = vpop.trf.xlu0
    %4765 = vxpose.xlu0.b32.start [1/16] %v3968, 128
    %4766 = vxpose.xlu0.b32.cont [2/16] %v3974, 128
    %4767 = vxpose.xlu0.b32.cont [3/16] 0.0, 128
    %4768 = vxpose.xlu0.b32.cont [4/16] 0.0, 128
    %4769 = vxpose.xlu0.b32.cont [5/16] 0.0, 128
    %4770 = vxpose.xlu0.b32.cont [6/16] 0.0, 128
    %4771 = vxpose.xlu0.b32.cont [7/16] 0.0, 128
    %4772 = vxpose.xlu0.b32.cont [8/16] 0.0, 128
    %4773 = vxpose.xlu0.b32.cont [9/16] 0.0, 128
    %4774 = vxpose.xlu0.b32.cont [10/16] 0.0, 128
    %4775 = vxpose.xlu0.b32.cont [11/16] 0.0, 128
    %4776 = vxpose.xlu0.b32.cont [12/16] 0.0, 128
    %4777 = vxpose.xlu0.b32.cont [13/16] 0.0, 128
    %4778 = vxpose.xlu0.b32.cont [14/16] 0.0, 128
    %4779 = vxpose.xlu0.b32.cont [15/16] 0.0, 128
    %4780 = vxpose.xlu0.b32.end [16/16] 0.0, 128
    %v4781 = vpop.trf.xlu0
    %v4782 = vpop.trf.xlu0
    %v4783 = vpop.trf.xlu0
    %v4784 = vpop.trf.xlu0
    %v4785 = vpop.trf.xlu0
    %v4786 = vpop.trf.xlu0
    %v4787 = vpop.trf.xlu0
    %v4788 = vpop.trf.xlu0
    %v4789 = vpop.trf.xlu0
    %v4790 = vpop.trf.xlu0
    %v4791 = vpop.trf.xlu0
    %v4792 = vpop.trf.xlu0
    %v4793 = vpop.trf.xlu0
    %v4794 = vpop.trf.xlu0
    %v4795 = vpop.trf.xlu0
    %v4796 = vpop.trf.xlu0
    %4797 = vxpose.xlu0.b32.start [1/16] %v3980, 128
    %4798 = vxpose.xlu0.b32.cont [2/16] %v3986, 128
    %4799 = vxpose.xlu0.b32.cont [3/16] 0.0, 128
    %4800 = vxpose.xlu0.b32.cont [4/16] 0.0, 128
    %4801 = vxpose.xlu0.b32.cont [5/16] 0.0, 128
    %4802 = vxpose.xlu0.b32.cont [6/16] 0.0, 128
    %4803 = vxpose.xlu0.b32.cont [7/16] 0.0, 128
    %4804 = vxpose.xlu0.b32.cont [8/16] 0.0, 128
    %4805 = vxpose.xlu0.b32.cont [9/16] 0.0, 128
    %4806 = vxpose.xlu0.b32.cont [10/16] 0.0, 128
    %4807 = vxpose.xlu0.b32.cont [11/16] 0.0, 128
    %4808 = vxpose.xlu0.b32.cont [12/16] 0.0, 128
    %4809 = vxpose.xlu0.b32.cont [13/16] 0.0, 128
    %4810 = vxpose.xlu0.b32.cont [14/16] 0.0, 128
    %4811 = vxpose.xlu0.b32.cont [15/16] 0.0, 128
    %4812 = vxpose.xlu0.b32.end [16/16] 0.0, 128
    %v4813 = vpop.trf.xlu0
    %v4814 = vpop.trf.xlu0
    %v4815 = vpop.trf.xlu0
    %v4816 = vpop.trf.xlu0
    %v4817 = vpop.trf.xlu0
    %v4818 = vpop.trf.xlu0
    %v4819 = vpop.trf.xlu0
    %v4820 = vpop.trf.xlu0
    %v4821 = vpop.trf.xlu0
    %v4822 = vpop.trf.xlu0
    %v4823 = vpop.trf.xlu0
    %v4824 = vpop.trf.xlu0
    %v4825 = vpop.trf.xlu0
    %v4826 = vpop.trf.xlu0
    %v4827 = vpop.trf.xlu0
    %v4828 = vpop.trf.xlu0
    %4829 = vxpose.xlu0.b32.start [1/16] %v3992, 128
    %4830 = vxpose.xlu0.b32.cont [2/16] %v3998, 128
    %4831 = vxpose.xlu0.b32.cont [3/16] 0.0, 128
    %4832 = vxpose.xlu0.b32.cont [4/16] 0.0, 128
    %4833 = vxpose.xlu0.b32.cont [5/16] 0.0, 128
    %4834 = vxpose.xlu0.b32.cont [6/16] 0.0, 128
    %4835 = vxpose.xlu0.b32.cont [7/16] 0.0, 128
    %4836 = vxpose.xlu0.b32.cont [8/16] 0.0, 128
    %4837 = vxpose.xlu0.b32.cont [9/16] 0.0, 128
    %4838 = vxpose.xlu0.b32.cont [10/16] 0.0, 128
    %4839 = vxpose.xlu0.b32.cont [11/16] 0.0, 128
    %4840 = vxpose.xlu0.b32.cont [12/16] 0.0, 128
    %4841 = vxpose.xlu0.b32.cont [13/16] 0.0, 128
    %4842 = vxpose.xlu0.b32.cont [14/16] 0.0, 128
    %4843 = vxpose.xlu0.b32.cont [15/16] 0.0, 128
    %4844 = vxpose.xlu0.b32.end [16/16] 0.0, 128
    %v4845 = vpop.trf.xlu0
    %v4846 = vpop.trf.xlu0
    %v4847 = vpop.trf.xlu0
    %v4848 = vpop.trf.xlu0
    %v4849 = vpop.trf.xlu0
    %v4850 = vpop.trf.xlu0
    %v4851 = vpop.trf.xlu0
    %v4852 = vpop.trf.xlu0
    %v4853 = vpop.trf.xlu0
    %v4854 = vpop.trf.xlu0
    %v4855 = vpop.trf.xlu0
    %v4856 = vpop.trf.xlu0
    %v4857 = vpop.trf.xlu0
    %v4858 = vpop.trf.xlu0
    %v4859 = vpop.trf.xlu0
    %v4860 = vpop.trf.xlu0
    %4861 = vxpose.xlu0.b32.start [1/16] %v4004, 128
    %4862 = vxpose.xlu0.b32.cont [2/16] %v4010, 128
    %4863 = vxpose.xlu0.b32.cont [3/16] 0.0, 128
    %4864 = vxpose.xlu0.b32.cont [4/16] 0.0, 128
    %4865 = vxpose.xlu0.b32.cont [5/16] 0.0, 128
    %4866 = vxpose.xlu0.b32.cont [6/16] 0.0, 128
    %4867 = vxpose.xlu0.b32.cont [7/16] 0.0, 128
    %4868 = vxpose.xlu0.b32.cont [8/16] 0.0, 128
    %4869 = vxpose.xlu0.b32.cont [9/16] 0.0, 128
    %4870 = vxpose.xlu0.b32.cont [10/16] 0.0, 128
    %4871 = vxpose.xlu0.b32.cont [11/16] 0.0, 128
    %4872 = vxpose.xlu0.b32.cont [12/16] 0.0, 128
    %4873 = vxpose.xlu0.b32.cont [13/16] 0.0, 128
    %4874 = vxpose.xlu0.b32.cont [14/16] 0.0, 128
    %4875 = vxpose.xlu0.b32.cont [15/16] 0.0, 128
    %4876 = vxpose.xlu0.b32.end [16/16] 0.0, 128
    %v4877 = vpop.trf.xlu0
    %v4878 = vpop.trf.xlu0
    %v4879 = vpop.trf.xlu0
    %v4880 = vpop.trf.xlu0
    %v4881 = vpop.trf.xlu0
    %v4882 = vpop.trf.xlu0
    %v4883 = vpop.trf.xlu0
    %v4884 = vpop.trf.xlu0
    %v4885 = vpop.trf.xlu0
    %v4886 = vpop.trf.xlu0
    %v4887 = vpop.trf.xlu0
    %v4888 = vpop.trf.xlu0
    %v4889 = vpop.trf.xlu0
    %v4890 = vpop.trf.xlu0
    %v4891 = vpop.trf.xlu0
    %v4892 = vpop.trf.xlu0
    %4893 = vxpose.xlu0.b32.start [1/16] %v4016, 128
    %4894 = vxpose.xlu0.b32.cont [2/16] %v4022, 128
    %4895 = vxpose.xlu0.b32.cont [3/16] 0.0, 128
    %4896 = vxpose.xlu0.b32.cont [4/16] 0.0, 128
    %4897 = vxpose.xlu0.b32.cont [5/16] 0.0, 128
    %4898 = vxpose.xlu0.b32.cont [6/16] 0.0, 128
    %4899 = vxpose.xlu0.b32.cont [7/16] 0.0, 128
    %4900 = vxpose.xlu0.b32.cont [8/16] 0.0, 128
    %4901 = vxpose.xlu0.b32.cont [9/16] 0.0, 128
    %4902 = vxpose.xlu0.b32.cont [10/16] 0.0, 128
    %4903 = vxpose.xlu0.b32.cont [11/16] 0.0, 128
    %4904 = vxpose.xlu0.b32.cont [12/16] 0.0, 128
    %4905 = vxpose.xlu0.b32.cont [13/16] 0.0, 128
    %4906 = vxpose.xlu0.b32.cont [14/16] 0.0, 128
    %4907 = vxpose.xlu0.b32.cont [15/16] 0.0, 128
    %4908 = vxpose.xlu0.b32.end [16/16] 0.0, 128
    %v4909 = vpop.trf.xlu0
    %v4910 = vpop.trf.xlu0
    %v4911 = vpop.trf.xlu0
    %v4912 = vpop.trf.xlu0
    %v4913 = vpop.trf.xlu0
    %v4914 = vpop.trf.xlu0
    %v4915 = vpop.trf.xlu0
    %v4916 = vpop.trf.xlu0
    %v4917 = vpop.trf.xlu0
    %v4918 = vpop.trf.xlu0
    %v4919 = vpop.trf.xlu0
    %v4920 = vpop.trf.xlu0
    %v4921 = vpop.trf.xlu0
    %v4922 = vpop.trf.xlu0
    %v4923 = vpop.trf.xlu0
    %v4924 = vpop.trf.xlu0
    %4925 = vxpose.xlu0.b32.start [1/16] %v4028, 128
    %4926 = vxpose.xlu0.b32.cont [2/16] %v4034, 128
    %4927 = vxpose.xlu0.b32.cont [3/16] 0.0, 128
    %4928 = vxpose.xlu0.b32.cont [4/16] 0.0, 128
    %4929 = vxpose.xlu0.b32.cont [5/16] 0.0, 128
    %4930 = vxpose.xlu0.b32.cont [6/16] 0.0, 128
    %4931 = vxpose.xlu0.b32.cont [7/16] 0.0, 128
    %4932 = vxpose.xlu0.b32.cont [8/16] 0.0, 128
    %4933 = vxpose.xlu0.b32.cont [9/16] 0.0, 128
    %4934 = vxpose.xlu0.b32.cont [10/16] 0.0, 128
    %4935 = vxpose.xlu0.b32.cont [11/16] 0.0, 128
    %4936 = vxpose.xlu0.b32.cont [12/16] 0.0, 128
    %4937 = vxpose.xlu0.b32.cont [13/16] 0.0, 128
    %4938 = vxpose.xlu0.b32.cont [14/16] 0.0, 128
    %4939 = vxpose.xlu0.b32.cont [15/16] 0.0, 128
    %4940 = vxpose.xlu0.b32.end [16/16] 0.0, 128
    %v4941 = vpop.trf.xlu0
    %v4942 = vpop.trf.xlu0
    %v4943 = vpop.trf.xlu0
    %v4944 = vpop.trf.xlu0
    %v4945 = vpop.trf.xlu0
    %v4946 = vpop.trf.xlu0
    %v4947 = vpop.trf.xlu0
    %v4948 = vpop.trf.xlu0
    %v4949 = vpop.trf.xlu0
    %v4950 = vpop.trf.xlu0
    %v4951 = vpop.trf.xlu0
    %v4952 = vpop.trf.xlu0
    %v4953 = vpop.trf.xlu0
    %v4954 = vpop.trf.xlu0
    %v4955 = vpop.trf.xlu0
    %v4956 = vpop.trf.xlu0
    %4957 = vxpose.xlu0.b32.start [1/16] %v4040, 128
    %4958 = vxpose.xlu0.b32.cont [2/16] %v4046, 128
    %4959 = vxpose.xlu0.b32.cont [3/16] 0.0, 128
    %4960 = vxpose.xlu0.b32.cont [4/16] 0.0, 128
    %4961 = vxpose.xlu0.b32.cont [5/16] 0.0, 128
    %4962 = vxpose.xlu0.b32.cont [6/16] 0.0, 128
    %4963 = vxpose.xlu0.b32.cont [7/16] 0.0, 128
    %4964 = vxpose.xlu0.b32.cont [8/16] 0.0, 128
    %4965 = vxpose.xlu0.b32.cont [9/16] 0.0, 128
    %4966 = vxpose.xlu0.b32.cont [10/16] 0.0, 128
    %4967 = vxpose.xlu0.b32.cont [11/16] 0.0, 128
    %4968 = vxpose.xlu0.b32.cont [12/16] 0.0, 128
    %4969 = vxpose.xlu0.b32.cont [13/16] 0.0, 128
    %4970 = vxpose.xlu0.b32.cont [14/16] 0.0, 128
    %4971 = vxpose.xlu0.b32.cont [15/16] 0.0, 128
    %4972 = vxpose.xlu0.b32.end [16/16] 0.0, 128
    %v4973 = vpop.trf.xlu0
    %v4974 = vpop.trf.xlu0
    %v4975 = vpop.trf.xlu0
    %v4976 = vpop.trf.xlu0
    %v4977 = vpop.trf.xlu0
    %v4978 = vpop.trf.xlu0
    %v4979 = vpop.trf.xlu0
    %v4980 = vpop.trf.xlu0
    %v4981 = vpop.trf.xlu0
    %v4982 = vpop.trf.xlu0
    %v4983 = vpop.trf.xlu0
    %v4984 = vpop.trf.xlu0
    %v4985 = vpop.trf.xlu0
    %v4986 = vpop.trf.xlu0
    %v4987 = vpop.trf.xlu0
    %v4988 = vpop.trf.xlu0
    %4989 = vxpose.xlu0.b32.start [1/16] %v4052, 128
    %4990 = vxpose.xlu0.b32.cont [2/16] %v4058, 128
    %4991 = vxpose.xlu0.b32.cont [3/16] 0.0, 128
    %4992 = vxpose.xlu0.b32.cont [4/16] 0.0, 128
    %4993 = vxpose.xlu0.b32.cont [5/16] 0.0, 128
    %4994 = vxpose.xlu0.b32.cont [6/16] 0.0, 128
    %4995 = vxpose.xlu0.b32.cont [7/16] 0.0, 128
    %4996 = vxpose.xlu0.b32.cont [8/16] 0.0, 128
    %4997 = vxpose.xlu0.b32.cont [9/16] 0.0, 128
    %4998 = vxpose.xlu0.b32.cont [10/16] 0.0, 128
    %4999 = vxpose.xlu0.b32.cont [11/16] 0.0, 128
    %5000 = vxpose.xlu0.b32.cont [12/16] 0.0, 128
    %5001 = vxpose.xlu0.b32.cont [13/16] 0.0, 128
    %5002 = vxpose.xlu0.b32.cont [14/16] 0.0, 128
    %5003 = vxpose.xlu0.b32.cont [15/16] 0.0, 128
    %5004 = vxpose.xlu0.b32.end [16/16] 0.0, 128
    %v5005 = vpop.trf.xlu0
    %v5006 = vpop.trf.xlu0
    %v5007 = vpop.trf.xlu0
    %v5008 = vpop.trf.xlu0
    %v5009 = vpop.trf.xlu0
    %v5010 = vpop.trf.xlu0
    %v5011 = vpop.trf.xlu0
    %v5012 = vpop.trf.xlu0
    %v5013 = vpop.trf.xlu0
    %v5014 = vpop.trf.xlu0
    %v5015 = vpop.trf.xlu0
    %v5016 = vpop.trf.xlu0
    %v5017 = vpop.trf.xlu0
    %v5018 = vpop.trf.xlu0
    %v5019 = vpop.trf.xlu0
    %v5020 = vpop.trf.xlu0
    %5021 = vxpose.xlu0.b32.start [1/16] %v4064, 128
    %5022 = vxpose.xlu0.b32.cont [2/16] %v4070, 128
    %5023 = vxpose.xlu0.b32.cont [3/16] 0.0, 128
    %5024 = vxpose.xlu0.b32.cont [4/16] 0.0, 128
    %5025 = vxpose.xlu0.b32.cont [5/16] 0.0, 128
    %5026 = vxpose.xlu0.b32.cont [6/16] 0.0, 128
    %5027 = vxpose.xlu0.b32.cont [7/16] 0.0, 128
    %5028 = vxpose.xlu0.b32.cont [8/16] 0.0, 128
    %5029 = vxpose.xlu0.b32.cont [9/16] 0.0, 128
    %5030 = vxpose.xlu0.b32.cont [10/16] 0.0, 128
    %5031 = vxpose.xlu0.b32.cont [11/16] 0.0, 128
    %5032 = vxpose.xlu0.b32.cont [12/16] 0.0, 128
    %5033 = vxpose.xlu0.b32.cont [13/16] 0.0, 128
    %5034 = vxpose.xlu0.b32.cont [14/16] 0.0, 128
    %5035 = vxpose.xlu0.b32.cont [15/16] 0.0, 128
    %5036 = vxpose.xlu0.b32.end [16/16] 0.0, 128
    %v5037 = vpop.trf.xlu0
    %v5038 = vpop.trf.xlu0
    %v5039 = vpop.trf.xlu0
    %v5040 = vpop.trf.xlu0
    %v5041 = vpop.trf.xlu0
    %v5042 = vpop.trf.xlu0
    %v5043 = vpop.trf.xlu0
    %v5044 = vpop.trf.xlu0
    %v5045 = vpop.trf.xlu0
    %v5046 = vpop.trf.xlu0
    %v5047 = vpop.trf.xlu0
    %v5048 = vpop.trf.xlu0
    %v5049 = vpop.trf.xlu0
    %v5050 = vpop.trf.xlu0
    %v5051 = vpop.trf.xlu0
    %v5052 = vpop.trf.xlu0
    %5053 = vxpose.xlu0.b32.start [1/16] %v4076, 128
    %5054 = vxpose.xlu0.b32.cont [2/16] %v4082, 128
    %5055 = vxpose.xlu0.b32.cont [3/16] 0.0, 128
    %5056 = vxpose.xlu0.b32.cont [4/16] 0.0, 128
    %5057 = vxpose.xlu0.b32.cont [5/16] 0.0, 128
    %5058 = vxpose.xlu0.b32.cont [6/16] 0.0, 128
    %5059 = vxpose.xlu0.b32.cont [7/16] 0.0, 128
    %5060 = vxpose.xlu0.b32.cont [8/16] 0.0, 128
    %5061 = vxpose.xlu0.b32.cont [9/16] 0.0, 128
    %5062 = vxpose.xlu0.b32.cont [10/16] 0.0, 128
    %5063 = vxpose.xlu0.b32.cont [11/16] 0.0, 128
    %5064 = vxpose.xlu0.b32.cont [12/16] 0.0, 128
    %5065 = vxpose.xlu0.b32.cont [13/16] 0.0, 128
    %5066 = vxpose.xlu0.b32.cont [14/16] 0.0, 128
    %5067 = vxpose.xlu0.b32.cont [15/16] 0.0, 128
    %5068 = vxpose.xlu0.b32.end [16/16] 0.0, 128
    %v5069 = vpop.trf.xlu0
    %v5070 = vpop.trf.xlu0
    %v5071 = vpop.trf.xlu0
    %v5072 = vpop.trf.xlu0
    %v5073 = vpop.trf.xlu0
    %v5074 = vpop.trf.xlu0
    %v5075 = vpop.trf.xlu0
    %v5076 = vpop.trf.xlu0
    %v5077 = vpop.trf.xlu0
    %v5078 = vpop.trf.xlu0
    %v5079 = vpop.trf.xlu0
    %v5080 = vpop.trf.xlu0
    %v5081 = vpop.trf.xlu0
    %v5082 = vpop.trf.xlu0
    %v5083 = vpop.trf.xlu0
    %v5084 = vpop.trf.xlu0
    %5085 = vxpose.xlu0.b32.start [1/16] %v4088, 128
    %5086 = vxpose.xlu0.b32.cont [2/16] %v4094, 128
    %5087 = vxpose.xlu0.b32.cont [3/16] 0.0, 128
    %5088 = vxpose.xlu0.b32.cont [4/16] 0.0, 128
    %5089 = vxpose.xlu0.b32.cont [5/16] 0.0, 128
    %5090 = vxpose.xlu0.b32.cont [6/16] 0.0, 128
    %5091 = vxpose.xlu0.b32.cont [7/16] 0.0, 128
    %5092 = vxpose.xlu0.b32.cont [8/16] 0.0, 128
    %5093 = vxpose.xlu0.b32.cont [9/16] 0.0, 128
    %5094 = vxpose.xlu0.b32.cont [10/16] 0.0, 128
    %5095 = vxpose.xlu0.b32.cont [11/16] 0.0, 128
    %5096 = vxpose.xlu0.b32.cont [12/16] 0.0, 128
    %5097 = vxpose.xlu0.b32.cont [13/16] 0.0, 128
    %5098 = vxpose.xlu0.b32.cont [14/16] 0.0, 128
    %5099 = vxpose.xlu0.b32.cont [15/16] 0.0, 128
    %5100 = vxpose.xlu0.b32.end [16/16] 0.0, 128
    %v5101 = vpop.trf.xlu0
    %v5102 = vpop.trf.xlu0
    %v5103 = vpop.trf.xlu0
    %v5104 = vpop.trf.xlu0
    %v5105 = vpop.trf.xlu0
    %v5106 = vpop.trf.xlu0
    %v5107 = vpop.trf.xlu0
    %v5108 = vpop.trf.xlu0
    %v5109 = vpop.trf.xlu0
    %v5110 = vpop.trf.xlu0
    %v5111 = vpop.trf.xlu0
    %v5112 = vpop.trf.xlu0
    %v5113 = vpop.trf.xlu0
    %v5114 = vpop.trf.xlu0
    %v5115 = vpop.trf.xlu0
    %v5116 = vpop.trf.xlu0
    %5117 = vxpose.xlu0.b32.start [1/16] %v4100, 128
    %5118 = vxpose.xlu0.b32.cont [2/16] %v4106, 128
    %5119 = vxpose.xlu0.b32.cont [3/16] 0.0, 128
    %5120 = vxpose.xlu0.b32.cont [4/16] 0.0, 128
    %5121 = vxpose.xlu0.b32.cont [5/16] 0.0, 128
    %5122 = vxpose.xlu0.b32.cont [6/16] 0.0, 128
    %5123 = vxpose.xlu0.b32.cont [7/16] 0.0, 128
    %5124 = vxpose.xlu0.b32.cont [8/16] 0.0, 128
    %5125 = vxpose.xlu0.b32.cont [9/16] 0.0, 128
    %5126 = vxpose.xlu0.b32.cont [10/16] 0.0, 128
    %5127 = vxpose.xlu0.b32.cont [11/16] 0.0, 128
    %5128 = vxpose.xlu0.b32.cont [12/16] 0.0, 128
    %5129 = vxpose.xlu0.b32.cont [13/16] 0.0, 128
    %5130 = vxpose.xlu0.b32.cont [14/16] 0.0, 128
    %5131 = vxpose.xlu0.b32.cont [15/16] 0.0, 128
    %5132 = vxpose.xlu0.b32.end [16/16] 0.0, 128
    %v5133 = vpop.trf.xlu0
    %v5134 = vpop.trf.xlu0
    %v5135 = vpop.trf.xlu0
    %v5136 = vpop.trf.xlu0
    %v5137 = vpop.trf.xlu0
    %v5138 = vpop.trf.xlu0
    %v5139 = vpop.trf.xlu0
    %v5140 = vpop.trf.xlu0
    %v5141 = vpop.trf.xlu0
    %v5142 = vpop.trf.xlu0
    %v5143 = vpop.trf.xlu0
    %v5144 = vpop.trf.xlu0
    %v5145 = vpop.trf.xlu0
    %v5146 = vpop.trf.xlu0
    %v5147 = vpop.trf.xlu0
    %v5148 = vpop.trf.xlu0
    %5149 = vxpose.xlu0.b32.start [1/16] %v4112, 128
    %5150 = vxpose.xlu0.b32.cont [2/16] %v4118, 128
    %5151 = vxpose.xlu0.b32.cont [3/16] 0.0, 128
    %5152 = vxpose.xlu0.b32.cont [4/16] 0.0, 128
    %5153 = vxpose.xlu0.b32.cont [5/16] 0.0, 128
    %5154 = vxpose.xlu0.b32.cont [6/16] 0.0, 128
    %5155 = vxpose.xlu0.b32.cont [7/16] 0.0, 128
    %5156 = vxpose.xlu0.b32.cont [8/16] 0.0, 128
    %5157 = vxpose.xlu0.b32.cont [9/16] 0.0, 128
    %5158 = vxpose.xlu0.b32.cont [10/16] 0.0, 128
    %5159 = vxpose.xlu0.b32.cont [11/16] 0.0, 128
    %5160 = vxpose.xlu0.b32.cont [12/16] 0.0, 128
    %5161 = vxpose.xlu0.b32.cont [13/16] 0.0, 128
    %5162 = vxpose.xlu0.b32.cont [14/16] 0.0, 128
    %5163 = vxpose.xlu0.b32.cont [15/16] 0.0, 128
    %5164 = vxpose.xlu0.b32.end [16/16] 0.0, 128
    %v5165 = vpop.trf.xlu0
    %v5166 = vpop.trf.xlu0
    %v5167 = vpop.trf.xlu0
    %v5168 = vpop.trf.xlu0
    %v5169 = vpop.trf.xlu0
    %v5170 = vpop.trf.xlu0
    %v5171 = vpop.trf.xlu0
    %v5172 = vpop.trf.xlu0
    %v5173 = vpop.trf.xlu0
    %v5174 = vpop.trf.xlu0
    %v5175 = vpop.trf.xlu0
    %v5176 = vpop.trf.xlu0
    %v5177 = vpop.trf.xlu0
    %v5178 = vpop.trf.xlu0
    %v5179 = vpop.trf.xlu0
    %v5180 = vpop.trf.xlu0
    %5181 = vxpose.xlu0.b32.start [1/16] %v4124, 128
    %5182 = vxpose.xlu0.b32.cont [2/16] %v4130, 128
    %5183 = vxpose.xlu0.b32.cont [3/16] 0.0, 128
    %5184 = vxpose.xlu0.b32.cont [4/16] 0.0, 128
    %5185 = vxpose.xlu0.b32.cont [5/16] 0.0, 128
    %5186 = vxpose.xlu0.b32.cont [6/16] 0.0, 128
    %5187 = vxpose.xlu0.b32.cont [7/16] 0.0, 128
    %5188 = vxpose.xlu0.b32.cont [8/16] 0.0, 128
    %5189 = vxpose.xlu0.b32.cont [9/16] 0.0, 128
    %5190 = vxpose.xlu0.b32.cont [10/16] 0.0, 128
    %5191 = vxpose.xlu0.b32.cont [11/16] 0.0, 128
    %5192 = vxpose.xlu0.b32.cont [12/16] 0.0, 128
    %5193 = vxpose.xlu0.b32.cont [13/16] 0.0, 128
    %5194 = vxpose.xlu0.b32.cont [14/16] 0.0, 128
    %5195 = vxpose.xlu0.b32.cont [15/16] 0.0, 128
    %5196 = vxpose.xlu0.b32.end [16/16] 0.0, 128
    %v5197 = vpop.trf.xlu0
    %v5198 = vpop.trf.xlu0
    %v5199 = vpop.trf.xlu0
    %v5200 = vpop.trf.xlu0
    %v5201 = vpop.trf.xlu0
    %v5202 = vpop.trf.xlu0
    %v5203 = vpop.trf.xlu0
    %v5204 = vpop.trf.xlu0
    %v5205 = vpop.trf.xlu0
    %v5206 = vpop.trf.xlu0
    %v5207 = vpop.trf.xlu0
    %v5208 = vpop.trf.xlu0
    %v5209 = vpop.trf.xlu0
    %v5210 = vpop.trf.xlu0
    %v5211 = vpop.trf.xlu0
    %v5212 = vpop.trf.xlu0
    %5213 = vxpose.xlu0.b32.start [1/16] %v4136, 128
    %5214 = vxpose.xlu0.b32.cont [2/16] %v4142, 128
    %5215 = vxpose.xlu0.b32.cont [3/16] 0.0, 128
    %5216 = vxpose.xlu0.b32.cont [4/16] 0.0, 128
    %5217 = vxpose.xlu0.b32.cont [5/16] 0.0, 128
    %5218 = vxpose.xlu0.b32.cont [6/16] 0.0, 128
    %5219 = vxpose.xlu0.b32.cont [7/16] 0.0, 128
    %5220 = vxpose.xlu0.b32.cont [8/16] 0.0, 128
    %5221 = vxpose.xlu0.b32.cont [9/16] 0.0, 128
    %5222 = vxpose.xlu0.b32.cont [10/16] 0.0, 128
    %5223 = vxpose.xlu0.b32.cont [11/16] 0.0, 128
    %5224 = vxpose.xlu0.b32.cont [12/16] 0.0, 128
    %5225 = vxpose.xlu0.b32.cont [13/16] 0.0, 128
    %5226 = vxpose.xlu0.b32.cont [14/16] 0.0, 128
    %5227 = vxpose.xlu0.b32.cont [15/16] 0.0, 128
    %5228 = vxpose.xlu0.b32.end [16/16] 0.0, 128
    %v5229 = vpop.trf.xlu0
    %v5230 = vpop.trf.xlu0
    %v5231 = vpop.trf.xlu0
    %v5232 = vpop.trf.xlu0
    %v5233 = vpop.trf.xlu0
    %v5234 = vpop.trf.xlu0
    %v5235 = vpop.trf.xlu0
    %v5236 = vpop.trf.xlu0
    %v5237 = vpop.trf.xlu0
    %v5238 = vpop.trf.xlu0
    %v5239 = vpop.trf.xlu0
    %v5240 = vpop.trf.xlu0
    %v5241 = vpop.trf.xlu0
    %v5242 = vpop.trf.xlu0
    %v5243 = vpop.trf.xlu0
    %v5244 = vpop.trf.xlu0
    %5245 = vxpose.xlu0.b32.start [1/16] %v4148, 128
    %5246 = vxpose.xlu0.b32.cont [2/16] %v4154, 128
    %5247 = vxpose.xlu0.b32.cont [3/16] 0.0, 128
    %5248 = vxpose.xlu0.b32.cont [4/16] 0.0, 128
    %5249 = vxpose.xlu0.b32.cont [5/16] 0.0, 128
    %5250 = vxpose.xlu0.b32.cont [6/16] 0.0, 128
    %5251 = vxpose.xlu0.b32.cont [7/16] 0.0, 128
    %5252 = vxpose.xlu0.b32.cont [8/16] 0.0, 128
    %5253 = vxpose.xlu0.b32.cont [9/16] 0.0, 128
    %5254 = vxpose.xlu0.b32.cont [10/16] 0.0, 128
    %5255 = vxpose.xlu0.b32.cont [11/16] 0.0, 128
    %5256 = vxpose.xlu0.b32.cont [12/16] 0.0, 128
    %5257 = vxpose.xlu0.b32.cont [13/16] 0.0, 128
    %5258 = vxpose.xlu0.b32.cont [14/16] 0.0, 128
    %5259 = vxpose.xlu0.b32.cont [15/16] 0.0, 128
    %5260 = vxpose.xlu0.b32.end [16/16] 0.0, 128
    %v5261 = vpop.trf.xlu0
    %v5262 = vpop.trf.xlu0
    %v5263 = vpop.trf.xlu0
    %v5264 = vpop.trf.xlu0
    %v5265 = vpop.trf.xlu0
    %v5266 = vpop.trf.xlu0
    %v5267 = vpop.trf.xlu0
    %v5268 = vpop.trf.xlu0
    %v5269 = vpop.trf.xlu0
    %v5270 = vpop.trf.xlu0
    %v5271 = vpop.trf.xlu0
    %v5272 = vpop.trf.xlu0
    %v5273 = vpop.trf.xlu0
    %v5274 = vpop.trf.xlu0
    %v5275 = vpop.trf.xlu0
    %v5276 = vpop.trf.xlu0
    %5277 = vxpose.xlu0.b32.start [1/16] %v4160, 128
    %5278 = vxpose.xlu0.b32.cont [2/16] %v4166, 128
    %5279 = vxpose.xlu0.b32.cont [3/16] 0.0, 128
    %5280 = vxpose.xlu0.b32.cont [4/16] 0.0, 128
    %5281 = vxpose.xlu0.b32.cont [5/16] 0.0, 128
    %5282 = vxpose.xlu0.b32.cont [6/16] 0.0, 128
    %5283 = vxpose.xlu0.b32.cont [7/16] 0.0, 128
    %5284 = vxpose.xlu0.b32.cont [8/16] 0.0, 128
    %5285 = vxpose.xlu0.b32.cont [9/16] 0.0, 128
    %5286 = vxpose.xlu0.b32.cont [10/16] 0.0, 128
    %5287 = vxpose.xlu0.b32.cont [11/16] 0.0, 128
    %5288 = vxpose.xlu0.b32.cont [12/16] 0.0, 128
    %5289 = vxpose.xlu0.b32.cont [13/16] 0.0, 128
    %5290 = vxpose.xlu0.b32.cont [14/16] 0.0, 128
    %5291 = vxpose.xlu0.b32.cont [15/16] 0.0, 128
    %5292 = vxpose.xlu0.b32.end [16/16] 0.0, 128
    %v5293 = vpop.trf.xlu0
    %v5294 = vpop.trf.xlu0
    %v5295 = vpop.trf.xlu0
    %v5296 = vpop.trf.xlu0
    %v5297 = vpop.trf.xlu0
    %v5298 = vpop.trf.xlu0
    %v5299 = vpop.trf.xlu0
    %v5300 = vpop.trf.xlu0
    %v5301 = vpop.trf.xlu0
    %v5302 = vpop.trf.xlu0
    %v5303 = vpop.trf.xlu0
    %v5304 = vpop.trf.xlu0
    %v5305 = vpop.trf.xlu0
    %v5306 = vpop.trf.xlu0
    %v5307 = vpop.trf.xlu0
    %v5308 = vpop.trf.xlu0
    %5309 = vxpose.xlu0.b32.start [1/16] %v4172, 128
    %5310 = vxpose.xlu0.b32.cont [2/16] %v4178, 128
    %5311 = vxpose.xlu0.b32.cont [3/16] 0.0, 128
    %5312 = vxpose.xlu0.b32.cont [4/16] 0.0, 128
    %5313 = vxpose.xlu0.b32.cont [5/16] 0.0, 128
    %5314 = vxpose.xlu0.b32.cont [6/16] 0.0, 128
    %5315 = vxpose.xlu0.b32.cont [7/16] 0.0, 128
    %5316 = vxpose.xlu0.b32.cont [8/16] 0.0, 128
    %5317 = vxpose.xlu0.b32.cont [9/16] 0.0, 128
    %5318 = vxpose.xlu0.b32.cont [10/16] 0.0, 128
    %5319 = vxpose.xlu0.b32.cont [11/16] 0.0, 128
    %5320 = vxpose.xlu0.b32.cont [12/16] 0.0, 128
    %5321 = vxpose.xlu0.b32.cont [13/16] 0.0, 128
    %5322 = vxpose.xlu0.b32.cont [14/16] 0.0, 128
    %5323 = vxpose.xlu0.b32.cont [15/16] 0.0, 128
    %5324 = vxpose.xlu0.b32.end [16/16] 0.0, 128
    %v5325 = vpop.trf.xlu0
    %v5326 = vpop.trf.xlu0
    %v5327 = vpop.trf.xlu0
    %v5328 = vpop.trf.xlu0
    %v5329 = vpop.trf.xlu0
    %v5330 = vpop.trf.xlu0
    %v5331 = vpop.trf.xlu0
    %v5332 = vpop.trf.xlu0
    %v5333 = vpop.trf.xlu0
    %v5334 = vpop.trf.xlu0
    %v5335 = vpop.trf.xlu0
    %v5336 = vpop.trf.xlu0
    %v5337 = vpop.trf.xlu0
    %v5338 = vpop.trf.xlu0
    %v5339 = vpop.trf.xlu0
    %v5340 = vpop.trf.xlu0
    %5341 = vxpose.xlu0.b32.start [1/16] %v4184, 128
    %5342 = vxpose.xlu0.b32.cont [2/16] %v4190, 128
    %5343 = vxpose.xlu0.b32.cont [3/16] 0.0, 128
    %5344 = vxpose.xlu0.b32.cont [4/16] 0.0, 128
    %5345 = vxpose.xlu0.b32.cont [5/16] 0.0, 128
    %5346 = vxpose.xlu0.b32.cont [6/16] 0.0, 128
    %5347 = vxpose.xlu0.b32.cont [7/16] 0.0, 128
    %5348 = vxpose.xlu0.b32.cont [8/16] 0.0, 128
    %5349 = vxpose.xlu0.b32.cont [9/16] 0.0, 128
    %5350 = vxpose.xlu0.b32.cont [10/16] 0.0, 128
    %5351 = vxpose.xlu0.b32.cont [11/16] 0.0, 128
    %5352 = vxpose.xlu0.b32.cont [12/16] 0.0, 128
    %5353 = vxpose.xlu0.b32.cont [13/16] 0.0, 128
    %5354 = vxpose.xlu0.b32.cont [14/16] 0.0, 128
    %5355 = vxpose.xlu0.b32.cont [15/16] 0.0, 128
    %5356 = vxpose.xlu0.b32.end [16/16] 0.0, 128
    %v5357 = vpop.trf.xlu0
    %v5358 = vpop.trf.xlu0
    %v5359 = vpop.trf.xlu0
    %v5360 = vpop.trf.xlu0
    %v5361 = vpop.trf.xlu0
    %v5362 = vpop.trf.xlu0
    %v5363 = vpop.trf.xlu0
    %v5364 = vpop.trf.xlu0
    %v5365 = vpop.trf.xlu0
    %v5366 = vpop.trf.xlu0
    %v5367 = vpop.trf.xlu0
    %v5368 = vpop.trf.xlu0
    %v5369 = vpop.trf.xlu0
    %v5370 = vpop.trf.xlu0
    %v5371 = vpop.trf.xlu0
    %v5372 = vpop.trf.xlu0
    %5373 = vxpose.xlu0.b32.start [1/16] %v4196, 128
    %5374 = vxpose.xlu0.b32.cont [2/16] %v4202, 128
    %5375 = vxpose.xlu0.b32.cont [3/16] 0.0, 128
    %5376 = vxpose.xlu0.b32.cont [4/16] 0.0, 128
    %5377 = vxpose.xlu0.b32.cont [5/16] 0.0, 128
    %5378 = vxpose.xlu0.b32.cont [6/16] 0.0, 128
    %5379 = vxpose.xlu0.b32.cont [7/16] 0.0, 128
    %5380 = vxpose.xlu0.b32.cont [8/16] 0.0, 128
    %5381 = vxpose.xlu0.b32.cont [9/16] 0.0, 128
    %5382 = vxpose.xlu0.b32.cont [10/16] 0.0, 128
    %5383 = vxpose.xlu0.b32.cont [11/16] 0.0, 128
    %5384 = vxpose.xlu0.b32.cont [12/16] 0.0, 128
    %5385 = vxpose.xlu0.b32.cont [13/16] 0.0, 128
    %5386 = vxpose.xlu0.b32.cont [14/16] 0.0, 128
    %5387 = vxpose.xlu0.b32.cont [15/16] 0.0, 128
    %5388 = vxpose.xlu0.b32.end [16/16] 0.0, 128
    %v5389 = vpop.trf.xlu0
    %v5390 = vpop.trf.xlu0
    %v5391 = vpop.trf.xlu0
    %v5392 = vpop.trf.xlu0
    %v5393 = vpop.trf.xlu0
    %v5394 = vpop.trf.xlu0
    %v5395 = vpop.trf.xlu0
    %v5396 = vpop.trf.xlu0
    %v5397 = vpop.trf.xlu0
    %v5398 = vpop.trf.xlu0
    %v5399 = vpop.trf.xlu0
    %v5400 = vpop.trf.xlu0
    %v5401 = vpop.trf.xlu0
    %v5402 = vpop.trf.xlu0
    %v5403 = vpop.trf.xlu0
    %v5404 = vpop.trf.xlu0
    %5405 = vxpose.xlu0.b32.start [1/16] %v4208, 128
    %5406 = vxpose.xlu0.b32.cont [2/16] %v4214, 128
    %5407 = vxpose.xlu0.b32.cont [3/16] 0.0, 128
    %5408 = vxpose.xlu0.b32.cont [4/16] 0.0, 128
    %5409 = vxpose.xlu0.b32.cont [5/16] 0.0, 128
    %5410 = vxpose.xlu0.b32.cont [6/16] 0.0, 128
    %5411 = vxpose.xlu0.b32.cont [7/16] 0.0, 128
    %5412 = vxpose.xlu0.b32.cont [8/16] 0.0, 128
    %5413 = vxpose.xlu0.b32.cont [9/16] 0.0, 128
    %5414 = vxpose.xlu0.b32.cont [10/16] 0.0, 128
    %5415 = vxpose.xlu0.b32.cont [11/16] 0.0, 128
    %5416 = vxpose.xlu0.b32.cont [12/16] 0.0, 128
    %5417 = vxpose.xlu0.b32.cont [13/16] 0.0, 128
    %5418 = vxpose.xlu0.b32.cont [14/16] 0.0, 128
    %5419 = vxpose.xlu0.b32.cont [15/16] 0.0, 128
    %5420 = vxpose.xlu0.b32.end [16/16] 0.0, 128
    %v5421 = vpop.trf.xlu0
    %v5422 = vpop.trf.xlu0
    %v5423 = vpop.trf.xlu0
    %v5424 = vpop.trf.xlu0
    %v5425 = vpop.trf.xlu0
    %v5426 = vpop.trf.xlu0
    %v5427 = vpop.trf.xlu0
    %v5428 = vpop.trf.xlu0
    %v5429 = vpop.trf.xlu0
    %v5430 = vpop.trf.xlu0
    %v5431 = vpop.trf.xlu0
    %v5432 = vpop.trf.xlu0
    %v5433 = vpop.trf.xlu0
    %v5434 = vpop.trf.xlu0
    %v5435 = vpop.trf.xlu0
    %v5436 = vpop.trf.xlu0
    %5437 = vxpose.xlu0.b32.start [1/16] %v4220, 128
    %5438 = vxpose.xlu0.b32.cont [2/16] %v4226, 128
    %5439 = vxpose.xlu0.b32.cont [3/16] 0.0, 128
    %5440 = vxpose.xlu0.b32.cont [4/16] 0.0, 128
    %5441 = vxpose.xlu0.b32.cont [5/16] 0.0, 128
    %5442 = vxpose.xlu0.b32.cont [6/16] 0.0, 128
    %5443 = vxpose.xlu0.b32.cont [7/16] 0.0, 128
    %5444 = vxpose.xlu0.b32.cont [8/16] 0.0, 128
    %5445 = vxpose.xlu0.b32.cont [9/16] 0.0, 128
    %5446 = vxpose.xlu0.b32.cont [10/16] 0.0, 128
    %5447 = vxpose.xlu0.b32.cont [11/16] 0.0, 128
    %5448 = vxpose.xlu0.b32.cont [12/16] 0.0, 128
    %5449 = vxpose.xlu0.b32.cont [13/16] 0.0, 128
    %5450 = vxpose.xlu0.b32.cont [14/16] 0.0, 128
    %5451 = vxpose.xlu0.b32.cont [15/16] 0.0, 128
    %5452 = vxpose.xlu0.b32.end [16/16] 0.0, 128
    %v5453 = vpop.trf.xlu0
    %v5454 = vpop.trf.xlu0
    %v5455 = vpop.trf.xlu0
    %v5456 = vpop.trf.xlu0
    %v5457 = vpop.trf.xlu0
    %v5458 = vpop.trf.xlu0
    %v5459 = vpop.trf.xlu0
    %v5460 = vpop.trf.xlu0
    %v5461 = vpop.trf.xlu0
    %v5462 = vpop.trf.xlu0
    %v5463 = vpop.trf.xlu0
    %v5464 = vpop.trf.xlu0
    %v5465 = vpop.trf.xlu0
    %v5466 = vpop.trf.xlu0
    %v5467 = vpop.trf.xlu0
    %v5468 = vpop.trf.xlu0
    %5469 = vxpose.xlu0.b32.start [1/16] %v4232, 128
    %5470 = vxpose.xlu0.b32.cont [2/16] %v4238, 128
    %5471 = vxpose.xlu0.b32.cont [3/16] 0.0, 128
    %5472 = vxpose.xlu0.b32.cont [4/16] 0.0, 128
    %5473 = vxpose.xlu0.b32.cont [5/16] 0.0, 128
    %5474 = vxpose.xlu0.b32.cont [6/16] 0.0, 128
    %5475 = vxpose.xlu0.b32.cont [7/16] 0.0, 128
    %5476 = vxpose.xlu0.b32.cont [8/16] 0.0, 128
    %5477 = vxpose.xlu0.b32.cont [9/16] 0.0, 128
    %5478 = vxpose.xlu0.b32.cont [10/16] 0.0, 128
    %5479 = vxpose.xlu0.b32.cont [11/16] 0.0, 128
    %5480 = vxpose.xlu0.b32.cont [12/16] 0.0, 128
    %5481 = vxpose.xlu0.b32.cont [13/16] 0.0, 128
    %5482 = vxpose.xlu0.b32.cont [14/16] 0.0, 128
    %5483 = vxpose.xlu0.b32.cont [15/16] 0.0, 128
    %5484 = vxpose.xlu0.b32.end [16/16] 0.0, 128
    %v5485 = vpop.trf.xlu0
    %v5486 = vpop.trf.xlu0
    %v5487 = vpop.trf.xlu0
    %v5488 = vpop.trf.xlu0
    %v5489 = vpop.trf.xlu0
    %v5490 = vpop.trf.xlu0
    %v5491 = vpop.trf.xlu0
    %v5492 = vpop.trf.xlu0
    %v5493 = vpop.trf.xlu0
    %v5494 = vpop.trf.xlu0
    %v5495 = vpop.trf.xlu0
    %v5496 = vpop.trf.xlu0
    %v5497 = vpop.trf.xlu0
    %v5498 = vpop.trf.xlu0
    %v5499 = vpop.trf.xlu0
    %v5500 = vpop.trf.xlu0
    %5501 = vxpose.xlu0.b32.start [1/16] %v4244, 128
    %5502 = vxpose.xlu0.b32.cont [2/16] %v4250, 128
    %5503 = vxpose.xlu0.b32.cont [3/16] 0.0, 128
    %5504 = vxpose.xlu0.b32.cont [4/16] 0.0, 128
    %5505 = vxpose.xlu0.b32.cont [5/16] 0.0, 128
    %5506 = vxpose.xlu0.b32.cont [6/16] 0.0, 128
    %5507 = vxpose.xlu0.b32.cont [7/16] 0.0, 128
    %5508 = vxpose.xlu0.b32.cont [8/16] 0.0, 128
    %5509 = vxpose.xlu0.b32.cont [9/16] 0.0, 128
    %5510 = vxpose.xlu0.b32.cont [10/16] 0.0, 128
    %5511 = vxpose.xlu0.b32.cont [11/16] 0.0, 128
    %5512 = vxpose.xlu0.b32.cont [12/16] 0.0, 128
    %5513 = vxpose.xlu0.b32.cont [13/16] 0.0, 128
    %5514 = vxpose.xlu0.b32.cont [14/16] 0.0, 128
    %5515 = vxpose.xlu0.b32.cont [15/16] 0.0, 128
    %5516 = vxpose.xlu0.b32.end [16/16] 0.0, 128
    %v5517 = vpop.trf.xlu0
    %v5518 = vpop.trf.xlu0
    %v5519 = vpop.trf.xlu0
    %v5520 = vpop.trf.xlu0
    %v5521 = vpop.trf.xlu0
    %v5522 = vpop.trf.xlu0
    %v5523 = vpop.trf.xlu0
    %v5524 = vpop.trf.xlu0
    %v5525 = vpop.trf.xlu0
    %v5526 = vpop.trf.xlu0
    %v5527 = vpop.trf.xlu0
    %v5528 = vpop.trf.xlu0
    %v5529 = vpop.trf.xlu0
    %v5530 = vpop.trf.xlu0
    %v5531 = vpop.trf.xlu0
    %v5532 = vpop.trf.xlu0
    %v5534 = vsel %vm156, %v4269, 0
    %v5537 = vsel %vm156, %v4270, 0
    %v5540 = vsel %vm156, %v4301, 0
    %v5543 = vsel %vm156, %v4302, 0
    %v5546 = vsel %vm156, %v4333, 0
    %v5549 = vsel %vm156, %v4334, 0
    %v5552 = vsel %vm156, %v4365, 0
    %v5555 = vsel %vm156, %v4366, 0
    %v5558 = vsel %vm156, %v4397, 0
    %v5561 = vsel %vm156, %v4398, 0
    %v5564 = vsel %vm156, %v4429, 0
    %v5567 = vsel %vm156, %v4430, 0
    %v5570 = vsel %vm156, %v4461, 0
    %v5573 = vsel %vm156, %v4462, 0
    %v5576 = vsel %vm156, %v4493, 0
    %v5579 = vsel %vm156, %v4494, 0
    %v5582 = vsel %vm156, %v4525, 0
    %v5585 = vsel %vm156, %v4526, 0
    %v5588 = vsel %vm156, %v4557, 0
    %v5591 = vsel %vm156, %v4558, 0
    %v5594 = vsel %vm156, %v4589, 0
    %v5597 = vsel %vm156, %v4590, 0
    %v5600 = vsel %vm156, %v4621, 0
    %v5603 = vsel %vm156, %v4622, 0
    %v5606 = vsel %vm156, %v4653, 0
    %v5609 = vsel %vm156, %v4654, 0
    %v5612 = vsel %vm156, %v4685, 0
    %v5615 = vsel %vm156, %v4686, 0
    %v5618 = vsel %vm156, %v4717, 0
    %v5621 = vsel %vm156, %v4718, 0
    %v5624 = vsel %vm156, %v4749, 0
    %v5627 = vsel %vm156, %v4750, 0
    %v5630 = vsel %vm156, %v4781, 0
    %v5633 = vsel %vm156, %v4782, 0
    %v5636 = vsel %vm156, %v4813, 0
    %v5639 = vsel %vm156, %v4814, 0
    %v5642 = vsel %vm156, %v4845, 0
    %v5645 = vsel %vm156, %v4846, 0
    %v5648 = vsel %vm156, %v4877, 0
    %v5651 = vsel %vm156, %v4878, 0
    %v5654 = vsel %vm156, %v4909, 0
    %v5657 = vsel %vm156, %v4910, 0
    %v5660 = vsel %vm156, %v4941, 0
    %v5663 = vsel %vm156, %v4942, 0
    %v5666 = vsel %vm156, %v4973, 0
    %v5669 = vsel %vm156, %v4974, 0
    %v5672 = vsel %vm156, %v5005, 0
    %v5675 = vsel %vm156, %v5006, 0
    %v5678 = vsel %vm156, %v5037, 0
    %v5681 = vsel %vm156, %v5038, 0
    %v5684 = vsel %vm156, %v5069, 0
    %v5687 = vsel %vm156, %v5070, 0
    %v5690 = vsel %vm156, %v5101, 0
    %v5693 = vsel %vm156, %v5102, 0
    %v5696 = vsel %vm156, %v5133, 0
    %v5699 = vsel %vm156, %v5134, 0
    %v5702 = vsel %vm156, %v5165, 0
    %v5705 = vsel %vm156, %v5166, 0
    %v5708 = vsel %vm156, %v5197, 0
    %v5711 = vsel %vm156, %v5198, 0
    %v5714 = vsel %vm156, %v5229, 0
    %v5717 = vsel %vm156, %v5230, 0
    %v5720 = vsel %vm156, %v5261, 0
    %v5723 = vsel %vm156, %v5262, 0
    %v5726 = vsel %vm156, %v5293, 0
    %v5729 = vsel %vm156, %v5294, 0
    %v5732 = vsel %vm156, %v5325, 0
    %v5735 = vsel %vm156, %v5326, 0
    %v5738 = vsel %vm156, %v5357, 0
    %v5741 = vsel %vm156, %v5358, 0
    %v5744 = vsel %vm156, %v5389, 0
    %v5747 = vsel %vm156, %v5390, 0
    %v5750 = vsel %vm156, %v5421, 0
    %v5753 = vsel %vm156, %v5422, 0
    %v5756 = vsel %vm156, %v5453, 0
    %v5759 = vsel %vm156, %v5454, 0
    %v5762 = vsel %vm156, %v5485, 0
    %v5765 = vsel %vm156, %v5486, 0
    %v5768 = vsel %vm156, %v5517, 0
    %v5771 = vsel %vm156, %v5518, 0
    %5773 = vmatprep.subr.mxu0 0.0
    %v5774 = vand.u32 %v104, 4294901760
    %5775 = vmatpush1.msra.mxu0 %v5774
    %5776 = vmatprep.subr.mxu0 0.0
    %v5777 = vand.u32 %v105, 4294901760
    %5778 = vmatpush1.msra.mxu0 %v5777
    %5779 = vmatprep.subr.mxu0 0.0
    %5780 = vmatpush1.msra.mxu0 0.0
    %5781 = vmatprep.subr.mxu0 0.0
    %5782 = vmatpush1.msra.mxu0 0.0
    %5783 = vmatprep.subr.mxu0 0.0
    %5784 = vmatpush1.msra.mxu0 0.0
    %5785 = vmatprep.subr.mxu0 0.0
    %5786 = vmatpush1.msra.mxu0 0.0
    %5787 = vmatprep.subr.mxu0 0.0
    %5788 = vmatpush1.msra.mxu0 0.0
    %5789 = vmatprep.subr.mxu0 0.0
    %5790 = vmatpush1.msra.mxu0 0.0
    %5791 = vmatprep.subr.mxu0 0.0
    %5792 = vmatpush1.msra.mxu0 0.0
    %5793 = vmatprep.subr.mxu0 0.0
    %5794 = vmatpush1.msra.mxu0 0.0
    %5795 = vmatprep.subr.mxu0 0.0
    %5796 = vmatpush1.msra.mxu0 0.0
    %5797 = vmatprep.subr.mxu0 0.0
    %5798 = vmatpush1.msra.mxu0 0.0
    %5799 = vmatprep.subr.mxu0 0.0
    %5800 = vmatpush1.msra.mxu0 0.0
    %5801 = vmatprep.subr.mxu0 0.0
    %5802 = vmatpush1.msra.mxu0 0.0
    %5803 = vmatprep.subr.mxu0 0.0
    %5804 = vmatpush1.msra.mxu0 0.0
    %5805 = vmatprep.subr.mxu0 0.0
    %5806 = vmatpush1.msra.mxu0 0.0
    %5807 = vmatprep.subr.mxu0 0.0
    %5808 = vmatpush1.msra.mxu0 0.0
    %5809 = vmatprep.subr.mxu0 0.0
    %5810 = vmatpush1.msra.mxu0 0.0
    %5811 = vmatprep.subr.mxu0 0.0
    %5812 = vmatpush1.msra.mxu0 0.0
    %5813 = vmatprep.subr.mxu0 0.0
    %5814 = vmatpush1.msra.mxu0 0.0
    %5815 = vmatprep.subr.mxu0 0.0
    %5816 = vmatpush1.msra.mxu0 0.0
    %5817 = vmatprep.subr.mxu0 0.0
    %5818 = vmatpush1.msra.mxu0 0.0
    %5819 = vmatprep.subr.mxu0 0.0
    %5820 = vmatpush1.msra.mxu0 0.0
    %5821 = vmatprep.subr.mxu0 0.0
    %5822 = vmatpush1.msra.mxu0 0.0
    %5823 = vmatprep.subr.mxu0 0.0
    %5824 = vmatpush1.msra.mxu0 0.0
    %5825 = vmatprep.subr.mxu0 0.0
    %5826 = vmatpush1.msra.mxu0 0.0
    %5827 = vmatprep.subr.mxu0 0.0
    %5828 = vmatpush1.msra.mxu0 0.0
    %5829 = vmatprep.subr.mxu0 0.0
    %5830 = vmatpush1.msra.mxu0 0.0
    %5831 = vmatprep.subr.mxu0 0.0
    %5832 = vmatpush1.msra.mxu0 0.0
    %5833 = vmatprep.subr.mxu0 0.0
    %5834 = vmatpush1.msra.mxu0 0.0
    %5835 = vmatprep.subr.mxu0 0.0
    %5836 = vmatpush1.msra.mxu0 0.0
    %5837 = vmatprep.subr.mxu0 0.0
    %5838 = vmatpush1.msra.mxu0 0.0
    %5839 = vmatprep.mubr.f32.mxu0 0.0
    %v5840 = vand.u32 %v5534, 4294901760
    %v5841 = vsub.f32 %v5534, %v5840
    %v5842 = vand.u32 %v5841, 4294901760
    %v5843 = vsub.f32 %v5841, %v5842
    %v5844 = vand.u32 %v5843, 4294901760
    %5845 = vmatmul.mubr.f32.gmra.mrb[0].mxu0 %v5844
    %v5846 = vpop.f32.mrb[0].mxu0
    %v5847 = vadd.f32 0.0, %v5846
    %v5848 = vpop.f32.mrb[0].mxu0
    %5849 = vmatprep.mubr.f32.mxu0 0.0
    %v5850 = vand.u32 %v5537, 4294901760
    %v5851 = vsub.f32 %v5537, %v5850
    %v5852 = vand.u32 %v5851, 4294901760
    %v5853 = vsub.f32 %v5851, %v5852
    %v5854 = vand.u32 %v5853, 4294901760
    %5855 = vmatmul.mubr.f32.gmra.mrb[0].mxu0 %v5854
    %v5856 = vpop.f32.mrb[0].mxu0
    %v5857 = vadd.f32 0.0, %v5856
    %v5858 = vpop.f32.mrb[0].mxu0
    %5859 = vmatprep.mubr.f32.mxu0 0.0
    %v5860 = vand.u32 %v5540, 4294901760
    %v5861 = vsub.f32 %v5540, %v5860
    %v5862 = vand.u32 %v5861, 4294901760
    %v5863 = vsub.f32 %v5861, %v5862
    %v5864 = vand.u32 %v5863, 4294901760
    %5865 = vmatmul.mubr.f32.gmra.mrb[0].mxu0 %v5864
    %v5866 = vpop.f32.mrb[0].mxu0
    %v5867 = vadd.f32 0.0, %v5866
    %v5868 = vpop.f32.mrb[0].mxu0
    %5869 = vmatprep.mubr.f32.mxu0 0.0
    %v5870 = vand.u32 %v5543, 4294901760
    %v5871 = vsub.f32 %v5543, %v5870
    %v5872 = vand.u32 %v5871, 4294901760
    %v5873 = vsub.f32 %v5871, %v5872
    %v5874 = vand.u32 %v5873, 4294901760
    %5875 = vmatmul.mubr.f32.gmra.mrb[0].mxu0 %v5874
    %v5876 = vpop.f32.mrb[0].mxu0
    %v5877 = vadd.f32 0.0, %v5876
    %v5878 = vpop.f32.mrb[0].mxu0
    %5879 = vmatprep.mubr.f32.mxu0 0.0
    %v5880 = vand.u32 %v5546, 4294901760
    %v5881 = vsub.f32 %v5546, %v5880
    %v5882 = vand.u32 %v5881, 4294901760
    %v5883 = vsub.f32 %v5881, %v5882
    %v5884 = vand.u32 %v5883, 4294901760
    %5885 = vmatmul.mubr.f32.gmra.mrb[0].mxu0 %v5884
    %v5886 = vpop.f32.mrb[0].mxu0
    %v5887 = vadd.f32 0.0, %v5886
    %v5888 = vpop.f32.mrb[0].mxu0
    %5889 = vmatprep.mubr.f32.mxu0 0.0
    %v5890 = vand.u32 %v5549, 4294901760
    %v5891 = vsub.f32 %v5549, %v5890
    %v5892 = vand.u32 %v5891, 4294901760
    %v5893 = vsub.f32 %v5891, %v5892
    %v5894 = vand.u32 %v5893, 4294901760
    %5895 = vmatmul.mubr.f32.gmra.mrb[0].mxu0 %v5894
    %v5896 = vpop.f32.mrb[0].mxu0
    %v5897 = vadd.f32 0.0, %v5896
    %v5898 = vpop.f32.mrb[0].mxu0
    %5899 = vmatprep.mubr.f32.mxu0 0.0
    %v5900 = vand.u32 %v5552, 4294901760
    %v5901 = vsub.f32 %v5552, %v5900
    %v5902 = vand.u32 %v5901, 4294901760
    %v5903 = vsub.f32 %v5901, %v5902
    %v5904 = vand.u32 %v5903, 4294901760
    %5905 = vmatmul.mubr.f32.gmra.mrb[0].mxu0 %v5904
    %v5906 = vpop.f32.mrb[0].mxu0
    %v5907 = vadd.f32 0.0, %v5906
    %v5908 = vpop.f32.mrb[0].mxu0
    %5909 = vmatprep.mubr.f32.mxu0 0.0
    %v5910 = vand.u32 %v5555, 4294901760
    %v5911 = vsub.f32 %v5555, %v5910
    %v5912 = vand.u32 %v5911, 4294901760
    %v5913 = vsub.f32 %v5911, %v5912
    %v5914 = vand.u32 %v5913, 4294901760
    %5915 = vmatmul.mubr.f32.gmra.mrb[0].mxu0 %v5914
    %v5916 = vpop.f32.mrb[0].mxu0
    %v5917 = vadd.f32 0.0, %v5916
    %v5918 = vpop.f32.mrb[0].mxu0
    %5919 = vmatprep.mubr.f32.mxu0 0.0
    %v5920 = vand.u32 %v5558, 4294901760
    %v5921 = vsub.f32 %v5558, %v5920
    %v5922 = vand.u32 %v5921, 4294901760
    %v5923 = vsub.f32 %v5921, %v5922
    %v5924 = vand.u32 %v5923, 4294901760
    %5925 = vmatmul.mubr.f32.gmra.mrb[0].mxu0 %v5924
    %v5926 = vpop.f32.mrb[0].mxu0
    %v5927 = vadd.f32 0.0, %v5926
    %v5928 = vpop.f32.mrb[0].mxu0
    %5929 = vmatprep.mubr.f32.mxu0 0.0
    %v5930 = vand.u32 %v5561, 4294901760
    %v5931 = vsub.f32 %v5561, %v5930
    %v5932 = vand.u32 %v5931, 4294901760
    %v5933 = vsub.f32 %v5931, %v5932
    %v5934 = vand.u32 %v5933, 4294901760
    %5935 = vmatmul.mubr.f32.gmra.mrb[0].mxu0 %v5934
    %v5936 = vpop.f32.mrb[0].mxu0
    %v5937 = vadd.f32 0.0, %v5936
    %v5938 = vpop.f32.mrb[0].mxu0
    %5939 = vmatprep.mubr.f32.mxu0 0.0
    %v5940 = vand.u32 %v5564, 4294901760
    %v5941 = vsub.f32 %v5564, %v5940
    %v5942 = vand.u32 %v5941, 4294901760
    %v5943 = vsub.f32 %v5941, %v5942
    %v5944 = vand.u32 %v5943, 4294901760
    %5945 = vmatmul.mubr.f32.gmra.mrb[0].mxu0 %v5944
    %v5946 = vpop.f32.mrb[0].mxu0
    %v5947 = vadd.f32 0.0, %v5946
    %v5948 = vpop.f32.mrb[0].mxu0
    %5949 = vmatprep.mubr.f32.mxu0 0.0
    %v5950 = vand.u32 %v5567, 4294901760
    %v5951 = vsub.f32 %v5567, %v5950
    %v5952 = vand.u32 %v5951, 4294901760
    %v5953 = vsub.f32 %v5951, %v5952
    %v5954 = vand.u32 %v5953, 4294901760
    %5955 = vmatmul.mubr.f32.gmra.mrb[0].mxu0 %v5954
    %v5956 = vpop.f32.mrb[0].mxu0
    %v5957 = vadd.f32 0.0, %v5956
    %v5958 = vpop.f32.mrb[0].mxu0
    %5959 = vmatprep.mubr.f32.mxu0 0.0
    %v5960 = vand.u32 %v5570, 4294901760
    %v5961 = vsub.f32 %v5570, %v5960
    %v5962 = vand.u32 %v5961, 4294901760
    %v5963 = vsub.f32 %v5961, %v5962
    %v5964 = vand.u32 %v5963, 4294901760
    %5965 = vmatmul.mubr.f32.gmra.mrb[0].mxu0 %v5964
    %v5966 = vpop.f32.mrb[0].mxu0
    %v5967 = vadd.f32 0.0, %v5966
    %v5968 = vpop.f32.mrb[0].mxu0
    %5969 = vmatprep.mubr.f32.mxu0 0.0
    %v5970 = vand.u32 %v5573, 4294901760
    %v5971 = vsub.f32 %v5573, %v5970
    %v5972 = vand.u32 %v5971, 4294901760
    %v5973 = vsub.f32 %v5971, %v5972
    %v5974 = vand.u32 %v5973, 4294901760
    %5975 = vmatmul.mubr.f32.gmra.mrb[0].mxu0 %v5974
    %v5976 = vpop.f32.mrb[0].mxu0
    %v5977 = vadd.f32 0.0, %v5976
    %v5978 = vpop.f32.mrb[0].mxu0
    %5979 = vmatprep.mubr.f32.mxu0 0.0
    %v5980 = vand.u32 %v5576, 4294901760
    %v5981 = vsub.f32 %v5576, %v5980
    %v5982 = vand.u32 %v5981, 4294901760
    %v5983 = vsub.f32 %v5981, %v5982
    %v5984 = vand.u32 %v5983, 4294901760
    %5985 = vmatmul.mubr.f32.gmra.mrb[0].mxu0 %v5984
    %v5986 = vpop.f32.mrb[0].mxu0
    %v5987 = vadd.f32 0.0, %v5986
    %v5988 = vpop.f32.mrb[0].mxu0
    %5989 = vmatprep.mubr.f32.mxu0 0.0
    %v5990 = vand.u32 %v5579, 4294901760
    %v5991 = vsub.f32 %v5579, %v5990
    %v5992 = vand.u32 %v5991, 4294901760
    %v5993 = vsub.f32 %v5991, %v5992
    %v5994 = vand.u32 %v5993, 4294901760
    %5995 = vmatmul.mubr.f32.gmra.mrb[0].mxu0 %v5994
    %v5996 = vpop.f32.mrb[0].mxu0
    %v5997 = vadd.f32 0.0, %v5996
    %v5998 = vpop.f32.mrb[0].mxu0
    %5999 = vmatprep.mubr.f32.mxu0 0.0
    %v6000 = vand.u32 %v5582, 4294901760
    %v6001 = vsub.f32 %v5582, %v6000
    %v6002 = vand.u32 %v6001, 4294901760
    %v6003 = vsub.f32 %v6001, %v6002
    %v6004 = vand.u32 %v6003, 4294901760
    %6005 = vmatmul.mubr.f32.gmra.mrb[0].mxu0 %v6004
    %v6006 = vpop.f32.mrb[0].mxu0
    %v6007 = vadd.f32 0.0, %v6006
    %v6008 = vpop.f32.mrb[0].mxu0
    %6009 = vmatprep.mubr.f32.mxu0 0.0
    %v6010 = vand.u32 %v5585, 4294901760
    %v6011 = vsub.f32 %v5585, %v6010
    %v6012 = vand.u32 %v6011, 4294901760
    %v6013 = vsub.f32 %v6011, %v6012
    %v6014 = vand.u32 %v6013, 4294901760
    %6015 = vmatmul.mubr.f32.gmra.mrb[0].mxu0 %v6014
    %v6016 = vpop.f32.mrb[0].mxu0
    %v6017 = vadd.f32 0.0, %v6016
    %v6018 = vpop.f32.mrb[0].mxu0
    %6019 = vmatprep.mubr.f32.mxu0 0.0
    %v6020 = vand.u32 %v5588, 4294901760
    %v6021 = vsub.f32 %v5588, %v6020
    %v6022 = vand.u32 %v6021, 4294901760
    %v6023 = vsub.f32 %v6021, %v6022
    %v6024 = vand.u32 %v6023, 4294901760
    %6025 = vmatmul.mubr.f32.gmra.mrb[0].mxu0 %v6024
    %v6026 = vpop.f32.mrb[0].mxu0
    %v6027 = vadd.f32 0.0, %v6026
    %v6028 = vpop.f32.mrb[0].mxu0
    %6029 = vmatprep.mubr.f32.mxu0 0.0
    %v6030 = vand.u32 %v5591, 4294901760
    %v6031 = vsub.f32 %v5591, %v6030
    %v6032 = vand.u32 %v6031, 4294901760
    %v6033 = vsub.f32 %v6031, %v6032
    %v6034 = vand.u32 %v6033, 4294901760
    %6035 = vmatmul.mubr.f32.gmra.mrb[0].mxu0 %v6034
    %v6036 = vpop.f32.mrb[0].mxu0
    %v6037 = vadd.f32 0.0, %v6036
    %v6038 = vpop.f32.mrb[0].mxu0
    %6039 = vmatprep.mubr.f32.mxu0 0.0
    %v6040 = vand.u32 %v5594, 4294901760
    %v6041 = vsub.f32 %v5594, %v6040
    %v6042 = vand.u32 %v6041, 4294901760
    %v6043 = vsub.f32 %v6041, %v6042
    %v6044 = vand.u32 %v6043, 4294901760
    %6045 = vmatmul.mubr.f32.gmra.mrb[0].mxu0 %v6044
    %v6046 = vpop.f32.mrb[0].mxu0
    %v6047 = vadd.f32 0.0, %v6046
    %v6048 = vpop.f32.mrb[0].mxu0
    %6049 = vmatprep.mubr.f32.mxu0 0.0
    %v6050 = vand.u32 %v5597, 4294901760
    %v6051 = vsub.f32 %v5597, %v6050
    %v6052 = vand.u32 %v6051, 4294901760
    %v6053 = vsub.f32 %v6051, %v6052
    %v6054 = vand.u32 %v6053, 4294901760
    %6055 = vmatmul.mubr.f32.gmra.mrb[0].mxu0 %v6054
    %v6056 = vpop.f32.mrb[0].mxu0
    %v6057 = vadd.f32 0.0, %v6056
    %v6058 = vpop.f32.mrb[0].mxu0
    %6059 = vmatprep.mubr.f32.mxu0 0.0
    %v6060 = vand.u32 %v5600, 4294901760
    %v6061 = vsub.f32 %v5600, %v6060
    %v6062 = vand.u32 %v6061, 4294901760
    %v6063 = vsub.f32 %v6061, %v6062
    %v6064 = vand.u32 %v6063, 4294901760
    %6065 = vmatmul.mubr.f32.gmra.mrb[0].mxu0 %v6064
    %v6066 = vpop.f32.mrb[0].mxu0
    %v6067 = vadd.f32 0.0, %v6066
    %v6068 = vpop.f32.mrb[0].mxu0
    %6069 = vmatprep.mubr.f32.mxu0 0.0
    %v6070 = vand.u32 %v5603, 4294901760
    %v6071 = vsub.f32 %v5603, %v6070
    %v6072 = vand.u32 %v6071, 4294901760
    %v6073 = vsub.f32 %v6071, %v6072
    %v6074 = vand.u32 %v6073, 4294901760
    %6075 = vmatmul.mubr.f32.gmra.mrb[0].mxu0 %v6074
    %v6076 = vpop.f32.mrb[0].mxu0
    %v6077 = vadd.f32 0.0, %v6076
    %v6078 = vpop.f32.mrb[0].mxu0
    %6079 = vmatprep.mubr.f32.mxu0 0.0
    %v6080 = vand.u32 %v5606, 4294901760
    %v6081 = vsub.f32 %v5606, %v6080
    %v6082 = vand.u32 %v6081, 4294901760
    %v6083 = vsub.f32 %v6081, %v6082
    %v6084 = vand.u32 %v6083, 4294901760
    %6085 = vmatmul.mubr.f32.gmra.mrb[0].mxu0 %v6084
    %v6086 = vpop.f32.mrb[0].mxu0
    %v6087 = vadd.f32 0.0, %v6086
    %v6088 = vpop.f32.mrb[0].mxu0
    %6089 = vmatprep.mubr.f32.mxu0 0.0
    %v6090 = vand.u32 %v5609, 4294901760
    %v6091 = vsub.f32 %v5609, %v6090
    %v6092 = vand.u32 %v6091, 4294901760
    %v6093 = vsub.f32 %v6091, %v6092
    %v6094 = vand.u32 %v6093, 4294901760
    %6095 = vmatmul.mubr.f32.gmra.mrb[0].mxu0 %v6094
    %v6096 = vpop.f32.mrb[0].mxu0
    %v6097 = vadd.f32 0.0, %v6096
    %v6098 = vpop.f32.mrb[0].mxu0
    %6099 = vmatprep.mubr.f32.mxu0 0.0
    %v6100 = vand.u32 %v5612, 4294901760
    %v6101 = vsub.f32 %v5612, %v6100
    %v6102 = vand.u32 %v6101, 4294901760
    %v6103 = vsub.f32 %v6101, %v6102
    %v6104 = vand.u32 %v6103, 4294901760
    %6105 = vmatmul.mubr.f32.gmra.mrb[0].mxu0 %v6104
    %v6106 = vpop.f32.mrb[0].mxu0
    %v6107 = vadd.f32 0.0, %v6106
    %v6108 = vpop.f32.mrb[0].mxu0
    %6109 = vmatprep.mubr.f32.mxu0 0.0
    %v6110 = vand.u32 %v5615, 4294901760
    %v6111 = vsub.f32 %v5615, %v6110
    %v6112 = vand.u32 %v6111, 4294901760
    %v6113 = vsub.f32 %v6111, %v6112
    %v6114 = vand.u32 %v6113, 4294901760
    %6115 = vmatmul.mubr.f32.gmra.mrb[0].mxu0 %v6114
    %v6116 = vpop.f32.mrb[0].mxu0
    %v6117 = vadd.f32 0.0, %v6116
    %v6118 = vpop.f32.mrb[0].mxu0
    %6119 = vmatprep.mubr.f32.mxu0 0.0
    %v6120 = vand.u32 %v5618, 4294901760
    %v6121 = vsub.f32 %v5618, %v6120
    %v6122 = vand.u32 %v6121, 4294901760
    %v6123 = vsub.f32 %v6121, %v6122
    %v6124 = vand.u32 %v6123, 4294901760
    %6125 = vmatmul.mubr.f32.gmra.mrb[0].mxu0 %v6124
    %v6126 = vpop.f32.mrb[0].mxu0
    %v6127 = vadd.f32 0.0, %v6126
    %v6128 = vpop.f32.mrb[0].mxu0
    %6129 = vmatprep.mubr.f32.mxu0 0.0
    %v6130 = vand.u32 %v5621, 4294901760
    %v6131 = vsub.f32 %v5621, %v6130
    %v6132 = vand.u32 %v6131, 4294901760
    %v6133 = vsub.f32 %v6131, %v6132
    %v6134 = vand.u32 %v6133, 4294901760
    %6135 = vmatmul.mubr.f32.gmra.mrb[0].mxu0 %v6134
    %v6136 = vpop.f32.mrb[0].mxu0
    %v6137 = vadd.f32 0.0, %v6136
    %v6138 = vpop.f32.mrb[0].mxu0
    %6139 = vmatprep.mubr.f32.mxu0 0.0
    %v6140 = vand.u32 %v5624, 4294901760
    %v6141 = vsub.f32 %v5624, %v6140
    %v6142 = vand.u32 %v6141, 4294901760
    %v6143 = vsub.f32 %v6141, %v6142
    %v6144 = vand.u32 %v6143, 4294901760
    %6145 = vmatmul.mubr.f32.gmra.mrb[0].mxu0 %v6144
    %v6146 = vpop.f32.mrb[0].mxu0
    %v6147 = vadd.f32 0.0, %v6146
    %v6148 = vpop.f32.mrb[0].mxu0
    %6149 = vmatprep.mubr.f32.mxu0 0.0
    %v6150 = vand.u32 %v5627, 4294901760
    %v6151 = vsub.f32 %v5627, %v6150
    %v6152 = vand.u32 %v6151, 4294901760
    %v6153 = vsub.f32 %v6151, %v6152
    %v6154 = vand.u32 %v6153, 4294901760
    %6155 = vmatmul.mubr.f32.gmra.mrb[0].mxu0 %v6154
    %v6156 = vpop.f32.mrb[0].mxu0
    %v6157 = vadd.f32 0.0, %v6156
    %v6158 = vpop.f32.mrb[0].mxu0
    %6159 = vmatprep.mubr.f32.mxu0 0.0
    %v6160 = vand.u32 %v5630, 4294901760
    %v6161 = vsub.f32 %v5630, %v6160
    %v6162 = vand.u32 %v6161, 4294901760
    %v6163 = vsub.f32 %v6161, %v6162
    %v6164 = vand.u32 %v6163, 4294901760
    %6165 = vmatmul.mubr.f32.gmra.mrb[0].mxu0 %v6164
    %v6166 = vpop.f32.mrb[0].mxu0
    %v6167 = vadd.f32 0.0, %v6166
    %v6168 = vpop.f32.mrb[0].mxu0
    %6169 = vmatprep.mubr.f32.mxu0 0.0
    %v6170 = vand.u32 %v5633, 4294901760
    %v6171 = vsub.f32 %v5633, %v6170
    %v6172 = vand.u32 %v6171, 4294901760
    %v6173 = vsub.f32 %v6171, %v6172
    %v6174 = vand.u32 %v6173, 4294901760
    %6175 = vmatmul.mubr.f32.gmra.mrb[0].mxu0 %v6174
    %v6176 = vpop.f32.mrb[0].mxu0
    %v6177 = vadd.f32 0.0, %v6176
    %v6178 = vpop.f32.mrb[0].mxu0
    %6179 = vmatprep.mubr.f32.mxu0 0.0
    %v6180 = vand.u32 %v5636, 4294901760
    %v6181 = vsub.f32 %v5636, %v6180
    %v6182 = vand.u32 %v6181, 4294901760
    %v6183 = vsub.f32 %v6181, %v6182
    %v6184 = vand.u32 %v6183, 4294901760
    %6185 = vmatmul.mubr.f32.gmra.mrb[0].mxu0 %v6184
    %v6186 = vpop.f32.mrb[0].mxu0
    %v6187 = vadd.f32 0.0, %v6186
    %v6188 = vpop.f32.mrb[0].mxu0
    %6189 = vmatprep.mubr.f32.mxu0 0.0
    %v6190 = vand.u32 %v5639, 4294901760
    %v6191 = vsub.f32 %v5639, %v6190
    %v6192 = vand.u32 %v6191, 4294901760
    %v6193 = vsub.f32 %v6191, %v6192
    %v6194 = vand.u32 %v6193, 4294901760
    %6195 = vmatmul.mubr.f32.gmra.mrb[0].mxu0 %v6194
    %v6196 = vpop.f32.mrb[0].mxu0
    %v6197 = vadd.f32 0.0, %v6196
    %v6198 = vpop.f32.mrb[0].mxu0
    %6199 = vmatprep.mubr.f32.mxu0 0.0
    %v6200 = vand.u32 %v5642, 4294901760
    %v6201 = vsub.f32 %v5642, %v6200
    %v6202 = vand.u32 %v6201, 4294901760
    %v6203 = vsub.f32 %v6201, %v6202
    %v6204 = vand.u32 %v6203, 4294901760
    %6205 = vmatmul.mubr.f32.gmra.mrb[0].mxu0 %v6204
    %v6206 = vpop.f32.mrb[0].mxu0
    %v6207 = vadd.f32 0.0, %v6206
    %v6208 = vpop.f32.mrb[0].mxu0
    %6209 = vmatprep.mubr.f32.mxu0 0.0
    %v6210 = vand.u32 %v5645, 4294901760
    %v6211 = vsub.f32 %v5645, %v6210
    %v6212 = vand.u32 %v6211, 4294901760
    %v6213 = vsub.f32 %v6211, %v6212
    %v6214 = vand.u32 %v6213, 4294901760
    %6215 = vmatmul.mubr.f32.gmra.mrb[0].mxu0 %v6214
    %v6216 = vpop.f32.mrb[0].mxu0
    %v6217 = vadd.f32 0.0, %v6216
    %v6218 = vpop.f32.mrb[0].mxu0
    %6219 = vmatprep.mubr.f32.mxu0 0.0
    %v6220 = vand.u32 %v5648, 4294901760
    %v6221 = vsub.f32 %v5648, %v6220
    %v6222 = vand.u32 %v6221, 4294901760
    %v6223 = vsub.f32 %v6221, %v6222
    %v6224 = vand.u32 %v6223, 4294901760
    %6225 = vmatmul.mubr.f32.gmra.mrb[0].mxu0 %v6224
    %v6226 = vpop.f32.mrb[0].mxu0
    %v6227 = vadd.f32 0.0, %v6226
    %v6228 = vpop.f32.mrb[0].mxu0
    %6229 = vmatprep.mubr.f32.mxu0 0.0
    %v6230 = vand.u32 %v5651, 4294901760
    %v6231 = vsub.f32 %v5651, %v6230
    %v6232 = vand.u32 %v6231, 4294901760
    %v6233 = vsub.f32 %v6231, %v6232
    %v6234 = vand.u32 %v6233, 4294901760
    %6235 = vmatmul.mubr.f32.gmra.mrb[0].mxu0 %v6234
    %v6236 = vpop.f32.mrb[0].mxu0
    %v6237 = vadd.f32 0.0, %v6236
    %v6238 = vpop.f32.mrb[0].mxu0
    %6239 = vmatprep.mubr.f32.mxu0 0.0
    %v6240 = vand.u32 %v5654, 4294901760
    %v6241 = vsub.f32 %v5654, %v6240
    %v6242 = vand.u32 %v6241, 4294901760
    %v6243 = vsub.f32 %v6241, %v6242
    %v6244 = vand.u32 %v6243, 4294901760
    %6245 = vmatmul.mubr.f32.gmra.mrb[0].mxu0 %v6244
    %v6246 = vpop.f32.mrb[0].mxu0
    %v6247 = vadd.f32 0.0, %v6246
    %v6248 = vpop.f32.mrb[0].mxu0
    %6249 = vmatprep.mubr.f32.mxu0 0.0
    %v6250 = vand.u32 %v5657, 4294901760
    %v6251 = vsub.f32 %v5657, %v6250
    %v6252 = vand.u32 %v6251, 4294901760
    %v6253 = vsub.f32 %v6251, %v6252
    %v6254 = vand.u32 %v6253, 4294901760
    %6255 = vmatmul.mubr.f32.gmra.mrb[0].mxu0 %v6254
    %v6256 = vpop.f32.mrb[0].mxu0
    %v6257 = vadd.f32 0.0, %v6256
    %v6258 = vpop.f32.mrb[0].mxu0
    %6259 = vmatprep.mubr.f32.mxu0 0.0
    %v6260 = vand.u32 %v5660, 4294901760
    %v6261 = vsub.f32 %v5660, %v6260
    %v6262 = vand.u32 %v6261, 4294901760
    %v6263 = vsub.f32 %v6261, %v6262
    %v6264 = vand.u32 %v6263, 4294901760
    %6265 = vmatmul.mubr.f32.gmra.mrb[0].mxu0 %v6264
    %v6266 = vpop.f32.mrb[0].mxu0
    %v6267 = vadd.f32 0.0, %v6266
    %v6268 = vpop.f32.mrb[0].mxu0
    %6269 = vmatprep.mubr.f32.mxu0 0.0
    %v6270 = vand.u32 %v5663, 4294901760
    %v6271 = vsub.f32 %v5663, %v6270
    %v6272 = vand.u32 %v6271, 4294901760
    %v6273 = vsub.f32 %v6271, %v6272
    %v6274 = vand.u32 %v6273, 4294901760
    %6275 = vmatmul.mubr.f32.gmra.mrb[0].mxu0 %v6274
    %v6276 = vpop.f32.mrb[0].mxu0
    %v6277 = vadd.f32 0.0, %v6276
    %v6278 = vpop.f32.mrb[0].mxu0
    %6279 = vmatprep.mubr.f32.mxu0 0.0
    %v6280 = vand.u32 %v5666, 4294901760
    %v6281 = vsub.f32 %v5666, %v6280
    %v6282 = vand.u32 %v6281, 4294901760
    %v6283 = vsub.f32 %v6281, %v6282
    %v6284 = vand.u32 %v6283, 4294901760
    %6285 = vmatmul.mubr.f32.gmra.mrb[0].mxu0 %v6284
    %v6286 = vpop.f32.mrb[0].mxu0
    %v6287 = vadd.f32 0.0, %v6286
    %v6288 = vpop.f32.mrb[0].mxu0
    %6289 = vmatprep.mubr.f32.mxu0 0.0
    %v6290 = vand.u32 %v5669, 4294901760
    %v6291 = vsub.f32 %v5669, %v6290
    %v6292 = vand.u32 %v6291, 4294901760
    %v6293 = vsub.f32 %v6291, %v6292
    %v6294 = vand.u32 %v6293, 4294901760
    %6295 = vmatmul.mubr.f32.gmra.mrb[0].mxu0 %v6294
    %v6296 = vpop.f32.mrb[0].mxu0
    %v6297 = vadd.f32 0.0, %v6296
    %v6298 = vpop.f32.mrb[0].mxu0
    %6299 = vmatprep.mubr.f32.mxu0 0.0
    %v6300 = vand.u32 %v5672, 4294901760
    %v6301 = vsub.f32 %v5672, %v6300
    %v6302 = vand.u32 %v6301, 4294901760
    %v6303 = vsub.f32 %v6301, %v6302
    %v6304 = vand.u32 %v6303, 4294901760
    %6305 = vmatmul.mubr.f32.gmra.mrb[0].mxu0 %v6304
    %v6306 = vpop.f32.mrb[0].mxu0
    %v6307 = vadd.f32 0.0, %v6306
    %v6308 = vpop.f32.mrb[0].mxu0
    %6309 = vmatprep.mubr.f32.mxu0 0.0
    %v6310 = vand.u32 %v5675, 4294901760
    %v6311 = vsub.f32 %v5675, %v6310
    %v6312 = vand.u32 %v6311, 4294901760
    %v6313 = vsub.f32 %v6311, %v6312
    %v6314 = vand.u32 %v6313, 4294901760
    %6315 = vmatmul.mubr.f32.gmra.mrb[0].mxu0 %v6314
    %v6316 = vpop.f32.mrb[0].mxu0
    %v6317 = vadd.f32 0.0, %v6316
    %v6318 = vpop.f32.mrb[0].mxu0
    %6319 = vmatprep.mubr.f32.mxu0 0.0
    %v6320 = vand.u32 %v5678, 4294901760
    %v6321 = vsub.f32 %v5678, %v6320
    %v6322 = vand.u32 %v6321, 4294901760
    %v6323 = vsub.f32 %v6321, %v6322
    %v6324 = vand.u32 %v6323, 4294901760
    %6325 = vmatmul.mubr.f32.gmra.mrb[0].mxu0 %v6324
    %v6326 = vpop.f32.mrb[0].mxu0
    %v6327 = vadd.f32 0.0, %v6326
    %v6328 = vpop.f32.mrb[0].mxu0
    %6329 = vmatprep.mubr.f32.mxu0 0.0
    %v6330 = vand.u32 %v5681, 4294901760
    %v6331 = vsub.f32 %v5681, %v6330
    %v6332 = vand.u32 %v6331, 4294901760
    %v6333 = vsub.f32 %v6331, %v6332
    %v6334 = vand.u32 %v6333, 4294901760
    %6335 = vmatmul.mubr.f32.gmra.mrb[0].mxu0 %v6334
    %v6336 = vpop.f32.mrb[0].mxu0
    %v6337 = vadd.f32 0.0, %v6336
    %v6338 = vpop.f32.mrb[0].mxu0
    %6339 = vmatprep.mubr.f32.mxu0 0.0
    %v6340 = vand.u32 %v5684, 4294901760
    %v6341 = vsub.f32 %v5684, %v6340
    %v6342 = vand.u32 %v6341, 4294901760
    %v6343 = vsub.f32 %v6341, %v6342
    %v6344 = vand.u32 %v6343, 4294901760
    %6345 = vmatmul.mubr.f32.gmra.mrb[0].mxu0 %v6344
    %v6346 = vpop.f32.mrb[0].mxu0
    %v6347 = vadd.f32 0.0, %v6346
    %v6348 = vpop.f32.mrb[0].mxu0
    %6349 = vmatprep.mubr.f32.mxu0 0.0
    %v6350 = vand.u32 %v5687, 4294901760
    %v6351 = vsub.f32 %v5687, %v6350
    %v6352 = vand.u32 %v6351, 4294901760
    %v6353 = vsub.f32 %v6351, %v6352
    %v6354 = vand.u32 %v6353, 4294901760
    %6355 = vmatmul.mubr.f32.gmra.mrb[0].mxu0 %v6354
    %v6356 = vpop.f32.mrb[0].mxu0
    %v6357 = vadd.f32 0.0, %v6356
    %v6358 = vpop.f32.mrb[0].mxu0
    %6359 = vmatprep.mubr.f32.mxu0 0.0
    %v6360 = vand.u32 %v5690, 4294901760
    %v6361 = vsub.f32 %v5690, %v6360
    %v6362 = vand.u32 %v6361, 4294901760
    %v6363 = vsub.f32 %v6361, %v6362
    %v6364 = vand.u32 %v6363, 4294901760
    %6365 = vmatmul.mubr.f32.gmra.mrb[0].mxu0 %v6364
    %v6366 = vpop.f32.mrb[0].mxu0
    %v6367 = vadd.f32 0.0, %v6366
    %v6368 = vpop.f32.mrb[0].mxu0
    %6369 = vmatprep.mubr.f32.mxu0 0.0
    %v6370 = vand.u32 %v5693, 4294901760
    %v6371 = vsub.f32 %v5693, %v6370
    %v6372 = vand.u32 %v6371, 4294901760
    %v6373 = vsub.f32 %v6371, %v6372
    %v6374 = vand.u32 %v6373, 4294901760
    %6375 = vmatmul.mubr.f32.gmra.mrb[0].mxu0 %v6374
    %v6376 = vpop.f32.mrb[0].mxu0
    %v6377 = vadd.f32 0.0, %v6376
    %v6378 = vpop.f32.mrb[0].mxu0
    %6379 = vmatprep.mubr.f32.mxu0 0.0
    %v6380 = vand.u32 %v5696, 4294901760
    %v6381 = vsub.f32 %v5696, %v6380
    %v6382 = vand.u32 %v6381, 4294901760
    %v6383 = vsub.f32 %v6381, %v6382
    %v6384 = vand.u32 %v6383, 4294901760
    %6385 = vmatmul.mubr.f32.gmra.mrb[0].mxu0 %v6384
    %v6386 = vpop.f32.mrb[0].mxu0
    %v6387 = vadd.f32 0.0, %v6386
    %v6388 = vpop.f32.mrb[0].mxu0
    %6389 = vmatprep.mubr.f32.mxu0 0.0
    %v6390 = vand.u32 %v5699, 4294901760
    %v6391 = vsub.f32 %v5699, %v6390
    %v6392 = vand.u32 %v6391, 4294901760
    %v6393 = vsub.f32 %v6391, %v6392
    %v6394 = vand.u32 %v6393, 4294901760
    %6395 = vmatmul.mubr.f32.gmra.mrb[0].mxu0 %v6394
    %v6396 = vpop.f32.mrb[0].mxu0
    %v6397 = vadd.f32 0.0, %v6396
    %v6398 = vpop.f32.mrb[0].mxu0
    %6399 = vmatprep.mubr.f32.mxu0 0.0
    %v6400 = vand.u32 %v5702, 4294901760
    %v6401 = vsub.f32 %v5702, %v6400
    %v6402 = vand.u32 %v6401, 4294901760
    %v6403 = vsub.f32 %v6401, %v6402
    %v6404 = vand.u32 %v6403, 4294901760
    %6405 = vmatmul.mubr.f32.gmra.mrb[0].mxu0 %v6404
    %v6406 = vpop.f32.mrb[0].mxu0
    %v6407 = vadd.f32 0.0, %v6406
    %v6408 = vpop.f32.mrb[0].mxu0
    %6409 = vmatprep.mubr.f32.mxu0 0.0
    %v6410 = vand.u32 %v5705, 4294901760
    %v6411 = vsub.f32 %v5705, %v6410
    %v6412 = vand.u32 %v6411, 4294901760
    %v6413 = vsub.f32 %v6411, %v6412
    %v6414 = vand.u32 %v6413, 4294901760
    %6415 = vmatmul.mubr.f32.gmra.mrb[0].mxu0 %v6414
    %v6416 = vpop.f32.mrb[0].mxu0
    %v6417 = vadd.f32 0.0, %v6416
    %v6418 = vpop.f32.mrb[0].mxu0
    %6419 = vmatprep.mubr.f32.mxu0 0.0
    %v6420 = vand.u32 %v5708, 4294901760
    %v6421 = vsub.f32 %v5708, %v6420
    %v6422 = vand.u32 %v6421, 4294901760
    %v6423 = vsub.f32 %v6421, %v6422
    %v6424 = vand.u32 %v6423, 4294901760
    %6425 = vmatmul.mubr.f32.gmra.mrb[0].mxu0 %v6424
    %v6426 = vpop.f32.mrb[0].mxu0
    %v6427 = vadd.f32 0.0, %v6426
    %v6428 = vpop.f32.mrb[0].mxu0
    %6429 = vmatprep.mubr.f32.mxu0 0.0
    %v6430 = vand.u32 %v5711, 4294901760
    %v6431 = vsub.f32 %v5711, %v6430
    %v6432 = vand.u32 %v6431, 4294901760
    %v6433 = vsub.f32 %v6431, %v6432
    %v6434 = vand.u32 %v6433, 4294901760
    %6435 = vmatmul.mubr.f32.gmra.mrb[0].mxu0 %v6434
    %v6436 = vpop.f32.mrb[0].mxu0
    %v6437 = vadd.f32 0.0, %v6436
    %v6438 = vpop.f32.mrb[0].mxu0
    %6439 = vmatprep.mubr.f32.mxu0 0.0
    %v6440 = vand.u32 %v5714, 4294901760
    %v6441 = vsub.f32 %v5714, %v6440
    %v6442 = vand.u32 %v6441, 4294901760
    %v6443 = vsub.f32 %v6441, %v6442
    %v6444 = vand.u32 %v6443, 4294901760
    %6445 = vmatmul.mubr.f32.gmra.mrb[0].mxu0 %v6444
    %v6446 = vpop.f32.mrb[0].mxu0
    %v6447 = vadd.f32 0.0, %v6446
    %v6448 = vpop.f32.mrb[0].mxu0
    %6449 = vmatprep.mubr.f32.mxu0 0.0
    %v6450 = vand.u32 %v5717, 4294901760
    %v6451 = vsub.f32 %v5717, %v6450
    %v6452 = vand.u32 %v6451, 4294901760
    %v6453 = vsub.f32 %v6451, %v6452
    %v6454 = vand.u32 %v6453, 4294901760
    %6455 = vmatmul.mubr.f32.gmra.mrb[0].mxu0 %v6454
    %v6456 = vpop.f32.mrb[0].mxu0
    %v6457 = vadd.f32 0.0, %v6456
    %v6458 = vpop.f32.mrb[0].mxu0
    %6459 = vmatprep.mubr.f32.mxu0 0.0
    %v6460 = vand.u32 %v5720, 4294901760
    %v6461 = vsub.f32 %v5720, %v6460
    %v6462 = vand.u32 %v6461, 4294901760
    %v6463 = vsub.f32 %v6461, %v6462
    %v6464 = vand.u32 %v6463, 4294901760
    %6465 = vmatmul.mubr.f32.gmra.mrb[0].mxu0 %v6464
    %v6466 = vpop.f32.mrb[0].mxu0
    %v6467 = vadd.f32 0.0, %v6466
    %v6468 = vpop.f32.mrb[0].mxu0
    %6469 = vmatprep.mubr.f32.mxu0 0.0
    %v6470 = vand.u32 %v5723, 4294901760
    %v6471 = vsub.f32 %v5723, %v6470
    %v6472 = vand.u32 %v6471, 4294901760
    %v6473 = vsub.f32 %v6471, %v6472
    %v6474 = vand.u32 %v6473, 4294901760
    %6475 = vmatmul.mubr.f32.gmra.mrb[0].mxu0 %v6474
    %v6476 = vpop.f32.mrb[0].mxu0
    %v6477 = vadd.f32 0.0, %v6476
    %v6478 = vpop.f32.mrb[0].mxu0
    %6479 = vmatprep.mubr.f32.mxu0 0.0
    %v6480 = vand.u32 %v5726, 4294901760
    %v6481 = vsub.f32 %v5726, %v6480
    %v6482 = vand.u32 %v6481, 4294901760
    %v6483 = vsub.f32 %v6481, %v6482
    %v6484 = vand.u32 %v6483, 4294901760
    %6485 = vmatmul.mubr.f32.gmra.mrb[0].mxu0 %v6484
    %v6486 = vpop.f32.mrb[0].mxu0
    %v6487 = vadd.f32 0.0, %v6486
    %v6488 = vpop.f32.mrb[0].mxu0
    %6489 = vmatprep.mubr.f32.mxu0 0.0
    %v6490 = vand.u32 %v5729, 4294901760
    %v6491 = vsub.f32 %v5729, %v6490
    %v6492 = vand.u32 %v6491, 4294901760
    %v6493 = vsub.f32 %v6491, %v6492
    %v6494 = vand.u32 %v6493, 4294901760
    %6495 = vmatmul.mubr.f32.gmra.mrb[0].mxu0 %v6494
    %v6496 = vpop.f32.mrb[0].mxu0
    %v6497 = vadd.f32 0.0, %v6496
    %v6498 = vpop.f32.mrb[0].mxu0
    %6499 = vmatprep.mubr.f32.mxu0 0.0
    %v6500 = vand.u32 %v5732, 4294901760
    %v6501 = vsub.f32 %v5732, %v6500
    %v6502 = vand.u32 %v6501, 4294901760
    %v6503 = vsub.f32 %v6501, %v6502
    %v6504 = vand.u32 %v6503, 4294901760
    %6505 = vmatmul.mubr.f32.gmra.mrb[0].mxu0 %v6504
    %v6506 = vpop.f32.mrb[0].mxu0
    %v6507 = vadd.f32 0.0, %v6506
    %v6508 = vpop.f32.mrb[0].mxu0
    %6509 = vmatprep.mubr.f32.mxu0 0.0
    %v6510 = vand.u32 %v5735, 4294901760
    %v6511 = vsub.f32 %v5735, %v6510
    %v6512 = vand.u32 %v6511, 4294901760
    %v6513 = vsub.f32 %v6511, %v6512
    %v6514 = vand.u32 %v6513, 4294901760
    %6515 = vmatmul.mubr.f32.gmra.mrb[0].mxu0 %v6514
    %v6516 = vpop.f32.mrb[0].mxu0
    %v6517 = vadd.f32 0.0, %v6516
    %v6518 = vpop.f32.mrb[0].mxu0
    %6519 = vmatprep.mubr.f32.mxu0 0.0
    %v6520 = vand.u32 %v5738, 4294901760
    %v6521 = vsub.f32 %v5738, %v6520
    %v6522 = vand.u32 %v6521, 4294901760
    %v6523 = vsub.f32 %v6521, %v6522
    %v6524 = vand.u32 %v6523, 4294901760
    %6525 = vmatmul.mubr.f32.gmra.mrb[0].mxu0 %v6524
    %v6526 = vpop.f32.mrb[0].mxu0
    %v6527 = vadd.f32 0.0, %v6526
    %v6528 = vpop.f32.mrb[0].mxu0
    %6529 = vmatprep.mubr.f32.mxu0 0.0
    %v6530 = vand.u32 %v5741, 4294901760
    %v6531 = vsub.f32 %v5741, %v6530
    %v6532 = vand.u32 %v6531, 4294901760
    %v6533 = vsub.f32 %v6531, %v6532
    %v6534 = vand.u32 %v6533, 4294901760
    %6535 = vmatmul.mubr.f32.gmra.mrb[0].mxu0 %v6534
    %v6536 = vpop.f32.mrb[0].mxu0
    %v6537 = vadd.f32 0.0, %v6536
    %v6538 = vpop.f32.mrb[0].mxu0
    %6539 = vmatprep.mubr.f32.mxu0 0.0
    %v6540 = vand.u32 %v5744, 4294901760
    %v6541 = vsub.f32 %v5744, %v6540
    %v6542 = vand.u32 %v6541, 4294901760
    %v6543 = vsub.f32 %v6541, %v6542
    %v6544 = vand.u32 %v6543, 4294901760
    %6545 = vmatmul.mubr.f32.gmra.mrb[0].mxu0 %v6544
    %v6546 = vpop.f32.mrb[0].mxu0
    %v6547 = vadd.f32 0.0, %v6546
    %v6548 = vpop.f32.mrb[0].mxu0
    %6549 = vmatprep.mubr.f32.mxu0 0.0
    %v6550 = vand.u32 %v5747, 4294901760
    %v6551 = vsub.f32 %v5747, %v6550
    %v6552 = vand.u32 %v6551, 4294901760
    %v6553 = vsub.f32 %v6551, %v6552
    %v6554 = vand.u32 %v6553, 4294901760
    %6555 = vmatmul.mubr.f32.gmra.mrb[0].mxu0 %v6554
    %v6556 = vpop.f32.mrb[0].mxu0
    %v6557 = vadd.f32 0.0, %v6556
    %v6558 = vpop.f32.mrb[0].mxu0
    %6559 = vmatprep.mubr.f32.mxu0 0.0
    %v6560 = vand.u32 %v5750, 4294901760
    %v6561 = vsub.f32 %v5750, %v6560
    %v6562 = vand.u32 %v6561, 4294901760
    %v6563 = vsub.f32 %v6561, %v6562
    %v6564 = vand.u32 %v6563, 4294901760
    %6565 = vmatmul.mubr.f32.gmra.mrb[0].mxu0 %v6564
    %v6566 = vpop.f32.mrb[0].mxu0
    %v6567 = vadd.f32 0.0, %v6566
    %v6568 = vpop.f32.mrb[0].mxu0
    %6569 = vmatprep.mubr.f32.mxu0 0.0
    %v6570 = vand.u32 %v5753, 4294901760
    %v6571 = vsub.f32 %v5753, %v6570
    %v6572 = vand.u32 %v6571, 4294901760
    %v6573 = vsub.f32 %v6571, %v6572
    %v6574 = vand.u32 %v6573, 4294901760
    %6575 = vmatmul.mubr.f32.gmra.mrb[0].mxu0 %v6574
    %v6576 = vpop.f32.mrb[0].mxu0
    %v6577 = vadd.f32 0.0, %v6576
    %v6578 = vpop.f32.mrb[0].mxu0
    %6579 = vmatprep.mubr.f32.mxu0 0.0
    %v6580 = vand.u32 %v5756, 4294901760
    %v6581 = vsub.f32 %v5756, %v6580
    %v6582 = vand.u32 %v6581, 4294901760
    %v6583 = vsub.f32 %v6581, %v6582
    %v6584 = vand.u32 %v6583, 4294901760
    %6585 = vmatmul.mubr.f32.gmra.mrb[0].mxu0 %v6584
    %v6586 = vpop.f32.mrb[0].mxu0
    %v6587 = vadd.f32 0.0, %v6586
    %v6588 = vpop.f32.mrb[0].mxu0
    %6589 = vmatprep.mubr.f32.mxu0 0.0
    %v6590 = vand.u32 %v5759, 4294901760
    %v6591 = vsub.f32 %v5759, %v6590
    %v6592 = vand.u32 %v6591, 4294901760
    %v6593 = vsub.f32 %v6591, %v6592
    %v6594 = vand.u32 %v6593, 4294901760
    %6595 = vmatmul.mubr.f32.gmra.mrb[0].mxu0 %v6594
    %v6596 = vpop.f32.mrb[0].mxu0
    %v6597 = vadd.f32 0.0, %v6596
    %v6598 = vpop.f32.mrb[0].mxu0
    %6599 = vmatprep.mubr.f32.mxu0 0.0
    %v6600 = vand.u32 %v5762, 4294901760
    %v6601 = vsub.f32 %v5762, %v6600
    %v6602 = vand.u32 %v6601, 4294901760
    %v6603 = vsub.f32 %v6601, %v6602
    %v6604 = vand.u32 %v6603, 4294901760
    %6605 = vmatmul.mubr.f32.gmra.mrb[0].mxu0 %v6604
    %v6606 = vpop.f32.mrb[0].mxu0
    %v6607 = vadd.f32 0.0, %v6606
    %v6608 = vpop.f32.mrb[0].mxu0
    %6609 = vmatprep.mubr.f32.mxu0 0.0
    %v6610 = vand.u32 %v5765, 4294901760
    %v6611 = vsub.f32 %v5765, %v6610
    %v6612 = vand.u32 %v6611, 4294901760
    %v6613 = vsub.f32 %v6611, %v6612
    %v6614 = vand.u32 %v6613, 4294901760
    %6615 = vmatmul.mubr.f32.gmra.mrb[0].mxu0 %v6614
    %v6616 = vpop.f32.mrb[0].mxu0
    %v6617 = vadd.f32 0.0, %v6616
    %v6618 = vpop.f32.mrb[0].mxu0
    %6619 = vmatprep.mubr.f32.mxu0 0.0
    %v6620 = vand.u32 %v5768, 4294901760
    %v6621 = vsub.f32 %v5768, %v6620
    %v6622 = vand.u32 %v6621, 4294901760
    %v6623 = vsub.f32 %v6621, %v6622
    %v6624 = vand.u32 %v6623, 4294901760
    %6625 = vmatmul.mubr.f32.gmra.mrb[0].mxu0 %v6624
    %v6626 = vpop.f32.mrb[0].mxu0
    %v6627 = vadd.f32 0.0, %v6626
    %v6628 = vpop.f32.mrb[0].mxu0
    %6629 = vmatprep.mubr.f32.mxu0 0.0
    %v6630 = vand.u32 %v5771, 4294901760
    %v6631 = vsub.f32 %v5771, %v6630
    %v6632 = vand.u32 %v6631, 4294901760
    %v6633 = vsub.f32 %v6631, %v6632
    %v6634 = vand.u32 %v6633, 4294901760
    %6635 = vmatmul.mubr.f32.gmra.mrb[0].mxu0 %v6634
    %v6636 = vpop.f32.mrb[0].mxu0
    %v6637 = vadd.f32 0.0, %v6636
    %v6638 = vpop.f32.mrb[0].mxu0
    %6639 = vdwg.mxu0
    %6640 = vmatprep.subr.mxu0 0.0
    %v6641 = vand.u32 %v104, 4294901760
    %v6642 = vsub.f32 %v104, %v6641
    %v6643 = vand.u32 %v6642, 4294901760
    %v6644 = vsub.f32 %v6642, %v6643
    %v6645 = vand.u32 %v6644, 4294901760
    %6646 = vmatpush1.msra.mxu0 %v6645
    %6647 = vmatprep.subr.mxu0 0.0
    %v6648 = vand.u32 %v105, 4294901760
    %v6649 = vsub.f32 %v105, %v6648
    %v6650 = vand.u32 %v6649, 4294901760
    %v6651 = vsub.f32 %v6649, %v6650
    %v6652 = vand.u32 %v6651, 4294901760
    %6653 = vmatpush1.msra.mxu0 %v6652
    %6654 = vmatprep.subr.mxu0 0.0
    %6655 = vmatpush1.msra.mxu0 0.0
    %6656 = vmatprep.subr.mxu0 0.0
    %6657 = vmatpush1.msra.mxu0 0.0
    %6658 = vmatprep.subr.mxu0 0.0
    %6659 = vmatpush1.msra.mxu0 0.0
    %6660 = vmatprep.subr.mxu0 0.0
    %6661 = vmatpush1.msra.mxu0 0.0
    %6662 = vmatprep.subr.mxu0 0.0
    %6663 = vmatpush1.msra.mxu0 0.0
    %6664 = vmatprep.subr.mxu0 0.0
    %6665 = vmatpush1.msra.mxu0 0.0
    %6666 = vmatprep.subr.mxu0 0.0
    %6667 = vmatpush1.msra.mxu0 0.0
    %6668 = vmatprep.subr.mxu0 0.0
    %6669 = vmatpush1.msra.mxu0 0.0
    %6670 = vmatprep.subr.mxu0 0.0
    %6671 = vmatpush1.msra.mxu0 0.0
    %6672 = vmatprep.subr.mxu0 0.0
    %6673 = vmatpush1.msra.mxu0 0.0
    %6674 = vmatprep.subr.mxu0 0.0
    %6675 = vmatpush1.msra.mxu0 0.0
    %6676 = vmatprep.subr.mxu0 0.0
    %6677 = vmatpush1.msra.mxu0 0.0
    %6678 = vmatprep.subr.mxu0 0.0
    %6679 = vmatpush1.msra.mxu0 0.0
    %6680 = vmatprep.subr.mxu0 0.0
    %6681 = vmatpush1.msra.mxu0 0.0
    %6682 = vmatprep.subr.mxu0 0.0
    %6683 = vmatpush1.msra.mxu0 0.0
    %6684 = vmatprep.subr.mxu0 0.0
    %6685 = vmatpush1.msra.mxu0 0.0
    %6686 = vmatprep.subr.mxu0 0.0
    %6687 = vmatpush1.msra.mxu0 0.0
    %6688 = vmatprep.subr.mxu0 0.0
    %6689 = vmatpush1.msra.mxu0 0.0
    %6690 = vmatprep.subr.mxu0 0.0
    %6691 = vmatpush1.msra.mxu0 0.0
    %6692 = vmatprep.subr.mxu0 0.0
    %6693 = vmatpush1.msra.mxu0 0.0
    %6694 = vmatprep.subr.mxu0 0.0
    %6695 = vmatpush1.msra.mxu0 0.0
    %6696 = vmatprep.subr.mxu0 0.0
    %6697 = vmatpush1.msra.mxu0 0.0
    %6698 = vmatprep.subr.mxu0 0.0
    %6699 = vmatpush1.msra.mxu0 0.0
    %6700 = vmatprep.subr.mxu0 0.0
    %6701 = vmatpush1.msra.mxu0 0.0
    %6702 = vmatprep.subr.mxu0 0.0
    %6703 = vmatpush1.msra.mxu0 0.0
    %6704 = vmatprep.subr.mxu0 0.0
    %6705 = vmatpush1.msra.mxu0 0.0
    %6706 = vmatprep.subr.mxu0 0.0
    %6707 = vmatpush1.msra.mxu0 0.0
    %6708 = vmatprep.subr.mxu0 0.0
    %6709 = vmatpush1.msra.mxu0 0.0
    %6710 = vmatprep.subr.mxu0 0.0
    %6711 = vmatpush1.msra.mxu0 0.0
    %6712 = vmatprep.subr.mxu0 0.0
    %6713 = vmatpush1.msra.mxu0 0.0
    %6714 = vmatprep.mubr.f32.mxu0 0.0
    %v6715 = vand.u32 %v5534, 4294901760
    %6716 = vmatmul.mubr.f32.gmra.mrb[0].mxu0 %v6715
    %v6717 = vpop.f32.mrb[0].mxu0
    %v6718 = vadd.f32 %v5847, %v6717
    %v6719 = vpop.f32.mrb[0].mxu0
    %6720 = vmatprep.mubr.f32.mxu0 0.0
    %v6721 = vand.u32 %v5537, 4294901760
    %6722 = vmatmul.mubr.f32.gmra.mrb[0].mxu0 %v6721
    %v6723 = vpop.f32.mrb[0].mxu0
    %v6724 = vadd.f32 %v5857, %v6723
    %v6725 = vpop.f32.mrb[0].mxu0
    %6726 = vmatprep.mubr.f32.mxu0 0.0
    %v6727 = vand.u32 %v5540, 4294901760
    %6728 = vmatmul.mubr.f32.gmra.mrb[0].mxu0 %v6727
    %v6729 = vpop.f32.mrb[0].mxu0
    %v6730 = vadd.f32 %v5867, %v6729
    %v6731 = vpop.f32.mrb[0].mxu0
    %6732 = vmatprep.mubr.f32.mxu0 0.0
    %v6733 = vand.u32 %v5543, 4294901760
    %6734 = vmatmul.mubr.f32.gmra.mrb[0].mxu0 %v6733
    %v6735 = vpop.f32.mrb[0].mxu0
    %v6736 = vadd.f32 %v5877, %v6735
    %v6737 = vpop.f32.mrb[0].mxu0
    %6738 = vmatprep.mubr.f32.mxu0 0.0
    %v6739 = vand.u32 %v5546, 4294901760
    %6740 = vmatmul.mubr.f32.gmra.mrb[0].mxu0 %v6739
    %v6741 = vpop.f32.mrb[0].mxu0
    %v6742 = vadd.f32 %v5887, %v6741
    %v6743 = vpop.f32.mrb[0].mxu0
    %6744 = vmatprep.mubr.f32.mxu0 0.0
    %v6745 = vand.u32 %v5549, 4294901760
    %6746 = vmatmul.mubr.f32.gmra.mrb[0].mxu0 %v6745
    %v6747 = vpop.f32.mrb[0].mxu0
    %v6748 = vadd.f32 %v5897, %v6747
    %v6749 = vpop.f32.mrb[0].mxu0
    %6750 = vmatprep.mubr.f32.mxu0 0.0
    %v6751 = vand.u32 %v5552, 4294901760
    %6752 = vmatmul.mubr.f32.gmra.mrb[0].mxu0 %v6751
    %v6753 = vpop.f32.mrb[0].mxu0
    %v6754 = vadd.f32 %v5907, %v6753
    %v6755 = vpop.f32.mrb[0].mxu0
    %6756 = vmatprep.mubr.f32.mxu0 0.0
    %v6757 = vand.u32 %v5555, 4294901760
    %6758 = vmatmul.mubr.f32.gmra.mrb[0].mxu0 %v6757
    %v6759 = vpop.f32.mrb[0].mxu0
    %v6760 = vadd.f32 %v5917, %v6759
    %v6761 = vpop.f32.mrb[0].mxu0
    %6762 = vmatprep.mubr.f32.mxu0 0.0
    %v6763 = vand.u32 %v5558, 4294901760
    %6764 = vmatmul.mubr.f32.gmra.mrb[0].mxu0 %v6763
    %v6765 = vpop.f32.mrb[0].mxu0
    %v6766 = vadd.f32 %v5927, %v6765
    %v6767 = vpop.f32.mrb[0].mxu0
    %6768 = vmatprep.mubr.f32.mxu0 0.0
    %v6769 = vand.u32 %v5561, 4294901760
    %6770 = vmatmul.mubr.f32.gmra.mrb[0].mxu0 %v6769
    %v6771 = vpop.f32.mrb[0].mxu0
    %v6772 = vadd.f32 %v5937, %v6771
    %v6773 = vpop.f32.mrb[0].mxu0
    %6774 = vmatprep.mubr.f32.mxu0 0.0
    %v6775 = vand.u32 %v5564, 4294901760
    %6776 = vmatmul.mubr.f32.gmra.mrb[0].mxu0 %v6775
    %v6777 = vpop.f32.mrb[0].mxu0
    %v6778 = vadd.f32 %v5947, %v6777
    %v6779 = vpop.f32.mrb[0].mxu0
    %6780 = vmatprep.mubr.f32.mxu0 0.0
    %v6781 = vand.u32 %v5567, 4294901760
    %6782 = vmatmul.mubr.f32.gmra.mrb[0].mxu0 %v6781
    %v6783 = vpop.f32.mrb[0].mxu0
    %v6784 = vadd.f32 %v5957, %v6783
    %v6785 = vpop.f32.mrb[0].mxu0
    %6786 = vmatprep.mubr.f32.mxu0 0.0
    %v6787 = vand.u32 %v5570, 4294901760
    %6788 = vmatmul.mubr.f32.gmra.mrb[0].mxu0 %v6787
    %v6789 = vpop.f32.mrb[0].mxu0
    %v6790 = vadd.f32 %v5967, %v6789
    %v6791 = vpop.f32.mrb[0].mxu0
    %6792 = vmatprep.mubr.f32.mxu0 0.0
    %v6793 = vand.u32 %v5573, 4294901760
    %6794 = vmatmul.mubr.f32.gmra.mrb[0].mxu0 %v6793
    %v6795 = vpop.f32.mrb[0].mxu0
    %v6796 = vadd.f32 %v5977, %v6795
    %v6797 = vpop.f32.mrb[0].mxu0
    %6798 = vmatprep.mubr.f32.mxu0 0.0
    %v6799 = vand.u32 %v5576, 4294901760
    %6800 = vmatmul.mubr.f32.gmra.mrb[0].mxu0 %v6799
    %v6801 = vpop.f32.mrb[0].mxu0
    %v6802 = vadd.f32 %v5987, %v6801
    %v6803 = vpop.f32.mrb[0].mxu0
    %6804 = vmatprep.mubr.f32.mxu0 0.0
    %v6805 = vand.u32 %v5579, 4294901760
    %6806 = vmatmul.mubr.f32.gmra.mrb[0].mxu0 %v6805
    %v6807 = vpop.f32.mrb[0].mxu0
    %v6808 = vadd.f32 %v5997, %v6807
    %v6809 = vpop.f32.mrb[0].mxu0
    %6810 = vmatprep.mubr.f32.mxu0 0.0
    %v6811 = vand.u32 %v5582, 4294901760
    %6812 = vmatmul.mubr.f32.gmra.mrb[0].mxu0 %v6811
    %v6813 = vpop.f32.mrb[0].mxu0
    %v6814 = vadd.f32 %v6007, %v6813
    %v6815 = vpop.f32.mrb[0].mxu0
    %6816 = vmatprep.mubr.f32.mxu0 0.0
    %v6817 = vand.u32 %v5585, 4294901760
    %6818 = vmatmul.mubr.f32.gmra.mrb[0].mxu0 %v6817
    %v6819 = vpop.f32.mrb[0].mxu0
    %v6820 = vadd.f32 %v6017, %v6819
    %v6821 = vpop.f32.mrb[0].mxu0
    %6822 = vmatprep.mubr.f32.mxu0 0.0
    %v6823 = vand.u32 %v5588, 4294901760
    %6824 = vmatmul.mubr.f32.gmra.mrb[0].mxu0 %v6823
    %v6825 = vpop.f32.mrb[0].mxu0
    %v6826 = vadd.f32 %v6027, %v6825
    %v6827 = vpop.f32.mrb[0].mxu0
    %6828 = vmatprep.mubr.f32.mxu0 0.0
    %v6829 = vand.u32 %v5591, 4294901760
    %6830 = vmatmul.mubr.f32.gmra.mrb[0].mxu0 %v6829
    %v6831 = vpop.f32.mrb[0].mxu0
    %v6832 = vadd.f32 %v6037, %v6831
    %v6833 = vpop.f32.mrb[0].mxu0
    %6834 = vmatprep.mubr.f32.mxu0 0.0
    %v6835 = vand.u32 %v5594, 4294901760
    %6836 = vmatmul.mubr.f32.gmra.mrb[0].mxu0 %v6835
    %v6837 = vpop.f32.mrb[0].mxu0
    %v6838 = vadd.f32 %v6047, %v6837
    %v6839 = vpop.f32.mrb[0].mxu0
    %6840 = vmatprep.mubr.f32.mxu0 0.0
    %v6841 = vand.u32 %v5597, 4294901760
    %6842 = vmatmul.mubr.f32.gmra.mrb[0].mxu0 %v6841
    %v6843 = vpop.f32.mrb[0].mxu0
    %v6844 = vadd.f32 %v6057, %v6843
    %v6845 = vpop.f32.mrb[0].mxu0
    %6846 = vmatprep.mubr.f32.mxu0 0.0
    %v6847 = vand.u32 %v5600, 4294901760
    %6848 = vmatmul.mubr.f32.gmra.mrb[0].mxu0 %v6847
    %v6849 = vpop.f32.mrb[0].mxu0
    %v6850 = vadd.f32 %v6067, %v6849
    %v6851 = vpop.f32.mrb[0].mxu0
    %6852 = vmatprep.mubr.f32.mxu0 0.0
    %v6853 = vand.u32 %v5603, 4294901760
    %6854 = vmatmul.mubr.f32.gmra.mrb[0].mxu0 %v6853
    %v6855 = vpop.f32.mrb[0].mxu0
    %v6856 = vadd.f32 %v6077, %v6855
    %v6857 = vpop.f32.mrb[0].mxu0
    %6858 = vmatprep.mubr.f32.mxu0 0.0
    %v6859 = vand.u32 %v5606, 4294901760
    %6860 = vmatmul.mubr.f32.gmra.mrb[0].mxu0 %v6859
    %v6861 = vpop.f32.mrb[0].mxu0
    %v6862 = vadd.f32 %v6087, %v6861
    %v6863 = vpop.f32.mrb[0].mxu0
    %6864 = vmatprep.mubr.f32.mxu0 0.0
    %v6865 = vand.u32 %v5609, 4294901760
    %6866 = vmatmul.mubr.f32.gmra.mrb[0].mxu0 %v6865
    %v6867 = vpop.f32.mrb[0].mxu0
    %v6868 = vadd.f32 %v6097, %v6867
    %v6869 = vpop.f32.mrb[0].mxu0
    %6870 = vmatprep.mubr.f32.mxu0 0.0
    %v6871 = vand.u32 %v5612, 4294901760
    %6872 = vmatmul.mubr.f32.gmra.mrb[0].mxu0 %v6871
    %v6873 = vpop.f32.mrb[0].mxu0
    %v6874 = vadd.f32 %v6107, %v6873
    %v6875 = vpop.f32.mrb[0].mxu0
    %6876 = vmatprep.mubr.f32.mxu0 0.0
    %v6877 = vand.u32 %v5615, 4294901760
    %6878 = vmatmul.mubr.f32.gmra.mrb[0].mxu0 %v6877
    %v6879 = vpop.f32.mrb[0].mxu0
    %v6880 = vadd.f32 %v6117, %v6879
    %v6881 = vpop.f32.mrb[0].mxu0
    %6882 = vmatprep.mubr.f32.mxu0 0.0
    %v6883 = vand.u32 %v5618, 4294901760
    %6884 = vmatmul.mubr.f32.gmra.mrb[0].mxu0 %v6883
    %v6885 = vpop.f32.mrb[0].mxu0
    %v6886 = vadd.f32 %v6127, %v6885
    %v6887 = vpop.f32.mrb[0].mxu0
    %6888 = vmatprep.mubr.f32.mxu0 0.0
    %v6889 = vand.u32 %v5621, 4294901760
    %6890 = vmatmul.mubr.f32.gmra.mrb[0].mxu0 %v6889
    %v6891 = vpop.f32.mrb[0].mxu0
    %v6892 = vadd.f32 %v6137, %v6891
    %v6893 = vpop.f32.mrb[0].mxu0
    %6894 = vmatprep.mubr.f32.mxu0 0.0
    %v6895 = vand.u32 %v5624, 4294901760
    %6896 = vmatmul.mubr.f32.gmra.mrb[0].mxu0 %v6895
    %v6897 = vpop.f32.mrb[0].mxu0
    %v6898 = vadd.f32 %v6147, %v6897
    %v6899 = vpop.f32.mrb[0].mxu0
    %6900 = vmatprep.mubr.f32.mxu0 0.0
    %v6901 = vand.u32 %v5627, 4294901760
    %6902 = vmatmul.mubr.f32.gmra.mrb[0].mxu0 %v6901
    %v6903 = vpop.f32.mrb[0].mxu0
    %v6904 = vadd.f32 %v6157, %v6903
    %v6905 = vpop.f32.mrb[0].mxu0
    %6906 = vmatprep.mubr.f32.mxu0 0.0
    %v6907 = vand.u32 %v5630, 4294901760
    %6908 = vmatmul.mubr.f32.gmra.mrb[0].mxu0 %v6907
    %v6909 = vpop.f32.mrb[0].mxu0
    %v6910 = vadd.f32 %v6167, %v6909
    %v6911 = vpop.f32.mrb[0].mxu0
    %6912 = vmatprep.mubr.f32.mxu0 0.0
    %v6913 = vand.u32 %v5633, 4294901760
    %6914 = vmatmul.mubr.f32.gmra.mrb[0].mxu0 %v6913
    %v6915 = vpop.f32.mrb[0].mxu0
    %v6916 = vadd.f32 %v6177, %v6915
    %v6917 = vpop.f32.mrb[0].mxu0
    %6918 = vmatprep.mubr.f32.mxu0 0.0
    %v6919 = vand.u32 %v5636, 4294901760
    %6920 = vmatmul.mubr.f32.gmra.mrb[0].mxu0 %v6919
    %v6921 = vpop.f32.mrb[0].mxu0
    %v6922 = vadd.f32 %v6187, %v6921
    %v6923 = vpop.f32.mrb[0].mxu0
    %6924 = vmatprep.mubr.f32.mxu0 0.0
    %v6925 = vand.u32 %v5639, 4294901760
    %6926 = vmatmul.mubr.f32.gmra.mrb[0].mxu0 %v6925
    %v6927 = vpop.f32.mrb[0].mxu0
    %v6928 = vadd.f32 %v6197, %v6927
    %v6929 = vpop.f32.mrb[0].mxu0
    %6930 = vmatprep.mubr.f32.mxu0 0.0
    %v6931 = vand.u32 %v5642, 4294901760
    %6932 = vmatmul.mubr.f32.gmra.mrb[0].mxu0 %v6931
    %v6933 = vpop.f32.mrb[0].mxu0
    %v6934 = vadd.f32 %v6207, %v6933
    %v6935 = vpop.f32.mrb[0].mxu0
    %6936 = vmatprep.mubr.f32.mxu0 0.0
    %v6937 = vand.u32 %v5645, 4294901760
    %6938 = vmatmul.mubr.f32.gmra.mrb[0].mxu0 %v6937
    %v6939 = vpop.f32.mrb[0].mxu0
    %v6940 = vadd.f32 %v6217, %v6939
    %v6941 = vpop.f32.mrb[0].mxu0
    %6942 = vmatprep.mubr.f32.mxu0 0.0
    %v6943 = vand.u32 %v5648, 4294901760
    %6944 = vmatmul.mubr.f32.gmra.mrb[0].mxu0 %v6943
    %v6945 = vpop.f32.mrb[0].mxu0
    %v6946 = vadd.f32 %v6227, %v6945
    %v6947 = vpop.f32.mrb[0].mxu0
    %6948 = vmatprep.mubr.f32.mxu0 0.0
    %v6949 = vand.u32 %v5651, 4294901760
    %6950 = vmatmul.mubr.f32.gmra.mrb[0].mxu0 %v6949
    %v6951 = vpop.f32.mrb[0].mxu0
    %v6952 = vadd.f32 %v6237, %v6951
    %v6953 = vpop.f32.mrb[0].mxu0
    %6954 = vmatprep.mubr.f32.mxu0 0.0
    %v6955 = vand.u32 %v5654, 4294901760
    %6956 = vmatmul.mubr.f32.gmra.mrb[0].mxu0 %v6955
    %v6957 = vpop.f32.mrb[0].mxu0
    %v6958 = vadd.f32 %v6247, %v6957
    %v6959 = vpop.f32.mrb[0].mxu0
    %6960 = vmatprep.mubr.f32.mxu0 0.0
    %v6961 = vand.u32 %v5657, 4294901760
    %6962 = vmatmul.mubr.f32.gmra.mrb[0].mxu0 %v6961
    %v6963 = vpop.f32.mrb[0].mxu0
    %v6964 = vadd.f32 %v6257, %v6963
    %v6965 = vpop.f32.mrb[0].mxu0
    %6966 = vmatprep.mubr.f32.mxu0 0.0
    %v6967 = vand.u32 %v5660, 4294901760
    %6968 = vmatmul.mubr.f32.gmra.mrb[0].mxu0 %v6967
    %v6969 = vpop.f32.mrb[0].mxu0
    %v6970 = vadd.f32 %v6267, %v6969
    %v6971 = vpop.f32.mrb[0].mxu0
    %6972 = vmatprep.mubr.f32.mxu0 0.0
    %v6973 = vand.u32 %v5663, 4294901760
    %6974 = vmatmul.mubr.f32.gmra.mrb[0].mxu0 %v6973
    %v6975 = vpop.f32.mrb[0].mxu0
    %v6976 = vadd.f32 %v6277, %v6975
    %v6977 = vpop.f32.mrb[0].mxu0
    %6978 = vmatprep.mubr.f32.mxu0 0.0
    %v6979 = vand.u32 %v5666, 4294901760
    %6980 = vmatmul.mubr.f32.gmra.mrb[0].mxu0 %v6979
    %v6981 = vpop.f32.mrb[0].mxu0
    %v6982 = vadd.f32 %v6287, %v6981
    %v6983 = vpop.f32.mrb[0].mxu0
    %6984 = vmatprep.mubr.f32.mxu0 0.0
    %v6985 = vand.u32 %v5669, 4294901760
    %6986 = vmatmul.mubr.f32.gmra.mrb[0].mxu0 %v6985
    %v6987 = vpop.f32.mrb[0].mxu0
    %v6988 = vadd.f32 %v6297, %v6987
    %v6989 = vpop.f32.mrb[0].mxu0
    %6990 = vmatprep.mubr.f32.mxu0 0.0
    %v6991 = vand.u32 %v5672, 4294901760
    %6992 = vmatmul.mubr.f32.gmra.mrb[0].mxu0 %v6991
    %v6993 = vpop.f32.mrb[0].mxu0
    %v6994 = vadd.f32 %v6307, %v6993
    %v6995 = vpop.f32.mrb[0].mxu0
    %6996 = vmatprep.mubr.f32.mxu0 0.0
    %v6997 = vand.u32 %v5675, 4294901760
    %6998 = vmatmul.mubr.f32.gmra.mrb[0].mxu0 %v6997
    %v6999 = vpop.f32.mrb[0].mxu0
    %v7000 = vadd.f32 %v6317, %v6999
    %v7001 = vpop.f32.mrb[0].mxu0
    %7002 = vmatprep.mubr.f32.mxu0 0.0
    %v7003 = vand.u32 %v5678, 4294901760
    %7004 = vmatmul.mubr.f32.gmra.mrb[0].mxu0 %v7003
    %v7005 = vpop.f32.mrb[0].mxu0
    %v7006 = vadd.f32 %v6327, %v7005
    %v7007 = vpop.f32.mrb[0].mxu0
    %7008 = vmatprep.mubr.f32.mxu0 0.0
    %v7009 = vand.u32 %v5681, 4294901760
    %7010 = vmatmul.mubr.f32.gmra.mrb[0].mxu0 %v7009
    %v7011 = vpop.f32.mrb[0].mxu0
    %v7012 = vadd.f32 %v6337, %v7011
    %v7013 = vpop.f32.mrb[0].mxu0
    %7014 = vmatprep.mubr.f32.mxu0 0.0
    %v7015 = vand.u32 %v5684, 4294901760
    %7016 = vmatmul.mubr.f32.gmra.mrb[0].mxu0 %v7015
    %v7017 = vpop.f32.mrb[0].mxu0
    %v7018 = vadd.f32 %v6347, %v7017
    %v7019 = vpop.f32.mrb[0].mxu0
    %7020 = vmatprep.mubr.f32.mxu0 0.0
    %v7021 = vand.u32 %v5687, 4294901760
    %7022 = vmatmul.mubr.f32.gmra.mrb[0].mxu0 %v7021
    %v7023 = vpop.f32.mrb[0].mxu0
    %v7024 = vadd.f32 %v6357, %v7023
    %v7025 = vpop.f32.mrb[0].mxu0
    %7026 = vmatprep.mubr.f32.mxu0 0.0
    %v7027 = vand.u32 %v5690, 4294901760
    %7028 = vmatmul.mubr.f32.gmra.mrb[0].mxu0 %v7027
    %v7029 = vpop.f32.mrb[0].mxu0
    %v7030 = vadd.f32 %v6367, %v7029
    %v7031 = vpop.f32.mrb[0].mxu0
    %7032 = vmatprep.mubr.f32.mxu0 0.0
    %v7033 = vand.u32 %v5693, 4294901760
    %7034 = vmatmul.mubr.f32.gmra.mrb[0].mxu0 %v7033
    %v7035 = vpop.f32.mrb[0].mxu0
    %v7036 = vadd.f32 %v6377, %v7035
    %v7037 = vpop.f32.mrb[0].mxu0
    %7038 = vmatprep.mubr.f32.mxu0 0.0
    %v7039 = vand.u32 %v5696, 4294901760
    %7040 = vmatmul.mubr.f32.gmra.mrb[0].mxu0 %v7039
    %v7041 = vpop.f32.mrb[0].mxu0
    %v7042 = vadd.f32 %v6387, %v7041
    %v7043 = vpop.f32.mrb[0].mxu0
    %7044 = vmatprep.mubr.f32.mxu0 0.0
    %v7045 = vand.u32 %v5699, 4294901760
    %7046 = vmatmul.mubr.f32.gmra.mrb[0].mxu0 %v7045
    %v7047 = vpop.f32.mrb[0].mxu0
    %v7048 = vadd.f32 %v6397, %v7047
    %v7049 = vpop.f32.mrb[0].mxu0
    %7050 = vmatprep.mubr.f32.mxu0 0.0
    %v7051 = vand.u32 %v5702, 4294901760
    %7052 = vmatmul.mubr.f32.gmra.mrb[0].mxu0 %v7051
    %v7053 = vpop.f32.mrb[0].mxu0
    %v7054 = vadd.f32 %v6407, %v7053
    %v7055 = vpop.f32.mrb[0].mxu0
    %7056 = vmatprep.mubr.f32.mxu0 0.0
    %v7057 = vand.u32 %v5705, 4294901760
    %7058 = vmatmul.mubr.f32.gmra.mrb[0].mxu0 %v7057
    %v7059 = vpop.f32.mrb[0].mxu0
    %v7060 = vadd.f32 %v6417, %v7059
    %v7061 = vpop.f32.mrb[0].mxu0
    %7062 = vmatprep.mubr.f32.mxu0 0.0
    %v7063 = vand.u32 %v5708, 4294901760
    %7064 = vmatmul.mubr.f32.gmra.mrb[0].mxu0 %v7063
    %v7065 = vpop.f32.mrb[0].mxu0
    %v7066 = vadd.f32 %v6427, %v7065
    %v7067 = vpop.f32.mrb[0].mxu0
    %7068 = vmatprep.mubr.f32.mxu0 0.0
    %v7069 = vand.u32 %v5711, 4294901760
    %7070 = vmatmul.mubr.f32.gmra.mrb[0].mxu0 %v7069
    %v7071 = vpop.f32.mrb[0].mxu0
    %v7072 = vadd.f32 %v6437, %v7071
    %v7073 = vpop.f32.mrb[0].mxu0
    %7074 = vmatprep.mubr.f32.mxu0 0.0
    %v7075 = vand.u32 %v5714, 4294901760
    %7076 = vmatmul.mubr.f32.gmra.mrb[0].mxu0 %v7075
    %v7077 = vpop.f32.mrb[0].mxu0
    %v7078 = vadd.f32 %v6447, %v7077
    %v7079 = vpop.f32.mrb[0].mxu0
    %7080 = vmatprep.mubr.f32.mxu0 0.0
    %v7081 = vand.u32 %v5717, 4294901760
    %7082 = vmatmul.mubr.f32.gmra.mrb[0].mxu0 %v7081
    %v7083 = vpop.f32.mrb[0].mxu0
    %v7084 = vadd.f32 %v6457, %v7083
    %v7085 = vpop.f32.mrb[0].mxu0
    %7086 = vmatprep.mubr.f32.mxu0 0.0
    %v7087 = vand.u32 %v5720, 4294901760
    %7088 = vmatmul.mubr.f32.gmra.mrb[0].mxu0 %v7087
    %v7089 = vpop.f32.mrb[0].mxu0
    %v7090 = vadd.f32 %v6467, %v7089
    %v7091 = vpop.f32.mrb[0].mxu0
    %7092 = vmatprep.mubr.f32.mxu0 0.0
    %v7093 = vand.u32 %v5723, 4294901760
    %7094 = vmatmul.mubr.f32.gmra.mrb[0].mxu0 %v7093
    %v7095 = vpop.f32.mrb[0].mxu0
    %v7096 = vadd.f32 %v6477, %v7095
    %v7097 = vpop.f32.mrb[0].mxu0
    %7098 = vmatprep.mubr.f32.mxu0 0.0
    %v7099 = vand.u32 %v5726, 4294901760
    %7100 = vmatmul.mubr.f32.gmra.mrb[0].mxu0 %v7099
    %v7101 = vpop.f32.mrb[0].mxu0
    %v7102 = vadd.f32 %v6487, %v7101
    %v7103 = vpop.f32.mrb[0].mxu0
    %7104 = vmatprep.mubr.f32.mxu0 0.0
    %v7105 = vand.u32 %v5729, 4294901760
    %7106 = vmatmul.mubr.f32.gmra.mrb[0].mxu0 %v7105
    %v7107 = vpop.f32.mrb[0].mxu0
    %v7108 = vadd.f32 %v6497, %v7107
    %v7109 = vpop.f32.mrb[0].mxu0
    %7110 = vmatprep.mubr.f32.mxu0 0.0
    %v7111 = vand.u32 %v5732, 4294901760
    %7112 = vmatmul.mubr.f32.gmra.mrb[0].mxu0 %v7111
    %v7113 = vpop.f32.mrb[0].mxu0
    %v7114 = vadd.f32 %v6507, %v7113
    %v7115 = vpop.f32.mrb[0].mxu0
    %7116 = vmatprep.mubr.f32.mxu0 0.0
    %v7117 = vand.u32 %v5735, 4294901760
    %7118 = vmatmul.mubr.f32.gmra.mrb[0].mxu0 %v7117
    %v7119 = vpop.f32.mrb[0].mxu0
    %v7120 = vadd.f32 %v6517, %v7119
    %v7121 = vpop.f32.mrb[0].mxu0
    %7122 = vmatprep.mubr.f32.mxu0 0.0
    %v7123 = vand.u32 %v5738, 4294901760
    %7124 = vmatmul.mubr.f32.gmra.mrb[0].mxu0 %v7123
    %v7125 = vpop.f32.mrb[0].mxu0
    %v7126 = vadd.f32 %v6527, %v7125
    %v7127 = vpop.f32.mrb[0].mxu0
    %7128 = vmatprep.mubr.f32.mxu0 0.0
    %v7129 = vand.u32 %v5741, 4294901760
    %7130 = vmatmul.mubr.f32.gmra.mrb[0].mxu0 %v7129
    %v7131 = vpop.f32.mrb[0].mxu0
    %v7132 = vadd.f32 %v6537, %v7131
    %v7133 = vpop.f32.mrb[0].mxu0
    %7134 = vmatprep.mubr.f32.mxu0 0.0
    %v7135 = vand.u32 %v5744, 4294901760
    %7136 = vmatmul.mubr.f32.gmra.mrb[0].mxu0 %v7135
    %v7137 = vpop.f32.mrb[0].mxu0
    %v7138 = vadd.f32 %v6547, %v7137
    %v7139 = vpop.f32.mrb[0].mxu0
    %7140 = vmatprep.mubr.f32.mxu0 0.0
    %v7141 = vand.u32 %v5747, 4294901760
    %7142 = vmatmul.mubr.f32.gmra.mrb[0].mxu0 %v7141
    %v7143 = vpop.f32.mrb[0].mxu0
    %v7144 = vadd.f32 %v6557, %v7143
    %v7145 = vpop.f32.mrb[0].mxu0
    %7146 = vmatprep.mubr.f32.mxu0 0.0
    %v7147 = vand.u32 %v5750, 4294901760
    %7148 = vmatmul.mubr.f32.gmra.mrb[0].mxu0 %v7147
    %v7149 = vpop.f32.mrb[0].mxu0
    %v7150 = vadd.f32 %v6567, %v7149
    %v7151 = vpop.f32.mrb[0].mxu0
    %7152 = vmatprep.mubr.f32.mxu0 0.0
    %v7153 = vand.u32 %v5753, 4294901760
    %7154 = vmatmul.mubr.f32.gmra.mrb[0].mxu0 %v7153
    %v7155 = vpop.f32.mrb[0].mxu0
    %v7156 = vadd.f32 %v6577, %v7155
    %v7157 = vpop.f32.mrb[0].mxu0
    %7158 = vmatprep.mubr.f32.mxu0 0.0
    %v7159 = vand.u32 %v5756, 4294901760
    %7160 = vmatmul.mubr.f32.gmra.mrb[0].mxu0 %v7159
    %v7161 = vpop.f32.mrb[0].mxu0
    %v7162 = vadd.f32 %v6587, %v7161
    %v7163 = vpop.f32.mrb[0].mxu0
    %7164 = vmatprep.mubr.f32.mxu0 0.0
    %v7165 = vand.u32 %v5759, 4294901760
    %7166 = vmatmul.mubr.f32.gmra.mrb[0].mxu0 %v7165
    %v7167 = vpop.f32.mrb[0].mxu0
    %v7168 = vadd.f32 %v6597, %v7167
    %v7169 = vpop.f32.mrb[0].mxu0
    %7170 = vmatprep.mubr.f32.mxu0 0.0
    %v7171 = vand.u32 %v5762, 4294901760
    %7172 = vmatmul.mubr.f32.gmra.mrb[0].mxu0 %v7171
    %v7173 = vpop.f32.mrb[0].mxu0
    %v7174 = vadd.f32 %v6607, %v7173
    %v7175 = vpop.f32.mrb[0].mxu0
    %7176 = vmatprep.mubr.f32.mxu0 0.0
    %v7177 = vand.u32 %v5765, 4294901760
    %7178 = vmatmul.mubr.f32.gmra.mrb[0].mxu0 %v7177
    %v7179 = vpop.f32.mrb[0].mxu0
    %v7180 = vadd.f32 %v6617, %v7179
    %v7181 = vpop.f32.mrb[0].mxu0
    %7182 = vmatprep.mubr.f32.mxu0 0.0
    %v7183 = vand.u32 %v5768, 4294901760
    %7184 = vmatmul.mubr.f32.gmra.mrb[0].mxu0 %v7183
    %v7185 = vpop.f32.mrb[0].mxu0
    %v7186 = vadd.f32 %v6627, %v7185
    %v7187 = vpop.f32.mrb[0].mxu0
    %7188 = vmatprep.mubr.f32.mxu0 0.0
    %v7189 = vand.u32 %v5771, 4294901760
    %7190 = vmatmul.mubr.f32.gmra.mrb[0].mxu0 %v7189
    %v7191 = vpop.f32.mrb[0].mxu0
    %v7192 = vadd.f32 %v6637, %v7191
    %v7193 = vpop.f32.mrb[0].mxu0
    %7194 = vdwg.mxu0
    %7195 = vmatprep.subr.mxu0 0.0
    %v7196 = vand.u32 %v104, 4294901760
    %v7197 = vsub.f32 %v104, %v7196
    %7198 = vmatpush1.msra.mxu0 %v7197
    %7199 = vmatprep.subr.mxu0 0.0
    %v7200 = vand.u32 %v105, 4294901760
    %v7201 = vsub.f32 %v105, %v7200
    %7202 = vmatpush1.msra.mxu0 %v7201
    %7203 = vmatprep.subr.mxu0 0.0
    %7204 = vmatpush1.msra.mxu0 0.0
    %7205 = vmatprep.subr.mxu0 0.0
    %7206 = vmatpush1.msra.mxu0 0.0
    %7207 = vmatprep.subr.mxu0 0.0
    %7208 = vmatpush1.msra.mxu0 0.0
    %7209 = vmatprep.subr.mxu0 0.0
    %7210 = vmatpush1.msra.mxu0 0.0
    %7211 = vmatprep.subr.mxu0 0.0
    %7212 = vmatpush1.msra.mxu0 0.0
    %7213 = vmatprep.subr.mxu0 0.0
    %7214 = vmatpush1.msra.mxu0 0.0
    %7215 = vmatprep.subr.mxu0 0.0
    %7216 = vmatpush1.msra.mxu0 0.0
    %7217 = vmatprep.subr.mxu0 0.0
    %7218 = vmatpush1.msra.mxu0 0.0
    %7219 = vmatprep.subr.mxu0 0.0
    %7220 = vmatpush1.msra.mxu0 0.0
    %7221 = vmatprep.subr.mxu0 0.0
    %7222 = vmatpush1.msra.mxu0 0.0
    %7223 = vmatprep.subr.mxu0 0.0
    %7224 = vmatpush1.msra.mxu0 0.0
    %7225 = vmatprep.subr.mxu0 0.0
    %7226 = vmatpush1.msra.mxu0 0.0
    %7227 = vmatprep.subr.mxu0 0.0
    %7228 = vmatpush1.msra.mxu0 0.0
    %7229 = vmatprep.subr.mxu0 0.0
    %7230 = vmatpush1.msra.mxu0 0.0
    %7231 = vmatprep.subr.mxu0 0.0
    %7232 = vmatpush1.msra.mxu0 0.0
    %7233 = vmatprep.subr.mxu0 0.0
    %7234 = vmatpush1.msra.mxu0 0.0
    %7235 = vmatprep.subr.mxu0 0.0
    %7236 = vmatpush1.msra.mxu0 0.0
    %7237 = vmatprep.subr.mxu0 0.0
    %7238 = vmatpush1.msra.mxu0 0.0
    %7239 = vmatprep.subr.mxu0 0.0
    %7240 = vmatpush1.msra.mxu0 0.0
    %7241 = vmatprep.subr.mxu0 0.0
    %7242 = vmatpush1.msra.mxu0 0.0
    %7243 = vmatprep.subr.mxu0 0.0
    %7244 = vmatpush1.msra.mxu0 0.0
    %7245 = vmatprep.subr.mxu0 0.0
    %7246 = vmatpush1.msra.mxu0 0.0
    %7247 = vmatprep.subr.mxu0 0.0
    %7248 = vmatpush1.msra.mxu0 0.0
    %7249 = vmatprep.subr.mxu0 0.0
    %7250 = vmatpush1.msra.mxu0 0.0
    %7251 = vmatprep.subr.mxu0 0.0
    %7252 = vmatpush1.msra.mxu0 0.0
    %7253 = vmatprep.subr.mxu0 0.0
    %7254 = vmatpush1.msra.mxu0 0.0
    %7255 = vmatprep.subr.mxu0 0.0
    %7256 = vmatpush1.msra.mxu0 0.0
    %7257 = vmatprep.subr.mxu0 0.0
    %7258 = vmatpush1.msra.mxu0 0.0
    %7259 = vmatprep.subr.mxu0 0.0
    %7260 = vmatpush1.msra.mxu0 0.0
    %7261 = vmatprep.subr.mxu0 0.0
    %7262 = vmatpush1.msra.mxu0 0.0
    %7263 = vmatprep.mubr.f32.mxu0 0.0
    %v7264 = vand.u32 %v5534, 4294901760
    %v7265 = vsub.f32 %v5534, %v7264
    %7266 = vmatmul.mubr.f32.gmra.mrb[0].mxu0 %v7265
    %v7267 = vpop.f32.mrb[0].mxu0
    %v7268 = vadd.f32 %v6718, %v7267
    %v7269 = vpop.f32.mrb[0].mxu0
    %7270 = vmatprep.mubr.f32.mxu0 0.0
    %v7271 = vand.u32 %v5537, 4294901760
    %v7272 = vsub.f32 %v5537, %v7271
    %7273 = vmatmul.mubr.f32.gmra.mrb[0].mxu0 %v7272
    %v7274 = vpop.f32.mrb[0].mxu0
    %v7275 = vadd.f32 %v6724, %v7274
    %v7276 = vpop.f32.mrb[0].mxu0
    %7277 = vmatprep.mubr.f32.mxu0 0.0
    %v7278 = vand.u32 %v5540, 4294901760
    %v7279 = vsub.f32 %v5540, %v7278
    %7280 = vmatmul.mubr.f32.gmra.mrb[0].mxu0 %v7279
    %v7281 = vpop.f32.mrb[0].mxu0
    %v7282 = vadd.f32 %v6730, %v7281
    %v7283 = vpop.f32.mrb[0].mxu0
    %7284 = vmatprep.mubr.f32.mxu0 0.0
    %v7285 = vand.u32 %v5543, 4294901760
    %v7286 = vsub.f32 %v5543, %v7285
    %7287 = vmatmul.mubr.f32.gmra.mrb[0].mxu0 %v7286
    %v7288 = vpop.f32.mrb[0].mxu0
    %v7289 = vadd.f32 %v6736, %v7288
    %v7290 = vpop.f32.mrb[0].mxu0
    %7291 = vmatprep.mubr.f32.mxu0 0.0
    %v7292 = vand.u32 %v5546, 4294901760
    %v7293 = vsub.f32 %v5546, %v7292
    %7294 = vmatmul.mubr.f32.gmra.mrb[0].mxu0 %v7293
    %v7295 = vpop.f32.mrb[0].mxu0
    %v7296 = vadd.f32 %v6742, %v7295
    %v7297 = vpop.f32.mrb[0].mxu0
    %7298 = vmatprep.mubr.f32.mxu0 0.0
    %v7299 = vand.u32 %v5549, 4294901760
    %v7300 = vsub.f32 %v5549, %v7299
    %7301 = vmatmul.mubr.f32.gmra.mrb[0].mxu0 %v7300
    %v7302 = vpop.f32.mrb[0].mxu0
    %v7303 = vadd.f32 %v6748, %v7302
    %v7304 = vpop.f32.mrb[0].mxu0
    %7305 = vmatprep.mubr.f32.mxu0 0.0
    %v7306 = vand.u32 %v5552, 4294901760
    %v7307 = vsub.f32 %v5552, %v7306
    %7308 = vmatmul.mubr.f32.gmra.mrb[0].mxu0 %v7307
    %v7309 = vpop.f32.mrb[0].mxu0
    %v7310 = vadd.f32 %v6754, %v7309
    %v7311 = vpop.f32.mrb[0].mxu0
    %7312 = vmatprep.mubr.f32.mxu0 0.0
    %v7313 = vand.u32 %v5555, 4294901760
    %v7314 = vsub.f32 %v5555, %v7313
    %7315 = vmatmul.mubr.f32.gmra.mrb[0].mxu0 %v7314
    %v7316 = vpop.f32.mrb[0].mxu0
    %v7317 = vadd.f32 %v6760, %v7316
    %v7318 = vpop.f32.mrb[0].mxu0
    %7319 = vmatprep.mubr.f32.mxu0 0.0
    %v7320 = vand.u32 %v5558, 4294901760
    %v7321 = vsub.f32 %v5558, %v7320
    %7322 = vmatmul.mubr.f32.gmra.mrb[0].mxu0 %v7321
    %v7323 = vpop.f32.mrb[0].mxu0
    %v7324 = vadd.f32 %v6766, %v7323
    %v7325 = vpop.f32.mrb[0].mxu0
    %7326 = vmatprep.mubr.f32.mxu0 0.0
    %v7327 = vand.u32 %v5561, 4294901760
    %v7328 = vsub.f32 %v5561, %v7327
    %7329 = vmatmul.mubr.f32.gmra.mrb[0].mxu0 %v7328
    %v7330 = vpop.f32.mrb[0].mxu0
    %v7331 = vadd.f32 %v6772, %v7330
    %v7332 = vpop.f32.mrb[0].mxu0
    %7333 = vmatprep.mubr.f32.mxu0 0.0
    %v7334 = vand.u32 %v5564, 4294901760
    %v7335 = vsub.f32 %v5564, %v7334
    %7336 = vmatmul.mubr.f32.gmra.mrb[0].mxu0 %v7335
    %v7337 = vpop.f32.mrb[0].mxu0
    %v7338 = vadd.f32 %v6778, %v7337
    %v7339 = vpop.f32.mrb[0].mxu0
    %7340 = vmatprep.mubr.f32.mxu0 0.0
    %v7341 = vand.u32 %v5567, 4294901760
    %v7342 = vsub.f32 %v5567, %v7341
    %7343 = vmatmul.mubr.f32.gmra.mrb[0].mxu0 %v7342
    %v7344 = vpop.f32.mrb[0].mxu0
    %v7345 = vadd.f32 %v6784, %v7344
    %v7346 = vpop.f32.mrb[0].mxu0
    %7347 = vmatprep.mubr.f32.mxu0 0.0
    %v7348 = vand.u32 %v5570, 4294901760
    %v7349 = vsub.f32 %v5570, %v7348
    %7350 = vmatmul.mubr.f32.gmra.mrb[0].mxu0 %v7349
    %v7351 = vpop.f32.mrb[0].mxu0
    %v7352 = vadd.f32 %v6790, %v7351
    %v7353 = vpop.f32.mrb[0].mxu0
    %7354 = vmatprep.mubr.f32.mxu0 0.0
    %v7355 = vand.u32 %v5573, 4294901760
    %v7356 = vsub.f32 %v5573, %v7355
    %7357 = vmatmul.mubr.f32.gmra.mrb[0].mxu0 %v7356
    %v7358 = vpop.f32.mrb[0].mxu0
    %v7359 = vadd.f32 %v6796, %v7358
    %v7360 = vpop.f32.mrb[0].mxu0
    %7361 = vmatprep.mubr.f32.mxu0 0.0
    %v7362 = vand.u32 %v5576, 4294901760
    %v7363 = vsub.f32 %v5576, %v7362
    %7364 = vmatmul.mubr.f32.gmra.mrb[0].mxu0 %v7363
    %v7365 = vpop.f32.mrb[0].mxu0
    %v7366 = vadd.f32 %v6802, %v7365
    %v7367 = vpop.f32.mrb[0].mxu0
    %7368 = vmatprep.mubr.f32.mxu0 0.0
    %v7369 = vand.u32 %v5579, 4294901760
    %v7370 = vsub.f32 %v5579, %v7369
    %7371 = vmatmul.mubr.f32.gmra.mrb[0].mxu0 %v7370
    %v7372 = vpop.f32.mrb[0].mxu0
    %v7373 = vadd.f32 %v6808, %v7372
    %v7374 = vpop.f32.mrb[0].mxu0
    %7375 = vmatprep.mubr.f32.mxu0 0.0
    %v7376 = vand.u32 %v5582, 4294901760
    %v7377 = vsub.f32 %v5582, %v7376
    %7378 = vmatmul.mubr.f32.gmra.mrb[0].mxu0 %v7377
    %v7379 = vpop.f32.mrb[0].mxu0
    %v7380 = vadd.f32 %v6814, %v7379
    %v7381 = vpop.f32.mrb[0].mxu0
    %7382 = vmatprep.mubr.f32.mxu0 0.0
    %v7383 = vand.u32 %v5585, 4294901760
    %v7384 = vsub.f32 %v5585, %v7383
    %7385 = vmatmul.mubr.f32.gmra.mrb[0].mxu0 %v7384
    %v7386 = vpop.f32.mrb[0].mxu0
    %v7387 = vadd.f32 %v6820, %v7386
    %v7388 = vpop.f32.mrb[0].mxu0
    %7389 = vmatprep.mubr.f32.mxu0 0.0
    %v7390 = vand.u32 %v5588, 4294901760
    %v7391 = vsub.f32 %v5588, %v7390
    %7392 = vmatmul.mubr.f32.gmra.mrb[0].mxu0 %v7391
    %v7393 = vpop.f32.mrb[0].mxu0
    %v7394 = vadd.f32 %v6826, %v7393
    %v7395 = vpop.f32.mrb[0].mxu0
    %7396 = vmatprep.mubr.f32.mxu0 0.0
    %v7397 = vand.u32 %v5591, 4294901760
    %v7398 = vsub.f32 %v5591, %v7397
    %7399 = vmatmul.mubr.f32.gmra.mrb[0].mxu0 %v7398
    %v7400 = vpop.f32.mrb[0].mxu0
    %v7401 = vadd.f32 %v6832, %v7400
    %v7402 = vpop.f32.mrb[0].mxu0
    %7403 = vmatprep.mubr.f32.mxu0 0.0
    %v7404 = vand.u32 %v5594, 4294901760
    %v7405 = vsub.f32 %v5594, %v7404
    %7406 = vmatmul.mubr.f32.gmra.mrb[0].mxu0 %v7405
    %v7407 = vpop.f32.mrb[0].mxu0
    %v7408 = vadd.f32 %v6838, %v7407
    %v7409 = vpop.f32.mrb[0].mxu0
    %7410 = vmatprep.mubr.f32.mxu0 0.0
    %v7411 = vand.u32 %v5597, 4294901760
    %v7412 = vsub.f32 %v5597, %v7411
    %7413 = vmatmul.mubr.f32.gmra.mrb[0].mxu0 %v7412
    %v7414 = vpop.f32.mrb[0].mxu0
    %v7415 = vadd.f32 %v6844, %v7414
    %v7416 = vpop.f32.mrb[0].mxu0
    %7417 = vmatprep.mubr.f32.mxu0 0.0
    %v7418 = vand.u32 %v5600, 4294901760
    %v7419 = vsub.f32 %v5600, %v7418
    %7420 = vmatmul.mubr.f32.gmra.mrb[0].mxu0 %v7419
    %v7421 = vpop.f32.mrb[0].mxu0
    %v7422 = vadd.f32 %v6850, %v7421
    %v7423 = vpop.f32.mrb[0].mxu0
    %7424 = vmatprep.mubr.f32.mxu0 0.0
    %v7425 = vand.u32 %v5603, 4294901760
    %v7426 = vsub.f32 %v5603, %v7425
    %7427 = vmatmul.mubr.f32.gmra.mrb[0].mxu0 %v7426
    %v7428 = vpop.f32.mrb[0].mxu0
    %v7429 = vadd.f32 %v6856, %v7428
    %v7430 = vpop.f32.mrb[0].mxu0
    %7431 = vmatprep.mubr.f32.mxu0 0.0
    %v7432 = vand.u32 %v5606, 4294901760
    %v7433 = vsub.f32 %v5606, %v7432
    %7434 = vmatmul.mubr.f32.gmra.mrb[0].mxu0 %v7433
    %v7435 = vpop.f32.mrb[0].mxu0
    %v7436 = vadd.f32 %v6862, %v7435
    %v7437 = vpop.f32.mrb[0].mxu0
    %7438 = vmatprep.mubr.f32.mxu0 0.0
    %v7439 = vand.u32 %v5609, 4294901760
    %v7440 = vsub.f32 %v5609, %v7439
    %7441 = vmatmul.mubr.f32.gmra.mrb[0].mxu0 %v7440
    %v7442 = vpop.f32.mrb[0].mxu0
    %v7443 = vadd.f32 %v6868, %v7442
    %v7444 = vpop.f32.mrb[0].mxu0
    %7445 = vmatprep.mubr.f32.mxu0 0.0
    %v7446 = vand.u32 %v5612, 4294901760
    %v7447 = vsub.f32 %v5612, %v7446
    %7448 = vmatmul.mubr.f32.gmra.mrb[0].mxu0 %v7447
    %v7449 = vpop.f32.mrb[0].mxu0
    %v7450 = vadd.f32 %v6874, %v7449
    %v7451 = vpop.f32.mrb[0].mxu0
    %7452 = vmatprep.mubr.f32.mxu0 0.0
    %v7453 = vand.u32 %v5615, 4294901760
    %v7454 = vsub.f32 %v5615, %v7453
    %7455 = vmatmul.mubr.f32.gmra.mrb[0].mxu0 %v7454
    %v7456 = vpop.f32.mrb[0].mxu0
    %v7457 = vadd.f32 %v6880, %v7456
    %v7458 = vpop.f32.mrb[0].mxu0
    %7459 = vmatprep.mubr.f32.mxu0 0.0
    %v7460 = vand.u32 %v5618, 4294901760
    %v7461 = vsub.f32 %v5618, %v7460
    %7462 = vmatmul.mubr.f32.gmra.mrb[0].mxu0 %v7461
    %v7463 = vpop.f32.mrb[0].mxu0
    %v7464 = vadd.f32 %v6886, %v7463
    %v7465 = vpop.f32.mrb[0].mxu0
    %7466 = vmatprep.mubr.f32.mxu0 0.0
    %v7467 = vand.u32 %v5621, 4294901760
    %v7468 = vsub.f32 %v5621, %v7467
    %7469 = vmatmul.mubr.f32.gmra.mrb[0].mxu0 %v7468
    %v7470 = vpop.f32.mrb[0].mxu0
    %v7471 = vadd.f32 %v6892, %v7470
    %v7472 = vpop.f32.mrb[0].mxu0
    %7473 = vmatprep.mubr.f32.mxu0 0.0
    %v7474 = vand.u32 %v5624, 4294901760
    %v7475 = vsub.f32 %v5624, %v7474
    %7476 = vmatmul.mubr.f32.gmra.mrb[0].mxu0 %v7475
    %v7477 = vpop.f32.mrb[0].mxu0
    %v7478 = vadd.f32 %v6898, %v7477
    %v7479 = vpop.f32.mrb[0].mxu0
    %7480 = vmatprep.mubr.f32.mxu0 0.0
    %v7481 = vand.u32 %v5627, 4294901760
    %v7482 = vsub.f32 %v5627, %v7481
    %7483 = vmatmul.mubr.f32.gmra.mrb[0].mxu0 %v7482
    %v7484 = vpop.f32.mrb[0].mxu0
    %v7485 = vadd.f32 %v6904, %v7484
    %v7486 = vpop.f32.mrb[0].mxu0
    %7487 = vmatprep.mubr.f32.mxu0 0.0
    %v7488 = vand.u32 %v5630, 4294901760
    %v7489 = vsub.f32 %v5630, %v7488
    %7490 = vmatmul.mubr.f32.gmra.mrb[0].mxu0 %v7489
    %v7491 = vpop.f32.mrb[0].mxu0
    %v7492 = vadd.f32 %v6910, %v7491
    %v7493 = vpop.f32.mrb[0].mxu0
    %7494 = vmatprep.mubr.f32.mxu0 0.0
    %v7495 = vand.u32 %v5633, 4294901760
    %v7496 = vsub.f32 %v5633, %v7495
    %7497 = vmatmul.mubr.f32.gmra.mrb[0].mxu0 %v7496
    %v7498 = vpop.f32.mrb[0].mxu0
    %v7499 = vadd.f32 %v6916, %v7498
    %v7500 = vpop.f32.mrb[0].mxu0
    %7501 = vmatprep.mubr.f32.mxu0 0.0
    %v7502 = vand.u32 %v5636, 4294901760
    %v7503 = vsub.f32 %v5636, %v7502
    %7504 = vmatmul.mubr.f32.gmra.mrb[0].mxu0 %v7503
    %v7505 = vpop.f32.mrb[0].mxu0
    %v7506 = vadd.f32 %v6922, %v7505
    %v7507 = vpop.f32.mrb[0].mxu0
    %7508 = vmatprep.mubr.f32.mxu0 0.0
    %v7509 = vand.u32 %v5639, 4294901760
    %v7510 = vsub.f32 %v5639, %v7509
    %7511 = vmatmul.mubr.f32.gmra.mrb[0].mxu0 %v7510
    %v7512 = vpop.f32.mrb[0].mxu0
    %v7513 = vadd.f32 %v6928, %v7512
    %v7514 = vpop.f32.mrb[0].mxu0
    %7515 = vmatprep.mubr.f32.mxu0 0.0
    %v7516 = vand.u32 %v5642, 4294901760
    %v7517 = vsub.f32 %v5642, %v7516
    %7518 = vmatmul.mubr.f32.gmra.mrb[0].mxu0 %v7517
    %v7519 = vpop.f32.mrb[0].mxu0
    %v7520 = vadd.f32 %v6934, %v7519
    %v7521 = vpop.f32.mrb[0].mxu0
    %7522 = vmatprep.mubr.f32.mxu0 0.0
    %v7523 = vand.u32 %v5645, 4294901760
    %v7524 = vsub.f32 %v5645, %v7523
    %7525 = vmatmul.mubr.f32.gmra.mrb[0].mxu0 %v7524
    %v7526 = vpop.f32.mrb[0].mxu0
    %v7527 = vadd.f32 %v6940, %v7526
    %v7528 = vpop.f32.mrb[0].mxu0
    %7529 = vmatprep.mubr.f32.mxu0 0.0
    %v7530 = vand.u32 %v5648, 4294901760
    %v7531 = vsub.f32 %v5648, %v7530
    %7532 = vmatmul.mubr.f32.gmra.mrb[0].mxu0 %v7531
    %v7533 = vpop.f32.mrb[0].mxu0
    %v7534 = vadd.f32 %v6946, %v7533
    %v7535 = vpop.f32.mrb[0].mxu0
    %7536 = vmatprep.mubr.f32.mxu0 0.0
    %v7537 = vand.u32 %v5651, 4294901760
    %v7538 = vsub.f32 %v5651, %v7537
    %7539 = vmatmul.mubr.f32.gmra.mrb[0].mxu0 %v7538
    %v7540 = vpop.f32.mrb[0].mxu0
    %v7541 = vadd.f32 %v6952, %v7540
    %v7542 = vpop.f32.mrb[0].mxu0
    %7543 = vmatprep.mubr.f32.mxu0 0.0
    %v7544 = vand.u32 %v5654, 4294901760
    %v7545 = vsub.f32 %v5654, %v7544
    %7546 = vmatmul.mubr.f32.gmra.mrb[0].mxu0 %v7545
    %v7547 = vpop.f32.mrb[0].mxu0
    %v7548 = vadd.f32 %v6958, %v7547
    %v7549 = vpop.f32.mrb[0].mxu0
    %7550 = vmatprep.mubr.f32.mxu0 0.0
    %v7551 = vand.u32 %v5657, 4294901760
    %v7552 = vsub.f32 %v5657, %v7551
    %7553 = vmatmul.mubr.f32.gmra.mrb[0].mxu0 %v7552
    %v7554 = vpop.f32.mrb[0].mxu0
    %v7555 = vadd.f32 %v6964, %v7554
    %v7556 = vpop.f32.mrb[0].mxu0
    %7557 = vmatprep.mubr.f32.mxu0 0.0
    %v7558 = vand.u32 %v5660, 4294901760
    %v7559 = vsub.f32 %v5660, %v7558
    %7560 = vmatmul.mubr.f32.gmra.mrb[0].mxu0 %v7559
    %v7561 = vpop.f32.mrb[0].mxu0
    %v7562 = vadd.f32 %v6970, %v7561
    %v7563 = vpop.f32.mrb[0].mxu0
    %7564 = vmatprep.mubr.f32.mxu0 0.0
    %v7565 = vand.u32 %v5663, 4294901760
    %v7566 = vsub.f32 %v5663, %v7565
    %7567 = vmatmul.mubr.f32.gmra.mrb[0].mxu0 %v7566
    %v7568 = vpop.f32.mrb[0].mxu0
    %v7569 = vadd.f32 %v6976, %v7568
    %v7570 = vpop.f32.mrb[0].mxu0
    %7571 = vmatprep.mubr.f32.mxu0 0.0
    %v7572 = vand.u32 %v5666, 4294901760
    %v7573 = vsub.f32 %v5666, %v7572
    %7574 = vmatmul.mubr.f32.gmra.mrb[0].mxu0 %v7573
    %v7575 = vpop.f32.mrb[0].mxu0
    %v7576 = vadd.f32 %v6982, %v7575
    %v7577 = vpop.f32.mrb[0].mxu0
    %7578 = vmatprep.mubr.f32.mxu0 0.0
    %v7579 = vand.u32 %v5669, 4294901760
    %v7580 = vsub.f32 %v5669, %v7579
    %7581 = vmatmul.mubr.f32.gmra.mrb[0].mxu0 %v7580
    %v7582 = vpop.f32.mrb[0].mxu0
    %v7583 = vadd.f32 %v6988, %v7582
    %v7584 = vpop.f32.mrb[0].mxu0
    %7585 = vmatprep.mubr.f32.mxu0 0.0
    %v7586 = vand.u32 %v5672, 4294901760
    %v7587 = vsub.f32 %v5672, %v7586
    %7588 = vmatmul.mubr.f32.gmra.mrb[0].mxu0 %v7587
    %v7589 = vpop.f32.mrb[0].mxu0
    %v7590 = vadd.f32 %v6994, %v7589
    %v7591 = vpop.f32.mrb[0].mxu0
    %7592 = vmatprep.mubr.f32.mxu0 0.0
    %v7593 = vand.u32 %v5675, 4294901760
    %v7594 = vsub.f32 %v5675, %v7593
    %7595 = vmatmul.mubr.f32.gmra.mrb[0].mxu0 %v7594
    %v7596 = vpop.f32.mrb[0].mxu0
    %v7597 = vadd.f32 %v7000, %v7596
    %v7598 = vpop.f32.mrb[0].mxu0
    %7599 = vmatprep.mubr.f32.mxu0 0.0
    %v7600 = vand.u32 %v5678, 4294901760
    %v7601 = vsub.f32 %v5678, %v7600
    %7602 = vmatmul.mubr.f32.gmra.mrb[0].mxu0 %v7601
    %v7603 = vpop.f32.mrb[0].mxu0
    %v7604 = vadd.f32 %v7006, %v7603
    %v7605 = vpop.f32.mrb[0].mxu0
    %7606 = vmatprep.mubr.f32.mxu0 0.0
    %v7607 = vand.u32 %v5681, 4294901760
    %v7608 = vsub.f32 %v5681, %v7607
    %7609 = vmatmul.mubr.f32.gmra.mrb[0].mxu0 %v7608
    %v7610 = vpop.f32.mrb[0].mxu0
    %v7611 = vadd.f32 %v7012, %v7610
    %v7612 = vpop.f32.mrb[0].mxu0
    %7613 = vmatprep.mubr.f32.mxu0 0.0
    %v7614 = vand.u32 %v5684, 4294901760
    %v7615 = vsub.f32 %v5684, %v7614
    %7616 = vmatmul.mubr.f32.gmra.mrb[0].mxu0 %v7615
    %v7617 = vpop.f32.mrb[0].mxu0
    %v7618 = vadd.f32 %v7018, %v7617
    %v7619 = vpop.f32.mrb[0].mxu0
    %7620 = vmatprep.mubr.f32.mxu0 0.0
    %v7621 = vand.u32 %v5687, 4294901760
    %v7622 = vsub.f32 %v5687, %v7621
    %7623 = vmatmul.mubr.f32.gmra.mrb[0].mxu0 %v7622
    %v7624 = vpop.f32.mrb[0].mxu0
    %v7625 = vadd.f32 %v7024, %v7624
    %v7626 = vpop.f32.mrb[0].mxu0
    %7627 = vmatprep.mubr.f32.mxu0 0.0
    %v7628 = vand.u32 %v5690, 4294901760
    %v7629 = vsub.f32 %v5690, %v7628
    %7630 = vmatmul.mubr.f32.gmra.mrb[0].mxu0 %v7629
    %v7631 = vpop.f32.mrb[0].mxu0
    %v7632 = vadd.f32 %v7030, %v7631
    %v7633 = vpop.f32.mrb[0].mxu0
    %7634 = vmatprep.mubr.f32.mxu0 0.0
    %v7635 = vand.u32 %v5693, 4294901760
    %v7636 = vsub.f32 %v5693, %v7635
    %7637 = vmatmul.mubr.f32.gmra.mrb[0].mxu0 %v7636
    %v7638 = vpop.f32.mrb[0].mxu0
    %v7639 = vadd.f32 %v7036, %v7638
    %v7640 = vpop.f32.mrb[0].mxu0
    %7641 = vmatprep.mubr.f32.mxu0 0.0
    %v7642 = vand.u32 %v5696, 4294901760
    %v7643 = vsub.f32 %v5696, %v7642
    %7644 = vmatmul.mubr.f32.gmra.mrb[0].mxu0 %v7643
    %v7645 = vpop.f32.mrb[0].mxu0
    %v7646 = vadd.f32 %v7042, %v7645
    %v7647 = vpop.f32.mrb[0].mxu0
    %7648 = vmatprep.mubr.f32.mxu0 0.0
    %v7649 = vand.u32 %v5699, 4294901760
    %v7650 = vsub.f32 %v5699, %v7649
    %7651 = vmatmul.mubr.f32.gmra.mrb[0].mxu0 %v7650
    %v7652 = vpop.f32.mrb[0].mxu0
    %v7653 = vadd.f32 %v7048, %v7652
    %v7654 = vpop.f32.mrb[0].mxu0
    %7655 = vmatprep.mubr.f32.mxu0 0.0
    %v7656 = vand.u32 %v5702, 4294901760
    %v7657 = vsub.f32 %v5702, %v7656
    %7658 = vmatmul.mubr.f32.gmra.mrb[0].mxu0 %v7657
    %v7659 = vpop.f32.mrb[0].mxu0
    %v7660 = vadd.f32 %v7054, %v7659
    %v7661 = vpop.f32.mrb[0].mxu0
    %7662 = vmatprep.mubr.f32.mxu0 0.0
    %v7663 = vand.u32 %v5705, 4294901760
    %v7664 = vsub.f32 %v5705, %v7663
    %7665 = vmatmul.mubr.f32.gmra.mrb[0].mxu0 %v7664
    %v7666 = vpop.f32.mrb[0].mxu0
    %v7667 = vadd.f32 %v7060, %v7666
    %v7668 = vpop.f32.mrb[0].mxu0
    %7669 = vmatprep.mubr.f32.mxu0 0.0
    %v7670 = vand.u32 %v5708, 4294901760
    %v7671 = vsub.f32 %v5708, %v7670
    %7672 = vmatmul.mubr.f32.gmra.mrb[0].mxu0 %v7671
    %v7673 = vpop.f32.mrb[0].mxu0
    %v7674 = vadd.f32 %v7066, %v7673
    %v7675 = vpop.f32.mrb[0].mxu0
    %7676 = vmatprep.mubr.f32.mxu0 0.0
    %v7677 = vand.u32 %v5711, 4294901760
    %v7678 = vsub.f32 %v5711, %v7677
    %7679 = vmatmul.mubr.f32.gmra.mrb[0].mxu0 %v7678
    %v7680 = vpop.f32.mrb[0].mxu0
    %v7681 = vadd.f32 %v7072, %v7680
    %v7682 = vpop.f32.mrb[0].mxu0
    %7683 = vmatprep.mubr.f32.mxu0 0.0
    %v7684 = vand.u32 %v5714, 4294901760
    %v7685 = vsub.f32 %v5714, %v7684
    %7686 = vmatmul.mubr.f32.gmra.mrb[0].mxu0 %v7685
    %v7687 = vpop.f32.mrb[0].mxu0
    %v7688 = vadd.f32 %v7078, %v7687
    %v7689 = vpop.f32.mrb[0].mxu0
    %7690 = vmatprep.mubr.f32.mxu0 0.0
    %v7691 = vand.u32 %v5717, 4294901760
    %v7692 = vsub.f32 %v5717, %v7691
    %7693 = vmatmul.mubr.f32.gmra.mrb[0].mxu0 %v7692
    %v7694 = vpop.f32.mrb[0].mxu0
    %v7695 = vadd.f32 %v7084, %v7694
    %v7696 = vpop.f32.mrb[0].mxu0
    %7697 = vmatprep.mubr.f32.mxu0 0.0
    %v7698 = vand.u32 %v5720, 4294901760
    %v7699 = vsub.f32 %v5720, %v7698
    %7700 = vmatmul.mubr.f32.gmra.mrb[0].mxu0 %v7699
    %v7701 = vpop.f32.mrb[0].mxu0
    %v7702 = vadd.f32 %v7090, %v7701
    %v7703 = vpop.f32.mrb[0].mxu0
    %7704 = vmatprep.mubr.f32.mxu0 0.0
    %v7705 = vand.u32 %v5723, 4294901760
    %v7706 = vsub.f32 %v5723, %v7705
    %7707 = vmatmul.mubr.f32.gmra.mrb[0].mxu0 %v7706
    %v7708 = vpop.f32.mrb[0].mxu0
    %v7709 = vadd.f32 %v7096, %v7708
    %v7710 = vpop.f32.mrb[0].mxu0
    %7711 = vmatprep.mubr.f32.mxu0 0.0
    %v7712 = vand.u32 %v5726, 4294901760
    %v7713 = vsub.f32 %v5726, %v7712
    %7714 = vmatmul.mubr.f32.gmra.mrb[0].mxu0 %v7713
    %v7715 = vpop.f32.mrb[0].mxu0
    %v7716 = vadd.f32 %v7102, %v7715
    %v7717 = vpop.f32.mrb[0].mxu0
    %7718 = vmatprep.mubr.f32.mxu0 0.0
    %v7719 = vand.u32 %v5729, 4294901760
    %v7720 = vsub.f32 %v5729, %v7719
    %7721 = vmatmul.mubr.f32.gmra.mrb[0].mxu0 %v7720
    %v7722 = vpop.f32.mrb[0].mxu0
    %v7723 = vadd.f32 %v7108, %v7722
    %v7724 = vpop.f32.mrb[0].mxu0
    %7725 = vmatprep.mubr.f32.mxu0 0.0
    %v7726 = vand.u32 %v5732, 4294901760
    %v7727 = vsub.f32 %v5732, %v7726
    %7728 = vmatmul.mubr.f32.gmra.mrb[0].mxu0 %v7727
    %v7729 = vpop.f32.mrb[0].mxu0
    %v7730 = vadd.f32 %v7114, %v7729
    %v7731 = vpop.f32.mrb[0].mxu0
    %7732 = vmatprep.mubr.f32.mxu0 0.0
    %v7733 = vand.u32 %v5735, 4294901760
    %v7734 = vsub.f32 %v5735, %v7733
    %7735 = vmatmul.mubr.f32.gmra.mrb[0].mxu0 %v7734
    %v7736 = vpop.f32.mrb[0].mxu0
    %v7737 = vadd.f32 %v7120, %v7736
    %v7738 = vpop.f32.mrb[0].mxu0
    %7739 = vmatprep.mubr.f32.mxu0 0.0
    %v7740 = vand.u32 %v5738, 4294901760
    %v7741 = vsub.f32 %v5738, %v7740
    %7742 = vmatmul.mubr.f32.gmra.mrb[0].mxu0 %v7741
    %v7743 = vpop.f32.mrb[0].mxu0
    %v7744 = vadd.f32 %v7126, %v7743
    %v7745 = vpop.f32.mrb[0].mxu0
    %7746 = vmatprep.mubr.f32.mxu0 0.0
    %v7747 = vand.u32 %v5741, 4294901760
    %v7748 = vsub.f32 %v5741, %v7747
    %7749 = vmatmul.mubr.f32.gmra.mrb[0].mxu0 %v7748
    %v7750 = vpop.f32.mrb[0].mxu0
    %v7751 = vadd.f32 %v7132, %v7750
    %v7752 = vpop.f32.mrb[0].mxu0
    %7753 = vmatprep.mubr.f32.mxu0 0.0
    %v7754 = vand.u32 %v5744, 4294901760
    %v7755 = vsub.f32 %v5744, %v7754
    %7756 = vmatmul.mubr.f32.gmra.mrb[0].mxu0 %v7755
    %v7757 = vpop.f32.mrb[0].mxu0
    %v7758 = vadd.f32 %v7138, %v7757
    %v7759 = vpop.f32.mrb[0].mxu0
    %7760 = vmatprep.mubr.f32.mxu0 0.0
    %v7761 = vand.u32 %v5747, 4294901760
    %v7762 = vsub.f32 %v5747, %v7761
    %7763 = vmatmul.mubr.f32.gmra.mrb[0].mxu0 %v7762
    %v7764 = vpop.f32.mrb[0].mxu0
    %v7765 = vadd.f32 %v7144, %v7764
    %v7766 = vpop.f32.mrb[0].mxu0
    %7767 = vmatprep.mubr.f32.mxu0 0.0
    %v7768 = vand.u32 %v5750, 4294901760
    %v7769 = vsub.f32 %v5750, %v7768
    %7770 = vmatmul.mubr.f32.gmra.mrb[0].mxu0 %v7769
    %v7771 = vpop.f32.mrb[0].mxu0
    %v7772 = vadd.f32 %v7150, %v7771
    %v7773 = vpop.f32.mrb[0].mxu0
    %7774 = vmatprep.mubr.f32.mxu0 0.0
    %v7775 = vand.u32 %v5753, 4294901760
    %v7776 = vsub.f32 %v5753, %v7775
    %7777 = vmatmul.mubr.f32.gmra.mrb[0].mxu0 %v7776
    %v7778 = vpop.f32.mrb[0].mxu0
    %v7779 = vadd.f32 %v7156, %v7778
    %v7780 = vpop.f32.mrb[0].mxu0
    %7781 = vmatprep.mubr.f32.mxu0 0.0
    %v7782 = vand.u32 %v5756, 4294901760
    %v7783 = vsub.f32 %v5756, %v7782
    %7784 = vmatmul.mubr.f32.gmra.mrb[0].mxu0 %v7783
    %v7785 = vpop.f32.mrb[0].mxu0
    %v7786 = vadd.f32 %v7162, %v7785
    %v7787 = vpop.f32.mrb[0].mxu0
    %7788 = vmatprep.mubr.f32.mxu0 0.0
    %v7789 = vand.u32 %v5759, 4294901760
    %v7790 = vsub.f32 %v5759, %v7789
    %7791 = vmatmul.mubr.f32.gmra.mrb[0].mxu0 %v7790
    %v7792 = vpop.f32.mrb[0].mxu0
    %v7793 = vadd.f32 %v7168, %v7792
    %v7794 = vpop.f32.mrb[0].mxu0
    %7795 = vmatprep.mubr.f32.mxu0 0.0
    %v7796 = vand.u32 %v5762, 4294901760
    %v7797 = vsub.f32 %v5762, %v7796
    %7798 = vmatmul.mubr.f32.gmra.mrb[0].mxu0 %v7797
    %v7799 = vpop.f32.mrb[0].mxu0
    %v7800 = vadd.f32 %v7174, %v7799
    %v7801 = vpop.f32.mrb[0].mxu0
    %7802 = vmatprep.mubr.f32.mxu0 0.0
    %v7803 = vand.u32 %v5765, 4294901760
    %v7804 = vsub.f32 %v5765, %v7803
    %7805 = vmatmul.mubr.f32.gmra.mrb[0].mxu0 %v7804
    %v7806 = vpop.f32.mrb[0].mxu0
    %v7807 = vadd.f32 %v7180, %v7806
    %v7808 = vpop.f32.mrb[0].mxu0
    %7809 = vmatprep.mubr.f32.mxu0 0.0
    %v7810 = vand.u32 %v5768, 4294901760
    %v7811 = vsub.f32 %v5768, %v7810
    %7812 = vmatmul.mubr.f32.gmra.mrb[0].mxu0 %v7811
    %v7813 = vpop.f32.mrb[0].mxu0
    %v7814 = vadd.f32 %v7186, %v7813
    %v7815 = vpop.f32.mrb[0].mxu0
    %7816 = vmatprep.mubr.f32.mxu0 0.0
    %v7817 = vand.u32 %v5771, 4294901760
    %v7818 = vsub.f32 %v5771, %v7817
    %7819 = vmatmul.mubr.f32.gmra.mrb[0].mxu0 %v7818
    %v7820 = vpop.f32.mrb[0].mxu0
    %v7821 = vadd.f32 %v7192, %v7820
    %v7822 = vpop.f32.mrb[0].mxu0
    %7823 = vdwg.mxu0
    %7824 = vmatprep.subr.mxu0 0.0
    %v7825 = vand.u32 %v104, 4294901760
    %7826 = vmatpush1.msra.mxu0 %v7825
    %7827 = vmatprep.subr.mxu0 0.0
    %v7828 = vand.u32 %v105, 4294901760
    %7829 = vmatpush1.msra.mxu0 %v7828
    %7830 = vmatprep.subr.mxu0 0.0
    %7831 = vmatpush1.msra.mxu0 0.0
    %7832 = vmatprep.subr.mxu0 0.0
    %7833 = vmatpush1.msra.mxu0 0.0
    %7834 = vmatprep.subr.mxu0 0.0
    %7835 = vmatpush1.msra.mxu0 0.0
    %7836 = vmatprep.subr.mxu0 0.0
    %7837 = vmatpush1.msra.mxu0 0.0
    %7838 = vmatprep.subr.mxu0 0.0
    %7839 = vmatpush1.msra.mxu0 0.0
    %7840 = vmatprep.subr.mxu0 0.0
    %7841 = vmatpush1.msra.mxu0 0.0
    %7842 = vmatprep.subr.mxu0 0.0
    %7843 = vmatpush1.msra.mxu0 0.0
    %7844 = vmatprep.subr.mxu0 0.0
    %7845 = vmatpush1.msra.mxu0 0.0
    %7846 = vmatprep.subr.mxu0 0.0
    %7847 = vmatpush1.msra.mxu0 0.0
    %7848 = vmatprep.subr.mxu0 0.0
    %7849 = vmatpush1.msra.mxu0 0.0
    %7850 = vmatprep.subr.mxu0 0.0
    %7851 = vmatpush1.msra.mxu0 0.0
    %7852 = vmatprep.subr.mxu0 0.0
    %7853 = vmatpush1.msra.mxu0 0.0
    %7854 = vmatprep.subr.mxu0 0.0
    %7855 = vmatpush1.msra.mxu0 0.0
    %7856 = vmatprep.subr.mxu0 0.0
    %7857 = vmatpush1.msra.mxu0 0.0
    %7858 = vmatprep.subr.mxu0 0.0
    %7859 = vmatpush1.msra.mxu0 0.0
    %7860 = vmatprep.subr.mxu0 0.0
    %7861 = vmatpush1.msra.mxu0 0.0
    %7862 = vmatprep.subr.mxu0 0.0
    %7863 = vmatpush1.msra.mxu0 0.0
    %7864 = vmatprep.subr.mxu0 0.0
    %7865 = vmatpush1.msra.mxu0 0.0
    %7866 = vmatprep.subr.mxu0 0.0
    %7867 = vmatpush1.msra.mxu0 0.0
    %7868 = vmatprep.subr.mxu0 0.0
    %7869 = vmatpush1.msra.mxu0 0.0
    %7870 = vmatprep.subr.mxu0 0.0
    %7871 = vmatpush1.msra.mxu0 0.0
    %7872 = vmatprep.subr.mxu0 0.0
    %7873 = vmatpush1.msra.mxu0 0.0
    %7874 = vmatprep.subr.mxu0 0.0
    %7875 = vmatpush1.msra.mxu0 0.0
    %7876 = vmatprep.subr.mxu0 0.0
    %7877 = vmatpush1.msra.mxu0 0.0
    %7878 = vmatprep.subr.mxu0 0.0
    %7879 = vmatpush1.msra.mxu0 0.0
    %7880 = vmatprep.subr.mxu0 0.0
    %7881 = vmatpush1.msra.mxu0 0.0
    %7882 = vmatprep.subr.mxu0 0.0
    %7883 = vmatpush1.msra.mxu0 0.0
    %7884 = vmatprep.subr.mxu0 0.0
    %7885 = vmatpush1.msra.mxu0 0.0
    %7886 = vmatprep.subr.mxu0 0.0
    %7887 = vmatpush1.msra.mxu0 0.0
    %7888 = vmatprep.subr.mxu0 0.0
    %7889 = vmatpush1.msra.mxu0 0.0
    %7890 = vmatprep.mubr.f32.mxu0 0.0
    %v7891 = vand.u32 %v5534, 4294901760
    %v7892 = vsub.f32 %v5534, %v7891
    %v7893 = vand.u32 %v7892, 4294901760
    %7894 = vmatmul.mubr.f32.gmra.mrb[0].mxu0 %v7893
    %v7895 = vpop.f32.mrb[0].mxu0
    %v7896 = vadd.f32 %v7268, %v7895
    %v7897 = vpop.f32.mrb[0].mxu0
    %7898 = vmatprep.mubr.f32.mxu0 0.0
    %v7899 = vand.u32 %v5537, 4294901760
    %v7900 = vsub.f32 %v5537, %v7899
    %v7901 = vand.u32 %v7900, 4294901760
    %7902 = vmatmul.mubr.f32.gmra.mrb[0].mxu0 %v7901
    %v7903 = vpop.f32.mrb[0].mxu0
    %v7904 = vadd.f32 %v7275, %v7903
    %v7905 = vpop.f32.mrb[0].mxu0
    %7906 = vmatprep.mubr.f32.mxu0 0.0
    %v7907 = vand.u32 %v5540, 4294901760
    %v7908 = vsub.f32 %v5540, %v7907
    %v7909 = vand.u32 %v7908, 4294901760
    %7910 = vmatmul.mubr.f32.gmra.mrb[0].mxu0 %v7909
    %v7911 = vpop.f32.mrb[0].mxu0
    %v7912 = vadd.f32 %v7282, %v7911
    %v7913 = vpop.f32.mrb[0].mxu0
    %7914 = vmatprep.mubr.f32.mxu0 0.0
    %v7915 = vand.u32 %v5543, 4294901760
    %v7916 = vsub.f32 %v5543, %v7915
    %v7917 = vand.u32 %v7916, 4294901760
    %7918 = vmatmul.mubr.f32.gmra.mrb[0].mxu0 %v7917
    %v7919 = vpop.f32.mrb[0].mxu0
    %v7920 = vadd.f32 %v7289, %v7919
    %v7921 = vpop.f32.mrb[0].mxu0
    %7922 = vmatprep.mubr.f32.mxu0 0.0
    %v7923 = vand.u32 %v5546, 4294901760
    %v7924 = vsub.f32 %v5546, %v7923
    %v7925 = vand.u32 %v7924, 4294901760
    %7926 = vmatmul.mubr.f32.gmra.mrb[0].mxu0 %v7925
    %v7927 = vpop.f32.mrb[0].mxu0
    %v7928 = vadd.f32 %v7296, %v7927
    %v7929 = vpop.f32.mrb[0].mxu0
    %7930 = vmatprep.mubr.f32.mxu0 0.0
    %v7931 = vand.u32 %v5549, 4294901760
    %v7932 = vsub.f32 %v5549, %v7931
    %v7933 = vand.u32 %v7932, 4294901760
    %7934 = vmatmul.mubr.f32.gmra.mrb[0].mxu0 %v7933
    %v7935 = vpop.f32.mrb[0].mxu0
    %v7936 = vadd.f32 %v7303, %v7935
    %v7937 = vpop.f32.mrb[0].mxu0
    %7938 = vmatprep.mubr.f32.mxu0 0.0
    %v7939 = vand.u32 %v5552, 4294901760
    %v7940 = vsub.f32 %v5552, %v7939
    %v7941 = vand.u32 %v7940, 4294901760
    %7942 = vmatmul.mubr.f32.gmra.mrb[0].mxu0 %v7941
    %v7943 = vpop.f32.mrb[0].mxu0
    %v7944 = vadd.f32 %v7310, %v7943
    %v7945 = vpop.f32.mrb[0].mxu0
    %7946 = vmatprep.mubr.f32.mxu0 0.0
    %v7947 = vand.u32 %v5555, 4294901760
    %v7948 = vsub.f32 %v5555, %v7947
    %v7949 = vand.u32 %v7948, 4294901760
    %7950 = vmatmul.mubr.f32.gmra.mrb[0].mxu0 %v7949
    %v7951 = vpop.f32.mrb[0].mxu0
    %v7952 = vadd.f32 %v7317, %v7951
    %v7953 = vpop.f32.mrb[0].mxu0
    %7954 = vmatprep.mubr.f32.mxu0 0.0
    %v7955 = vand.u32 %v5558, 4294901760
    %v7956 = vsub.f32 %v5558, %v7955
    %v7957 = vand.u32 %v7956, 4294901760
    %7958 = vmatmul.mubr.f32.gmra.mrb[0].mxu0 %v7957
    %v7959 = vpop.f32.mrb[0].mxu0
    %v7960 = vadd.f32 %v7324, %v7959
    %v7961 = vpop.f32.mrb[0].mxu0
    %7962 = vmatprep.mubr.f32.mxu0 0.0
    %v7963 = vand.u32 %v5561, 4294901760
    %v7964 = vsub.f32 %v5561, %v7963
    %v7965 = vand.u32 %v7964, 4294901760
    %7966 = vmatmul.mubr.f32.gmra.mrb[0].mxu0 %v7965
    %v7967 = vpop.f32.mrb[0].mxu0
    %v7968 = vadd.f32 %v7331, %v7967
    %v7969 = vpop.f32.mrb[0].mxu0
    %7970 = vmatprep.mubr.f32.mxu0 0.0
    %v7971 = vand.u32 %v5564, 4294901760
    %v7972 = vsub.f32 %v5564, %v7971
    %v7973 = vand.u32 %v7972, 4294901760
    %7974 = vmatmul.mubr.f32.gmra.mrb[0].mxu0 %v7973
    %v7975 = vpop.f32.mrb[0].mxu0
    %v7976 = vadd.f32 %v7338, %v7975
    %v7977 = vpop.f32.mrb[0].mxu0
    %7978 = vmatprep.mubr.f32.mxu0 0.0
    %v7979 = vand.u32 %v5567, 4294901760
    %v7980 = vsub.f32 %v5567, %v7979
    %v7981 = vand.u32 %v7980, 4294901760
    %7982 = vmatmul.mubr.f32.gmra.mrb[0].mxu0 %v7981
    %v7983 = vpop.f32.mrb[0].mxu0
    %v7984 = vadd.f32 %v7345, %v7983
    %v7985 = vpop.f32.mrb[0].mxu0
    %7986 = vmatprep.mubr.f32.mxu0 0.0
    %v7987 = vand.u32 %v5570, 4294901760
    %v7988 = vsub.f32 %v5570, %v7987
    %v7989 = vand.u32 %v7988, 4294901760
    %7990 = vmatmul.mubr.f32.gmra.mrb[0].mxu0 %v7989
    %v7991 = vpop.f32.mrb[0].mxu0
    %v7992 = vadd.f32 %v7352, %v7991
    %v7993 = vpop.f32.mrb[0].mxu0
    %7994 = vmatprep.mubr.f32.mxu0 0.0
    %v7995 = vand.u32 %v5573, 4294901760
    %v7996 = vsub.f32 %v5573, %v7995
    %v7997 = vand.u32 %v7996, 4294901760
    %7998 = vmatmul.mubr.f32.gmra.mrb[0].mxu0 %v7997
    %v7999 = vpop.f32.mrb[0].mxu0
    %v8000 = vadd.f32 %v7359, %v7999
    %v8001 = vpop.f32.mrb[0].mxu0
    %8002 = vmatprep.mubr.f32.mxu0 0.0
    %v8003 = vand.u32 %v5576, 4294901760
    %v8004 = vsub.f32 %v5576, %v8003
    %v8005 = vand.u32 %v8004, 4294901760
    %8006 = vmatmul.mubr.f32.gmra.mrb[0].mxu0 %v8005
    %v8007 = vpop.f32.mrb[0].mxu0
    %v8008 = vadd.f32 %v7366, %v8007
    %v8009 = vpop.f32.mrb[0].mxu0
    %8010 = vmatprep.mubr.f32.mxu0 0.0
    %v8011 = vand.u32 %v5579, 4294901760
    %v8012 = vsub.f32 %v5579, %v8011
    %v8013 = vand.u32 %v8012, 4294901760
    %8014 = vmatmul.mubr.f32.gmra.mrb[0].mxu0 %v8013
    %v8015 = vpop.f32.mrb[0].mxu0
    %v8016 = vadd.f32 %v7373, %v8015
    %v8017 = vpop.f32.mrb[0].mxu0
    %8018 = vmatprep.mubr.f32.mxu0 0.0
    %v8019 = vand.u32 %v5582, 4294901760
    %v8020 = vsub.f32 %v5582, %v8019
    %v8021 = vand.u32 %v8020, 4294901760
    %8022 = vmatmul.mubr.f32.gmra.mrb[0].mxu0 %v8021
    %v8023 = vpop.f32.mrb[0].mxu0
    %v8024 = vadd.f32 %v7380, %v8023
    %v8025 = vpop.f32.mrb[0].mxu0
    %8026 = vmatprep.mubr.f32.mxu0 0.0
    %v8027 = vand.u32 %v5585, 4294901760
    %v8028 = vsub.f32 %v5585, %v8027
    %v8029 = vand.u32 %v8028, 4294901760
    %8030 = vmatmul.mubr.f32.gmra.mrb[0].mxu0 %v8029
    %v8031 = vpop.f32.mrb[0].mxu0
    %v8032 = vadd.f32 %v7387, %v8031
    %v8033 = vpop.f32.mrb[0].mxu0
    %8034 = vmatprep.mubr.f32.mxu0 0.0
    %v8035 = vand.u32 %v5588, 4294901760
    %v8036 = vsub.f32 %v5588, %v8035
    %v8037 = vand.u32 %v8036, 4294901760
    %8038 = vmatmul.mubr.f32.gmra.mrb[0].mxu0 %v8037
    %v8039 = vpop.f32.mrb[0].mxu0
    %v8040 = vadd.f32 %v7394, %v8039
    %v8041 = vpop.f32.mrb[0].mxu0
    %8042 = vmatprep.mubr.f32.mxu0 0.0
    %v8043 = vand.u32 %v5591, 4294901760
    %v8044 = vsub.f32 %v5591, %v8043
    %v8045 = vand.u32 %v8044, 4294901760
    %8046 = vmatmul.mubr.f32.gmra.mrb[0].mxu0 %v8045
    %v8047 = vpop.f32.mrb[0].mxu0
    %v8048 = vadd.f32 %v7401, %v8047
    %v8049 = vpop.f32.mrb[0].mxu0
    %8050 = vmatprep.mubr.f32.mxu0 0.0
    %v8051 = vand.u32 %v5594, 4294901760
    %v8052 = vsub.f32 %v5594, %v8051
    %v8053 = vand.u32 %v8052, 4294901760
    %8054 = vmatmul.mubr.f32.gmra.mrb[0].mxu0 %v8053
    %v8055 = vpop.f32.mrb[0].mxu0
    %v8056 = vadd.f32 %v7408, %v8055
    %v8057 = vpop.f32.mrb[0].mxu0
    %8058 = vmatprep.mubr.f32.mxu0 0.0
    %v8059 = vand.u32 %v5597, 4294901760
    %v8060 = vsub.f32 %v5597, %v8059
    %v8061 = vand.u32 %v8060, 4294901760
    %8062 = vmatmul.mubr.f32.gmra.mrb[0].mxu0 %v8061
    %v8063 = vpop.f32.mrb[0].mxu0
    %v8064 = vadd.f32 %v7415, %v8063
    %v8065 = vpop.f32.mrb[0].mxu0
    %8066 = vmatprep.mubr.f32.mxu0 0.0
    %v8067 = vand.u32 %v5600, 4294901760
    %v8068 = vsub.f32 %v5600, %v8067
    %v8069 = vand.u32 %v8068, 4294901760
    %8070 = vmatmul.mubr.f32.gmra.mrb[0].mxu0 %v8069
    %v8071 = vpop.f32.mrb[0].mxu0
    %v8072 = vadd.f32 %v7422, %v8071
    %v8073 = vpop.f32.mrb[0].mxu0
    %8074 = vmatprep.mubr.f32.mxu0 0.0
    %v8075 = vand.u32 %v5603, 4294901760
    %v8076 = vsub.f32 %v5603, %v8075
    %v8077 = vand.u32 %v8076, 4294901760
    %8078 = vmatmul.mubr.f32.gmra.mrb[0].mxu0 %v8077
    %v8079 = vpop.f32.mrb[0].mxu0
    %v8080 = vadd.f32 %v7429, %v8079
    %v8081 = vpop.f32.mrb[0].mxu0
    %8082 = vmatprep.mubr.f32.mxu0 0.0
    %v8083 = vand.u32 %v5606, 4294901760
    %v8084 = vsub.f32 %v5606, %v8083
    %v8085 = vand.u32 %v8084, 4294901760
    %8086 = vmatmul.mubr.f32.gmra.mrb[0].mxu0 %v8085
    %v8087 = vpop.f32.mrb[0].mxu0
    %v8088 = vadd.f32 %v7436, %v8087
    %v8089 = vpop.f32.mrb[0].mxu0
    %8090 = vmatprep.mubr.f32.mxu0 0.0
    %v8091 = vand.u32 %v5609, 4294901760
    %v8092 = vsub.f32 %v5609, %v8091
    %v8093 = vand.u32 %v8092, 4294901760
    %8094 = vmatmul.mubr.f32.gmra.mrb[0].mxu0 %v8093
    %v8095 = vpop.f32.mrb[0].mxu0
    %v8096 = vadd.f32 %v7443, %v8095
    %v8097 = vpop.f32.mrb[0].mxu0
    %8098 = vmatprep.mubr.f32.mxu0 0.0
    %v8099 = vand.u32 %v5612, 4294901760
    %v8100 = vsub.f32 %v5612, %v8099
    %v8101 = vand.u32 %v8100, 4294901760
    %8102 = vmatmul.mubr.f32.gmra.mrb[0].mxu0 %v8101
    %v8103 = vpop.f32.mrb[0].mxu0
    %v8104 = vadd.f32 %v7450, %v8103
    %v8105 = vpop.f32.mrb[0].mxu0
    %8106 = vmatprep.mubr.f32.mxu0 0.0
    %v8107 = vand.u32 %v5615, 4294901760
    %v8108 = vsub.f32 %v5615, %v8107
    %v8109 = vand.u32 %v8108, 4294901760
    %8110 = vmatmul.mubr.f32.gmra.mrb[0].mxu0 %v8109
    %v8111 = vpop.f32.mrb[0].mxu0
    %v8112 = vadd.f32 %v7457, %v8111
    %v8113 = vpop.f32.mrb[0].mxu0
    %8114 = vmatprep.mubr.f32.mxu0 0.0
    %v8115 = vand.u32 %v5618, 4294901760
    %v8116 = vsub.f32 %v5618, %v8115
    %v8117 = vand.u32 %v8116, 4294901760
    %8118 = vmatmul.mubr.f32.gmra.mrb[0].mxu0 %v8117
    %v8119 = vpop.f32.mrb[0].mxu0
    %v8120 = vadd.f32 %v7464, %v8119
    %v8121 = vpop.f32.mrb[0].mxu0
    %8122 = vmatprep.mubr.f32.mxu0 0.0
    %v8123 = vand.u32 %v5621, 4294901760
    %v8124 = vsub.f32 %v5621, %v8123
    %v8125 = vand.u32 %v8124, 4294901760
    %8126 = vmatmul.mubr.f32.gmra.mrb[0].mxu0 %v8125
    %v8127 = vpop.f32.mrb[0].mxu0
    %v8128 = vadd.f32 %v7471, %v8127
    %v8129 = vpop.f32.mrb[0].mxu0
    %8130 = vmatprep.mubr.f32.mxu0 0.0
    %v8131 = vand.u32 %v5624, 4294901760
    %v8132 = vsub.f32 %v5624, %v8131
    %v8133 = vand.u32 %v8132, 4294901760
    %8134 = vmatmul.mubr.f32.gmra.mrb[0].mxu0 %v8133
    %v8135 = vpop.f32.mrb[0].mxu0
    %v8136 = vadd.f32 %v7478, %v8135
    %v8137 = vpop.f32.mrb[0].mxu0
    %8138 = vmatprep.mubr.f32.mxu0 0.0
    %v8139 = vand.u32 %v5627, 4294901760
    %v8140 = vsub.f32 %v5627, %v8139
    %v8141 = vand.u32 %v8140, 4294901760
    %8142 = vmatmul.mubr.f32.gmra.mrb[0].mxu0 %v8141
    %v8143 = vpop.f32.mrb[0].mxu0
    %v8144 = vadd.f32 %v7485, %v8143
    %v8145 = vpop.f32.mrb[0].mxu0
    %8146 = vmatprep.mubr.f32.mxu0 0.0
    %v8147 = vand.u32 %v5630, 4294901760
    %v8148 = vsub.f32 %v5630, %v8147
    %v8149 = vand.u32 %v8148, 4294901760
    %8150 = vmatmul.mubr.f32.gmra.mrb[0].mxu0 %v8149
    %v8151 = vpop.f32.mrb[0].mxu0
    %v8152 = vadd.f32 %v7492, %v8151
    %v8153 = vpop.f32.mrb[0].mxu0
    %8154 = vmatprep.mubr.f32.mxu0 0.0
    %v8155 = vand.u32 %v5633, 4294901760
    %v8156 = vsub.f32 %v5633, %v8155
    %v8157 = vand.u32 %v8156, 4294901760
    %8158 = vmatmul.mubr.f32.gmra.mrb[0].mxu0 %v8157
    %v8159 = vpop.f32.mrb[0].mxu0
    %v8160 = vadd.f32 %v7499, %v8159
    %v8161 = vpop.f32.mrb[0].mxu0
    %8162 = vmatprep.mubr.f32.mxu0 0.0
    %v8163 = vand.u32 %v5636, 4294901760
    %v8164 = vsub.f32 %v5636, %v8163
    %v8165 = vand.u32 %v8164, 4294901760
    %8166 = vmatmul.mubr.f32.gmra.mrb[0].mxu0 %v8165
    %v8167 = vpop.f32.mrb[0].mxu0
    %v8168 = vadd.f32 %v7506, %v8167
    %v8169 = vpop.f32.mrb[0].mxu0
    %8170 = vmatprep.mubr.f32.mxu0 0.0
    %v8171 = vand.u32 %v5639, 4294901760
    %v8172 = vsub.f32 %v5639, %v8171
    %v8173 = vand.u32 %v8172, 4294901760
    %8174 = vmatmul.mubr.f32.gmra.mrb[0].mxu0 %v8173
    %v8175 = vpop.f32.mrb[0].mxu0
    %v8176 = vadd.f32 %v7513, %v8175
    %v8177 = vpop.f32.mrb[0].mxu0
    %8178 = vmatprep.mubr.f32.mxu0 0.0
    %v8179 = vand.u32 %v5642, 4294901760
    %v8180 = vsub.f32 %v5642, %v8179
    %v8181 = vand.u32 %v8180, 4294901760
    %8182 = vmatmul.mubr.f32.gmra.mrb[0].mxu0 %v8181
    %v8183 = vpop.f32.mrb[0].mxu0
    %v8184 = vadd.f32 %v7520, %v8183
    %v8185 = vpop.f32.mrb[0].mxu0
    %8186 = vmatprep.mubr.f32.mxu0 0.0
    %v8187 = vand.u32 %v5645, 4294901760
    %v8188 = vsub.f32 %v5645, %v8187
    %v8189 = vand.u32 %v8188, 4294901760
    %8190 = vmatmul.mubr.f32.gmra.mrb[0].mxu0 %v8189
    %v8191 = vpop.f32.mrb[0].mxu0
    %v8192 = vadd.f32 %v7527, %v8191
    %v8193 = vpop.f32.mrb[0].mxu0
    %8194 = vmatprep.mubr.f32.mxu0 0.0
    %v8195 = vand.u32 %v5648, 4294901760
    %v8196 = vsub.f32 %v5648, %v8195
    %v8197 = vand.u32 %v8196, 4294901760
    %8198 = vmatmul.mubr.f32.gmra.mrb[0].mxu0 %v8197
    %v8199 = vpop.f32.mrb[0].mxu0
    %v8200 = vadd.f32 %v7534, %v8199
    %v8201 = vpop.f32.mrb[0].mxu0
    %8202 = vmatprep.mubr.f32.mxu0 0.0
    %v8203 = vand.u32 %v5651, 4294901760
    %v8204 = vsub.f32 %v5651, %v8203
    %v8205 = vand.u32 %v8204, 4294901760
    %8206 = vmatmul.mubr.f32.gmra.mrb[0].mxu0 %v8205
    %v8207 = vpop.f32.mrb[0].mxu0
    %v8208 = vadd.f32 %v7541, %v8207
    %v8209 = vpop.f32.mrb[0].mxu0
    %8210 = vmatprep.mubr.f32.mxu0 0.0
    %v8211 = vand.u32 %v5654, 4294901760
    %v8212 = vsub.f32 %v5654, %v8211
    %v8213 = vand.u32 %v8212, 4294901760
    %8214 = vmatmul.mubr.f32.gmra.mrb[0].mxu0 %v8213
    %v8215 = vpop.f32.mrb[0].mxu0
    %v8216 = vadd.f32 %v7548, %v8215
    %v8217 = vpop.f32.mrb[0].mxu0
    %8218 = vmatprep.mubr.f32.mxu0 0.0
    %v8219 = vand.u32 %v5657, 4294901760
    %v8220 = vsub.f32 %v5657, %v8219
    %v8221 = vand.u32 %v8220, 4294901760
    %8222 = vmatmul.mubr.f32.gmra.mrb[0].mxu0 %v8221
    %v8223 = vpop.f32.mrb[0].mxu0
    %v8224 = vadd.f32 %v7555, %v8223
    %v8225 = vpop.f32.mrb[0].mxu0
    %8226 = vmatprep.mubr.f32.mxu0 0.0
    %v8227 = vand.u32 %v5660, 4294901760
    %v8228 = vsub.f32 %v5660, %v8227
    %v8229 = vand.u32 %v8228, 4294901760
    %8230 = vmatmul.mubr.f32.gmra.mrb[0].mxu0 %v8229
    %v8231 = vpop.f32.mrb[0].mxu0
    %v8232 = vadd.f32 %v7562, %v8231
    %v8233 = vpop.f32.mrb[0].mxu0
    %8234 = vmatprep.mubr.f32.mxu0 0.0
    %v8235 = vand.u32 %v5663, 4294901760
    %v8236 = vsub.f32 %v5663, %v8235
    %v8237 = vand.u32 %v8236, 4294901760
    %8238 = vmatmul.mubr.f32.gmra.mrb[0].mxu0 %v8237
    %v8239 = vpop.f32.mrb[0].mxu0
    %v8240 = vadd.f32 %v7569, %v8239
    %v8241 = vpop.f32.mrb[0].mxu0
    %8242 = vmatprep.mubr.f32.mxu0 0.0
    %v8243 = vand.u32 %v5666, 4294901760
    %v8244 = vsub.f32 %v5666, %v8243
    %v8245 = vand.u32 %v8244, 4294901760
    %8246 = vmatmul.mubr.f32.gmra.mrb[0].mxu0 %v8245
    %v8247 = vpop.f32.mrb[0].mxu0
    %v8248 = vadd.f32 %v7576, %v8247
    %v8249 = vpop.f32.mrb[0].mxu0
    %8250 = vmatprep.mubr.f32.mxu0 0.0
    %v8251 = vand.u32 %v5669, 4294901760
    %v8252 = vsub.f32 %v5669, %v8251
    %v8253 = vand.u32 %v8252, 4294901760
    %8254 = vmatmul.mubr.f32.gmra.mrb[0].mxu0 %v8253
    %v8255 = vpop.f32.mrb[0].mxu0
    %v8256 = vadd.f32 %v7583, %v8255
    %v8257 = vpop.f32.mrb[0].mxu0
    %8258 = vmatprep.mubr.f32.mxu0 0.0
    %v8259 = vand.u32 %v5672, 4294901760
    %v8260 = vsub.f32 %v5672, %v8259
    %v8261 = vand.u32 %v8260, 4294901760
    %8262 = vmatmul.mubr.f32.gmra.mrb[0].mxu0 %v8261
    %v8263 = vpop.f32.mrb[0].mxu0
    %v8264 = vadd.f32 %v7590, %v8263
    %v8265 = vpop.f32.mrb[0].mxu0
    %8266 = vmatprep.mubr.f32.mxu0 0.0
    %v8267 = vand.u32 %v5675, 4294901760
    %v8268 = vsub.f32 %v5675, %v8267
    %v8269 = vand.u32 %v8268, 4294901760
    %8270 = vmatmul.mubr.f32.gmra.mrb[0].mxu0 %v8269
    %v8271 = vpop.f32.mrb[0].mxu0
    %v8272 = vadd.f32 %v7597, %v8271
    %v8273 = vpop.f32.mrb[0].mxu0
    %8274 = vmatprep.mubr.f32.mxu0 0.0
    %v8275 = vand.u32 %v5678, 4294901760
    %v8276 = vsub.f32 %v5678, %v8275
    %v8277 = vand.u32 %v8276, 4294901760
    %8278 = vmatmul.mubr.f32.gmra.mrb[0].mxu0 %v8277
    %v8279 = vpop.f32.mrb[0].mxu0
    %v8280 = vadd.f32 %v7604, %v8279
    %v8281 = vpop.f32.mrb[0].mxu0
    %8282 = vmatprep.mubr.f32.mxu0 0.0
    %v8283 = vand.u32 %v5681, 4294901760
    %v8284 = vsub.f32 %v5681, %v8283
    %v8285 = vand.u32 %v8284, 4294901760
    %8286 = vmatmul.mubr.f32.gmra.mrb[0].mxu0 %v8285
    %v8287 = vpop.f32.mrb[0].mxu0
    %v8288 = vadd.f32 %v7611, %v8287
    %v8289 = vpop.f32.mrb[0].mxu0
    %8290 = vmatprep.mubr.f32.mxu0 0.0
    %v8291 = vand.u32 %v5684, 4294901760
    %v8292 = vsub.f32 %v5684, %v8291
    %v8293 = vand.u32 %v8292, 4294901760
    %8294 = vmatmul.mubr.f32.gmra.mrb[0].mxu0 %v8293
    %v8295 = vpop.f32.mrb[0].mxu0
    %v8296 = vadd.f32 %v7618, %v8295
    %v8297 = vpop.f32.mrb[0].mxu0
    %8298 = vmatprep.mubr.f32.mxu0 0.0
    %v8299 = vand.u32 %v5687, 4294901760
    %v8300 = vsub.f32 %v5687, %v8299
    %v8301 = vand.u32 %v8300, 4294901760
    %8302 = vmatmul.mubr.f32.gmra.mrb[0].mxu0 %v8301
    %v8303 = vpop.f32.mrb[0].mxu0
    %v8304 = vadd.f32 %v7625, %v8303
    %v8305 = vpop.f32.mrb[0].mxu0
    %8306 = vmatprep.mubr.f32.mxu0 0.0
    %v8307 = vand.u32 %v5690, 4294901760
    %v8308 = vsub.f32 %v5690, %v8307
    %v8309 = vand.u32 %v8308, 4294901760
    %8310 = vmatmul.mubr.f32.gmra.mrb[0].mxu0 %v8309
    %v8311 = vpop.f32.mrb[0].mxu0
    %v8312 = vadd.f32 %v7632, %v8311
    %v8313 = vpop.f32.mrb[0].mxu0
    %8314 = vmatprep.mubr.f32.mxu0 0.0
    %v8315 = vand.u32 %v5693, 4294901760
    %v8316 = vsub.f32 %v5693, %v8315
    %v8317 = vand.u32 %v8316, 4294901760
    %8318 = vmatmul.mubr.f32.gmra.mrb[0].mxu0 %v8317
    %v8319 = vpop.f32.mrb[0].mxu0
    %v8320 = vadd.f32 %v7639, %v8319
    %v8321 = vpop.f32.mrb[0].mxu0
    %8322 = vmatprep.mubr.f32.mxu0 0.0
    %v8323 = vand.u32 %v5696, 4294901760
    %v8324 = vsub.f32 %v5696, %v8323
    %v8325 = vand.u32 %v8324, 4294901760
    %8326 = vmatmul.mubr.f32.gmra.mrb[0].mxu0 %v8325
    %v8327 = vpop.f32.mrb[0].mxu0
    %v8328 = vadd.f32 %v7646, %v8327
    %v8329 = vpop.f32.mrb[0].mxu0
    %8330 = vmatprep.mubr.f32.mxu0 0.0
    %v8331 = vand.u32 %v5699, 4294901760
    %v8332 = vsub.f32 %v5699, %v8331
    %v8333 = vand.u32 %v8332, 4294901760
    %8334 = vmatmul.mubr.f32.gmra.mrb[0].mxu0 %v8333
    %v8335 = vpop.f32.mrb[0].mxu0
    %v8336 = vadd.f32 %v7653, %v8335
    %v8337 = vpop.f32.mrb[0].mxu0
    %8338 = vmatprep.mubr.f32.mxu0 0.0
    %v8339 = vand.u32 %v5702, 4294901760
    %v8340 = vsub.f32 %v5702, %v8339
    %v8341 = vand.u32 %v8340, 4294901760
    %8342 = vmatmul.mubr.f32.gmra.mrb[0].mxu0 %v8341
    %v8343 = vpop.f32.mrb[0].mxu0
    %v8344 = vadd.f32 %v7660, %v8343
    %v8345 = vpop.f32.mrb[0].mxu0
    %8346 = vmatprep.mubr.f32.mxu0 0.0
    %v8347 = vand.u32 %v5705, 4294901760
    %v8348 = vsub.f32 %v5705, %v8347
    %v8349 = vand.u32 %v8348, 4294901760
    %8350 = vmatmul.mubr.f32.gmra.mrb[0].mxu0 %v8349
    %v8351 = vpop.f32.mrb[0].mxu0
    %v8352 = vadd.f32 %v7667, %v8351
    %v8353 = vpop.f32.mrb[0].mxu0
    %8354 = vmatprep.mubr.f32.mxu0 0.0
    %v8355 = vand.u32 %v5708, 4294901760
    %v8356 = vsub.f32 %v5708, %v8355
    %v8357 = vand.u32 %v8356, 4294901760
    %8358 = vmatmul.mubr.f32.gmra.mrb[0].mxu0 %v8357
    %v8359 = vpop.f32.mrb[0].mxu0
    %v8360 = vadd.f32 %v7674, %v8359
    %v8361 = vpop.f32.mrb[0].mxu0
    %8362 = vmatprep.mubr.f32.mxu0 0.0
    %v8363 = vand.u32 %v5711, 4294901760
    %v8364 = vsub.f32 %v5711, %v8363
    %v8365 = vand.u32 %v8364, 4294901760
    %8366 = vmatmul.mubr.f32.gmra.mrb[0].mxu0 %v8365
    %v8367 = vpop.f32.mrb[0].mxu0
    %v8368 = vadd.f32 %v7681, %v8367
    %v8369 = vpop.f32.mrb[0].mxu0
    %8370 = vmatprep.mubr.f32.mxu0 0.0
    %v8371 = vand.u32 %v5714, 4294901760
    %v8372 = vsub.f32 %v5714, %v8371
    %v8373 = vand.u32 %v8372, 4294901760
    %8374 = vmatmul.mubr.f32.gmra.mrb[0].mxu0 %v8373
    %v8375 = vpop.f32.mrb[0].mxu0
    %v8376 = vadd.f32 %v7688, %v8375
    %v8377 = vpop.f32.mrb[0].mxu0
    %8378 = vmatprep.mubr.f32.mxu0 0.0
    %v8379 = vand.u32 %v5717, 4294901760
    %v8380 = vsub.f32 %v5717, %v8379
    %v8381 = vand.u32 %v8380, 4294901760
    %8382 = vmatmul.mubr.f32.gmra.mrb[0].mxu0 %v8381
    %v8383 = vpop.f32.mrb[0].mxu0
    %v8384 = vadd.f32 %v7695, %v8383
    %v8385 = vpop.f32.mrb[0].mxu0
    %8386 = vmatprep.mubr.f32.mxu0 0.0
    %v8387 = vand.u32 %v5720, 4294901760
    %v8388 = vsub.f32 %v5720, %v8387
    %v8389 = vand.u32 %v8388, 4294901760
    %8390 = vmatmul.mubr.f32.gmra.mrb[0].mxu0 %v8389
    %v8391 = vpop.f32.mrb[0].mxu0
    %v8392 = vadd.f32 %v7702, %v8391
    %v8393 = vpop.f32.mrb[0].mxu0
    %8394 = vmatprep.mubr.f32.mxu0 0.0
    %v8395 = vand.u32 %v5723, 4294901760
    %v8396 = vsub.f32 %v5723, %v8395
    %v8397 = vand.u32 %v8396, 4294901760
    %8398 = vmatmul.mubr.f32.gmra.mrb[0].mxu0 %v8397
    %v8399 = vpop.f32.mrb[0].mxu0
    %v8400 = vadd.f32 %v7709, %v8399
    %v8401 = vpop.f32.mrb[0].mxu0
    %8402 = vmatprep.mubr.f32.mxu0 0.0
    %v8403 = vand.u32 %v5726, 4294901760
    %v8404 = vsub.f32 %v5726, %v8403
    %v8405 = vand.u32 %v8404, 4294901760
    %8406 = vmatmul.mubr.f32.gmra.mrb[0].mxu0 %v8405
    %v8407 = vpop.f32.mrb[0].mxu0
    %v8408 = vadd.f32 %v7716, %v8407
    %v8409 = vpop.f32.mrb[0].mxu0
    %8410 = vmatprep.mubr.f32.mxu0 0.0
    %v8411 = vand.u32 %v5729, 4294901760
    %v8412 = vsub.f32 %v5729, %v8411
    %v8413 = vand.u32 %v8412, 4294901760
    %8414 = vmatmul.mubr.f32.gmra.mrb[0].mxu0 %v8413
    %v8415 = vpop.f32.mrb[0].mxu0
    %v8416 = vadd.f32 %v7723, %v8415
    %v8417 = vpop.f32.mrb[0].mxu0
    %8418 = vmatprep.mubr.f32.mxu0 0.0
    %v8419 = vand.u32 %v5732, 4294901760
    %v8420 = vsub.f32 %v5732, %v8419
    %v8421 = vand.u32 %v8420, 4294901760
    %8422 = vmatmul.mubr.f32.gmra.mrb[0].mxu0 %v8421
    %v8423 = vpop.f32.mrb[0].mxu0
    %v8424 = vadd.f32 %v7730, %v8423
    %v8425 = vpop.f32.mrb[0].mxu0
    %8426 = vmatprep.mubr.f32.mxu0 0.0
    %v8427 = vand.u32 %v5735, 4294901760
    %v8428 = vsub.f32 %v5735, %v8427
    %v8429 = vand.u32 %v8428, 4294901760
    %8430 = vmatmul.mubr.f32.gmra.mrb[0].mxu0 %v8429
    %v8431 = vpop.f32.mrb[0].mxu0
    %v8432 = vadd.f32 %v7737, %v8431
    %v8433 = vpop.f32.mrb[0].mxu0
    %8434 = vmatprep.mubr.f32.mxu0 0.0
    %v8435 = vand.u32 %v5738, 4294901760
    %v8436 = vsub.f32 %v5738, %v8435
    %v8437 = vand.u32 %v8436, 4294901760
    %8438 = vmatmul.mubr.f32.gmra.mrb[0].mxu0 %v8437
    %v8439 = vpop.f32.mrb[0].mxu0
    %v8440 = vadd.f32 %v7744, %v8439
    %v8441 = vpop.f32.mrb[0].mxu0
    %8442 = vmatprep.mubr.f32.mxu0 0.0
    %v8443 = vand.u32 %v5741, 4294901760
    %v8444 = vsub.f32 %v5741, %v8443
    %v8445 = vand.u32 %v8444, 4294901760
    %8446 = vmatmul.mubr.f32.gmra.mrb[0].mxu0 %v8445
    %v8447 = vpop.f32.mrb[0].mxu0
    %v8448 = vadd.f32 %v7751, %v8447
    %v8449 = vpop.f32.mrb[0].mxu0
    %8450 = vmatprep.mubr.f32.mxu0 0.0
    %v8451 = vand.u32 %v5744, 4294901760
    %v8452 = vsub.f32 %v5744, %v8451
    %v8453 = vand.u32 %v8452, 4294901760
    %8454 = vmatmul.mubr.f32.gmra.mrb[0].mxu0 %v8453
    %v8455 = vpop.f32.mrb[0].mxu0
    %v8456 = vadd.f32 %v7758, %v8455
    %v8457 = vpop.f32.mrb[0].mxu0
    %8458 = vmatprep.mubr.f32.mxu0 0.0
    %v8459 = vand.u32 %v5747, 4294901760
    %v8460 = vsub.f32 %v5747, %v8459
    %v8461 = vand.u32 %v8460, 4294901760
    %8462 = vmatmul.mubr.f32.gmra.mrb[0].mxu0 %v8461
    %v8463 = vpop.f32.mrb[0].mxu0
    %v8464 = vadd.f32 %v7765, %v8463
    %v8465 = vpop.f32.mrb[0].mxu0
    %8466 = vmatprep.mubr.f32.mxu0 0.0
    %v8467 = vand.u32 %v5750, 4294901760
    %v8468 = vsub.f32 %v5750, %v8467
    %v8469 = vand.u32 %v8468, 4294901760
    %8470 = vmatmul.mubr.f32.gmra.mrb[0].mxu0 %v8469
    %v8471 = vpop.f32.mrb[0].mxu0
    %v8472 = vadd.f32 %v7772, %v8471
    %v8473 = vpop.f32.mrb[0].mxu0
    %8474 = vmatprep.mubr.f32.mxu0 0.0
    %v8475 = vand.u32 %v5753, 4294901760
    %v8476 = vsub.f32 %v5753, %v8475
    %v8477 = vand.u32 %v8476, 4294901760
    %8478 = vmatmul.mubr.f32.gmra.mrb[0].mxu0 %v8477
    %v8479 = vpop.f32.mrb[0].mxu0
    %v8480 = vadd.f32 %v7779, %v8479
    %v8481 = vpop.f32.mrb[0].mxu0
    %8482 = vmatprep.mubr.f32.mxu0 0.0
    %v8483 = vand.u32 %v5756, 4294901760
    %v8484 = vsub.f32 %v5756, %v8483
    %v8485 = vand.u32 %v8484, 4294901760
    %8486 = vmatmul.mubr.f32.gmra.mrb[0].mxu0 %v8485
    %v8487 = vpop.f32.mrb[0].mxu0
    %v8488 = vadd.f32 %v7786, %v8487
    %v8489 = vpop.f32.mrb[0].mxu0
    %8490 = vmatprep.mubr.f32.mxu0 0.0
    %v8491 = vand.u32 %v5759, 4294901760
    %v8492 = vsub.f32 %v5759, %v8491
    %v8493 = vand.u32 %v8492, 4294901760
    %8494 = vmatmul.mubr.f32.gmra.mrb[0].mxu0 %v8493
    %v8495 = vpop.f32.mrb[0].mxu0
    %v8496 = vadd.f32 %v7793, %v8495
    %v8497 = vpop.f32.mrb[0].mxu0
    %8498 = vmatprep.mubr.f32.mxu0 0.0
    %v8499 = vand.u32 %v5762, 4294901760
    %v8500 = vsub.f32 %v5762, %v8499
    %v8501 = vand.u32 %v8500, 4294901760
    %8502 = vmatmul.mubr.f32.gmra.mrb[0].mxu0 %v8501
    %v8503 = vpop.f32.mrb[0].mxu0
    %v8504 = vadd.f32 %v7800, %v8503
    %v8505 = vpop.f32.mrb[0].mxu0
    %8506 = vmatprep.mubr.f32.mxu0 0.0
    %v8507 = vand.u32 %v5765, 4294901760
    %v8508 = vsub.f32 %v5765, %v8507
    %v8509 = vand.u32 %v8508, 4294901760
    %8510 = vmatmul.mubr.f32.gmra.mrb[0].mxu0 %v8509
    %v8511 = vpop.f32.mrb[0].mxu0
    %v8512 = vadd.f32 %v7807, %v8511
    %v8513 = vpop.f32.mrb[0].mxu0
    %8514 = vmatprep.mubr.f32.mxu0 0.0
    %v8515 = vand.u32 %v5768, 4294901760
    %v8516 = vsub.f32 %v5768, %v8515
    %v8517 = vand.u32 %v8516, 4294901760
    %8518 = vmatmul.mubr.f32.gmra.mrb[0].mxu0 %v8517
    %v8519 = vpop.f32.mrb[0].mxu0
    %v8520 = vadd.f32 %v7814, %v8519
    %v8521 = vpop.f32.mrb[0].mxu0
    %8522 = vmatprep.mubr.f32.mxu0 0.0
    %v8523 = vand.u32 %v5771, 4294901760
    %v8524 = vsub.f32 %v5771, %v8523
    %v8525 = vand.u32 %v8524, 4294901760
    %8526 = vmatmul.mubr.f32.gmra.mrb[0].mxu0 %v8525
    %v8527 = vpop.f32.mrb[0].mxu0
    %v8528 = vadd.f32 %v7821, %v8527
    %v8529 = vpop.f32.mrb[0].mxu0
    %8530 = vdwg.mxu0
    %8531 = vmatprep.subr.mxu0 0.0
    %v8532 = vand.u32 %v104, 4294901760
    %v8533 = vsub.f32 %v104, %v8532
    %v8534 = vand.u32 %v8533, 4294901760
    %8535 = vmatpush1.msra.mxu0 %v8534
    %8536 = vmatprep.subr.mxu0 0.0
    %v8537 = vand.u32 %v105, 4294901760
    %v8538 = vsub.f32 %v105, %v8537
    %v8539 = vand.u32 %v8538, 4294901760
    %8540 = vmatpush1.msra.mxu0 %v8539
    %8541 = vmatprep.subr.mxu0 0.0
    %8542 = vmatpush1.msra.mxu0 0.0
    %8543 = vmatprep.subr.mxu0 0.0
    %8544 = vmatpush1.msra.mxu0 0.0
    %8545 = vmatprep.subr.mxu0 0.0
    %8546 = vmatpush1.msra.mxu0 0.0
    %8547 = vmatprep.subr.mxu0 0.0
    %8548 = vmatpush1.msra.mxu0 0.0
    %8549 = vmatprep.subr.mxu0 0.0
    %8550 = vmatpush1.msra.mxu0 0.0
    %8551 = vmatprep.subr.mxu0 0.0
    %8552 = vmatpush1.msra.mxu0 0.0
    %8553 = vmatprep.subr.mxu0 0.0
    %8554 = vmatpush1.msra.mxu0 0.0
    %8555 = vmatprep.subr.mxu0 0.0
    %8556 = vmatpush1.msra.mxu0 0.0
    %8557 = vmatprep.subr.mxu0 0.0
    %8558 = vmatpush1.msra.mxu0 0.0
    %8559 = vmatprep.subr.mxu0 0.0
    %8560 = vmatpush1.msra.mxu0 0.0
    %8561 = vmatprep.subr.mxu0 0.0
    %8562 = vmatpush1.msra.mxu0 0.0
    %8563 = vmatprep.subr.mxu0 0.0
    %8564 = vmatpush1.msra.mxu0 0.0
    %8565 = vmatprep.subr.mxu0 0.0
    %8566 = vmatpush1.msra.mxu0 0.0
    %8567 = vmatprep.subr.mxu0 0.0
    %8568 = vmatpush1.msra.mxu0 0.0
    %8569 = vmatprep.subr.mxu0 0.0
    %8570 = vmatpush1.msra.mxu0 0.0
    %8571 = vmatprep.subr.mxu0 0.0
    %8572 = vmatpush1.msra.mxu0 0.0
    %8573 = vmatprep.subr.mxu0 0.0
    %8574 = vmatpush1.msra.mxu0 0.0
    %8575 = vmatprep.subr.mxu0 0.0
    %8576 = vmatpush1.msra.mxu0 0.0
    %8577 = vmatprep.subr.mxu0 0.0
    %8578 = vmatpush1.msra.mxu0 0.0
    %8579 = vmatprep.subr.mxu0 0.0
    %8580 = vmatpush1.msra.mxu0 0.0
    %8581 = vmatprep.subr.mxu0 0.0
    %8582 = vmatpush1.msra.mxu0 0.0
    %8583 = vmatprep.subr.mxu0 0.0
    %8584 = vmatpush1.msra.mxu0 0.0
    %8585 = vmatprep.subr.mxu0 0.0
    %8586 = vmatpush1.msra.mxu0 0.0
    %8587 = vmatprep.subr.mxu0 0.0
    %8588 = vmatpush1.msra.mxu0 0.0
    %8589 = vmatprep.subr.mxu0 0.0
    %8590 = vmatpush1.msra.mxu0 0.0
    %8591 = vmatprep.subr.mxu0 0.0
    %8592 = vmatpush1.msra.mxu0 0.0
    %8593 = vmatprep.subr.mxu0 0.0
    %8594 = vmatpush1.msra.mxu0 0.0
    %8595 = vmatprep.subr.mxu0 0.0
    %8596 = vmatpush1.msra.mxu0 0.0
    %8597 = vmatprep.subr.mxu0 0.0
    %8598 = vmatpush1.msra.mxu0 0.0
    %8599 = vmatprep.subr.mxu0 0.0
    %8600 = vmatpush1.msra.mxu0 0.0
    %8601 = vmatprep.mubr.f32.mxu0 0.0
    %v8602 = vand.u32 %v5534, 4294901760
    %8603 = vmatmul.mubr.f32.gmra.mrb[0].mxu0 %v8602
    %v8604 = vpop.f32.mrb[0].mxu0
    %v8605 = vadd.f32 %v7896, %v8604
    %v8606 = vpop.f32.mrb[0].mxu0
    %8607 = vmatprep.mubr.f32.mxu0 0.0
    %v8608 = vand.u32 %v5537, 4294901760
    %8609 = vmatmul.mubr.f32.gmra.mrb[0].mxu0 %v8608
    %v8610 = vpop.f32.mrb[0].mxu0
    %v8611 = vadd.f32 %v7904, %v8610
    %v8612 = vpop.f32.mrb[0].mxu0
    %8613 = vmatprep.mubr.f32.mxu0 0.0
    %v8614 = vand.u32 %v5540, 4294901760
    %8615 = vmatmul.mubr.f32.gmra.mrb[0].mxu0 %v8614
    %v8616 = vpop.f32.mrb[0].mxu0
    %v8617 = vadd.f32 %v7912, %v8616
    %v8618 = vpop.f32.mrb[0].mxu0
    %8619 = vmatprep.mubr.f32.mxu0 0.0
    %v8620 = vand.u32 %v5543, 4294901760
    %8621 = vmatmul.mubr.f32.gmra.mrb[0].mxu0 %v8620
    %v8622 = vpop.f32.mrb[0].mxu0
    %v8623 = vadd.f32 %v7920, %v8622
    %v8624 = vpop.f32.mrb[0].mxu0
    %8625 = vmatprep.mubr.f32.mxu0 0.0
    %v8626 = vand.u32 %v5546, 4294901760
    %8627 = vmatmul.mubr.f32.gmra.mrb[0].mxu0 %v8626
    %v8628 = vpop.f32.mrb[0].mxu0
    %v8629 = vadd.f32 %v7928, %v8628
    %v8630 = vpop.f32.mrb[0].mxu0
    %8631 = vmatprep.mubr.f32.mxu0 0.0
    %v8632 = vand.u32 %v5549, 4294901760
    %8633 = vmatmul.mubr.f32.gmra.mrb[0].mxu0 %v8632
    %v8634 = vpop.f32.mrb[0].mxu0
    %v8635 = vadd.f32 %v7936, %v8634
    %v8636 = vpop.f32.mrb[0].mxu0
    %8637 = vmatprep.mubr.f32.mxu0 0.0
    %v8638 = vand.u32 %v5552, 4294901760
    %8639 = vmatmul.mubr.f32.gmra.mrb[0].mxu0 %v8638
    %v8640 = vpop.f32.mrb[0].mxu0
    %v8641 = vadd.f32 %v7944, %v8640
    %v8642 = vpop.f32.mrb[0].mxu0
    %8643 = vmatprep.mubr.f32.mxu0 0.0
    %v8644 = vand.u32 %v5555, 4294901760
    %8645 = vmatmul.mubr.f32.gmra.mrb[0].mxu0 %v8644
    %v8646 = vpop.f32.mrb[0].mxu0
    %v8647 = vadd.f32 %v7952, %v8646
    %v8648 = vpop.f32.mrb[0].mxu0
    %8649 = vmatprep.mubr.f32.mxu0 0.0
    %v8650 = vand.u32 %v5558, 4294901760
    %8651 = vmatmul.mubr.f32.gmra.mrb[0].mxu0 %v8650
    %v8652 = vpop.f32.mrb[0].mxu0
    %v8653 = vadd.f32 %v7960, %v8652
    %v8654 = vpop.f32.mrb[0].mxu0
    %8655 = vmatprep.mubr.f32.mxu0 0.0
    %v8656 = vand.u32 %v5561, 4294901760
    %8657 = vmatmul.mubr.f32.gmra.mrb[0].mxu0 %v8656
    %v8658 = vpop.f32.mrb[0].mxu0
    %v8659 = vadd.f32 %v7968, %v8658
    %v8660 = vpop.f32.mrb[0].mxu0
    %8661 = vmatprep.mubr.f32.mxu0 0.0
    %v8662 = vand.u32 %v5564, 4294901760
    %8663 = vmatmul.mubr.f32.gmra.mrb[0].mxu0 %v8662
    %v8664 = vpop.f32.mrb[0].mxu0
    %v8665 = vadd.f32 %v7976, %v8664
    %v8666 = vpop.f32.mrb[0].mxu0
    %8667 = vmatprep.mubr.f32.mxu0 0.0
    %v8668 = vand.u32 %v5567, 4294901760
    %8669 = vmatmul.mubr.f32.gmra.mrb[0].mxu0 %v8668
    %v8670 = vpop.f32.mrb[0].mxu0
    %v8671 = vadd.f32 %v7984, %v8670
    %v8672 = vpop.f32.mrb[0].mxu0
    %8673 = vmatprep.mubr.f32.mxu0 0.0
    %v8674 = vand.u32 %v5570, 4294901760
    %8675 = vmatmul.mubr.f32.gmra.mrb[0].mxu0 %v8674
    %v8676 = vpop.f32.mrb[0].mxu0
    %v8677 = vadd.f32 %v7992, %v8676
    %v8678 = vpop.f32.mrb[0].mxu0
    %8679 = vmatprep.mubr.f32.mxu0 0.0
    %v8680 = vand.u32 %v5573, 4294901760
    %8681 = vmatmul.mubr.f32.gmra.mrb[0].mxu0 %v8680
    %v8682 = vpop.f32.mrb[0].mxu0
    %v8683 = vadd.f32 %v8000, %v8682
    %v8684 = vpop.f32.mrb[0].mxu0
    %8685 = vmatprep.mubr.f32.mxu0 0.0
    %v8686 = vand.u32 %v5576, 4294901760
    %8687 = vmatmul.mubr.f32.gmra.mrb[0].mxu0 %v8686
    %v8688 = vpop.f32.mrb[0].mxu0
    %v8689 = vadd.f32 %v8008, %v8688
    %v8690 = vpop.f32.mrb[0].mxu0
    %8691 = vmatprep.mubr.f32.mxu0 0.0
    %v8692 = vand.u32 %v5579, 4294901760
    %8693 = vmatmul.mubr.f32.gmra.mrb[0].mxu0 %v8692
    %v8694 = vpop.f32.mrb[0].mxu0
    %v8695 = vadd.f32 %v8016, %v8694
    %v8696 = vpop.f32.mrb[0].mxu0
    %8697 = vmatprep.mubr.f32.mxu0 0.0
    %v8698 = vand.u32 %v5582, 4294901760
    %8699 = vmatmul.mubr.f32.gmra.mrb[0].mxu0 %v8698
    %v8700 = vpop.f32.mrb[0].mxu0
    %v8701 = vadd.f32 %v8024, %v8700
    %v8702 = vpop.f32.mrb[0].mxu0
    %8703 = vmatprep.mubr.f32.mxu0 0.0
    %v8704 = vand.u32 %v5585, 4294901760
    %8705 = vmatmul.mubr.f32.gmra.mrb[0].mxu0 %v8704
    %v8706 = vpop.f32.mrb[0].mxu0
    %v8707 = vadd.f32 %v8032, %v8706
    %v8708 = vpop.f32.mrb[0].mxu0
    %8709 = vmatprep.mubr.f32.mxu0 0.0
    %v8710 = vand.u32 %v5588, 4294901760
    %8711 = vmatmul.mubr.f32.gmra.mrb[0].mxu0 %v8710
    %v8712 = vpop.f32.mrb[0].mxu0
    %v8713 = vadd.f32 %v8040, %v8712
    %v8714 = vpop.f32.mrb[0].mxu0
    %8715 = vmatprep.mubr.f32.mxu0 0.0
    %v8716 = vand.u32 %v5591, 4294901760
    %8717 = vmatmul.mubr.f32.gmra.mrb[0].mxu0 %v8716
    %v8718 = vpop.f32.mrb[0].mxu0
    %v8719 = vadd.f32 %v8048, %v8718
    %v8720 = vpop.f32.mrb[0].mxu0
    %8721 = vmatprep.mubr.f32.mxu0 0.0
    %v8722 = vand.u32 %v5594, 4294901760
    %8723 = vmatmul.mubr.f32.gmra.mrb[0].mxu0 %v8722
    %v8724 = vpop.f32.mrb[0].mxu0
    %v8725 = vadd.f32 %v8056, %v8724
    %v8726 = vpop.f32.mrb[0].mxu0
    %8727 = vmatprep.mubr.f32.mxu0 0.0
    %v8728 = vand.u32 %v5597, 4294901760
    %8729 = vmatmul.mubr.f32.gmra.mrb[0].mxu0 %v8728
    %v8730 = vpop.f32.mrb[0].mxu0
    %v8731 = vadd.f32 %v8064, %v8730
    %v8732 = vpop.f32.mrb[0].mxu0
    %8733 = vmatprep.mubr.f32.mxu0 0.0
    %v8734 = vand.u32 %v5600, 4294901760
    %8735 = vmatmul.mubr.f32.gmra.mrb[0].mxu0 %v8734
    %v8736 = vpop.f32.mrb[0].mxu0
    %v8737 = vadd.f32 %v8072, %v8736
    %v8738 = vpop.f32.mrb[0].mxu0
    %8739 = vmatprep.mubr.f32.mxu0 0.0
    %v8740 = vand.u32 %v5603, 4294901760
    %8741 = vmatmul.mubr.f32.gmra.mrb[0].mxu0 %v8740
    %v8742 = vpop.f32.mrb[0].mxu0
    %v8743 = vadd.f32 %v8080, %v8742
    %v8744 = vpop.f32.mrb[0].mxu0
    %8745 = vmatprep.mubr.f32.mxu0 0.0
    %v8746 = vand.u32 %v5606, 4294901760
    %8747 = vmatmul.mubr.f32.gmra.mrb[0].mxu0 %v8746
    %v8748 = vpop.f32.mrb[0].mxu0
    %v8749 = vadd.f32 %v8088, %v8748
    %v8750 = vpop.f32.mrb[0].mxu0
    %8751 = vmatprep.mubr.f32.mxu0 0.0
    %v8752 = vand.u32 %v5609, 4294901760
    %8753 = vmatmul.mubr.f32.gmra.mrb[0].mxu0 %v8752
    %v8754 = vpop.f32.mrb[0].mxu0
    %v8755 = vadd.f32 %v8096, %v8754
    %v8756 = vpop.f32.mrb[0].mxu0
    %8757 = vmatprep.mubr.f32.mxu0 0.0
    %v8758 = vand.u32 %v5612, 4294901760
    %8759 = vmatmul.mubr.f32.gmra.mrb[0].mxu0 %v8758
    %v8760 = vpop.f32.mrb[0].mxu0
    %v8761 = vadd.f32 %v8104, %v8760
    %v8762 = vpop.f32.mrb[0].mxu0
    %8763 = vmatprep.mubr.f32.mxu0 0.0
    %v8764 = vand.u32 %v5615, 4294901760
    %8765 = vmatmul.mubr.f32.gmra.mrb[0].mxu0 %v8764
    %v8766 = vpop.f32.mrb[0].mxu0
    %v8767 = vadd.f32 %v8112, %v8766
    %v8768 = vpop.f32.mrb[0].mxu0
    %8769 = vmatprep.mubr.f32.mxu0 0.0
    %v8770 = vand.u32 %v5618, 4294901760
    %8771 = vmatmul.mubr.f32.gmra.mrb[0].mxu0 %v8770
    %v8772 = vpop.f32.mrb[0].mxu0
    %v8773 = vadd.f32 %v8120, %v8772
    %v8774 = vpop.f32.mrb[0].mxu0
    %8775 = vmatprep.mubr.f32.mxu0 0.0
    %v8776 = vand.u32 %v5621, 4294901760
    %8777 = vmatmul.mubr.f32.gmra.mrb[0].mxu0 %v8776
    %v8778 = vpop.f32.mrb[0].mxu0
    %v8779 = vadd.f32 %v8128, %v8778
    %v8780 = vpop.f32.mrb[0].mxu0
    %8781 = vmatprep.mubr.f32.mxu0 0.0
    %v8782 = vand.u32 %v5624, 4294901760
    %8783 = vmatmul.mubr.f32.gmra.mrb[0].mxu0 %v8782
    %v8784 = vpop.f32.mrb[0].mxu0
    %v8785 = vadd.f32 %v8136, %v8784
    %v8786 = vpop.f32.mrb[0].mxu0
    %8787 = vmatprep.mubr.f32.mxu0 0.0
    %v8788 = vand.u32 %v5627, 4294901760
    %8789 = vmatmul.mubr.f32.gmra.mrb[0].mxu0 %v8788
    %v8790 = vpop.f32.mrb[0].mxu0
    %v8791 = vadd.f32 %v8144, %v8790
    %v8792 = vpop.f32.mrb[0].mxu0
    %8793 = vmatprep.mubr.f32.mxu0 0.0
    %v8794 = vand.u32 %v5630, 4294901760
    %8795 = vmatmul.mubr.f32.gmra.mrb[0].mxu0 %v8794
    %v8796 = vpop.f32.mrb[0].mxu0
    %v8797 = vadd.f32 %v8152, %v8796
    %v8798 = vpop.f32.mrb[0].mxu0
    %8799 = vmatprep.mubr.f32.mxu0 0.0
    %v8800 = vand.u32 %v5633, 4294901760
    %8801 = vmatmul.mubr.f32.gmra.mrb[0].mxu0 %v8800
    %v8802 = vpop.f32.mrb[0].mxu0
    %v8803 = vadd.f32 %v8160, %v8802
    %v8804 = vpop.f32.mrb[0].mxu0
    %8805 = vmatprep.mubr.f32.mxu0 0.0
    %v8806 = vand.u32 %v5636, 4294901760
    %8807 = vmatmul.mubr.f32.gmra.mrb[0].mxu0 %v8806
    %v8808 = vpop.f32.mrb[0].mxu0
    %v8809 = vadd.f32 %v8168, %v8808
    %v8810 = vpop.f32.mrb[0].mxu0
    %8811 = vmatprep.mubr.f32.mxu0 0.0
    %v8812 = vand.u32 %v5639, 4294901760
    %8813 = vmatmul.mubr.f32.gmra.mrb[0].mxu0 %v8812
    %v8814 = vpop.f32.mrb[0].mxu0
    %v8815 = vadd.f32 %v8176, %v8814
    %v8816 = vpop.f32.mrb[0].mxu0
    %8817 = vmatprep.mubr.f32.mxu0 0.0
    %v8818 = vand.u32 %v5642, 4294901760
    %8819 = vmatmul.mubr.f32.gmra.mrb[0].mxu0 %v8818
    %v8820 = vpop.f32.mrb[0].mxu0
    %v8821 = vadd.f32 %v8184, %v8820
    %v8822 = vpop.f32.mrb[0].mxu0
    %8823 = vmatprep.mubr.f32.mxu0 0.0
    %v8824 = vand.u32 %v5645, 4294901760
    %8825 = vmatmul.mubr.f32.gmra.mrb[0].mxu0 %v8824
    %v8826 = vpop.f32.mrb[0].mxu0
    %v8827 = vadd.f32 %v8192, %v8826
    %v8828 = vpop.f32.mrb[0].mxu0
    %8829 = vmatprep.mubr.f32.mxu0 0.0
    %v8830 = vand.u32 %v5648, 4294901760
    %8831 = vmatmul.mubr.f32.gmra.mrb[0].mxu0 %v8830
    %v8832 = vpop.f32.mrb[0].mxu0
    %v8833 = vadd.f32 %v8200, %v8832
    %v8834 = vpop.f32.mrb[0].mxu0
    %8835 = vmatprep.mubr.f32.mxu0 0.0
    %v8836 = vand.u32 %v5651, 4294901760
    %8837 = vmatmul.mubr.f32.gmra.mrb[0].mxu0 %v8836
    %v8838 = vpop.f32.mrb[0].mxu0
    %v8839 = vadd.f32 %v8208, %v8838
    %v8840 = vpop.f32.mrb[0].mxu0
    %8841 = vmatprep.mubr.f32.mxu0 0.0
    %v8842 = vand.u32 %v5654, 4294901760
    %8843 = vmatmul.mubr.f32.gmra.mrb[0].mxu0 %v8842
    %v8844 = vpop.f32.mrb[0].mxu0
    %v8845 = vadd.f32 %v8216, %v8844
    %v8846 = vpop.f32.mrb[0].mxu0
    %8847 = vmatprep.mubr.f32.mxu0 0.0
    %v8848 = vand.u32 %v5657, 4294901760
    %8849 = vmatmul.mubr.f32.gmra.mrb[0].mxu0 %v8848
    %v8850 = vpop.f32.mrb[0].mxu0
    %v8851 = vadd.f32 %v8224, %v8850
    %v8852 = vpop.f32.mrb[0].mxu0
    %8853 = vmatprep.mubr.f32.mxu0 0.0
    %v8854 = vand.u32 %v5660, 4294901760
    %8855 = vmatmul.mubr.f32.gmra.mrb[0].mxu0 %v8854
    %v8856 = vpop.f32.mrb[0].mxu0
    %v8857 = vadd.f32 %v8232, %v8856
    %v8858 = vpop.f32.mrb[0].mxu0
    %8859 = vmatprep.mubr.f32.mxu0 0.0
    %v8860 = vand.u32 %v5663, 4294901760
    %8861 = vmatmul.mubr.f32.gmra.mrb[0].mxu0 %v8860
    %v8862 = vpop.f32.mrb[0].mxu0
    %v8863 = vadd.f32 %v8240, %v8862
    %v8864 = vpop.f32.mrb[0].mxu0
    %8865 = vmatprep.mubr.f32.mxu0 0.0
    %v8866 = vand.u32 %v5666, 4294901760
    %8867 = vmatmul.mubr.f32.gmra.mrb[0].mxu0 %v8866
    %v8868 = vpop.f32.mrb[0].mxu0
    %v8869 = vadd.f32 %v8248, %v8868
    %v8870 = vpop.f32.mrb[0].mxu0
    %8871 = vmatprep.mubr.f32.mxu0 0.0
    %v8872 = vand.u32 %v5669, 4294901760
    %8873 = vmatmul.mubr.f32.gmra.mrb[0].mxu0 %v8872
    %v8874 = vpop.f32.mrb[0].mxu0
    %v8875 = vadd.f32 %v8256, %v8874
    %v8876 = vpop.f32.mrb[0].mxu0
    %8877 = vmatprep.mubr.f32.mxu0 0.0
    %v8878 = vand.u32 %v5672, 4294901760
    %8879 = vmatmul.mubr.f32.gmra.mrb[0].mxu0 %v8878
    %v8880 = vpop.f32.mrb[0].mxu0
    %v8881 = vadd.f32 %v8264, %v8880
    %v8882 = vpop.f32.mrb[0].mxu0
    %8883 = vmatprep.mubr.f32.mxu0 0.0
    %v8884 = vand.u32 %v5675, 4294901760
    %8885 = vmatmul.mubr.f32.gmra.mrb[0].mxu0 %v8884
    %v8886 = vpop.f32.mrb[0].mxu0
    %v8887 = vadd.f32 %v8272, %v8886
    %v8888 = vpop.f32.mrb[0].mxu0
    %8889 = vmatprep.mubr.f32.mxu0 0.0
    %v8890 = vand.u32 %v5678, 4294901760
    %8891 = vmatmul.mubr.f32.gmra.mrb[0].mxu0 %v8890
    %v8892 = vpop.f32.mrb[0].mxu0
    %v8893 = vadd.f32 %v8280, %v8892
    %v8894 = vpop.f32.mrb[0].mxu0
    %8895 = vmatprep.mubr.f32.mxu0 0.0
    %v8896 = vand.u32 %v5681, 4294901760
    %8897 = vmatmul.mubr.f32.gmra.mrb[0].mxu0 %v8896
    %v8898 = vpop.f32.mrb[0].mxu0
    %v8899 = vadd.f32 %v8288, %v8898
    %v8900 = vpop.f32.mrb[0].mxu0
    %8901 = vmatprep.mubr.f32.mxu0 0.0
    %v8902 = vand.u32 %v5684, 4294901760
    %8903 = vmatmul.mubr.f32.gmra.mrb[0].mxu0 %v8902
    %v8904 = vpop.f32.mrb[0].mxu0
    %v8905 = vadd.f32 %v8296, %v8904
    %v8906 = vpop.f32.mrb[0].mxu0
    %8907 = vmatprep.mubr.f32.mxu0 0.0
    %v8908 = vand.u32 %v5687, 4294901760
    %8909 = vmatmul.mubr.f32.gmra.mrb[0].mxu0 %v8908
    %v8910 = vpop.f32.mrb[0].mxu0
    %v8911 = vadd.f32 %v8304, %v8910
    %v8912 = vpop.f32.mrb[0].mxu0
    %8913 = vmatprep.mubr.f32.mxu0 0.0
    %v8914 = vand.u32 %v5690, 4294901760
    %8915 = vmatmul.mubr.f32.gmra.mrb[0].mxu0 %v8914
    %v8916 = vpop.f32.mrb[0].mxu0
    %v8917 = vadd.f32 %v8312, %v8916
    %v8918 = vpop.f32.mrb[0].mxu0
    %8919 = vmatprep.mubr.f32.mxu0 0.0
    %v8920 = vand.u32 %v5693, 4294901760
    %8921 = vmatmul.mubr.f32.gmra.mrb[0].mxu0 %v8920
    %v8922 = vpop.f32.mrb[0].mxu0
    %v8923 = vadd.f32 %v8320, %v8922
    %v8924 = vpop.f32.mrb[0].mxu0
    %8925 = vmatprep.mubr.f32.mxu0 0.0
    %v8926 = vand.u32 %v5696, 4294901760
    %8927 = vmatmul.mubr.f32.gmra.mrb[0].mxu0 %v8926
    %v8928 = vpop.f32.mrb[0].mxu0
    %v8929 = vadd.f32 %v8328, %v8928
    %v8930 = vpop.f32.mrb[0].mxu0
    %8931 = vmatprep.mubr.f32.mxu0 0.0
    %v8932 = vand.u32 %v5699, 4294901760
    %8933 = vmatmul.mubr.f32.gmra.mrb[0].mxu0 %v8932
    %v8934 = vpop.f32.mrb[0].mxu0
    %v8935 = vadd.f32 %v8336, %v8934
    %v8936 = vpop.f32.mrb[0].mxu0
    %8937 = vmatprep.mubr.f32.mxu0 0.0
    %v8938 = vand.u32 %v5702, 4294901760
    %8939 = vmatmul.mubr.f32.gmra.mrb[0].mxu0 %v8938
    %v8940 = vpop.f32.mrb[0].mxu0
    %v8941 = vadd.f32 %v8344, %v8940
    %v8942 = vpop.f32.mrb[0].mxu0
    %8943 = vmatprep.mubr.f32.mxu0 0.0
    %v8944 = vand.u32 %v5705, 4294901760
    %8945 = vmatmul.mubr.f32.gmra.mrb[0].mxu0 %v8944
    %v8946 = vpop.f32.mrb[0].mxu0
    %v8947 = vadd.f32 %v8352, %v8946
    %v8948 = vpop.f32.mrb[0].mxu0
    %8949 = vmatprep.mubr.f32.mxu0 0.0
    %v8950 = vand.u32 %v5708, 4294901760
    %8951 = vmatmul.mubr.f32.gmra.mrb[0].mxu0 %v8950
    %v8952 = vpop.f32.mrb[0].mxu0
    %v8953 = vadd.f32 %v8360, %v8952
    %v8954 = vpop.f32.mrb[0].mxu0
    %8955 = vmatprep.mubr.f32.mxu0 0.0
    %v8956 = vand.u32 %v5711, 4294901760
    %8957 = vmatmul.mubr.f32.gmra.mrb[0].mxu0 %v8956
    %v8958 = vpop.f32.mrb[0].mxu0
    %v8959 = vadd.f32 %v8368, %v8958
    %v8960 = vpop.f32.mrb[0].mxu0
    %8961 = vmatprep.mubr.f32.mxu0 0.0
    %v8962 = vand.u32 %v5714, 4294901760
    %8963 = vmatmul.mubr.f32.gmra.mrb[0].mxu0 %v8962
    %v8964 = vpop.f32.mrb[0].mxu0
    %v8965 = vadd.f32 %v8376, %v8964
    %v8966 = vpop.f32.mrb[0].mxu0
    %8967 = vmatprep.mubr.f32.mxu0 0.0
    %v8968 = vand.u32 %v5717, 4294901760
    %8969 = vmatmul.mubr.f32.gmra.mrb[0].mxu0 %v8968
    %v8970 = vpop.f32.mrb[0].mxu0
    %v8971 = vadd.f32 %v8384, %v8970
    %v8972 = vpop.f32.mrb[0].mxu0
    %8973 = vmatprep.mubr.f32.mxu0 0.0
    %v8974 = vand.u32 %v5720, 4294901760
    %8975 = vmatmul.mubr.f32.gmra.mrb[0].mxu0 %v8974
    %v8976 = vpop.f32.mrb[0].mxu0
    %v8977 = vadd.f32 %v8392, %v8976
    %v8978 = vpop.f32.mrb[0].mxu0
    %8979 = vmatprep.mubr.f32.mxu0 0.0
    %v8980 = vand.u32 %v5723, 4294901760
    %8981 = vmatmul.mubr.f32.gmra.mrb[0].mxu0 %v8980
    %v8982 = vpop.f32.mrb[0].mxu0
    %v8983 = vadd.f32 %v8400, %v8982
    %v8984 = vpop.f32.mrb[0].mxu0
    %8985 = vmatprep.mubr.f32.mxu0 0.0
    %v8986 = vand.u32 %v5726, 4294901760
    %8987 = vmatmul.mubr.f32.gmra.mrb[0].mxu0 %v8986
    %v8988 = vpop.f32.mrb[0].mxu0
    %v8989 = vadd.f32 %v8408, %v8988
    %v8990 = vpop.f32.mrb[0].mxu0
    %8991 = vmatprep.mubr.f32.mxu0 0.0
    %v8992 = vand.u32 %v5729, 4294901760
    %8993 = vmatmul.mubr.f32.gmra.mrb[0].mxu0 %v8992
    %v8994 = vpop.f32.mrb[0].mxu0
    %v8995 = vadd.f32 %v8416, %v8994
    %v8996 = vpop.f32.mrb[0].mxu0
    %8997 = vmatprep.mubr.f32.mxu0 0.0
    %v8998 = vand.u32 %v5732, 4294901760
    %8999 = vmatmul.mubr.f32.gmra.mrb[0].mxu0 %v8998
    %v9000 = vpop.f32.mrb[0].mxu0
    %v9001 = vadd.f32 %v8424, %v9000
    %v9002 = vpop.f32.mrb[0].mxu0
    %9003 = vmatprep.mubr.f32.mxu0 0.0
    %v9004 = vand.u32 %v5735, 4294901760
    %9005 = vmatmul.mubr.f32.gmra.mrb[0].mxu0 %v9004
    %v9006 = vpop.f32.mrb[0].mxu0
    %v9007 = vadd.f32 %v8432, %v9006
    %v9008 = vpop.f32.mrb[0].mxu0
    %9009 = vmatprep.mubr.f32.mxu0 0.0
    %v9010 = vand.u32 %v5738, 4294901760
    %9011 = vmatmul.mubr.f32.gmra.mrb[0].mxu0 %v9010
    %v9012 = vpop.f32.mrb[0].mxu0
    %v9013 = vadd.f32 %v8440, %v9012
    %v9014 = vpop.f32.mrb[0].mxu0
    %9015 = vmatprep.mubr.f32.mxu0 0.0
    %v9016 = vand.u32 %v5741, 4294901760
    %9017 = vmatmul.mubr.f32.gmra.mrb[0].mxu0 %v9016
    %v9018 = vpop.f32.mrb[0].mxu0
    %v9019 = vadd.f32 %v8448, %v9018
    %v9020 = vpop.f32.mrb[0].mxu0
    %9021 = vmatprep.mubr.f32.mxu0 0.0
    %v9022 = vand.u32 %v5744, 4294901760
    %9023 = vmatmul.mubr.f32.gmra.mrb[0].mxu0 %v9022
    %v9024 = vpop.f32.mrb[0].mxu0
    %v9025 = vadd.f32 %v8456, %v9024
    %v9026 = vpop.f32.mrb[0].mxu0
    %9027 = vmatprep.mubr.f32.mxu0 0.0
    %v9028 = vand.u32 %v5747, 4294901760
    %9029 = vmatmul.mubr.f32.gmra.mrb[0].mxu0 %v9028
    %v9030 = vpop.f32.mrb[0].mxu0
    %v9031 = vadd.f32 %v8464, %v9030
    %v9032 = vpop.f32.mrb[0].mxu0
    %9033 = vmatprep.mubr.f32.mxu0 0.0
    %v9034 = vand.u32 %v5750, 4294901760
    %9035 = vmatmul.mubr.f32.gmra.mrb[0].mxu0 %v9034
    %v9036 = vpop.f32.mrb[0].mxu0
    %v9037 = vadd.f32 %v8472, %v9036
    %v9038 = vpop.f32.mrb[0].mxu0
    %9039 = vmatprep.mubr.f32.mxu0 0.0
    %v9040 = vand.u32 %v5753, 4294901760
    %9041 = vmatmul.mubr.f32.gmra.mrb[0].mxu0 %v9040
    %v9042 = vpop.f32.mrb[0].mxu0
    %v9043 = vadd.f32 %v8480, %v9042
    %v9044 = vpop.f32.mrb[0].mxu0
    %9045 = vmatprep.mubr.f32.mxu0 0.0
    %v9046 = vand.u32 %v5756, 4294901760
    %9047 = vmatmul.mubr.f32.gmra.mrb[0].mxu0 %v9046
    %v9048 = vpop.f32.mrb[0].mxu0
    %v9049 = vadd.f32 %v8488, %v9048
    %v9050 = vpop.f32.mrb[0].mxu0
    %9051 = vmatprep.mubr.f32.mxu0 0.0
    %v9052 = vand.u32 %v5759, 4294901760
    %9053 = vmatmul.mubr.f32.gmra.mrb[0].mxu0 %v9052
    %v9054 = vpop.f32.mrb[0].mxu0
    %v9055 = vadd.f32 %v8496, %v9054
    %v9056 = vpop.f32.mrb[0].mxu0
    %9057 = vmatprep.mubr.f32.mxu0 0.0
    %v9058 = vand.u32 %v5762, 4294901760
    %9059 = vmatmul.mubr.f32.gmra.mrb[0].mxu0 %v9058
    %v9060 = vpop.f32.mrb[0].mxu0
    %v9061 = vadd.f32 %v8504, %v9060
    %v9062 = vpop.f32.mrb[0].mxu0
    %9063 = vmatprep.mubr.f32.mxu0 0.0
    %v9064 = vand.u32 %v5765, 4294901760
    %9065 = vmatmul.mubr.f32.gmra.mrb[0].mxu0 %v9064
    %v9066 = vpop.f32.mrb[0].mxu0
    %v9067 = vadd.f32 %v8512, %v9066
    %v9068 = vpop.f32.mrb[0].mxu0
    %9069 = vmatprep.mubr.f32.mxu0 0.0
    %v9070 = vand.u32 %v5768, 4294901760
    %9071 = vmatmul.mubr.f32.gmra.mrb[0].mxu0 %v9070
    %v9072 = vpop.f32.mrb[0].mxu0
    %v9073 = vadd.f32 %v8520, %v9072
    %v9074 = vpop.f32.mrb[0].mxu0
    %9075 = vmatprep.mubr.f32.mxu0 0.0
    %v9076 = vand.u32 %v5771, 4294901760
    %9077 = vmatmul.mubr.f32.gmra.mrb[0].mxu0 %v9076
    %v9078 = vpop.f32.mrb[0].mxu0
    %v9079 = vadd.f32 %v8528, %v9078
    %v9080 = vpop.f32.mrb[0].mxu0
    %9081 = vdwg.mxu0
    %9082 = vmatprep.subr.mxu0 0.0
    %v9083 = vand.u32 %v104, 4294901760
    %9084 = vmatpush1.msra.mxu0 %v9083
    %9085 = vmatprep.subr.mxu0 0.0
    %v9086 = vand.u32 %v105, 4294901760
    %9087 = vmatpush1.msra.mxu0 %v9086
    %9088 = vmatprep.subr.mxu0 0.0
    %9089 = vmatpush1.msra.mxu0 0.0
    %9090 = vmatprep.subr.mxu0 0.0
    %9091 = vmatpush1.msra.mxu0 0.0
    %9092 = vmatprep.subr.mxu0 0.0
    %9093 = vmatpush1.msra.mxu0 0.0
    %9094 = vmatprep.subr.mxu0 0.0
    %9095 = vmatpush1.msra.mxu0 0.0
    %9096 = vmatprep.subr.mxu0 0.0
    %9097 = vmatpush1.msra.mxu0 0.0
    %9098 = vmatprep.subr.mxu0 0.0
    %9099 = vmatpush1.msra.mxu0 0.0
    %9100 = vmatprep.subr.mxu0 0.0
    %9101 = vmatpush1.msra.mxu0 0.0
    %9102 = vmatprep.subr.mxu0 0.0
    %9103 = vmatpush1.msra.mxu0 0.0
    %9104 = vmatprep.subr.mxu0 0.0
    %9105 = vmatpush1.msra.mxu0 0.0
    %9106 = vmatprep.subr.mxu0 0.0
    %9107 = vmatpush1.msra.mxu0 0.0
    %9108 = vmatprep.subr.mxu0 0.0
    %9109 = vmatpush1.msra.mxu0 0.0
    %9110 = vmatprep.subr.mxu0 0.0
    %9111 = vmatpush1.msra.mxu0 0.0
    %9112 = vmatprep.subr.mxu0 0.0
    %9113 = vmatpush1.msra.mxu0 0.0
    %9114 = vmatprep.subr.mxu0 0.0
    %9115 = vmatpush1.msra.mxu0 0.0
    %9116 = vmatprep.subr.mxu0 0.0
    %9117 = vmatpush1.msra.mxu0 0.0
    %9118 = vmatprep.subr.mxu0 0.0
    %9119 = vmatpush1.msra.mxu0 0.0
    %9120 = vmatprep.subr.mxu0 0.0
    %9121 = vmatpush1.msra.mxu0 0.0
    %9122 = vmatprep.subr.mxu0 0.0
    %9123 = vmatpush1.msra.mxu0 0.0
    %9124 = vmatprep.subr.mxu0 0.0
    %9125 = vmatpush1.msra.mxu0 0.0
    %9126 = vmatprep.subr.mxu0 0.0
    %9127 = vmatpush1.msra.mxu0 0.0
    %9128 = vmatprep.subr.mxu0 0.0
    %9129 = vmatpush1.msra.mxu0 0.0
    %9130 = vmatprep.subr.mxu0 0.0
    %9131 = vmatpush1.msra.mxu0 0.0
    %9132 = vmatprep.subr.mxu0 0.0
    %9133 = vmatpush1.msra.mxu0 0.0
    %9134 = vmatprep.subr.mxu0 0.0
    %9135 = vmatpush1.msra.mxu0 0.0
    %9136 = vmatprep.subr.mxu0 0.0
    %9137 = vmatpush1.msra.mxu0 0.0
    %9138 = vmatprep.subr.mxu0 0.0
    %9139 = vmatpush1.msra.mxu0 0.0
    %9140 = vmatprep.subr.mxu0 0.0
    %9141 = vmatpush1.msra.mxu0 0.0
    %9142 = vmatprep.subr.mxu0 0.0
    %9143 = vmatpush1.msra.mxu0 0.0
    %9144 = vmatprep.subr.mxu0 0.0
    %9145 = vmatpush1.msra.mxu0 0.0
    %9146 = vmatprep.subr.mxu0 0.0
    %9147 = vmatpush1.msra.mxu0 0.0
    %9148 = vmatprep.mubr.f32.mxu0 0.0
    %v9149 = vand.u32 %v5534, 4294901760
    %9150 = vmatmul.mubr.f32.gmra.mrb[0].mxu0 %v9149
    %v9151 = vpop.f32.mrb[0].mxu0
    %v9152 = vadd.f32 %v8605, %v9151
    %v9153 = vpop.f32.mrb[0].mxu0
    %9154 = vmatprep.mubr.f32.mxu0 0.0
    %v9155 = vand.u32 %v5537, 4294901760
    %9156 = vmatmul.mubr.f32.gmra.mrb[0].mxu0 %v9155
    %v9157 = vpop.f32.mrb[0].mxu0
    %v9158 = vadd.f32 %v8611, %v9157
    %v9159 = vpop.f32.mrb[0].mxu0
    %9160 = vmatprep.mubr.f32.mxu0 0.0
    %v9161 = vand.u32 %v5540, 4294901760
    %9162 = vmatmul.mubr.f32.gmra.mrb[0].mxu0 %v9161
    %v9163 = vpop.f32.mrb[0].mxu0
    %v9164 = vadd.f32 %v8617, %v9163
    %v9165 = vpop.f32.mrb[0].mxu0
    %9166 = vmatprep.mubr.f32.mxu0 0.0
    %v9167 = vand.u32 %v5543, 4294901760
    %9168 = vmatmul.mubr.f32.gmra.mrb[0].mxu0 %v9167
    %v9169 = vpop.f32.mrb[0].mxu0
    %v9170 = vadd.f32 %v8623, %v9169
    %v9171 = vpop.f32.mrb[0].mxu0
    %9172 = vmatprep.mubr.f32.mxu0 0.0
    %v9173 = vand.u32 %v5546, 4294901760
    %9174 = vmatmul.mubr.f32.gmra.mrb[0].mxu0 %v9173
    %v9175 = vpop.f32.mrb[0].mxu0
    %v9176 = vadd.f32 %v8629, %v9175
    %v9177 = vpop.f32.mrb[0].mxu0
    %9178 = vmatprep.mubr.f32.mxu0 0.0
    %v9179 = vand.u32 %v5549, 4294901760
    %9180 = vmatmul.mubr.f32.gmra.mrb[0].mxu0 %v9179
    %v9181 = vpop.f32.mrb[0].mxu0
    %v9182 = vadd.f32 %v8635, %v9181
    %v9183 = vpop.f32.mrb[0].mxu0
    %9184 = vmatprep.mubr.f32.mxu0 0.0
    %v9185 = vand.u32 %v5552, 4294901760
    %9186 = vmatmul.mubr.f32.gmra.mrb[0].mxu0 %v9185
    %v9187 = vpop.f32.mrb[0].mxu0
    %v9188 = vadd.f32 %v8641, %v9187
    %v9189 = vpop.f32.mrb[0].mxu0
    %9190 = vmatprep.mubr.f32.mxu0 0.0
    %v9191 = vand.u32 %v5555, 4294901760
    %9192 = vmatmul.mubr.f32.gmra.mrb[0].mxu0 %v9191
    %v9193 = vpop.f32.mrb[0].mxu0
    %v9194 = vadd.f32 %v8647, %v9193
    %v9195 = vpop.f32.mrb[0].mxu0
    %9196 = vmatprep.mubr.f32.mxu0 0.0
    %v9197 = vand.u32 %v5558, 4294901760
    %9198 = vmatmul.mubr.f32.gmra.mrb[0].mxu0 %v9197
    %v9199 = vpop.f32.mrb[0].mxu0
    %v9200 = vadd.f32 %v8653, %v9199
    %v9201 = vpop.f32.mrb[0].mxu0
    %9202 = vmatprep.mubr.f32.mxu0 0.0
    %v9203 = vand.u32 %v5561, 4294901760
    %9204 = vmatmul.mubr.f32.gmra.mrb[0].mxu0 %v9203
    %v9205 = vpop.f32.mrb[0].mxu0
    %v9206 = vadd.f32 %v8659, %v9205
    %v9207 = vpop.f32.mrb[0].mxu0
    %9208 = vmatprep.mubr.f32.mxu0 0.0
    %v9209 = vand.u32 %v5564, 4294901760
    %9210 = vmatmul.mubr.f32.gmra.mrb[0].mxu0 %v9209
    %v9211 = vpop.f32.mrb[0].mxu0
    %v9212 = vadd.f32 %v8665, %v9211
    %v9213 = vpop.f32.mrb[0].mxu0
    %9214 = vmatprep.mubr.f32.mxu0 0.0
    %v9215 = vand.u32 %v5567, 4294901760
    %9216 = vmatmul.mubr.f32.gmra.mrb[0].mxu0 %v9215
    %v9217 = vpop.f32.mrb[0].mxu0
    %v9218 = vadd.f32 %v8671, %v9217
    %v9219 = vpop.f32.mrb[0].mxu0
    %9220 = vmatprep.mubr.f32.mxu0 0.0
    %v9221 = vand.u32 %v5570, 4294901760
    %9222 = vmatmul.mubr.f32.gmra.mrb[0].mxu0 %v9221
    %v9223 = vpop.f32.mrb[0].mxu0
    %v9224 = vadd.f32 %v8677, %v9223
    %v9225 = vpop.f32.mrb[0].mxu0
    %9226 = vmatprep.mubr.f32.mxu0 0.0
    %v9227 = vand.u32 %v5573, 4294901760
    %9228 = vmatmul.mubr.f32.gmra.mrb[0].mxu0 %v9227
    %v9229 = vpop.f32.mrb[0].mxu0
    %v9230 = vadd.f32 %v8683, %v9229
    %v9231 = vpop.f32.mrb[0].mxu0
    %9232 = vmatprep.mubr.f32.mxu0 0.0
    %v9233 = vand.u32 %v5576, 4294901760
    %9234 = vmatmul.mubr.f32.gmra.mrb[0].mxu0 %v9233
    %v9235 = vpop.f32.mrb[0].mxu0
    %v9236 = vadd.f32 %v8689, %v9235
    %v9237 = vpop.f32.mrb[0].mxu0
    %9238 = vmatprep.mubr.f32.mxu0 0.0
    %v9239 = vand.u32 %v5579, 4294901760
    %9240 = vmatmul.mubr.f32.gmra.mrb[0].mxu0 %v9239
    %v9241 = vpop.f32.mrb[0].mxu0
    %v9242 = vadd.f32 %v8695, %v9241
    %v9243 = vpop.f32.mrb[0].mxu0
    %9244 = vmatprep.mubr.f32.mxu0 0.0
    %v9245 = vand.u32 %v5582, 4294901760
    %9246 = vmatmul.mubr.f32.gmra.mrb[0].mxu0 %v9245
    %v9247 = vpop.f32.mrb[0].mxu0
    %v9248 = vadd.f32 %v8701, %v9247
    %v9249 = vpop.f32.mrb[0].mxu0
    %9250 = vmatprep.mubr.f32.mxu0 0.0
    %v9251 = vand.u32 %v5585, 4294901760
    %9252 = vmatmul.mubr.f32.gmra.mrb[0].mxu0 %v9251
    %v9253 = vpop.f32.mrb[0].mxu0
    %v9254 = vadd.f32 %v8707, %v9253
    %v9255 = vpop.f32.mrb[0].mxu0
    %9256 = vmatprep.mubr.f32.mxu0 0.0
    %v9257 = vand.u32 %v5588, 4294901760
    %9258 = vmatmul.mubr.f32.gmra.mrb[0].mxu0 %v9257
    %v9259 = vpop.f32.mrb[0].mxu0
    %v9260 = vadd.f32 %v8713, %v9259
    %v9261 = vpop.f32.mrb[0].mxu0
    %9262 = vmatprep.mubr.f32.mxu0 0.0
    %v9263 = vand.u32 %v5591, 4294901760
    %9264 = vmatmul.mubr.f32.gmra.mrb[0].mxu0 %v9263
    %v9265 = vpop.f32.mrb[0].mxu0
    %v9266 = vadd.f32 %v8719, %v9265
    %v9267 = vpop.f32.mrb[0].mxu0
    %9268 = vmatprep.mubr.f32.mxu0 0.0
    %v9269 = vand.u32 %v5594, 4294901760
    %9270 = vmatmul.mubr.f32.gmra.mrb[0].mxu0 %v9269
    %v9271 = vpop.f32.mrb[0].mxu0
    %v9272 = vadd.f32 %v8725, %v9271
    %v9273 = vpop.f32.mrb[0].mxu0
    %9274 = vmatprep.mubr.f32.mxu0 0.0
    %v9275 = vand.u32 %v5597, 4294901760
    %9276 = vmatmul.mubr.f32.gmra.mrb[0].mxu0 %v9275
    %v9277 = vpop.f32.mrb[0].mxu0
    %v9278 = vadd.f32 %v8731, %v9277
    %v9279 = vpop.f32.mrb[0].mxu0
    %9280 = vmatprep.mubr.f32.mxu0 0.0
    %v9281 = vand.u32 %v5600, 4294901760
    %9282 = vmatmul.mubr.f32.gmra.mrb[0].mxu0 %v9281
    %v9283 = vpop.f32.mrb[0].mxu0
    %v9284 = vadd.f32 %v8737, %v9283
    %v9285 = vpop.f32.mrb[0].mxu0
    %9286 = vmatprep.mubr.f32.mxu0 0.0
    %v9287 = vand.u32 %v5603, 4294901760
    %9288 = vmatmul.mubr.f32.gmra.mrb[0].mxu0 %v9287
    %v9289 = vpop.f32.mrb[0].mxu0
    %v9290 = vadd.f32 %v8743, %v9289
    %v9291 = vpop.f32.mrb[0].mxu0
    %9292 = vmatprep.mubr.f32.mxu0 0.0
    %v9293 = vand.u32 %v5606, 4294901760
    %9294 = vmatmul.mubr.f32.gmra.mrb[0].mxu0 %v9293
    %v9295 = vpop.f32.mrb[0].mxu0
    %v9296 = vadd.f32 %v8749, %v9295
    %v9297 = vpop.f32.mrb[0].mxu0
    %9298 = vmatprep.mubr.f32.mxu0 0.0
    %v9299 = vand.u32 %v5609, 4294901760
    %9300 = vmatmul.mubr.f32.gmra.mrb[0].mxu0 %v9299
    %v9301 = vpop.f32.mrb[0].mxu0
    %v9302 = vadd.f32 %v8755, %v9301
    %v9303 = vpop.f32.mrb[0].mxu0
    %9304 = vmatprep.mubr.f32.mxu0 0.0
    %v9305 = vand.u32 %v5612, 4294901760
    %9306 = vmatmul.mubr.f32.gmra.mrb[0].mxu0 %v9305
    %v9307 = vpop.f32.mrb[0].mxu0
    %v9308 = vadd.f32 %v8761, %v9307
    %v9309 = vpop.f32.mrb[0].mxu0
    %9310 = vmatprep.mubr.f32.mxu0 0.0
    %v9311 = vand.u32 %v5615, 4294901760
    %9312 = vmatmul.mubr.f32.gmra.mrb[0].mxu0 %v9311
    %v9313 = vpop.f32.mrb[0].mxu0
    %v9314 = vadd.f32 %v8767, %v9313
    %v9315 = vpop.f32.mrb[0].mxu0
    %9316 = vmatprep.mubr.f32.mxu0 0.0
    %v9317 = vand.u32 %v5618, 4294901760
    %9318 = vmatmul.mubr.f32.gmra.mrb[0].mxu0 %v9317
    %v9319 = vpop.f32.mrb[0].mxu0
    %v9320 = vadd.f32 %v8773, %v9319
    %v9321 = vpop.f32.mrb[0].mxu0
    %9322 = vmatprep.mubr.f32.mxu0 0.0
    %v9323 = vand.u32 %v5621, 4294901760
    %9324 = vmatmul.mubr.f32.gmra.mrb[0].mxu0 %v9323
    %v9325 = vpop.f32.mrb[0].mxu0
    %v9326 = vadd.f32 %v8779, %v9325
    %v9327 = vpop.f32.mrb[0].mxu0
    %9328 = vmatprep.mubr.f32.mxu0 0.0
    %v9329 = vand.u32 %v5624, 4294901760
    %9330 = vmatmul.mubr.f32.gmra.mrb[0].mxu0 %v9329
    %v9331 = vpop.f32.mrb[0].mxu0
    %v9332 = vadd.f32 %v8785, %v9331
    %v9333 = vpop.f32.mrb[0].mxu0
    %9334 = vmatprep.mubr.f32.mxu0 0.0
    %v9335 = vand.u32 %v5627, 4294901760
    %9336 = vmatmul.mubr.f32.gmra.mrb[0].mxu0 %v9335
    %v9337 = vpop.f32.mrb[0].mxu0
    %v9338 = vadd.f32 %v8791, %v9337
    %v9339 = vpop.f32.mrb[0].mxu0
    %9340 = vmatprep.mubr.f32.mxu0 0.0
    %v9341 = vand.u32 %v5630, 4294901760
    %9342 = vmatmul.mubr.f32.gmra.mrb[0].mxu0 %v9341
    %v9343 = vpop.f32.mrb[0].mxu0
    %v9344 = vadd.f32 %v8797, %v9343
    %v9345 = vpop.f32.mrb[0].mxu0
    %9346 = vmatprep.mubr.f32.mxu0 0.0
    %v9347 = vand.u32 %v5633, 4294901760
    %9348 = vmatmul.mubr.f32.gmra.mrb[0].mxu0 %v9347
    %v9349 = vpop.f32.mrb[0].mxu0
    %v9350 = vadd.f32 %v8803, %v9349
    %v9351 = vpop.f32.mrb[0].mxu0
    %9352 = vmatprep.mubr.f32.mxu0 0.0
    %v9353 = vand.u32 %v5636, 4294901760
    %9354 = vmatmul.mubr.f32.gmra.mrb[0].mxu0 %v9353
    %v9355 = vpop.f32.mrb[0].mxu0
    %v9356 = vadd.f32 %v8809, %v9355
    %v9357 = vpop.f32.mrb[0].mxu0
    %9358 = vmatprep.mubr.f32.mxu0 0.0
    %v9359 = vand.u32 %v5639, 4294901760
    %9360 = vmatmul.mubr.f32.gmra.mrb[0].mxu0 %v9359
    %v9361 = vpop.f32.mrb[0].mxu0
    %v9362 = vadd.f32 %v8815, %v9361
    %v9363 = vpop.f32.mrb[0].mxu0
    %9364 = vmatprep.mubr.f32.mxu0 0.0
    %v9365 = vand.u32 %v5642, 4294901760
    %9366 = vmatmul.mubr.f32.gmra.mrb[0].mxu0 %v9365
    %v9367 = vpop.f32.mrb[0].mxu0
    %v9368 = vadd.f32 %v8821, %v9367
    %v9369 = vpop.f32.mrb[0].mxu0
    %9370 = vmatprep.mubr.f32.mxu0 0.0
    %v9371 = vand.u32 %v5645, 4294901760
    %9372 = vmatmul.mubr.f32.gmra.mrb[0].mxu0 %v9371
    %v9373 = vpop.f32.mrb[0].mxu0
    %v9374 = vadd.f32 %v8827, %v9373
    %v9375 = vpop.f32.mrb[0].mxu0
    %9376 = vmatprep.mubr.f32.mxu0 0.0
    %v9377 = vand.u32 %v5648, 4294901760
    %9378 = vmatmul.mubr.f32.gmra.mrb[0].mxu0 %v9377
    %v9379 = vpop.f32.mrb[0].mxu0
    %v9380 = vadd.f32 %v8833, %v9379
    %v9381 = vpop.f32.mrb[0].mxu0
    %9382 = vmatprep.mubr.f32.mxu0 0.0
    %v9383 = vand.u32 %v5651, 4294901760
    %9384 = vmatmul.mubr.f32.gmra.mrb[0].mxu0 %v9383
    %v9385 = vpop.f32.mrb[0].mxu0
    %v9386 = vadd.f32 %v8839, %v9385
    %v9387 = vpop.f32.mrb[0].mxu0
    %9388 = vmatprep.mubr.f32.mxu0 0.0
    %v9389 = vand.u32 %v5654, 4294901760
    %9390 = vmatmul.mubr.f32.gmra.mrb[0].mxu0 %v9389
    %v9391 = vpop.f32.mrb[0].mxu0
    %v9392 = vadd.f32 %v8845, %v9391
    %v9393 = vpop.f32.mrb[0].mxu0
    %9394 = vmatprep.mubr.f32.mxu0 0.0
    %v9395 = vand.u32 %v5657, 4294901760
    %9396 = vmatmul.mubr.f32.gmra.mrb[0].mxu0 %v9395
    %v9397 = vpop.f32.mrb[0].mxu0
    %v9398 = vadd.f32 %v8851, %v9397
    %v9399 = vpop.f32.mrb[0].mxu0
    %9400 = vmatprep.mubr.f32.mxu0 0.0
    %v9401 = vand.u32 %v5660, 4294901760
    %9402 = vmatmul.mubr.f32.gmra.mrb[0].mxu0 %v9401
    %v9403 = vpop.f32.mrb[0].mxu0
    %v9404 = vadd.f32 %v8857, %v9403
    %v9405 = vpop.f32.mrb[0].mxu0
    %9406 = vmatprep.mubr.f32.mxu0 0.0
    %v9407 = vand.u32 %v5663, 4294901760
    %9408 = vmatmul.mubr.f32.gmra.mrb[0].mxu0 %v9407
    %v9409 = vpop.f32.mrb[0].mxu0
    %v9410 = vadd.f32 %v8863, %v9409
    %v9411 = vpop.f32.mrb[0].mxu0
    %9412 = vmatprep.mubr.f32.mxu0 0.0
    %v9413 = vand.u32 %v5666, 4294901760
    %9414 = vmatmul.mubr.f32.gmra.mrb[0].mxu0 %v9413
    %v9415 = vpop.f32.mrb[0].mxu0
    %v9416 = vadd.f32 %v8869, %v9415
    %v9417 = vpop.f32.mrb[0].mxu0
    %9418 = vmatprep.mubr.f32.mxu0 0.0
    %v9419 = vand.u32 %v5669, 4294901760
    %9420 = vmatmul.mubr.f32.gmra.mrb[0].mxu0 %v9419
    %v9421 = vpop.f32.mrb[0].mxu0
    %v9422 = vadd.f32 %v8875, %v9421
    %v9423 = vpop.f32.mrb[0].mxu0
    %9424 = vmatprep.mubr.f32.mxu0 0.0
    %v9425 = vand.u32 %v5672, 4294901760
    %9426 = vmatmul.mubr.f32.gmra.mrb[0].mxu0 %v9425
    %v9427 = vpop.f32.mrb[0].mxu0
    %v9428 = vadd.f32 %v8881, %v9427
    %v9429 = vpop.f32.mrb[0].mxu0
    %9430 = vmatprep.mubr.f32.mxu0 0.0
    %v9431 = vand.u32 %v5675, 4294901760
    %9432 = vmatmul.mubr.f32.gmra.mrb[0].mxu0 %v9431
    %v9433 = vpop.f32.mrb[0].mxu0
    %v9434 = vadd.f32 %v8887, %v9433
    %v9435 = vpop.f32.mrb[0].mxu0
    %9436 = vmatprep.mubr.f32.mxu0 0.0
    %v9437 = vand.u32 %v5678, 4294901760
    %9438 = vmatmul.mubr.f32.gmra.mrb[0].mxu0 %v9437
    %v9439 = vpop.f32.mrb[0].mxu0
    %v9440 = vadd.f32 %v8893, %v9439
    %v9441 = vpop.f32.mrb[0].mxu0
    %9442 = vmatprep.mubr.f32.mxu0 0.0
    %v9443 = vand.u32 %v5681, 4294901760
    %9444 = vmatmul.mubr.f32.gmra.mrb[0].mxu0 %v9443
    %v9445 = vpop.f32.mrb[0].mxu0
    %v9446 = vadd.f32 %v8899, %v9445
    %v9447 = vpop.f32.mrb[0].mxu0
    %9448 = vmatprep.mubr.f32.mxu0 0.0
    %v9449 = vand.u32 %v5684, 4294901760
    %9450 = vmatmul.mubr.f32.gmra.mrb[0].mxu0 %v9449
    %v9451 = vpop.f32.mrb[0].mxu0
    %v9452 = vadd.f32 %v8905, %v9451
    %v9453 = vpop.f32.mrb[0].mxu0
    %9454 = vmatprep.mubr.f32.mxu0 0.0
    %v9455 = vand.u32 %v5687, 4294901760
    %9456 = vmatmul.mubr.f32.gmra.mrb[0].mxu0 %v9455
    %v9457 = vpop.f32.mrb[0].mxu0
    %v9458 = vadd.f32 %v8911, %v9457
    %v9459 = vpop.f32.mrb[0].mxu0
    %9460 = vmatprep.mubr.f32.mxu0 0.0
    %v9461 = vand.u32 %v5690, 4294901760
    %9462 = vmatmul.mubr.f32.gmra.mrb[0].mxu0 %v9461
    %v9463 = vpop.f32.mrb[0].mxu0
    %v9464 = vadd.f32 %v8917, %v9463
    %v9465 = vpop.f32.mrb[0].mxu0
    %9466 = vmatprep.mubr.f32.mxu0 0.0
    %v9467 = vand.u32 %v5693, 4294901760
    %9468 = vmatmul.mubr.f32.gmra.mrb[0].mxu0 %v9467
    %v9469 = vpop.f32.mrb[0].mxu0
    %v9470 = vadd.f32 %v8923, %v9469
    %v9471 = vpop.f32.mrb[0].mxu0
    %9472 = vmatprep.mubr.f32.mxu0 0.0
    %v9473 = vand.u32 %v5696, 4294901760
    %9474 = vmatmul.mubr.f32.gmra.mrb[0].mxu0 %v9473
    %v9475 = vpop.f32.mrb[0].mxu0
    %v9476 = vadd.f32 %v8929, %v9475
    %v9477 = vpop.f32.mrb[0].mxu0
    %9478 = vmatprep.mubr.f32.mxu0 0.0
    %v9479 = vand.u32 %v5699, 4294901760
    %9480 = vmatmul.mubr.f32.gmra.mrb[0].mxu0 %v9479
    %v9481 = vpop.f32.mrb[0].mxu0
    %v9482 = vadd.f32 %v8935, %v9481
    %v9483 = vpop.f32.mrb[0].mxu0
    %9484 = vmatprep.mubr.f32.mxu0 0.0
    %v9485 = vand.u32 %v5702, 4294901760
    %9486 = vmatmul.mubr.f32.gmra.mrb[0].mxu0 %v9485
    %v9487 = vpop.f32.mrb[0].mxu0
    %v9488 = vadd.f32 %v8941, %v9487
    %v9489 = vpop.f32.mrb[0].mxu0
    %9490 = vmatprep.mubr.f32.mxu0 0.0
    %v9491 = vand.u32 %v5705, 4294901760
    %9492 = vmatmul.mubr.f32.gmra.mrb[0].mxu0 %v9491
    %v9493 = vpop.f32.mrb[0].mxu0
    %v9494 = vadd.f32 %v8947, %v9493
    %v9495 = vpop.f32.mrb[0].mxu0
    %9496 = vmatprep.mubr.f32.mxu0 0.0
    %v9497 = vand.u32 %v5708, 4294901760
    %9498 = vmatmul.mubr.f32.gmra.mrb[0].mxu0 %v9497
    %v9499 = vpop.f32.mrb[0].mxu0
    %v9500 = vadd.f32 %v8953, %v9499
    %v9501 = vpop.f32.mrb[0].mxu0
    %9502 = vmatprep.mubr.f32.mxu0 0.0
    %v9503 = vand.u32 %v5711, 4294901760
    %9504 = vmatmul.mubr.f32.gmra.mrb[0].mxu0 %v9503
    %v9505 = vpop.f32.mrb[0].mxu0
    %v9506 = vadd.f32 %v8959, %v9505
    %v9507 = vpop.f32.mrb[0].mxu0
    %9508 = vmatprep.mubr.f32.mxu0 0.0
    %v9509 = vand.u32 %v5714, 4294901760
    %9510 = vmatmul.mubr.f32.gmra.mrb[0].mxu0 %v9509
    %v9511 = vpop.f32.mrb[0].mxu0
    %v9512 = vadd.f32 %v8965, %v9511
    %v9513 = vpop.f32.mrb[0].mxu0
    %9514 = vmatprep.mubr.f32.mxu0 0.0
    %v9515 = vand.u32 %v5717, 4294901760
    %9516 = vmatmul.mubr.f32.gmra.mrb[0].mxu0 %v9515
    %v9517 = vpop.f32.mrb[0].mxu0
    %v9518 = vadd.f32 %v8971, %v9517
    %v9519 = vpop.f32.mrb[0].mxu0
    %9520 = vmatprep.mubr.f32.mxu0 0.0
    %v9521 = vand.u32 %v5720, 4294901760
    %9522 = vmatmul.mubr.f32.gmra.mrb[0].mxu0 %v9521
    %v9523 = vpop.f32.mrb[0].mxu0
    %v9524 = vadd.f32 %v8977, %v9523
    %v9525 = vpop.f32.mrb[0].mxu0
    %9526 = vmatprep.mubr.f32.mxu0 0.0
    %v9527 = vand.u32 %v5723, 4294901760
    %9528 = vmatmul.mubr.f32.gmra.mrb[0].mxu0 %v9527
    %v9529 = vpop.f32.mrb[0].mxu0
    %v9530 = vadd.f32 %v8983, %v9529
    %v9531 = vpop.f32.mrb[0].mxu0
    %9532 = vmatprep.mubr.f32.mxu0 0.0
    %v9533 = vand.u32 %v5726, 4294901760
    %9534 = vmatmul.mubr.f32.gmra.mrb[0].mxu0 %v9533
    %v9535 = vpop.f32.mrb[0].mxu0
    %v9536 = vadd.f32 %v8989, %v9535
    %v9537 = vpop.f32.mrb[0].mxu0
    %9538 = vmatprep.mubr.f32.mxu0 0.0
    %v9539 = vand.u32 %v5729, 4294901760
    %9540 = vmatmul.mubr.f32.gmra.mrb[0].mxu0 %v9539
    %v9541 = vpop.f32.mrb[0].mxu0
    %v9542 = vadd.f32 %v8995, %v9541
    %v9543 = vpop.f32.mrb[0].mxu0
    %9544 = vmatprep.mubr.f32.mxu0 0.0
    %v9545 = vand.u32 %v5732, 4294901760
    %9546 = vmatmul.mubr.f32.gmra.mrb[0].mxu0 %v9545
    %v9547 = vpop.f32.mrb[0].mxu0
    %v9548 = vadd.f32 %v9001, %v9547
    %v9549 = vpop.f32.mrb[0].mxu0
    %9550 = vmatprep.mubr.f32.mxu0 0.0
    %v9551 = vand.u32 %v5735, 4294901760
    %9552 = vmatmul.mubr.f32.gmra.mrb[0].mxu0 %v9551
    %v9553 = vpop.f32.mrb[0].mxu0
    %v9554 = vadd.f32 %v9007, %v9553
    %v9555 = vpop.f32.mrb[0].mxu0
    %9556 = vmatprep.mubr.f32.mxu0 0.0
    %v9557 = vand.u32 %v5738, 4294901760
    %9558 = vmatmul.mubr.f32.gmra.mrb[0].mxu0 %v9557
    %v9559 = vpop.f32.mrb[0].mxu0
    %v9560 = vadd.f32 %v9013, %v9559
    %v9561 = vpop.f32.mrb[0].mxu0
    %9562 = vmatprep.mubr.f32.mxu0 0.0
    %v9563 = vand.u32 %v5741, 4294901760
    %9564 = vmatmul.mubr.f32.gmra.mrb[0].mxu0 %v9563
    %v9565 = vpop.f32.mrb[0].mxu0
    %v9566 = vadd.f32 %v9019, %v9565
    %v9567 = vpop.f32.mrb[0].mxu0
    %9568 = vmatprep.mubr.f32.mxu0 0.0
    %v9569 = vand.u32 %v5744, 4294901760
    %9570 = vmatmul.mubr.f32.gmra.mrb[0].mxu0 %v9569
    %v9571 = vpop.f32.mrb[0].mxu0
    %v9572 = vadd.f32 %v9025, %v9571
    %v9573 = vpop.f32.mrb[0].mxu0
    %9574 = vmatprep.mubr.f32.mxu0 0.0
    %v9575 = vand.u32 %v5747, 4294901760
    %9576 = vmatmul.mubr.f32.gmra.mrb[0].mxu0 %v9575
    %v9577 = vpop.f32.mrb[0].mxu0
    %v9578 = vadd.f32 %v9031, %v9577
    %v9579 = vpop.f32.mrb[0].mxu0
    %9580 = vmatprep.mubr.f32.mxu0 0.0
    %v9581 = vand.u32 %v5750, 4294901760
    %9582 = vmatmul.mubr.f32.gmra.mrb[0].mxu0 %v9581
    %v9583 = vpop.f32.mrb[0].mxu0
    %v9584 = vadd.f32 %v9037, %v9583
    %v9585 = vpop.f32.mrb[0].mxu0
    %9586 = vmatprep.mubr.f32.mxu0 0.0
    %v9587 = vand.u32 %v5753, 4294901760
    %9588 = vmatmul.mubr.f32.gmra.mrb[0].mxu0 %v9587
    %v9589 = vpop.f32.mrb[0].mxu0
    %v9590 = vadd.f32 %v9043, %v9589
    %v9591 = vpop.f32.mrb[0].mxu0
    %9592 = vmatprep.mubr.f32.mxu0 0.0
    %v9593 = vand.u32 %v5756, 4294901760
    %9594 = vmatmul.mubr.f32.gmra.mrb[0].mxu0 %v9593
    %v9595 = vpop.f32.mrb[0].mxu0
    %v9596 = vadd.f32 %v9049, %v9595
    %v9597 = vpop.f32.mrb[0].mxu0
    %9598 = vmatprep.mubr.f32.mxu0 0.0
    %v9599 = vand.u32 %v5759, 4294901760
    %9600 = vmatmul.mubr.f32.gmra.mrb[0].mxu0 %v9599
    %v9601 = vpop.f32.mrb[0].mxu0
    %v9602 = vadd.f32 %v9055, %v9601
    %v9603 = vpop.f32.mrb[0].mxu0
    %9604 = vmatprep.mubr.f32.mxu0 0.0
    %v9605 = vand.u32 %v5762, 4294901760
    %9606 = vmatmul.mubr.f32.gmra.mrb[0].mxu0 %v9605
    %v9607 = vpop.f32.mrb[0].mxu0
    %v9608 = vadd.f32 %v9061, %v9607
    %v9609 = vpop.f32.mrb[0].mxu0
    %9610 = vmatprep.mubr.f32.mxu0 0.0
    %v9611 = vand.u32 %v5765, 4294901760
    %9612 = vmatmul.mubr.f32.gmra.mrb[0].mxu0 %v9611
    %v9613 = vpop.f32.mrb[0].mxu0
    %v9614 = vadd.f32 %v9067, %v9613
    %v9615 = vpop.f32.mrb[0].mxu0
    %9616 = vmatprep.mubr.f32.mxu0 0.0
    %v9617 = vand.u32 %v5768, 4294901760
    %9618 = vmatmul.mubr.f32.gmra.mrb[0].mxu0 %v9617
    %v9619 = vpop.f32.mrb[0].mxu0
    %v9620 = vadd.f32 %v9073, %v9619
    %v9621 = vpop.f32.mrb[0].mxu0
    %9622 = vmatprep.mubr.f32.mxu0 0.0
    %v9623 = vand.u32 %v5771, 4294901760
    %9624 = vmatmul.mubr.f32.gmra.mrb[0].mxu0 %v9623
    %v9625 = vpop.f32.mrb[0].mxu0
    %v9626 = vadd.f32 %v9079, %v9625
    %v9627 = vpop.f32.mrb[0].mxu0
    %9628 = vdwg.mxu0
    %v9629 = vmul.f32 %v9152, %v9152
    %v9630 = vmul.f32 %v9158, %v9158
    %v9631 = vmul.f32 %v9164, %v9164
    %v9632 = vmul.f32 %v9170, %v9170
    %v9633 = vmul.f32 %v9176, %v9176
    %v9634 = vmul.f32 %v9182, %v9182
    %v9635 = vmul.f32 %v9188, %v9188
    %v9636 = vmul.f32 %v9194, %v9194
    %v9637 = vmul.f32 %v9200, %v9200
    %v9638 = vmul.f32 %v9206, %v9206
    %v9639 = vmul.f32 %v9212, %v9212
    %v9640 = vmul.f32 %v9218, %v9218
    %v9641 = vmul.f32 %v9224, %v9224
    %v9642 = vmul.f32 %v9230, %v9230
    %v9643 = vmul.f32 %v9236, %v9236
    %v9644 = vmul.f32 %v9242, %v9242
    %v9645 = vmul.f32 %v9248, %v9248
    %v9646 = vmul.f32 %v9254, %v9254
    %v9647 = vmul.f32 %v9260, %v9260
    %v9648 = vmul.f32 %v9266, %v9266
    %v9649 = vmul.f32 %v9272, %v9272
    %v9650 = vmul.f32 %v9278, %v9278
    %v9651 = vmul.f32 %v9284, %v9284
    %v9652 = vmul.f32 %v9290, %v9290
    %v9653 = vmul.f32 %v9296, %v9296
    %v9654 = vmul.f32 %v9302, %v9302
    %v9655 = vmul.f32 %v9308, %v9308
    %v9656 = vmul.f32 %v9314, %v9314
    %v9657 = vmul.f32 %v9320, %v9320
    %v9658 = vmul.f32 %v9326, %v9326
    %v9659 = vmul.f32 %v9332, %v9332
    %v9660 = vmul.f32 %v9338, %v9338
    %v9661 = vmul.f32 %v9152, %v9248
    %v9662 = vmul.f32 %v9158, %v9254
    %v9663 = vmul.f32 %v9164, %v9260
    %v9664 = vmul.f32 %v9170, %v9266
    %v9665 = vmul.f32 %v9176, %v9272
    %v9666 = vmul.f32 %v9182, %v9278
    %v9667 = vmul.f32 %v9188, %v9284
    %v9668 = vmul.f32 %v9194, %v9290
    %v9669 = vmul.f32 %v9200, %v9296
    %v9670 = vmul.f32 %v9206, %v9302
    %v9671 = vmul.f32 %v9212, %v9308
    %v9672 = vmul.f32 %v9218, %v9314
    %v9673 = vmul.f32 %v9224, %v9320
    %v9674 = vmul.f32 %v9230, %v9326
    %v9675 = vmul.f32 %v9236, %v9332
    %v9676 = vmul.f32 %v9242, %v9338
    %v9677 = vsub.f32 %v9344, %v9629
    %v9678 = vsub.f32 %v9350, %v9630
    %v9679 = vsub.f32 %v9356, %v9631
    %v9680 = vsub.f32 %v9362, %v9632
    %v9681 = vsub.f32 %v9368, %v9633
    %v9682 = vsub.f32 %v9374, %v9634
    %v9683 = vsub.f32 %v9380, %v9635
    %v9684 = vsub.f32 %v9386, %v9636
    %v9685 = vsub.f32 %v9392, %v9637
    %v9686 = vsub.f32 %v9398, %v9638
    %v9687 = vsub.f32 %v9404, %v9639
    %v9688 = vsub.f32 %v9410, %v9640
    %v9689 = vsub.f32 %v9416, %v9641
    %v9690 = vsub.f32 %v9422, %v9642
    %v9691 = vsub.f32 %v9428, %v9643
    %v9692 = vsub.f32 %v9434, %v9644
    %v9693 = vsub.f32 %v9440, %v9645
    %v9694 = vsub.f32 %v9446, %v9646
    %v9695 = vsub.f32 %v9452, %v9647
    %v9696 = vsub.f32 %v9458, %v9648
    %v9697 = vsub.f32 %v9464, %v9649
    %v9698 = vsub.f32 %v9470, %v9650
    %v9699 = vsub.f32 %v9476, %v9651
    %v9700 = vsub.f32 %v9482, %v9652
    %v9701 = vsub.f32 %v9488, %v9653
    %v9702 = vsub.f32 %v9494, %v9654
    %v9703 = vsub.f32 %v9500, %v9655
    %v9704 = vsub.f32 %v9506, %v9656
    %v9705 = vsub.f32 %v9512, %v9657
    %v9706 = vsub.f32 %v9518, %v9658
    %v9707 = vsub.f32 %v9524, %v9659
    %v9708 = vsub.f32 %v9530, %v9660
    %v9709 = vsub.f32 %v9536, %v9661
    %v9710 = vsub.f32 %v9542, %v9662
    %v9711 = vsub.f32 %v9548, %v9663
    %v9712 = vsub.f32 %v9554, %v9664
    %v9713 = vsub.f32 %v9560, %v9665
    %v9714 = vsub.f32 %v9566, %v9666
    %v9715 = vsub.f32 %v9572, %v9667
    %v9716 = vsub.f32 %v9578, %v9668
    %v9717 = vsub.f32 %v9584, %v9669
    %v9718 = vsub.f32 %v9590, %v9670
    %v9719 = vsub.f32 %v9596, %v9671
    %v9720 = vsub.f32 %v9602, %v9672
    %v9721 = vsub.f32 %v9608, %v9673
    %v9722 = vsub.f32 %v9614, %v9674
    %v9723 = vsub.f32 %v9620, %v9675
    %v9724 = vsub.f32 %v9626, %v9676
    %v9725 = vmul.f32 %v9661, 2.0
    %v9726 = vmul.f32 %v9662, 2.0
    %v9727 = vmul.f32 %v9663, 2.0
    %v9728 = vmul.f32 %v9664, 2.0
    %v9729 = vmul.f32 %v9665, 2.0
    %v9730 = vmul.f32 %v9666, 2.0
    %v9731 = vmul.f32 %v9667, 2.0
    %v9732 = vmul.f32 %v9668, 2.0
    %v9733 = vmul.f32 %v9669, 2.0
    %v9734 = vmul.f32 %v9670, 2.0
    %v9735 = vmul.f32 %v9671, 2.0
    %v9736 = vmul.f32 %v9672, 2.0
    %v9737 = vmul.f32 %v9673, 2.0
    %v9738 = vmul.f32 %v9674, 2.0
    %v9739 = vmul.f32 %v9675, 2.0
    %v9740 = vmul.f32 %v9676, 2.0
    %v9741 = vadd.f32 %v9725, 0.0001
    %v9742 = vadd.f32 %v9726, 0.0001
    %v9743 = vadd.f32 %v9727, 0.0001
    %v9744 = vadd.f32 %v9728, 0.0001
    %v9745 = vadd.f32 %v9729, 0.0001
    %v9746 = vadd.f32 %v9730, 0.0001
    %v9747 = vadd.f32 %v9731, 0.0001
    %v9748 = vadd.f32 %v9732, 0.0001
    %v9749 = vadd.f32 %v9733, 0.0001
    %v9750 = vadd.f32 %v9734, 0.0001
    %v9751 = vadd.f32 %v9735, 0.0001
    %v9752 = vadd.f32 %v9736, 0.0001
    %v9753 = vadd.f32 %v9737, 0.0001
    %v9754 = vadd.f32 %v9738, 0.0001
    %v9755 = vadd.f32 %v9739, 0.0001
    %v9756 = vadd.f32 %v9740, 0.0001
    %v9757 = vmul.f32 %v9709, 2.0
    %v9758 = vmul.f32 %v9710, 2.0
    %v9759 = vmul.f32 %v9711, 2.0
    %v9760 = vmul.f32 %v9712, 2.0
    %v9761 = vmul.f32 %v9713, 2.0
    %v9762 = vmul.f32 %v9714, 2.0
    %v9763 = vmul.f32 %v9715, 2.0
    %v9764 = vmul.f32 %v9716, 2.0
    %v9765 = vmul.f32 %v9717, 2.0
    %v9766 = vmul.f32 %v9718, 2.0
    %v9767 = vmul.f32 %v9719, 2.0
    %v9768 = vmul.f32 %v9720, 2.0
    %v9769 = vmul.f32 %v9721, 2.0
    %v9770 = vmul.f32 %v9722, 2.0
    %v9771 = vmul.f32 %v9723, 2.0
    %v9772 = vmul.f32 %v9724, 2.0
    %v9773 = vadd.f32 %v9757, 0.0009
    %v9774 = vadd.f32 %v9758, 0.0009
    %v9775 = vadd.f32 %v9759, 0.0009
    %v9776 = vadd.f32 %v9760, 0.0009
    %v9777 = vadd.f32 %v9761, 0.0009
    %v9778 = vadd.f32 %v9762, 0.0009
    %v9779 = vadd.f32 %v9763, 0.0009
    %v9780 = vadd.f32 %v9764, 0.0009
    %v9781 = vadd.f32 %v9765, 0.0009
    %v9782 = vadd.f32 %v9766, 0.0009
    %v9783 = vadd.f32 %v9767, 0.0009
    %v9784 = vadd.f32 %v9768, 0.0009
    %v9785 = vadd.f32 %v9769, 0.0009
    %v9786 = vadd.f32 %v9770, 0.0009
    %v9787 = vadd.f32 %v9771, 0.0009
    %v9788 = vadd.f32 %v9772, 0.0009
    %v9789 = vmul.f32 %v9741, %v9773
    %v9790 = vmul.f32 %v9742, %v9774
    %v9791 = vmul.f32 %v9743, %v9775
    %v9792 = vmul.f32 %v9744, %v9776
    %v9793 = vmul.f32 %v9745, %v9777
    %v9794 = vmul.f32 %v9746, %v9778
    %v9795 = vmul.f32 %v9747, %v9779
    %v9796 = vmul.f32 %v9748, %v9780
    %v9797 = vmul.f32 %v9749, %v9781
    %v9798 = vmul.f32 %v9750, %v9782
    %v9799 = vmul.f32 %v9751, %v9783
    %v9800 = vmul.f32 %v9752, %v9784
    %v9801 = vmul.f32 %v9753, %v9785
    %v9802 = vmul.f32 %v9754, %v9786
    %v9803 = vmul.f32 %v9755, %v9787
    %v9804 = vmul.f32 %v9756, %v9788
    %v9805 = vadd.f32 %v9629, %v9645
    %v9806 = vadd.f32 %v9630, %v9646
    %v9807 = vadd.f32 %v9631, %v9647
    %v9808 = vadd.f32 %v9632, %v9648
    %v9809 = vadd.f32 %v9633, %v9649
    %v9810 = vadd.f32 %v9634, %v9650
    %v9811 = vadd.f32 %v9635, %v9651
    %v9812 = vadd.f32 %v9636, %v9652
    %v9813 = vadd.f32 %v9637, %v9653
    %v9814 = vadd.f32 %v9638, %v9654
    %v9815 = vadd.f32 %v9639, %v9655
    %v9816 = vadd.f32 %v9640, %v9656
    %v9817 = vadd.f32 %v9641, %v9657
    %v9818 = vadd.f32 %v9642, %v9658
    %v9819 = vadd.f32 %v9643, %v9659
    %v9820 = vadd.f32 %v9644, %v9660
    %v9821 = vadd.f32 %v9805, 0.0001
    %v9822 = vadd.f32 %v9806, 0.0001
    %v9823 = vadd.f32 %v9807, 0.0001
    %v9824 = vadd.f32 %v9808, 0.0001
    %v9825 = vadd.f32 %v9809, 0.0001
    %v9826 = vadd.f32 %v9810, 0.0001
    %v9827 = vadd.f32 %v9811, 0.0001
    %v9828 = vadd.f32 %v9812, 0.0001
    %v9829 = vadd.f32 %v9813, 0.0001
    %v9830 = vadd.f32 %v9814, 0.0001
    %v9831 = vadd.f32 %v9815, 0.0001
    %v9832 = vadd.f32 %v9816, 0.0001
    %v9833 = vadd.f32 %v9817, 0.0001
    %v9834 = vadd.f32 %v9818, 0.0001
    %v9835 = vadd.f32 %v9819, 0.0001
    %v9836 = vadd.f32 %v9820, 0.0001
    %v9837 = vadd.f32 %v9677, %v9693
    %v9838 = vadd.f32 %v9678, %v9694
    %v9839 = vadd.f32 %v9679, %v9695
    %v9840 = vadd.f32 %v9680, %v9696
    %v9841 = vadd.f32 %v9681, %v9697
    %v9842 = vadd.f32 %v9682, %v9698
    %v9843 = vadd.f32 %v9683, %v9699
    %v9844 = vadd.f32 %v9684, %v9700
    %v9845 = vadd.f32 %v9685, %v9701
    %v9846 = vadd.f32 %v9686, %v9702
    %v9847 = vadd.f32 %v9687, %v9703
    %v9848 = vadd.f32 %v9688, %v9704
    %v9849 = vadd.f32 %v9689, %v9705
    %v9850 = vadd.f32 %v9690, %v9706
    %v9851 = vadd.f32 %v9691, %v9707
    %v9852 = vadd.f32 %v9692, %v9708
    %v9853 = vadd.f32 %v9837, 0.0009
    %v9854 = vadd.f32 %v9838, 0.0009
    %v9855 = vadd.f32 %v9839, 0.0009
    %v9856 = vadd.f32 %v9840, 0.0009
    %v9857 = vadd.f32 %v9841, 0.0009
    %v9858 = vadd.f32 %v9842, 0.0009
    %v9859 = vadd.f32 %v9843, 0.0009
    %v9860 = vadd.f32 %v9844, 0.0009
    %v9861 = vadd.f32 %v9845, 0.0009
    %v9862 = vadd.f32 %v9846, 0.0009
    %v9863 = vadd.f32 %v9847, 0.0009
    %v9864 = vadd.f32 %v9848, 0.0009
    %v9865 = vadd.f32 %v9849, 0.0009
    %v9866 = vadd.f32 %v9850, 0.0009
    %v9867 = vadd.f32 %v9851, 0.0009
    %v9868 = vadd.f32 %v9852, 0.0009
    %v9869 = vmul.f32 %v9821, %v9853
    %v9870 = vmul.f32 %v9822, %v9854
    %v9871 = vmul.f32 %v9823, %v9855
    %v9872 = vmul.f32 %v9824, %v9856
    %v9873 = vmul.f32 %v9825, %v9857
    %v9874 = vmul.f32 %v9826, %v9858
    %v9875 = vmul.f32 %v9827, %v9859
    %v9876 = vmul.f32 %v9828, %v9860
    %v9877 = vmul.f32 %v9829, %v9861
    %v9878 = vmul.f32 %v9830, %v9862
    %v9879 = vmul.f32 %v9831, %v9863
    %v9880 = vmul.f32 %v9832, %v9864
    %v9881 = vmul.f32 %v9833, %v9865
    %v9882 = vmul.f32 %v9834, %v9866
    %v9883 = vmul.f32 %v9835, %v9867
    %v9884 = vmul.f32 %v9836, %v9868
    %v9885 = vrcp.pop %v9869
    %v9886 = vrcp.pop %v9870
    %v9887 = vrcp.pop %v9871
    %v9888 = vrcp.pop %v9872
    %v9889 = vrcp.pop %v9873
    %v9890 = vrcp.pop %v9874
    %v9891 = vrcp.pop %v9875
    %v9892 = vrcp.pop %v9876
    %v9893 = vrcp.pop %v9877
    %v9894 = vrcp.pop %v9878
    %v9895 = vrcp.pop %v9879
    %v9896 = vrcp.pop %v9880
    %v9897 = vrcp.pop %v9881
    %v9898 = vrcp.pop %v9882
    %v9899 = vrcp.pop %v9883
    %v9900 = vrcp.pop %v9884
    %v9901 = vmul.f32 %v9789, %v9885
    %v9902 = vmul.f32 %v9790, %v9886
    %v9903 = vmul.f32 %v9791, %v9887
    %v9904 = vmul.f32 %v9792, %v9888
    %v9905 = vmul.f32 %v9793, %v9889
    %v9906 = vmul.f32 %v9794, %v9890
    %v9907 = vmul.f32 %v9795, %v9891
    %v9908 = vmul.f32 %v9796, %v9892
    %v9909 = vmul.f32 %v9797, %v9893
    %v9910 = vmul.f32 %v9798, %v9894
    %v9911 = vmul.f32 %v9799, %v9895
    %v9912 = vmul.f32 %v9800, %v9896
    %v9913 = vmul.f32 %v9801, %v9897
    %v9914 = vmul.f32 %v9802, %v9898
    %v9915 = vmul.f32 %v9803, %v9899
    %v9916 = vmul.f32 %v9804, %v9900
    %v9917 = vsel %vm156, %v9901, 0.0
    %9918 = vadd.xlane.f32.xlu0 %v9917
    %v9919 = vpop.xlane.xlu0 %9918
    %v9920 = vsel %vm156, %v9902, 0.0
    %9921 = vadd.xlane.f32.xlu0 %v9920
    %v9922 = vpop.xlane.xlu0 %9921
    %v9923 = vsel %vm156, %v9903, 0.0
    %9924 = vadd.xlane.f32.xlu0 %v9923
    %v9925 = vpop.xlane.xlu0 %9924
    %v9926 = vsel %vm156, %v9904, 0.0
    %9927 = vadd.xlane.f32.xlu0 %v9926
    %v9928 = vpop.xlane.xlu0 %9927
    %v9929 = vsel %vm156, %v9905, 0.0
    %9930 = vadd.xlane.f32.xlu0 %v9929
    %v9931 = vpop.xlane.xlu0 %9930
    %v9932 = vsel %vm156, %v9906, 0.0
    %9933 = vadd.xlane.f32.xlu0 %v9932
    %v9934 = vpop.xlane.xlu0 %9933
    %v9935 = vsel %vm156, %v9907, 0.0
    %9936 = vadd.xlane.f32.xlu0 %v9935
    %v9937 = vpop.xlane.xlu0 %9936
    %v9938 = vsel %vm156, %v9908, 0.0
    %9939 = vadd.xlane.f32.xlu0 %v9938
    %v9940 = vpop.xlane.xlu0 %9939
    %v9941 = vsel %vm156, %v9909, 0.0
    %9942 = vadd.xlane.f32.xlu0 %v9941
    %v9943 = vpop.xlane.xlu0 %9942
    %v9944 = vsel %vm156, %v9910, 0.0
    %9945 = vadd.xlane.f32.xlu0 %v9944
    %v9946 = vpop.xlane.xlu0 %9945
    %v9947 = vsel %vm156, %v9911, 0.0
    %9948 = vadd.xlane.f32.xlu0 %v9947
    %v9949 = vpop.xlane.xlu0 %9948
    %v9950 = vsel %vm156, %v9912, 0.0
    %9951 = vadd.xlane.f32.xlu0 %v9950
    %v9952 = vpop.xlane.xlu0 %9951
    %v9953 = vsel %vm156, %v9913, 0.0
    %9954 = vadd.xlane.f32.xlu0 %v9953
    %v9955 = vpop.xlane.xlu0 %9954
    %v9956 = vsel %vm156, %v9914, 0.0
    %9957 = vadd.xlane.f32.xlu0 %v9956
    %v9958 = vpop.xlane.xlu0 %9957
    %v9959 = vsel %vm156, %v9915, 0.0
    %9960 = vadd.xlane.f32.xlu0 %v9959
    %v9961 = vpop.xlane.xlu0 %9960
    %v9962 = vsel %vm156, %v9916, 0.0
    %9963 = vadd.xlane.f32.xlu0 %v9962
    %v9964 = vpop.xlane.xlu0 %9963
    %v9981 = vlaneseq
    %v9982 = vand.u32 %v9981, 127
    %v9983 = vlaneseq
    %v9984 = vshrl.u32 %v9983, 7
    %v9985 = vsub.s32 %v9982, %v9984
    %v9986 = vrot.slane %v9919, %v9985
    %v9987 = vadd.s32 %v9982, 4294967288
    %v9988 = vlaneseq
    %v9989 = vshrl.u32 %v9988, 7
    %v9990 = vsub.s32 %v9987, %v9989
    %v9991 = vrot.slane %v9922, %v9990
    %vm9992 = vcmask 130112
    %v9993 = vsel %vm9992, %v9991, %v9986
    %v9994 = vlaneseq
    %v9995 = vshrl.u32 %v9994, 7
    %v9996 = vsub.s32 %v9982, %v9995
    %v9997 = vrot.slane %v9925, %v9996
    %v9998 = vlaneseq
    %v9999 = vshrl.u32 %v9998, 7
    %v10000 = vsub.s32 %v9987, %v9999
    %v10001 = vrot.slane %v9928, %v10000
    %v10002 = vsel %vm9992, %v10001, %v9997
    %v10003 = vlaneseq
    %v10004 = vshrl.u32 %v10003, 7
    %v10005 = vsub.s32 %v9982, %v10004
    %v10006 = vrot.slane %v9931, %v10005
    %v10007 = vlaneseq
    %v10008 = vshrl.u32 %v10007, 7
    %v10009 = vsub.s32 %v9987, %v10008
    %v10010 = vrot.slane %v9934, %v10009
    %v10011 = vsel %vm9992, %v10010, %v10006
    %v10012 = vlaneseq
    %v10013 = vshrl.u32 %v10012, 7
    %v10014 = vsub.s32 %v9982, %v10013
    %v10015 = vrot.slane %v9937, %v10014
    %v10016 = vlaneseq
    %v10017 = vshrl.u32 %v10016, 7
    %v10018 = vsub.s32 %v9987, %v10017
    %v10019 = vrot.slane %v9940, %v10018
    %v10020 = vsel %vm9992, %v10019, %v10015
    %v10021 = vlaneseq
    %v10022 = vshrl.u32 %v10021, 7
    %v10023 = vsub.s32 %v9982, %v10022
    %v10024 = vrot.slane %v9943, %v10023
    %v10025 = vlaneseq
    %v10026 = vshrl.u32 %v10025, 7
    %v10027 = vsub.s32 %v9987, %v10026
    %v10028 = vrot.slane %v9946, %v10027
    %v10029 = vsel %vm9992, %v10028, %v10024
    %v10030 = vlaneseq
    %v10031 = vshrl.u32 %v10030, 7
    %v10032 = vsub.s32 %v9982, %v10031
    %v10033 = vrot.slane %v9949, %v10032
    %v10034 = vlaneseq
    %v10035 = vshrl.u32 %v10034, 7
    %v10036 = vsub.s32 %v9987, %v10035
    %v10037 = vrot.slane %v9952, %v10036
    %v10038 = vsel %vm9992, %v10037, %v10033
    %v10039 = vlaneseq
    %v10040 = vshrl.u32 %v10039, 7
    %v10041 = vsub.s32 %v9982, %v10040
    %v10042 = vrot.slane %v9955, %v10041
    %v10043 = vlaneseq
    %v10044 = vshrl.u32 %v10043, 7
    %v10045 = vsub.s32 %v9987, %v10044
    %v10046 = vrot.slane %v9958, %v10045
    %v10047 = vsel %vm9992, %v10046, %v10042
    %v10048 = vlaneseq
    %v10049 = vshrl.u32 %v10048, 7
    %v10050 = vsub.s32 %v9982, %v10049
    %v10051 = vrot.slane %v9961, %v10050
    %v10052 = vlaneseq
    %v10053 = vshrl.u32 %v10052, 7
    %v10054 = vsub.s32 %v9987, %v10053
    %v10055 = vrot.slane %v9964, %v10054
    %v10056 = vsel %vm9992, %v10055, %v10051
    %vm10057 = vcmask 1041409
    %v10058 = vsel %vm10057, %v10002, %v9993
    %vm10059 = vcmask 1042434
    %v10060 = vsel %vm10059, %v10011, %v10058
    %vm10061 = vcmask 1043459
    %v10062 = vsel %vm10061, %v10020, %v10060
    %vm10063 = vcmask 1044484
    %v10064 = vsel %vm10063, %v10029, %v10062
    %vm10065 = vcmask 1045509
    %v10066 = vsel %vm10065, %v10038, %v10064
    %vm10067 = vcmask 1046534
    %v10068 = vsel %vm10067, %v10047, %v10066
    %vm10069 = vcmask 1047559
    %v10070 = vsel %vm10069, %v10056, %v10068
    %v10072 = vsel %vm156, %v10070, 0.0
    %10073 = vadd.xlane.f32.xlu0 %v10072
    %v10074 = vpop.xlane.xlu0 %10073
    %vm10075 = vcmask 7168
    %10076 = vst.msk [vmem:[%s4] sm:$0xff] %vm10075, %v10074
    // Predicated region
    $region34: #{tpu_custom_call.1} parent=1 // pred_check
      _
    $region35: #{tpu_custom_call.1} parent=1 // pred_check_branch
      %10078 = sbr.rel (0) target = $region37
    $region36: #{tpu_custom_call.1} parent=1 // pred_region
      _
    $region37: #{tpu_custom_call.1} parent=1 // pred_fallthru
      _
    // Predicated region
    $region38: #{tpu_custom_call.1} parent=1 // pred_check
      _
    $region39: #{tpu_custom_call.1} parent=1 // pred_check_branch
      %10080 = sbr.rel (0) target = $region41
    $region40: #{tpu_custom_call.1} parent=1 // pred_region
      _
    $region41: #{tpu_custom_call.1} parent=1 // pred_fallthru
      _
    %10081 = vsyncpa [#allocation3], 1
    %10082 = vsyncpa [#allocation5], 1
    %10083 = vsyncpa [#allocation8], 1

</llo_original>
